<compile_context>
chip_gen: v7x
topology: tpu7x:2x2x1
jax: 0.10.0
libtpu: 0.0.40
codegen_flags: <defaults>
</compile_context>

<pallas_src>
import functools

import jax
import jax.numpy as jnp
from jax.experimental import pallas as pl
from jax.experimental.pallas import tpu as pltpu

LANE = 128

# MXU input dtype.  float32 keeps full numerical fidelity with the PyTorch
# reference; flip to jnp.bfloat16 (per perf review, v5e/v6e/v7x) to halve
# patch/weight VMEM+HBM traffic -- accumulation & epilogue stay float32.
MXU_DTYPE = jnp.float32


# --------------------------------------------------------------------------
# Pallas kernels
# --------------------------------------------------------------------------

def _conv_pool_kernel(a_ref, w_ref, b_ref, o_ref, *, cout):
    """Fused conv (as matmul) + folded-BN bias + ReLU + 2x2/2 maxpool.

    a_ref: (4, tm, K)  im2col patches; leading axis = pool parity group
                       (di*2+dj), row order within a group is (b, ph, pw).
    w_ref: (K, 128)    conv weights (BN folded), Cout zero-padded to 128.
    b_ref: (1, 128)    folded bias, zero-padded to 128.
    o_ref: (tm, cout)  pooled activation at natural channel count.
    """
    w = w_ref[...]
    z = jnp.dot(a_ref[0], w, preferred_element_type=jnp.float32)
    for g in range(1, 4):                        # max over the 2x2 pool window
        z = jnp.maximum(z, jnp.dot(a_ref[g], w,
                                   preferred_element_type=jnp.float32))
    z = jnp.maximum(z + b_ref[...], 0.0)         # bias + ReLU (commute w/ max)
    o_ref[...] = z[:, :cout].astype(o_ref.dtype)


def _fc_head_kernel(x_ref, w3_ref, b3_ref, w4_ref, b4_ref, o_ref, *, num_classes):
    """Fused bin_ip1 (BN folded) + ReLU + ip2."""
    h = jnp.dot(x_ref[...], w3_ref[...], preferred_element_type=jnp.float32)
    h = jnp.maximum(h + b3_ref[...], 0.0)
    o = jnp.dot(h.astype(w4_ref.dtype), w4_ref[...],
                preferred_element_type=jnp.float32) + b4_ref[...]
    o_ref[...] = o[:, :num_classes].astype(o_ref.dtype)


# --------------------------------------------------------------------------
# pallas_call wrappers
# --------------------------------------------------------------------------

def conv_bn_relu_pool(a, w, b, *, cout):
    """a: (4, M, K) parity-grouped patches -> (M, cout) pooled activation."""
    _, M, K = a.shape
    N = w.shape[1]
    # Split M over a small 'parallel' grid when it tiles cleanly (keeps both
    # v7x TensorCores busy); otherwise a single block -- everything fits in
    # VMEM and there is no activation padding or out[:M] slicing either way.
    G = 2 if (M >= 512 and M % 16 == 0) else 1
    tm = M // G
    kernel = functools.partial(_conv_pool_kernel, cout=cout)
    return pl.pallas_call(
        kernel,
        out_shape=jax.ShapeDtypeStruct((M, cout), jnp.float32),
        grid=(G,),
        in_specs=[
            pl.BlockSpec((4, tm, K), lambda i: (0, i, 0)),
            pl.BlockSpec((K, N), lambda i: (0, 0)),
            pl.BlockSpec((1, N), lambda i: (0, 0)),
        ],
        out_specs=pl.BlockSpec((tm, cout), lambda i: (i, 0)),
        compiler_params=pltpu.CompilerParams(
            dimension_semantics=("parallel",)),
    )(a.astype(w.dtype), w, b)


def fc_head(x, w3, b3, w4, b4, *, num_classes):
    B = x.shape[0]
    kernel = functools.partial(_fc_head_kernel, num_classes=num_classes)
    return pl.pallas_call(
        kernel,
        out_shape=jax.ShapeDtypeStruct((B, num_classes), jnp.float32),
        grid=(1,),
        in_specs=[
            pl.BlockSpec(x.shape, lambda i: (0, 0)),
            pl.BlockSpec(w3.shape, lambda i: (0, 0)),
            pl.BlockSpec(b3.shape, lambda i: (0, 0)),
            pl.BlockSpec(w4.shape, lambda i: (0, 0)),
            pl.BlockSpec(b4.shape, lambda i: (0, 0)),
        ],
        out_specs=pl.BlockSpec((B, num_classes), lambda i: (0, 0)),
        compiler_params=pltpu.CompilerParams(
            dimension_semantics=("arbitrary",)),
    )(x.astype(w3.dtype), w3, b3, w4, b4)


# --------------------------------------------------------------------------
# Glue: patch extraction, weight layout, one-time parameter preparation
# --------------------------------------------------------------------------

def pooled_patches(x, k):
    """x: (N,H,W,C) -> (4, N*PH*PW, k*k*C) valid-conv im2col patches grouped
    by 2x2-pool parity.  Group g = di*2+dj holds the patches of conv output
    pixels (2*ph+di, 2*pw+dj); feature order is (ki, kj, cin)."""
    N, H, W, C = x.shape
    OH, OW = H - k + 1, W - k + 1
    assert OH % 2 == 0 and OW % 2 == 0
    PH, PW = OH // 2, OW // 2
    cols = [x[:, ki:ki + OH, kj:kj + OW, :] for ki in range(k) for kj in range(k)]
    p = jnp.concatenate(cols, axis=-1)                 # (N, OH, OW, k*k*C)
    p = p.reshape(N, PH, 2, PW, 2, k * k * C)
    p = jnp.transpose(p, (2, 4, 0, 1, 3, 5))           # (2, 2, N, PH, PW, K)
    return p.reshape(4, N * PH * PW, k * k * C)


def conv_weight_to_mat(w):
    """torch conv weight (Cout,Cin,KH,KW) -> (KH*KW*Cin, Cout), rows (ki,kj,cin)."""
    cout, cin, kh, kw = w.shape
    return jnp.transpose(w, (2, 3, 1, 0)).reshape(kh * kw * cin, cout)


def _pad_cols(a, n):
    a = a.astype(jnp.float32)
    return jnp.pad(a, ((0, 0), (0, n - a.shape[-1])))


def prepare_params(params):
    """One-time weight folding / permutation / lane padding (runs outside jit)."""
    eps = 1e-4
    nc = params["ip2_b"].shape[0]

    # --- stage 1: conv1 + bn_conv1(affine=False, eval running stats) ---
    inv1 = 1.0 / jnp.sqrt(1.0 + eps)                       # mean=0, var=1
    w1 = conv_weight_to_mat(params["conv1_w"]) * inv1      # (75, 20)
    b1 = params["conv1_b"] * inv1
    w1p = _pad_cols(w1, LANE).astype(MXU_DTYPE)            # (75, 128)
    b1p = _pad_cols(b1[None, :], LANE)                     # (1, 128)

    # --- stage 2: bn2 (gamma clamped >= 0.01) folded into conv2 ---
    g2 = jnp.maximum(params["bn2_gamma"], 0.01)
    s2 = g2 / jnp.sqrt(params["bn2_var"] + eps)
    t2 = params["bn2_beta"] - params["bn2_mean"] * s2
    w2 = conv_weight_to_mat(params["conv2_w"])             # (500, 50), rows (ki,kj,cin)
    feat_s2 = jnp.tile(s2, 25)
    feat_t2 = jnp.tile(t2, 25)
    w2f = w2 * feat_s2[:, None]
    b2f = params["conv2_b"] + feat_t2 @ w2
    w2p = _pad_cols(w2f, LANE).astype(MXU_DTYPE)           # (500, 128)
    b2p = _pad_cols(b2f[None, :], LANE)

    # --- stage 3: bn3 folded into ip1; permute ip1 columns so the kernel can
    # consume the NHWC-flat pooled activation directly (no transpose in fwd).
    g3 = jnp.maximum(params["bn3_gamma"], 0.01)
    s3 = g3 / jnp.sqrt(params["bn3_var"] + eps)
    t3 = params["bn3_beta"] - params["bn3_mean"] * s3
    w3 = params["ip1_w"]                                   # (500, 1250), torch col = c*25 + hw
    s3_feat = jnp.repeat(s3, 25)
    t3_feat = jnp.repeat(t3, 25)
    w3f = w3 * s3_feat[None, :]
    b3f = params["ip1_b"] + w3 @ t3_feat
    hw = jnp.arange(25)
    c = jnp.arange(50)
    col_idx = (c[None, :] * 25 + hw[:, None]).reshape(-1)  # NHWC pos hw*50+c -> torch col c*25+hw
    w3n = w3f[:, col_idx].T                                # (1250, 500), rows NHWC-flat order
    w3p = _pad_cols(w3n, 512).astype(MXU_DTYPE)            # (1250, 512)
    b3p = _pad_cols(b3f[None, :], 512)                     # (1, 512)

    # --- ip2 ---
    w4 = params["ip2_w"].T.astype(jnp.float32)             # (500, nc)
    w4p = jnp.zeros((512, LANE), jnp.float32).at[:500, :nc].set(w4).astype(MXU_DTYPE)
    b4p = _pad_cols(params["ip2_b"][None, :], LANE)        # (1, 128)

    return {"w1": w1p, "b1": b1p, "w2": w2p, "b2": b2p,
            "w3": w3p, "b3": b3p, "w4": w4p, "b4": b4p}


def init_params(key, num_classes=10):
    ks = jax.random.split(key, 8)

    def nrm(k, shape, s=0.05):
        return s * jax.random.normal(k, shape, jnp.float32)

    return {
        "conv1_w": nrm(ks[0], (20, 3, 5, 5)),
        "conv1_b": nrm(ks[1], (20,)),
        "conv2_w": nrm(ks[2], (50, 20, 5, 5)),
        "conv2_b": nrm(ks[3], (50,)),
        "ip1_w": nrm(ks[4], (500, 1250)),
        "ip1_b": nrm(ks[5], (500,)),
        "ip2_w": nrm(ks[6], (num_classes, 500)),
        "ip2_b": nrm(ks[7], (num_classes,)),
        # BatchNorm: gamma set to 1.0 in __init__, beta 0, running stats at
        # init (mean 0, var 1) -> eval-mode BN.
        "bn2_gamma": jnp.ones((20,), jnp.float32),
        "bn2_beta": jnp.zeros((20,), jnp.float32),
        "bn2_mean": jnp.zeros((20,), jnp.float32),
        "bn2_var": jnp.ones((20,), jnp.float32),
        "bn3_gamma": jnp.ones((50,), jnp.float32),
        "bn3_beta": jnp.zeros((50,), jnp.float32),
        "bn3_mean": jnp.zeros((50,), jnp.float32),
        "bn3_var": jnp.ones((50,), jnp.float32),
    }


# --------------------------------------------------------------------------
# Forward pass (3 pallas_calls)
# --------------------------------------------------------------------------

def bwn_net_forward(x_nchw, prep, *, num_classes=10):
    """BWNNet forward.  x_nchw: (B, 3, 32, 32) -> (B, num_classes)."""
    x = jnp.transpose(x_nchw, (0, 2, 3, 1)).astype(jnp.float32)   # NCHW -> NHWC
    B = x.shape[0]

    # conv1 + bn_conv1 + ReLU + pool1 (one fused kernel)
    a1 = pooled_patches(x, 5)                                     # (4, B*14*14, 75)
    y1 = conv_bn_relu_pool(a1, prep["w1"], prep["b1"], cout=20)   # (B*196, 20)

    # bin_conv2 (BN folded) + ReLU + pool2 (one fused kernel)
    a2 = pooled_patches(y1.reshape(B, 14, 14, 20), 5)             # (4, B*5*5, 500)
    y2 = conv_bn_relu_pool(a2, prep["w2"], prep["b2"], cout=50)   # (B*25, 50)

    # bin_ip1 (BN folded) + ReLU + ip2 (one fused kernel).  ip1 weight columns
    # were permuted in prepare_params to consume the NHWC-flat layout.
    xf = y2.reshape(B, 25 * 50)                                   # (B, 1250)
    return fc_head(xf, prep["w3"], prep["b3"], prep["w4"], prep["b4"],
                   num_classes=num_classes)


# --------------------------------------------------------------------------
# Pure-JAX reference (eval-mode BN), for correctness checking
# --------------------------------------------------------------------------

def reference_forward(x, params):
    eps = 1e-4
    dn = ("NCHW", "OIHW", "NCHW")

    def maxpool2(y):
        return jax.lax.reduce_window(y, -jnp.inf, jax.lax.max,
                                     (1, 1, 2, 2), (1, 1, 2, 2), "VALID")

    y = jax.lax.conv_general_dilated(x, params["conv1_w"], (1, 1), "VALID",
                                     dimension_numbers=dn)
    y = y + params["conv1_b"][None, :, None, None]
    y = y / jnp.sqrt(1.0 + eps)                    # bn_conv1 (affine=False, eval)
    y = jnp.maximum(y, 0.0)
    y = maxpool2(y)

    g2 = jnp.maximum(params["bn2_gamma"], 0.01)
    s2 = g2 / jnp.sqrt(params["bn2_var"] + eps)
    t2 = params["bn2_beta"] - params["bn2_mean"] * s2
    y = y * s2[None, :, None, None] + t2[None, :, None, None]
    y = jax.lax.conv_general_dilated(y, params["conv2_w"], (1, 1), "VALID",
                                     dimension_numbers=dn)
    y = y + params["conv2_b"][None, :, None, None]
    y = jnp.maximum(y, 0.0)
    y = maxpool2(y)

    g3 = jnp.maximum(params["bn3_gamma"], 0.01)
    s3 = g3 / jnp.sqrt(params["bn3_var"] + eps)
    t3 = params["bn3_beta"] - params["bn3_mean"] * s3
    y = y * s3[None, :, None, None] + t3[None, :, None, None]
    y = y.reshape(y.shape[0], -1)                  # torch channel-major flatten
    y = jnp.maximum(y @ params["ip1_w"].T + params["ip1_b"], 0.0)
    return y @ params["ip2_w"].T + params["ip2_b"]


if __name__ == "__main__":
    key = jax.random.PRNGKey(0)
    k_x, k_p = jax.random.split(key)
    B = 4
    # 32x32 input is required so that 50*5*5 = 1250 features reach bin_ip1.
    x = jax.random.normal(k_x, (B, 3, 32, 32), jnp.float32)
    params = init_params(k_p, num_classes=10)

    prep = prepare_params(params)                  # one-time weight folding
    fwd = jax.jit(functools.partial(bwn_net_forward, num_classes=10))
    out = jax.block_until_ready(fwd(x, prep))
    assert out.shape == (B, 10) and out.dtype == jnp.float32

    ref = jax.block_until_ready(jax.jit(reference_forward)(x, params))
    max_err = float(jnp.max(jnp.abs(out - ref)))
    assert max_err < 5e-2, f"mismatch vs pure-JAX reference: {max_err}"
    print("KERNEL_OK")
</pallas_src>

<mosaic_0001>
module attributes {stable_mosaic.version = 11 : i64} {
  func.func @_conv_pool_kernel(%arg0: i32, %arg1: memref<4x392x75xf32, #tpu.memory_space<vmem>>, %arg2: memref<75x128xf32, #tpu.memory_space<vmem>>, %arg3: memref<1x128xf32, #tpu.memory_space<vmem>>, %arg4: memref<392x20xf32, #tpu.memory_space<vmem>>) attributes {dimension_semantics = [#tpu.dimension_semantics<parallel>], iteration_bounds = array<i64: 2>, scalar_prefetch = 0 : i64, scratch_operands = 0 : i64, tpu.core_type = #tpu.core_type<tc>, window_params = [{transform_indices = @transform_0, window_bounds = array<i64: 4, 392, 75>}, {pipeline_mode = #tpu.pipeline_mode<synchronous>, transform_indices = @transform_1, window_bounds = array<i64: 75, 128>}, {pipeline_mode = #tpu.pipeline_mode<synchronous>, transform_indices = @transform_2, window_bounds = array<i64: 1, 128>}, {transform_indices = @transform_3, window_bounds = array<i64: 392, 20>}]} {
    %c0 = arith.constant 0 : index
    %c0_0 = arith.constant 0 : index
    %0 = vector.load %arg2[%c0, %c0_0] : memref<75x128xf32, #tpu.memory_space<vmem>>, vector<75x128xf32>
    %c0_1 = arith.constant 0 : index
    %c0_2 = arith.constant 0 : index
    %c0_3 = arith.constant 0 : index
    %1 = vector.load %arg1[%c0_1, %c0_2, %c0_3] : memref<4x392x75xf32, #tpu.memory_space<vmem>>, vector<1x392x75xf32>
    %2 = vector.shape_cast %1 : vector<1x392x75xf32> to vector<392x75xf32>
    %cst = arith.constant dense<0.000000e+00> : vector<392x128xf32>
    %3 = tpu.matmul %2, %0, %cst {dimension_numbers = #tpu.dot_dimension_numbers<[1], [0], [0], [1], [0, 0, 1, 1], [], []>} : vector<392x75xf32>, vector<75x128xf32>, vector<392x128xf32> -> vector<392x128xf32>
    %c1 = arith.constant 1 : index
    %c0_4 = arith.constant 0 : index
    %c0_5 = arith.constant 0 : index
    %4 = vector.load %arg1[%c1, %c0_4, %c0_5] : memref<4x392x75xf32, #tpu.memory_space<vmem>>, vector<1x392x75xf32>
    %5 = vector.shape_cast %4 : vector<1x392x75xf32> to vector<392x75xf32>
    %cst_6 = arith.constant dense<0.000000e+00> : vector<392x128xf32>
    %6 = tpu.matmul %5, %0, %cst_6 {dimension_numbers = #tpu.dot_dimension_numbers<[1], [0], [0], [1], [0, 0, 1, 1], [], []>} : vector<392x75xf32>, vector<75x128xf32>, vector<392x128xf32> -> vector<392x128xf32>
    %7 = arith.maximumf %3, %6 : vector<392x128xf32>
    %c2 = arith.constant 2 : index
    %c0_7 = arith.constant 0 : index
    %c0_8 = arith.constant 0 : index
    %8 = vector.load %arg1[%c2, %c0_7, %c0_8] : memref<4x392x75xf32, #tpu.memory_space<vmem>>, vector<1x392x75xf32>
    %9 = vector.shape_cast %8 : vector<1x392x75xf32> to vector<392x75xf32>
    %cst_9 = arith.constant dense<0.000000e+00> : vector<392x128xf32>
    %10 = tpu.matmul %9, %0, %cst_9 {dimension_numbers = #tpu.dot_dimension_numbers<[1], [0], [0], [1], [0, 0, 1, 1], [], []>} : vector<392x75xf32>, vector<75x128xf32>, vector<392x128xf32> -> vector<392x128xf32>
    %11 = arith.maximumf %7, %10 : vector<392x128xf32>
    %c3 = arith.constant 3 : index
    %c0_10 = arith.constant 0 : index
    %c0_11 = arith.constant 0 : index
    %12 = vector.load %arg1[%c3, %c0_10, %c0_11] : memref<4x392x75xf32, #tpu.memory_space<vmem>>, vector<1x392x75xf32>
    %13 = vector.shape_cast %12 : vector<1x392x75xf32> to vector<392x75xf32>
    %cst_12 = arith.constant dense<0.000000e+00> : vector<392x128xf32>
    %14 = tpu.matmul %13, %0, %cst_12 {dimension_numbers = #tpu.dot_dimension_numbers<[1], [0], [0], [1], [0, 0, 1, 1], [], []>} : vector<392x75xf32>, vector<75x128xf32>, vector<392x128xf32> -> vector<392x128xf32>
    %15 = arith.maximumf %11, %14 : vector<392x128xf32>
    %c0_13 = arith.constant 0 : index
    %c0_14 = arith.constant 0 : index
    %16 = vector.load %arg3[%c0_13, %c0_14] : memref<1x128xf32, #tpu.memory_space<vmem>>, vector<1x128xf32>
    %17 = vector.broadcast %16 : vector<1x128xf32> to vector<392x128xf32>
    %18 = arith.addf %15, %17 : vector<392x128xf32>
    %cst_15 = arith.constant 0.000000e+00 : f32
    %19 = vector.broadcast %cst_15 : f32 to vector<392x128xf32>
    %20 = arith.maximumf %18, %19 : vector<392x128xf32>
    %21 = vector.extract_strided_slice %20 {offsets = [0, 0], sizes = [392, 20], strides = [1, 1]} : vector<392x128xf32> to vector<392x20xf32>
    %c0_16 = arith.constant 0 : index
    %c0_17 = arith.constant 0 : index
    %22 = vector.load %arg4[%c0_16, %c0_17] : memref<392x20xf32, #tpu.memory_space<vmem>>, vector<392x20xf32>
    tpu.vector_store %arg4[%c0_16, %c0_17], %21 {strides = array<i32>} : memref<392x20xf32, #tpu.memory_space<vmem>>, vector<392x20xf32>,
    return
  }
  func.func @transform_0(%arg0: i32) -> (i32, i32, i32) {
    %c0_i32 = arith.constant 0 : i32
    %c0_i32_0 = arith.constant 0 : i32
    %c0_i32_1 = arith.constant 0 : i32
    return %c0_i32, %arg0, %c0_i32_0 : i32, i32, i32
  }
  func.func @transform_1(%arg0: i32) -> (i32, i32) {
    %c0_i32 = arith.constant 0 : i32
    %c0_i32_0 = arith.constant 0 : i32
    %c0_i32_1 = arith.constant 0 : i32
    return %c0_i32, %c0_i32_0 : i32, i32
  }
  func.func @transform_2(%arg0: i32) -> (i32, i32) {
    %c0_i32 = arith.constant 0 : i32
    %c0_i32_0 = arith.constant 0 : i32
    %c0_i32_1 = arith.constant 0 : i32
    return %c0_i32, %c0_i32_0 : i32, i32
  }
  func.func @transform_3(%arg0: i32) -> (i32, i32) {
    %c0_i32 = arith.constant 0 : i32
    %c0_i32_0 = arith.constant 0 : i32
    return %arg0, %c0_i32 : i32, i32
  }
}

module attributes {stable_mosaic.version = 11 : i64} {
  func.func @_conv_pool_kernel(%arg0: i32, %arg1: memref<4x100x500xf32, #tpu.memory_space<vmem>>, %arg2: memref<500x128xf32, #tpu.memory_space<vmem>>, %arg3: memref<1x128xf32, #tpu.memory_space<vmem>>, %arg4: memref<100x50xf32, #tpu.memory_space<vmem>>) attributes {dimension_semantics = [#tpu.dimension_semantics<parallel>], iteration_bounds = array<i64: 1>, scalar_prefetch = 0 : i64, scratch_operands = 0 : i64, tpu.core_type = #tpu.core_type<tc>, window_params = [{transform_indices = @transform_0, window_bounds = array<i64: 4, 100, 500>}, {pipeline_mode = #tpu.pipeline_mode<synchronous>, transform_indices = @transform_1, window_bounds = array<i64: 500, 128>}, {pipeline_mode = #tpu.pipeline_mode<synchronous>, transform_indices = @transform_2, window_bounds = array<i64: 1, 128>}, {transform_indices = @transform_3, window_bounds = array<i64: 100, 50>}]} {
    %c0 = arith.constant 0 : index
    %c0_0 = arith.constant 0 : index
    %0 = vector.load %arg2[%c0, %c0_0] : memref<500x128xf32, #tpu.memory_space<vmem>>, vector<500x128xf32>
    %c0_1 = arith.constant 0 : index
    %c0_2 = arith.constant 0 : index
    %c0_3 = arith.constant 0 : index
    %1 = vector.load %arg1[%c0_1, %c0_2, %c0_3] : memref<4x100x500xf32, #tpu.memory_space<vmem>>, vector<1x100x500xf32>
    %2 = vector.shape_cast %1 : vector<1x100x500xf32> to vector<100x500xf32>
    %cst = arith.constant dense<0.000000e+00> : vector<100x128xf32>
    %3 = tpu.matmul %2, %0, %cst {dimension_numbers = #tpu.dot_dimension_numbers<[1], [0], [0], [1], [0, 0, 1, 1], [], []>} : vector<100x500xf32>, vector<500x128xf32>, vector<100x128xf32> -> vector<100x128xf32>
    %c1 = arith.constant 1 : index
    %c0_4 = arith.constant 0 : index
    %c0_5 = arith.constant 0 : index
    %4 = vector.load %arg1[%c1, %c0_4, %c0_5] : memref<4x100x500xf32, #tpu.memory_space<vmem>>, vector<1x100x500xf32>
    %5 = vector.shape_cast %4 : vector<1x100x500xf32> to vector<100x500xf32>
    %cst_6 = arith.constant dense<0.000000e+00> : vector<100x128xf32>
    %6 = tpu.matmul %5, %0, %cst_6 {dimension_numbers = #tpu.dot_dimension_numbers<[1], [0], [0], [1], [0, 0, 1, 1], [], []>} : vector<100x500xf32>, vector<500x128xf32>, vector<100x128xf32> -> vector<100x128xf32>
    %7 = arith.maximumf %3, %6 : vector<100x128xf32>
    %c2 = arith.constant 2 : index
    %c0_7 = arith.constant 0 : index
    %c0_8 = arith.constant 0 : index
    %8 = vector.load %arg1[%c2, %c0_7, %c0_8] : memref<4x100x500xf32, #tpu.memory_space<vmem>>, vector<1x100x500xf32>
    %9 = vector.shape_cast %8 : vector<1x100x500xf32> to vector<100x500xf32>
    %cst_9 = arith.constant dense<0.000000e+00> : vector<100x128xf32>
    %10 = tpu.matmul %9, %0, %cst_9 {dimension_numbers = #tpu.dot_dimension_numbers<[1], [0], [0], [1], [0, 0, 1, 1], [], []>} : vector<100x500xf32>, vector<500x128xf32>, vector<100x128xf32> -> vector<100x128xf32>
    %11 = arith.maximumf %7, %10 : vector<100x128xf32>
    %c3 = arith.constant 3 : index
    %c0_10 = arith.constant 0 : index
    %c0_11 = arith.constant 0 : index
    %12 = vector.load %arg1[%c3, %c0_10, %c0_11] : memref<4x100x500xf32, #tpu.memory_space<vmem>>, vector<1x100x500xf32>
    %13 = vector.shape_cast %12 : vector<1x100x500xf32> to vector<100x500xf32>
    %cst_12 = arith.constant dense<0.000000e+00> : vector<100x128xf32>
    %14 = tpu.matmul %13, %0, %cst_12 {dimension_numbers = #tpu.dot_dimension_numbers<[1], [0], [0], [1], [0, 0, 1, 1], [], []>} : vector<100x500xf32>, vector<500x128xf32>, vector<100x128xf32> -> vector<100x128xf32>
    %15 = arith.maximumf %11, %14 : vector<100x128xf32>
    %c0_13 = arith.constant 0 : index
    %c0_14 = arith.constant 0 : index
    %16 = vector.load %arg3[%c0_13, %c0_14] : memref<1x128xf32, #tpu.memory_space<vmem>>, vector<1x128xf32>
    %17 = vector.broadcast %16 : vector<1x128xf32> to vector<100x128xf32>
    %18 = arith.addf %15, %17 : vector<100x128xf32>
    %cst_15 = arith.constant 0.000000e+00 : f32
    %19 = vector.broadcast %cst_15 : f32 to vector<100x128xf32>
    %20 = arith.maximumf %18, %19 : vector<100x128xf32>
    %21 = vector.extract_strided_slice %20 {offsets = [0, 0], sizes = [100, 50], strides = [1, 1]} : vector<100x128xf32> to vector<100x50xf32>
    %c0_16 = arith.constant 0 : index
    %c0_17 = arith.constant 0 : index
    %22 = vector.load %arg4[%c0_16, %c0_17] : memref<100x50xf32, #tpu.memory_space<vmem>>, vector<100x50xf32>
    tpu.vector_store %arg4[%c0_16, %c0_17], %21 {strides = array<i32>} : memref<100x50xf32, #tpu.memory_space<vmem>>, vector<100x50xf32>,
    return
  }
  func.func @transform_0(%arg0: i32) -> (i32, i32, i32) {
    %c0_i32 = arith.constant 0 : i32
    %c0_i32_0 = arith.constant 0 : i32
    %c0_i32_1 = arith.constant 0 : i32
    return %c0_i32, %arg0, %c0_i32_0 : i32, i32, i32
  }
  func.func @transform_1(%arg0: i32) -> (i32, i32) {
    %c0_i32 = arith.constant 0 : i32
    %c0_i32_0 = arith.constant 0 : i32
    %c0_i32_1 = arith.constant 0 : i32
    return %c0_i32, %c0_i32_0 : i32, i32
  }
  func.func @transform_2(%arg0: i32) -> (i32, i32) {
    %c0_i32 = arith.constant 0 : i32
    %c0_i32_0 = arith.constant 0 : i32
    %c0_i32_1 = arith.constant 0 : i32
    return %c0_i32, %c0_i32_0 : i32, i32
  }
  func.func @transform_3(%arg0: i32) -> (i32, i32) {
    %c0_i32 = arith.constant 0 : i32
    %c0_i32_0 = arith.constant 0 : i32
    return %arg0, %c0_i32 : i32, i32
  }
}

module attributes {stable_mosaic.version = 11 : i64} {
  func.func @_fc_head_kernel(%arg0: i32, %arg1: memref<4x1250xf32, #tpu.memory_space<vmem>>, %arg2: memref<1250x512xf32, #tpu.memory_space<vmem>>, %arg3: memref<1x512xf32, #tpu.memory_space<vmem>>, %arg4: memref<512x128xf32, #tpu.memory_space<vmem>>, %arg5: memref<1x128xf32, #tpu.memory_space<vmem>>, %arg6: memref<4x10xf32, #tpu.memory_space<vmem>>) attributes {dimension_semantics = [#tpu.dimension_semantics<arbitrary>], iteration_bounds = array<i64: 1>, scalar_prefetch = 0 : i64, scratch_operands = 0 : i64, tpu.core_type = #tpu.core_type<tc>, window_params = [{pipeline_mode = #tpu.pipeline_mode<synchronous>, transform_indices = @transform_0, window_bounds = array<i64: 4, 1250>}, {pipeline_mode = #tpu.pipeline_mode<synchronous>, transform_indices = @transform_1, window_bounds = array<i64: 1250, 512>}, {pipeline_mode = #tpu.pipeline_mode<synchronous>, transform_indices = @transform_2, window_bounds = array<i64: 1, 512>}, {pipeline_mode = #tpu.pipeline_mode<synchronous>, transform_indices = @transform_3, window_bounds = array<i64: 512, 128>}, {pipeline_mode = #tpu.pipeline_mode<synchronous>, transform_indices = @transform_4, window_bounds = array<i64: 1, 128>}, {pipeline_mode = #tpu.pipeline_mode<synchronous>, transform_indices = @transform_5, window_bounds = array<i64: 4, 10>}]} {
    %c0 = arith.constant 0 : index
    %c0_0 = arith.constant 0 : index
    %0 = vector.load %arg1[%c0, %c0_0] : memref<4x1250xf32, #tpu.memory_space<vmem>>, vector<4x1250xf32>
    %c0_1 = arith.constant 0 : index
    %c0_2 = arith.constant 0 : index
    %1 = vector.load %arg2[%c0_1, %c0_2] : memref<1250x512xf32, #tpu.memory_space<vmem>>, vector<1250x512xf32>
    %cst = arith.constant dense<0.000000e+00> : vector<4x512xf32>
    %2 = tpu.matmul %0, %1, %cst {dimension_numbers = #tpu.dot_dimension_numbers<[1], [0], [0], [1], [0, 0, 1, 1], [], []>} : vector<4x1250xf32>, vector<1250x512xf32>, vector<4x512xf32> -> vector<4x512xf32>
    %c0_3 = arith.constant 0 : index
    %c0_4 = arith.constant 0 : index
    %3 = vector.load %arg3[%c0_3, %c0_4] : memref<1x512xf32, #tpu.memory_space<vmem>>, vector<1x512xf32>
    %4 = vector.broadcast %3 : vector<1x512xf32> to vector<4x512xf32>
    %5 = arith.addf %2, %4 : vector<4x512xf32>
    %cst_5 = arith.constant 0.000000e+00 : f32
    %6 = vector.broadcast %cst_5 : f32 to vector<4x512xf32>
    %7 = arith.maximumf %5, %6 : vector<4x512xf32>
    %c0_6 = arith.constant 0 : index
    %c0_7 = arith.constant 0 : index
    %8 = vector.load %arg4[%c0_6, %c0_7] : memref<512x128xf32, #tpu.memory_space<vmem>>, vector<512x128xf32>
    %cst_8 = arith.constant dense<0.000000e+00> : vector<4x128xf32>
    %9 = tpu.matmul %7, %8, %cst_8 {dimension_numbers = #tpu.dot_dimension_numbers<[1], [0], [0], [1], [0, 0, 1, 1], [], []>} : vector<4x512xf32>, vector<512x128xf32>, vector<4x128xf32> -> vector<4x128xf32>
    %c0_9 = arith.constant 0 : index
    %c0_10 = arith.constant 0 : index
    %10 = vector.load %arg5[%c0_9, %c0_10] : memref<1x128xf32, #tpu.memory_space<vmem>>, vector<1x128xf32>
    %11 = vector.broadcast %10 : vector<1x128xf32> to vector<4x128xf32>
    %12 = arith.addf %9, %11 : vector<4x128xf32>
    %13 = vector.extract_strided_slice %12 {offsets = [0, 0], sizes = [4, 10], strides = [1, 1]} : vector<4x128xf32> to vector<4x10xf32>
    %c0_11 = arith.constant 0 : index
    %c0_12 = arith.constant 0 : index
    %14 = vector.load %arg6[%c0_11, %c0_12] : memref<4x10xf32, #tpu.memory_space<vmem>>, vector<4x10xf32>
    tpu.vector_store %arg6[%c0_11, %c0_12], %13 {strides = array<i32>} : memref<4x10xf32, #tpu.memory_space<vmem>>, vector<4x10xf32>,
    return
  }
  func.func @transform_0(%arg0: i32) -> (i32, i32) {
    %c0_i32 = arith.constant 0 : i32
    %c0_i32_0 = arith.constant 0 : i32
    %c0_i32_1 = arith.constant 0 : i32
    return %c0_i32, %c0_i32_0 : i32, i32
  }
  func.func @transform_1(%arg0: i32) -> (i32, i32) {
    %c0_i32 = arith.constant 0 : i32
    %c0_i32_0 = arith.constant 0 : i32
    %c0_i32_1 = arith.constant 0 : i32
    return %c0_i32, %c0_i32_0 : i32, i32
  }
  func.func @transform_2(%arg0: i32) -> (i32, i32) {
    %c0_i32 = arith.constant 0 : i32
    %c0_i32_0 = arith.constant 0 : i32
    %c0_i32_1 = arith.constant 0 : i32
    return %c0_i32, %c0_i32_0 : i32, i32
  }
  func.func @transform_3(%arg0: i32) -> (i32, i32) {
    %c0_i32 = arith.constant 0 : i32
    %c0_i32_0 = arith.constant 0 : i32
    %c0_i32_1 = arith.constant 0 : i32
    return %c0_i32, %c0_i32_0 : i32, i32
  }
  func.func @transform_4(%arg0: i32) -> (i32, i32) {
    %c0_i32 = arith.constant 0 : i32
    %c0_i32_0 = arith.constant 0 : i32
    %c0_i32_1 = arith.constant 0 : i32
    return %c0_i32, %c0_i32_0 : i32, i32
  }
  func.func @transform_5(%arg0: i32) -> (i32, i32) {
    %c0_i32 = arith.constant 0 : i32
    %c0_i32_0 = arith.constant 0 : i32
    %c0_i32_1 = arith.constant 0 : i32
    return %c0_i32, %c0_i32_0 : i32, i32
  }
}

</mosaic_0001>

<llo_original>
// kernel: bwn_net_forward.3
$region0: #{bwn_net_forward.3}
  #allocation0 [shape = 'u32[]', space=smem, size = 0x4, offset = 0x4, fixed_abs, tag = 'smem constant byte address 0x4 - core index']
  #allocation1 [shape = 'u32[144,128]{1,0:T(1,128)}', space=vmem, size = 0x12000, scoped, tag = 'internal scratch']
  %s0 = inlined_call_operand.vmem [shape: f32[4,784,75], index: 0, kind: input, shape index: {}]
  %s1 = inlined_call_operand.vmem [shape: f32[75,128], index: 1, kind: input, shape index: {}]
  %s2 = inlined_call_operand.vmem [shape: f32[1,128], index: 2, kind: input, shape index: {}]
  %s3 = inlined_call_operand.vmem [shape: f32[784,20], index: 3, kind: output, shape index: {}]
  %s4 = sld [smem:[#allocation0]]
  $region83: #{bwn_net_forward.3} parent=0
    _
  %s6 = ssub.s32 1, %s4
  %s7 = scalar_select 0, %s6, %s4
  $region1: #{bwn_net_forward.3} parent=0
    #allocation2 [shape = 'u8[1605632]{0}', space=vmem, size = 0x188000, scoped, tag = 'input window, operand 0']
    loop: start=0, step=1, limit=4
    $region2: #{bwn_net_forward.3} parent=1 // loop_pre_header
      _
    $region3: #{bwn_net_forward.3} parent=1 // loop_header
      %s9 = sphi 0, %s13
      %p10 = scmp.ge.s32.totalorder %s9, 4
      %s19 = sphi 0, %s21
      %s22 = sphi 0, %s19
      %s23 = sphi 0, %s22
      %s39 = sphi 0, %s23
      %s43 = sphi 0, %s43
      %s45 = sphi 0, %s43
      %s46 = sphi 0, %s45
      %s60 = sphi 0, %s46
      %s64 = sphi 0, %s64
      %s66 = sphi 0, %s64
      %s67 = sphi 0, %s66
      %s81 = sphi 0, %s67
      %s87 = sphi 0, %s89
      %s90 = sphi 0, %s87
      %s91 = sphi 0, %s90
      %s107 = sphi 0, %s91
    $region4: #{bwn_net_forward.3} parent=1 // loop_header_branch
      %12 = sbr.rel (%p10) target = $region8
    $region5: #{bwn_net_forward.3} parent=1 // loop_body
      %s14 = ssub.s32 %s9, 1
      %s15 = ssub.s32 %s9, 2
      %s16 = sadd.s32 %s9, 1
      %s17 = ssub.s32 %s9, %s16
      %p18 = scmp.eq.s32.totalorder %s17, 0
      %s20 = sadd.s32 %s19, 1
      %s21 = scalar_select %p18, %s19, %s20
      %p24 = pneg %p18
      %p25 = scmp.eq.s32.totalorder %s9, 1
      %p26 = por %p24, %p25
      %p27 = scmp.ne.s32.totalorder %s19, %s22
      %p28 = scmp.eq.s32.totalorder %s9, 0
      %p29 = por %p27, %p28
      %p30 = scmp.ne.s32.totalorder %s19, %s22
      %p31 = scmp.eq.s32.totalorder %s14, 1
      %p32 = por %p30, %p31
      %p33 = scmp.ne.s32.totalorder %s22, %s23
      %p34 = scmp.eq.s32.totalorder %s14, 0
      %p35 = por %p33, %p34
      %p36 = scmp.ne.s32.totalorder %s22, %s23
      %p37 = scmp.eq.s32.totalorder %s15, 1
      %p38 = por %p36, %p37
      %p40 = scmp.ne.s32.totalorder %s23, %s39
      %p41 = scmp.eq.s32.totalorder %s15, 0
      %p42 = por %p40, %p41
      %s44 = sadd.s32 %s43, 1
      %p47 = scmp.eq.s32.totalorder %s9, 1
      %p48 = scmp.ne.s32.totalorder %s43, %s45
      %p49 = scmp.eq.s32.totalorder %s9, 0
      %p50 = por %p48, %p49
      %p51 = scmp.ne.s32.totalorder %s43, %s45
      %p52 = scmp.eq.s32.totalorder %s14, 1
      %p53 = por %p51, %p52
      %p54 = scmp.ne.s32.totalorder %s45, %s46
      %p55 = scmp.eq.s32.totalorder %s14, 0
      %p56 = por %p54, %p55
      %p57 = scmp.ne.s32.totalorder %s45, %s46
      %p58 = scmp.eq.s32.totalorder %s15, 1
      %p59 = por %p57, %p58
      %p61 = scmp.ne.s32.totalorder %s46, %s60
      %p62 = scmp.eq.s32.totalorder %s15, 0
      %p63 = por %p61, %p62
      %s65 = sadd.s32 %s64, 1
      %p68 = scmp.eq.s32.totalorder %s9, 1
      %p69 = scmp.ne.s32.totalorder %s64, %s66
      %p70 = scmp.eq.s32.totalorder %s9, 0
      %p71 = por %p69, %p70
      %p72 = scmp.ne.s32.totalorder %s64, %s66
      %p73 = scmp.eq.s32.totalorder %s14, 1
      %p74 = por %p72, %p73
      %p75 = scmp.ne.s32.totalorder %s66, %s67
      %p76 = scmp.eq.s32.totalorder %s14, 0
      %p77 = por %p75, %p76
      %p78 = scmp.ne.s32.totalorder %s66, %s67
      %p79 = scmp.eq.s32.totalorder %s15, 1
      %p80 = por %p78, %p79
      %p82 = scmp.ne.s32.totalorder %s67, %s81
      %p83 = scmp.eq.s32.totalorder %s15, 0
      %p84 = por %p82, %p83
      %s85 = ssub.s32 %s9, %s16
      %p86 = scmp.eq.s32.totalorder %s85, 0
      %s88 = sadd.s32 %s87, 1
      %s89 = scalar_select %p86, %s87, %s88
      %p92 = pneg %p86
      %p93 = scmp.eq.s32.totalorder %s9, 1
      %p94 = por %p92, %p93
      %p95 = scmp.ne.s32.totalorder %s87, %s90
      %p96 = scmp.eq.s32.totalorder %s9, 0
      %p97 = por %p95, %p96
      %p98 = scmp.ne.s32.totalorder %s87, %s90
      %p99 = scmp.eq.s32.totalorder %s14, 1
      %p100 = por %p98, %p99
      %p101 = scmp.ne.s32.totalorder %s90, %s91
      %p102 = scmp.eq.s32.totalorder %s14, 0
      %p103 = por %p101, %p102
      %p104 = scmp.ne.s32.totalorder %s90, %s91
      %p105 = scmp.eq.s32.totalorder %s15, 1
      %p106 = por %p104, %p105
      %p108 = scmp.ne.s32.totalorder %s91, %s107
      %p109 = scmp.eq.s32.totalorder %s15, 0
      %p110 = por %p108, %p109
      %p111 = scmp.le.s32.totalorder 1, %s9
      %p112 = scmp.lt.s32.totalorder %s9, 3
      %p113 = pnand %p111, %p112
      %p114 = pneg %p113
      // Predicated region
      $region9: #{bwn_net_forward.3} parent=5 // pred_check
        _
      $region10: #{bwn_net_forward.3} parent=5 // pred_check_branch
        %116 = sbr.rel (%p113) target = $region12
      $region11: #{bwn_net_forward.3} parent=5 // pred_region
        %s117 = ssub.s32 %s9, 1
        // Predicated region
        $region13: #{bwn_net_forward.3} parent=11 // pred_check
          %p118 = pneg %p56
        $region14: #{bwn_net_forward.3} parent=11 // pred_check_branch
          %120 = sbr.rel (%p118) target = $region16
        $region15: #{bwn_net_forward.3} parent=11 // pred_region
          _
        $region16: #{bwn_net_forward.3} parent=11 // pred_fallthru
          _
        // Predicated region
        $region17: #{bwn_net_forward.3} parent=11 // pred_check
          %p121 = pneg %p77
        $region18: #{bwn_net_forward.3} parent=11 // pred_check_branch
          %123 = sbr.rel (%p121) target = $region20
        $region19: #{bwn_net_forward.3} parent=11 // pred_region
          _
        $region20: #{bwn_net_forward.3} parent=11 // pred_fallthru
          _
      $region12: #{bwn_net_forward.3} parent=5 // pred_fallthru
        _
      %p124 = scmp.lt.s32.totalorder %s9, 2
      // Predicated region
      $region21: #{bwn_net_forward.3} parent=5 // pred_check
        %p125 = pneg %p124
      $region22: #{bwn_net_forward.3} parent=5 // pred_check_branch
        %127 = sbr.rel (%p125) target = $region24
      $region23: #{bwn_net_forward.3} parent=5 // pred_region
        // Predicated region
        $region25: #{bwn_net_forward.3} parent=23 // pred_check
          %p128 = pneg %p29
        $region26: #{bwn_net_forward.3} parent=23 // pred_check_branch
          %130 = sbr.rel (%p128) target = $region28
        $region27: #{bwn_net_forward.3} parent=23 // pred_region
          %s131 = sand.u32 %s19, 1
          %s132 = sand.u32 %s19, 1
          %s133 = smul.addr %s132, 1568
          %s134 = scalar_lea.vmem [#allocation2], %s133
          %s135 = smul.u32 49, %s9
          %s136 = smul.addr %s135, 8
          %s137 = scalar_lea.vmem %s0, %s136
          // Predicated region
          $region29: #{bwn_net_forward.3} parent=27 // pred_check
            _
          $region30: #{bwn_net_forward.3} parent=27 // pred_check_branch
            %139 = sbr.rel (0) target = $region32
          $region31: #{bwn_net_forward.3} parent=27 // pred_region
            // Predicated region
            $region33: #{bwn_net_forward.3} parent=31 // pred_check
              _
            $region34: #{bwn_net_forward.3} parent=31 // pred_check_branch
              %141 = sbr.rel (0) target = $region36
            $region35: #{bwn_net_forward.3} parent=31 // pred_region
              // Predicated region
              $region48: #{bwn_net_forward.3} parent=35 // pred_check
                _
              $region49: #{bwn_net_forward.3} parent=35 // pred_check_branch
                %546 = sbr.rel (0) target = $region51
              $region50: #{bwn_net_forward.3} parent=35 // pred_region
                loop: start=0, step=1, limit=1
                $region52: #{bwn_net_forward.3} parent=50 // loop_pre_header
                  _
                $region53: #{bwn_net_forward.3} parent=50 // loop_header
                  %s548 = sphi 0, %s552
                  %p549 = scmp.ge.s32.totalorder %s548, 1
                  %s553 = sphi %s137, %s137
                  %s554 = sphi %s134, %s134
                $region54: #{bwn_net_forward.3} parent=50 // loop_header_branch
                  %551 = sbr.rel (%p549) target = $region58
                $region55: #{bwn_net_forward.3} parent=50 // loop_body
                  %v555 = vld [vmem:[%s553] sm:$0xff]
                  %556 = vst [vmem:[%s554] sm:$0xff] %v555
                  %v557 = vld [vmem:[%s553 + $0x8] sm:$0xff]
                  %558 = vst [vmem:[%s554 + $0x8] sm:$0xff] %v557
                  %v559 = vld [vmem:[%s553 + $0x10] sm:$0xff]
                  %560 = vst [vmem:[%s554 + $0x10] sm:$0xff] %v559
                  %v561 = vld [vmem:[%s553 + $0x18] sm:$0xff]
                  %562 = vst [vmem:[%s554 + $0x18] sm:$0xff] %v561
                  %v563 = vld [vmem:[%s553 + $0x20] sm:$0xff]
                  %564 = vst [vmem:[%s554 + $0x20] sm:$0xff] %v563
                  %v565 = vld [vmem:[%s553 + $0x28] sm:$0xff]
                  %566 = vst [vmem:[%s554 + $0x28] sm:$0xff] %v565
                  %v567 = vld [vmem:[%s553 + $0x30] sm:$0xff]
                  %568 = vst [vmem:[%s554 + $0x30] sm:$0xff] %v567
                  %v569 = vld [vmem:[%s553 + $0x38] sm:$0xff]
                  %570 = vst [vmem:[%s554 + $0x38] sm:$0xff] %v569
                  %v571 = vld [vmem:[%s553 + $0x40] sm:$0xff]
                  %572 = vst [vmem:[%s554 + $0x40] sm:$0xff] %v571
                  %v573 = vld [vmem:[%s553 + $0x48] sm:$0xff]
                  %574 = vst [vmem:[%s554 + $0x48] sm:$0xff] %v573
                  %v575 = vld [vmem:[%s553 + $0x50] sm:$0xff]
                  %576 = vst [vmem:[%s554 + $0x50] sm:$0xff] %v575
                  %v577 = vld [vmem:[%s553 + $0x58] sm:$0xff]
                  %578 = vst [vmem:[%s554 + $0x58] sm:$0xff] %v577
                  %v579 = vld [vmem:[%s553 + $0x60] sm:$0xff]
                  %580 = vst [vmem:[%s554 + $0x60] sm:$0xff] %v579
                  %v581 = vld [vmem:[%s553 + $0x68] sm:$0xff]
                  %582 = vst [vmem:[%s554 + $0x68] sm:$0xff] %v581
                  %v583 = vld [vmem:[%s553 + $0x70] sm:$0xff]
                  %584 = vst [vmem:[%s554 + $0x70] sm:$0xff] %v583
                  %v585 = vld [vmem:[%s553 + $0x78] sm:$0xff]
                  %586 = vst [vmem:[%s554 + $0x78] sm:$0xff] %v585
                  %v587 = vld [vmem:[%s553 + $0x80] sm:$0xff]
                  %588 = vst [vmem:[%s554 + $0x80] sm:$0xff] %v587
                  %v589 = vld [vmem:[%s553 + $0x88] sm:$0xff]
                  %590 = vst [vmem:[%s554 + $0x88] sm:$0xff] %v589
                  %v591 = vld [vmem:[%s553 + $0x90] sm:$0xff]
                  %592 = vst [vmem:[%s554 + $0x90] sm:$0xff] %v591
                  %v593 = vld [vmem:[%s553 + $0x98] sm:$0xff]
                  %594 = vst [vmem:[%s554 + $0x98] sm:$0xff] %v593
                  %v595 = vld [vmem:[%s553 + $0xa0] sm:$0xff]
                  %596 = vst [vmem:[%s554 + $0xa0] sm:$0xff] %v595
                  %v597 = vld [vmem:[%s553 + $0xa8] sm:$0xff]
                  %598 = vst [vmem:[%s554 + $0xa8] sm:$0xff] %v597
                  %v599 = vld [vmem:[%s553 + $0xb0] sm:$0xff]
                  %600 = vst [vmem:[%s554 + $0xb0] sm:$0xff] %v599
                  %v601 = vld [vmem:[%s553 + $0xb8] sm:$0xff]
                  %602 = vst [vmem:[%s554 + $0xb8] sm:$0xff] %v601
                  %v603 = vld [vmem:[%s553 + $0xc0] sm:$0xff]
                  %604 = vst [vmem:[%s554 + $0xc0] sm:$0xff] %v603
                  %v605 = vld [vmem:[%s553 + $0xc8] sm:$0xff]
                  %606 = vst [vmem:[%s554 + $0xc8] sm:$0xff] %v605
                  %v607 = vld [vmem:[%s553 + $0xd0] sm:$0xff]
                  %608 = vst [vmem:[%s554 + $0xd0] sm:$0xff] %v607
                  %v609 = vld [vmem:[%s553 + $0xd8] sm:$0xff]
                  %610 = vst [vmem:[%s554 + $0xd8] sm:$0xff] %v609
                  %v611 = vld [vmem:[%s553 + $0xe0] sm:$0xff]
                  %612 = vst [vmem:[%s554 + $0xe0] sm:$0xff] %v611
                  %v613 = vld [vmem:[%s553 + $0xe8] sm:$0xff]
                  %614 = vst [vmem:[%s554 + $0xe8] sm:$0xff] %v613
                  %v615 = vld [vmem:[%s553 + $0xf0] sm:$0xff]
                  %616 = vst [vmem:[%s554 + $0xf0] sm:$0xff] %v615
                  %v617 = vld [vmem:[%s553 + $0xf8] sm:$0xff]
                  %618 = vst [vmem:[%s554 + $0xf8] sm:$0xff] %v617
                  %v619 = vld [vmem:[%s553 + $0x100] sm:$0xff]
                  %620 = vst [vmem:[%s554 + $0x100] sm:$0xff] %v619
                  %v621 = vld [vmem:[%s553 + $0x108] sm:$0xff]
                  %622 = vst [vmem:[%s554 + $0x108] sm:$0xff] %v621
                  %v623 = vld [vmem:[%s553 + $0x110] sm:$0xff]
                  %624 = vst [vmem:[%s554 + $0x110] sm:$0xff] %v623
                  %v625 = vld [vmem:[%s553 + $0x118] sm:$0xff]
                  %626 = vst [vmem:[%s554 + $0x118] sm:$0xff] %v625
                  %v627 = vld [vmem:[%s553 + $0x120] sm:$0xff]
                  %628 = vst [vmem:[%s554 + $0x120] sm:$0xff] %v627
                  %v629 = vld [vmem:[%s553 + $0x128] sm:$0xff]
                  %630 = vst [vmem:[%s554 + $0x128] sm:$0xff] %v629
                  %v631 = vld [vmem:[%s553 + $0x130] sm:$0xff]
                  %632 = vst [vmem:[%s554 + $0x130] sm:$0xff] %v631
                  %v633 = vld [vmem:[%s553 + $0x138] sm:$0xff]
                  %634 = vst [vmem:[%s554 + $0x138] sm:$0xff] %v633
                  %v635 = vld [vmem:[%s553 + $0x140] sm:$0xff]
                  %636 = vst [vmem:[%s554 + $0x140] sm:$0xff] %v635
                  %v637 = vld [vmem:[%s553 + $0x148] sm:$0xff]
                  %638 = vst [vmem:[%s554 + $0x148] sm:$0xff] %v637
                  %v639 = vld [vmem:[%s553 + $0x150] sm:$0xff]
                  %640 = vst [vmem:[%s554 + $0x150] sm:$0xff] %v639
                  %v641 = vld [vmem:[%s553 + $0x158] sm:$0xff]
                  %642 = vst [vmem:[%s554 + $0x158] sm:$0xff] %v641
                  %v643 = vld [vmem:[%s553 + $0x160] sm:$0xff]
                  %644 = vst [vmem:[%s554 + $0x160] sm:$0xff] %v643
                  %v645 = vld [vmem:[%s553 + $0x168] sm:$0xff]
                  %646 = vst [vmem:[%s554 + $0x168] sm:$0xff] %v645
                  %v647 = vld [vmem:[%s553 + $0x170] sm:$0xff]
                  %648 = vst [vmem:[%s554 + $0x170] sm:$0xff] %v647
                  %v649 = vld [vmem:[%s553 + $0x178] sm:$0xff]
                  %650 = vst [vmem:[%s554 + $0x178] sm:$0xff] %v649
                  %v651 = vld [vmem:[%s553 + $0x180] sm:$0xff]
                  %652 = vst [vmem:[%s554 + $0x180] sm:$0xff] %v651
                  %v653 = vld [vmem:[%s553 + $0x310] sm:$0xff]
                  %654 = vst [vmem:[%s554 + $0x188] sm:$0xff] %v653
                  %v655 = vld [vmem:[%s553 + $0x318] sm:$0xff]
                  %656 = vst [vmem:[%s554 + $0x190] sm:$0xff] %v655
                  %v657 = vld [vmem:[%s553 + $0x320] sm:$0xff]
                  %658 = vst [vmem:[%s554 + $0x198] sm:$0xff] %v657
                  %v659 = vld [vmem:[%s553 + $0x328] sm:$0xff]
                  %660 = vst [vmem:[%s554 + $0x1a0] sm:$0xff] %v659
                  %v661 = vld [vmem:[%s553 + $0x330] sm:$0xff]
                  %662 = vst [vmem:[%s554 + $0x1a8] sm:$0xff] %v661
                  %v663 = vld [vmem:[%s553 + $0x338] sm:$0xff]
                  %664 = vst [vmem:[%s554 + $0x1b0] sm:$0xff] %v663
                  %v665 = vld [vmem:[%s553 + $0x340] sm:$0xff]
                  %666 = vst [vmem:[%s554 + $0x1b8] sm:$0xff] %v665
                  %v667 = vld [vmem:[%s553 + $0x348] sm:$0xff]
                  %668 = vst [vmem:[%s554 + $0x1c0] sm:$0xff] %v667
                  %v669 = vld [vmem:[%s553 + $0x350] sm:$0xff]
                  %670 = vst [vmem:[%s554 + $0x1c8] sm:$0xff] %v669
                  %v671 = vld [vmem:[%s553 + $0x358] sm:$0xff]
                  %672 = vst [vmem:[%s554 + $0x1d0] sm:$0xff] %v671
                  %v673 = vld [vmem:[%s553 + $0x360] sm:$0xff]
                  %674 = vst [vmem:[%s554 + $0x1d8] sm:$0xff] %v673
                  %v675 = vld [vmem:[%s553 + $0x368] sm:$0xff]
                  %676 = vst [vmem:[%s554 + $0x1e0] sm:$0xff] %v675
                  %v677 = vld [vmem:[%s553 + $0x370] sm:$0xff]
                  %678 = vst [vmem:[%s554 + $0x1e8] sm:$0xff] %v677
                  %v679 = vld [vmem:[%s553 + $0x378] sm:$0xff]
                  %680 = vst [vmem:[%s554 + $0x1f0] sm:$0xff] %v679
                  %v681 = vld [vmem:[%s553 + $0x380] sm:$0xff]
                  %682 = vst [vmem:[%s554 + $0x1f8] sm:$0xff] %v681
                  %v683 = vld [vmem:[%s553 + $0x388] sm:$0xff]
                  %684 = vst [vmem:[%s554 + $0x200] sm:$0xff] %v683
                  %v685 = vld [vmem:[%s553 + $0x390] sm:$0xff]
                  %686 = vst [vmem:[%s554 + $0x208] sm:$0xff] %v685
                  %v687 = vld [vmem:[%s553 + $0x398] sm:$0xff]
                  %688 = vst [vmem:[%s554 + $0x210] sm:$0xff] %v687
                  %v689 = vld [vmem:[%s553 + $0x3a0] sm:$0xff]
                  %690 = vst [vmem:[%s554 + $0x218] sm:$0xff] %v689
                  %v691 = vld [vmem:[%s553 + $0x3a8] sm:$0xff]
                  %692 = vst [vmem:[%s554 + $0x220] sm:$0xff] %v691
                  %v693 = vld [vmem:[%s553 + $0x3b0] sm:$0xff]
                  %694 = vst [vmem:[%s554 + $0x228] sm:$0xff] %v693
                  %v695 = vld [vmem:[%s553 + $0x3b8] sm:$0xff]
                  %696 = vst [vmem:[%s554 + $0x230] sm:$0xff] %v695
                  %v697 = vld [vmem:[%s553 + $0x3c0] sm:$0xff]
                  %698 = vst [vmem:[%s554 + $0x238] sm:$0xff] %v697
                  %v699 = vld [vmem:[%s553 + $0x3c8] sm:$0xff]
                  %700 = vst [vmem:[%s554 + $0x240] sm:$0xff] %v699
                  %v701 = vld [vmem:[%s553 + $0x3d0] sm:$0xff]
                  %702 = vst [vmem:[%s554 + $0x248] sm:$0xff] %v701
                  %v703 = vld [vmem:[%s553 + $0x3d8] sm:$0xff]
                  %704 = vst [vmem:[%s554 + $0x250] sm:$0xff] %v703
                  %v705 = vld [vmem:[%s553 + $0x3e0] sm:$0xff]
                  %706 = vst [vmem:[%s554 + $0x258] sm:$0xff] %v705
                  %v707 = vld [vmem:[%s553 + $0x3e8] sm:$0xff]
                  %708 = vst [vmem:[%s554 + $0x260] sm:$0xff] %v707
                  %v709 = vld [vmem:[%s553 + $0x3f0] sm:$0xff]
                  %710 = vst [vmem:[%s554 + $0x268] sm:$0xff] %v709
                  %v711 = vld [vmem:[%s553 + $0x3f8] sm:$0xff]
                  %712 = vst [vmem:[%s554 + $0x270] sm:$0xff] %v711
                  %v713 = vld [vmem:[%s553 + $0x400] sm:$0xff]
                  %714 = vst [vmem:[%s554 + $0x278] sm:$0xff] %v713
                  %v715 = vld [vmem:[%s553 + $0x408] sm:$0xff]
                  %716 = vst [vmem:[%s554 + $0x280] sm:$0xff] %v715
                  %v717 = vld [vmem:[%s553 + $0x410] sm:$0xff]
                  %718 = vst [vmem:[%s554 + $0x288] sm:$0xff] %v717
                  %v719 = vld [vmem:[%s553 + $0x418] sm:$0xff]
                  %720 = vst [vmem:[%s554 + $0x290] sm:$0xff] %v719
                  %v721 = vld [vmem:[%s553 + $0x420] sm:$0xff]
                  %722 = vst [vmem:[%s554 + $0x298] sm:$0xff] %v721
                  %v723 = vld [vmem:[%s553 + $0x428] sm:$0xff]
                  %724 = vst [vmem:[%s554 + $0x2a0] sm:$0xff] %v723
                  %v725 = vld [vmem:[%s553 + $0x430] sm:$0xff]
                  %726 = vst [vmem:[%s554 + $0x2a8] sm:$0xff] %v725
                  %v727 = vld [vmem:[%s553 + $0x438] sm:$0xff]
                  %728 = vst [vmem:[%s554 + $0x2b0] sm:$0xff] %v727
                  %v729 = vld [vmem:[%s553 + $0x440] sm:$0xff]
                  %730 = vst [vmem:[%s554 + $0x2b8] sm:$0xff] %v729
                  %v731 = vld [vmem:[%s553 + $0x448] sm:$0xff]
                  %732 = vst [vmem:[%s554 + $0x2c0] sm:$0xff] %v731
                  %v733 = vld [vmem:[%s553 + $0x450] sm:$0xff]
                  %734 = vst [vmem:[%s554 + $0x2c8] sm:$0xff] %v733
                  %v735 = vld [vmem:[%s553 + $0x458] sm:$0xff]
                  %736 = vst [vmem:[%s554 + $0x2d0] sm:$0xff] %v735
                  %v737 = vld [vmem:[%s553 + $0x460] sm:$0xff]
                  %738 = vst [vmem:[%s554 + $0x2d8] sm:$0xff] %v737
                  %v739 = vld [vmem:[%s553 + $0x468] sm:$0xff]
                  %740 = vst [vmem:[%s554 + $0x2e0] sm:$0xff] %v739
                  %v741 = vld [vmem:[%s553 + $0x470] sm:$0xff]
                  %742 = vst [vmem:[%s554 + $0x2e8] sm:$0xff] %v741
                  %v743 = vld [vmem:[%s553 + $0x478] sm:$0xff]
                  %744 = vst [vmem:[%s554 + $0x2f0] sm:$0xff] %v743
                  %v745 = vld [vmem:[%s553 + $0x480] sm:$0xff]
                  %746 = vst [vmem:[%s554 + $0x2f8] sm:$0xff] %v745
                  %v747 = vld [vmem:[%s553 + $0x488] sm:$0xff]
                  %748 = vst [vmem:[%s554 + $0x300] sm:$0xff] %v747
                  %v749 = vld [vmem:[%s553 + $0x490] sm:$0xff]
                  %750 = vst [vmem:[%s554 + $0x308] sm:$0xff] %v749
                  %v751 = vld [vmem:[%s553 + $0x620] sm:$0xff]
                  %752 = vst [vmem:[%s554 + $0x310] sm:$0xff] %v751
                  %v753 = vld [vmem:[%s553 + $0x628] sm:$0xff]
                  %754 = vst [vmem:[%s554 + $0x318] sm:$0xff] %v753
                  %v755 = vld [vmem:[%s553 + $0x630] sm:$0xff]
                  %756 = vst [vmem:[%s554 + $0x320] sm:$0xff] %v755
                  %v757 = vld [vmem:[%s553 + $0x638] sm:$0xff]
                  %758 = vst [vmem:[%s554 + $0x328] sm:$0xff] %v757
                  %v759 = vld [vmem:[%s553 + $0x640] sm:$0xff]
                  %760 = vst [vmem:[%s554 + $0x330] sm:$0xff] %v759
                  %v761 = vld [vmem:[%s553 + $0x648] sm:$0xff]
                  %762 = vst [vmem:[%s554 + $0x338] sm:$0xff] %v761
                  %v763 = vld [vmem:[%s553 + $0x650] sm:$0xff]
                  %764 = vst [vmem:[%s554 + $0x340] sm:$0xff] %v763
                  %v765 = vld [vmem:[%s553 + $0x658] sm:$0xff]
                  %766 = vst [vmem:[%s554 + $0x348] sm:$0xff] %v765
                  %v767 = vld [vmem:[%s553 + $0x660] sm:$0xff]
                  %768 = vst [vmem:[%s554 + $0x350] sm:$0xff] %v767
                  %v769 = vld [vmem:[%s553 + $0x668] sm:$0xff]
                  %770 = vst [vmem:[%s554 + $0x358] sm:$0xff] %v769
                  %v771 = vld [vmem:[%s553 + $0x670] sm:$0xff]
                  %772 = vst [vmem:[%s554 + $0x360] sm:$0xff] %v771
                  %v773 = vld [vmem:[%s553 + $0x678] sm:$0xff]
                  %774 = vst [vmem:[%s554 + $0x368] sm:$0xff] %v773
                  %v775 = vld [vmem:[%s553 + $0x680] sm:$0xff]
                  %776 = vst [vmem:[%s554 + $0x370] sm:$0xff] %v775
                  %v777 = vld [vmem:[%s553 + $0x688] sm:$0xff]
                  %778 = vst [vmem:[%s554 + $0x378] sm:$0xff] %v777
                  %v779 = vld [vmem:[%s553 + $0x690] sm:$0xff]
                  %780 = vst [vmem:[%s554 + $0x380] sm:$0xff] %v779
                  %v781 = vld [vmem:[%s553 + $0x698] sm:$0xff]
                  %782 = vst [vmem:[%s554 + $0x388] sm:$0xff] %v781
                  %v783 = vld [vmem:[%s553 + $0x6a0] sm:$0xff]
                  %784 = vst [vmem:[%s554 + $0x390] sm:$0xff] %v783
                  %v785 = vld [vmem:[%s553 + $0x6a8] sm:$0xff]
                  %786 = vst [vmem:[%s554 + $0x398] sm:$0xff] %v785
                  %v787 = vld [vmem:[%s553 + $0x6b0] sm:$0xff]
                  %788 = vst [vmem:[%s554 + $0x3a0] sm:$0xff] %v787
                  %v789 = vld [vmem:[%s553 + $0x6b8] sm:$0xff]
                  %790 = vst [vmem:[%s554 + $0x3a8] sm:$0xff] %v789
                  %v791 = vld [vmem:[%s553 + $0x6c0] sm:$0xff]
                  %792 = vst [vmem:[%s554 + $0x3b0] sm:$0xff] %v791
                  %v793 = vld [vmem:[%s553 + $0x6c8] sm:$0xff]
                  %794 = vst [vmem:[%s554 + $0x3b8] sm:$0xff] %v793
                  %v795 = vld [vmem:[%s553 + $0x6d0] sm:$0xff]
                  %796 = vst [vmem:[%s554 + $0x3c0] sm:$0xff] %v795
                  %v797 = vld [vmem:[%s553 + $0x6d8] sm:$0xff]
                  %798 = vst [vmem:[%s554 + $0x3c8] sm:$0xff] %v797
                  %v799 = vld [vmem:[%s553 + $0x6e0] sm:$0xff]
                  %800 = vst [vmem:[%s554 + $0x3d0] sm:$0xff] %v799
                  %v801 = vld [vmem:[%s553 + $0x6e8] sm:$0xff]
                  %802 = vst [vmem:[%s554 + $0x3d8] sm:$0xff] %v801
                  %v803 = vld [vmem:[%s553 + $0x6f0] sm:$0xff]
                  %804 = vst [vmem:[%s554 + $0x3e0] sm:$0xff] %v803
                  %v805 = vld [vmem:[%s553 + $0x6f8] sm:$0xff]
                  %806 = vst [vmem:[%s554 + $0x3e8] sm:$0xff] %v805
                  %v807 = vld [vmem:[%s553 + $0x700] sm:$0xff]
                  %808 = vst [vmem:[%s554 + $0x3f0] sm:$0xff] %v807
                  %v809 = vld [vmem:[%s553 + $0x708] sm:$0xff]
                  %810 = vst [vmem:[%s554 + $0x3f8] sm:$0xff] %v809
                  %v811 = vld [vmem:[%s553 + $0x710] sm:$0xff]
                  %812 = vst [vmem:[%s554 + $0x400] sm:$0xff] %v811
                  %v813 = vld [vmem:[%s553 + $0x718] sm:$0xff]
                  %814 = vst [vmem:[%s554 + $0x408] sm:$0xff] %v813
                  %v815 = vld [vmem:[%s553 + $0x720] sm:$0xff]
                  %816 = vst [vmem:[%s554 + $0x410] sm:$0xff] %v815
                  %v817 = vld [vmem:[%s553 + $0x728] sm:$0xff]
                  %818 = vst [vmem:[%s554 + $0x418] sm:$0xff] %v817
                  %v819 = vld [vmem:[%s553 + $0x730] sm:$0xff]
                  %820 = vst [vmem:[%s554 + $0x420] sm:$0xff] %v819
                  %v821 = vld [vmem:[%s553 + $0x738] sm:$0xff]
                  %822 = vst [vmem:[%s554 + $0x428] sm:$0xff] %v821
                  %v823 = vld [vmem:[%s553 + $0x740] sm:$0xff]
                  %824 = vst [vmem:[%s554 + $0x430] sm:$0xff] %v823
                  %v825 = vld [vmem:[%s553 + $0x748] sm:$0xff]
                  %826 = vst [vmem:[%s554 + $0x438] sm:$0xff] %v825
                  %v827 = vld [vmem:[%s553 + $0x750] sm:$0xff]
                  %828 = vst [vmem:[%s554 + $0x440] sm:$0xff] %v827
                  %v829 = vld [vmem:[%s553 + $0x758] sm:$0xff]
                  %830 = vst [vmem:[%s554 + $0x448] sm:$0xff] %v829
                  %v831 = vld [vmem:[%s553 + $0x760] sm:$0xff]
                  %832 = vst [vmem:[%s554 + $0x450] sm:$0xff] %v831
                  %v833 = vld [vmem:[%s553 + $0x768] sm:$0xff]
                  %834 = vst [vmem:[%s554 + $0x458] sm:$0xff] %v833
                  %v835 = vld [vmem:[%s553 + $0x770] sm:$0xff]
                  %836 = vst [vmem:[%s554 + $0x460] sm:$0xff] %v835
                  %v837 = vld [vmem:[%s553 + $0x778] sm:$0xff]
                  %838 = vst [vmem:[%s554 + $0x468] sm:$0xff] %v837
                  %v839 = vld [vmem:[%s553 + $0x780] sm:$0xff]
                  %840 = vst [vmem:[%s554 + $0x470] sm:$0xff] %v839
                  %v841 = vld [vmem:[%s553 + $0x788] sm:$0xff]
                  %842 = vst [vmem:[%s554 + $0x478] sm:$0xff] %v841
                  %v843 = vld [vmem:[%s553 + $0x790] sm:$0xff]
                  %844 = vst [vmem:[%s554 + $0x480] sm:$0xff] %v843
                  %v845 = vld [vmem:[%s553 + $0x798] sm:$0xff]
                  %846 = vst [vmem:[%s554 + $0x488] sm:$0xff] %v845
                  %v847 = vld [vmem:[%s553 + $0x7a0] sm:$0xff]
                  %848 = vst [vmem:[%s554 + $0x490] sm:$0xff] %v847
                  %v849 = vld [vmem:[%s553 + $0x930] sm:$0xff]
                  %850 = vst [vmem:[%s554 + $0x498] sm:$0xff] %v849
                  %v851 = vld [vmem:[%s553 + $0x938] sm:$0xff]
                  %852 = vst [vmem:[%s554 + $0x4a0] sm:$0xff] %v851
                  %v853 = vld [vmem:[%s553 + $0x940] sm:$0xff]
                  %854 = vst [vmem:[%s554 + $0x4a8] sm:$0xff] %v853
                  %v855 = vld [vmem:[%s553 + $0x948] sm:$0xff]
                  %856 = vst [vmem:[%s554 + $0x4b0] sm:$0xff] %v855
                  %v857 = vld [vmem:[%s553 + $0x950] sm:$0xff]
                  %858 = vst [vmem:[%s554 + $0x4b8] sm:$0xff] %v857
                  %v859 = vld [vmem:[%s553 + $0x958] sm:$0xff]
                  %860 = vst [vmem:[%s554 + $0x4c0] sm:$0xff] %v859
                  %v861 = vld [vmem:[%s553 + $0x960] sm:$0xff]
                  %862 = vst [vmem:[%s554 + $0x4c8] sm:$0xff] %v861
                  %v863 = vld [vmem:[%s553 + $0x968] sm:$0xff]
                  %864 = vst [vmem:[%s554 + $0x4d0] sm:$0xff] %v863
                  %v865 = vld [vmem:[%s553 + $0x970] sm:$0xff]
                  %866 = vst [vmem:[%s554 + $0x4d8] sm:$0xff] %v865
                  %v867 = vld [vmem:[%s553 + $0x978] sm:$0xff]
                  %868 = vst [vmem:[%s554 + $0x4e0] sm:$0xff] %v867
                  %v869 = vld [vmem:[%s553 + $0x980] sm:$0xff]
                  %870 = vst [vmem:[%s554 + $0x4e8] sm:$0xff] %v869
                  %v871 = vld [vmem:[%s553 + $0x988] sm:$0xff]
                  %872 = vst [vmem:[%s554 + $0x4f0] sm:$0xff] %v871
                  %v873 = vld [vmem:[%s553 + $0x990] sm:$0xff]
                  %874 = vst [vmem:[%s554 + $0x4f8] sm:$0xff] %v873
                  %v875 = vld [vmem:[%s553 + $0x998] sm:$0xff]
                  %876 = vst [vmem:[%s554 + $0x500] sm:$0xff] %v875
                  %v877 = vld [vmem:[%s553 + $0x9a0] sm:$0xff]
                  %878 = vst [vmem:[%s554 + $0x508] sm:$0xff] %v877
                  %v879 = vld [vmem:[%s553 + $0x9a8] sm:$0xff]
                  %880 = vst [vmem:[%s554 + $0x510] sm:$0xff] %v879
                  %v881 = vld [vmem:[%s553 + $0x9b0] sm:$0xff]
                  %882 = vst [vmem:[%s554 + $0x518] sm:$0xff] %v881
                  %v883 = vld [vmem:[%s553 + $0x9b8] sm:$0xff]
                  %884 = vst [vmem:[%s554 + $0x520] sm:$0xff] %v883
                  %v885 = vld [vmem:[%s553 + $0x9c0] sm:$0xff]
                  %886 = vst [vmem:[%s554 + $0x528] sm:$0xff] %v885
                  %v887 = vld [vmem:[%s553 + $0x9c8] sm:$0xff]
                  %888 = vst [vmem:[%s554 + $0x530] sm:$0xff] %v887
                  %v889 = vld [vmem:[%s553 + $0x9d0] sm:$0xff]
                  %890 = vst [vmem:[%s554 + $0x538] sm:$0xff] %v889
                  %v891 = vld [vmem:[%s553 + $0x9d8] sm:$0xff]
                  %892 = vst [vmem:[%s554 + $0x540] sm:$0xff] %v891
                  %v893 = vld [vmem:[%s553 + $0x9e0] sm:$0xff]
                  %894 = vst [vmem:[%s554 + $0x548] sm:$0xff] %v893
                  %v895 = vld [vmem:[%s553 + $0x9e8] sm:$0xff]
                  %896 = vst [vmem:[%s554 + $0x550] sm:$0xff] %v895
                  %v897 = vld [vmem:[%s553 + $0x9f0] sm:$0xff]
                  %898 = vst [vmem:[%s554 + $0x558] sm:$0xff] %v897
                  %v899 = vld [vmem:[%s553 + $0x9f8] sm:$0xff]
                  %900 = vst [vmem:[%s554 + $0x560] sm:$0xff] %v899
                  %v901 = vld [vmem:[%s553 + $0xa00] sm:$0xff]
                  %902 = vst [vmem:[%s554 + $0x568] sm:$0xff] %v901
                  %v903 = vld [vmem:[%s553 + $0xa08] sm:$0xff]
                  %904 = vst [vmem:[%s554 + $0x570] sm:$0xff] %v903
                  %v905 = vld [vmem:[%s553 + $0xa10] sm:$0xff]
                  %906 = vst [vmem:[%s554 + $0x578] sm:$0xff] %v905
                  %v907 = vld [vmem:[%s553 + $0xa18] sm:$0xff]
                  %908 = vst [vmem:[%s554 + $0x580] sm:$0xff] %v907
                  %v909 = vld [vmem:[%s553 + $0xa20] sm:$0xff]
                  %910 = vst [vmem:[%s554 + $0x588] sm:$0xff] %v909
                  %v911 = vld [vmem:[%s553 + $0xa28] sm:$0xff]
                  %912 = vst [vmem:[%s554 + $0x590] sm:$0xff] %v911
                  %v913 = vld [vmem:[%s553 + $0xa30] sm:$0xff]
                  %914 = vst [vmem:[%s554 + $0x598] sm:$0xff] %v913
                  %v915 = vld [vmem:[%s553 + $0xa38] sm:$0xff]
                  %916 = vst [vmem:[%s554 + $0x5a0] sm:$0xff] %v915
                  %v917 = vld [vmem:[%s553 + $0xa40] sm:$0xff]
                  %918 = vst [vmem:[%s554 + $0x5a8] sm:$0xff] %v917
                  %v919 = vld [vmem:[%s553 + $0xa48] sm:$0xff]
                  %920 = vst [vmem:[%s554 + $0x5b0] sm:$0xff] %v919
                  %v921 = vld [vmem:[%s553 + $0xa50] sm:$0xff]
                  %922 = vst [vmem:[%s554 + $0x5b8] sm:$0xff] %v921
                  %v923 = vld [vmem:[%s553 + $0xa58] sm:$0xff]
                  %924 = vst [vmem:[%s554 + $0x5c0] sm:$0xff] %v923
                  %v925 = vld [vmem:[%s553 + $0xa60] sm:$0xff]
                  %926 = vst [vmem:[%s554 + $0x5c8] sm:$0xff] %v925
                  %v927 = vld [vmem:[%s553 + $0xa68] sm:$0xff]
                  %928 = vst [vmem:[%s554 + $0x5d0] sm:$0xff] %v927
                  %v929 = vld [vmem:[%s553 + $0xa70] sm:$0xff]
                  %930 = vst [vmem:[%s554 + $0x5d8] sm:$0xff] %v929
                  %v931 = vld [vmem:[%s553 + $0xa78] sm:$0xff]
                  %932 = vst [vmem:[%s554 + $0x5e0] sm:$0xff] %v931
                  %v933 = vld [vmem:[%s553 + $0xa80] sm:$0xff]
                  %934 = vst [vmem:[%s554 + $0x5e8] sm:$0xff] %v933
                  %v935 = vld [vmem:[%s553 + $0xa88] sm:$0xff]
                  %936 = vst [vmem:[%s554 + $0x5f0] sm:$0xff] %v935
                  %v937 = vld [vmem:[%s553 + $0xa90] sm:$0xff]
                  %938 = vst [vmem:[%s554 + $0x5f8] sm:$0xff] %v937
                  %v939 = vld [vmem:[%s553 + $0xa98] sm:$0xff]
                  %940 = vst [vmem:[%s554 + $0x600] sm:$0xff] %v939
                  %v941 = vld [vmem:[%s553 + $0xaa0] sm:$0xff]
                  %942 = vst [vmem:[%s554 + $0x608] sm:$0xff] %v941
                  %v943 = vld [vmem:[%s553 + $0xaa8] sm:$0xff]
                  %944 = vst [vmem:[%s554 + $0x610] sm:$0xff] %v943
                  %v945 = vld [vmem:[%s553 + $0xab0] sm:$0xff]
                  %946 = vst [vmem:[%s554 + $0x618] sm:$0xff] %v945
                $region56: #{bwn_net_forward.3} parent=50 // loop_footer
                  %s552 = sadd.s32 1, %s548
                $region57: #{bwn_net_forward.3} parent=50 // loop_footer_branch
                  %547 = sbr.rel target = $region53
                $region58: #{bwn_net_forward.3} parent=50 // loop_exit
                  _
              $region51: #{bwn_net_forward.3} parent=35 // pred_fallthru
                _
              // Predicated region
              $region59: #{bwn_net_forward.3} parent=35 // pred_check
                _
              $region60: #{bwn_net_forward.3} parent=35 // pred_check_branch
                %948 = sbr.rel target = $region62
              $region61: #{bwn_net_forward.3} parent=35 // pred_region
                _
              $region62: #{bwn_net_forward.3} parent=35 // pred_fallthru
                _
            $region36: #{bwn_net_forward.3} parent=31 // pred_fallthru
              _
            // Predicated region
            $region37: #{bwn_net_forward.3} parent=31 // pred_check
              _
            $region38: #{bwn_net_forward.3} parent=31 // pred_check_branch
              %143 = sbr.rel target = $region40
            $region39: #{bwn_net_forward.3} parent=31 // pred_region
              loop: start=0, step=1, limit=1
              $region41: #{bwn_net_forward.3} parent=39 // loop_pre_header
                _
              $region42: #{bwn_net_forward.3} parent=39 // loop_header
                %s146 = sphi 0, %s150
                %p147 = scmp.ge.s32.totalorder %s146, 1
                %s151 = sphi %s137, %s137
                %s152 = sphi %s134, %s134
              $region43: #{bwn_net_forward.3} parent=39 // loop_header_branch
                %149 = sbr.rel (%p147) target = $region47
              $region44: #{bwn_net_forward.3} parent=39 // loop_body
                %v153 = vld [vmem:[%s151] sm:$0xff]
                %154 = vst [vmem:[%s152] sm:$0xff] %v153
                %v155 = vld [vmem:[%s151 + $0x8] sm:$0xff]
                %156 = vst [vmem:[%s152 + $0x8] sm:$0xff] %v155
                %v157 = vld [vmem:[%s151 + $0x10] sm:$0xff]
                %158 = vst [vmem:[%s152 + $0x10] sm:$0xff] %v157
                %v159 = vld [vmem:[%s151 + $0x18] sm:$0xff]
                %160 = vst [vmem:[%s152 + $0x18] sm:$0xff] %v159
                %v161 = vld [vmem:[%s151 + $0x20] sm:$0xff]
                %162 = vst [vmem:[%s152 + $0x20] sm:$0xff] %v161
                %v163 = vld [vmem:[%s151 + $0x28] sm:$0xff]
                %164 = vst [vmem:[%s152 + $0x28] sm:$0xff] %v163
                %v165 = vld [vmem:[%s151 + $0x30] sm:$0xff]
                %166 = vst [vmem:[%s152 + $0x30] sm:$0xff] %v165
                %v167 = vld [vmem:[%s151 + $0x38] sm:$0xff]
                %168 = vst [vmem:[%s152 + $0x38] sm:$0xff] %v167
                %v169 = vld [vmem:[%s151 + $0x40] sm:$0xff]
                %170 = vst [vmem:[%s152 + $0x40] sm:$0xff] %v169
                %v171 = vld [vmem:[%s151 + $0x48] sm:$0xff]
                %172 = vst [vmem:[%s152 + $0x48] sm:$0xff] %v171
                %v173 = vld [vmem:[%s151 + $0x50] sm:$0xff]
                %174 = vst [vmem:[%s152 + $0x50] sm:$0xff] %v173
                %v175 = vld [vmem:[%s151 + $0x58] sm:$0xff]
                %176 = vst [vmem:[%s152 + $0x58] sm:$0xff] %v175
                %v177 = vld [vmem:[%s151 + $0x60] sm:$0xff]
                %178 = vst [vmem:[%s152 + $0x60] sm:$0xff] %v177
                %v179 = vld [vmem:[%s151 + $0x68] sm:$0xff]
                %180 = vst [vmem:[%s152 + $0x68] sm:$0xff] %v179
                %v181 = vld [vmem:[%s151 + $0x70] sm:$0xff]
                %182 = vst [vmem:[%s152 + $0x70] sm:$0xff] %v181
                %v183 = vld [vmem:[%s151 + $0x78] sm:$0xff]
                %184 = vst [vmem:[%s152 + $0x78] sm:$0xff] %v183
                %v185 = vld [vmem:[%s151 + $0x80] sm:$0xff]
                %186 = vst [vmem:[%s152 + $0x80] sm:$0xff] %v185
                %v187 = vld [vmem:[%s151 + $0x88] sm:$0xff]
                %188 = vst [vmem:[%s152 + $0x88] sm:$0xff] %v187
                %v189 = vld [vmem:[%s151 + $0x90] sm:$0xff]
                %190 = vst [vmem:[%s152 + $0x90] sm:$0xff] %v189
                %v191 = vld [vmem:[%s151 + $0x98] sm:$0xff]
                %192 = vst [vmem:[%s152 + $0x98] sm:$0xff] %v191
                %v193 = vld [vmem:[%s151 + $0xa0] sm:$0xff]
                %194 = vst [vmem:[%s152 + $0xa0] sm:$0xff] %v193
                %v195 = vld [vmem:[%s151 + $0xa8] sm:$0xff]
                %196 = vst [vmem:[%s152 + $0xa8] sm:$0xff] %v195
                %v197 = vld [vmem:[%s151 + $0xb0] sm:$0xff]
                %198 = vst [vmem:[%s152 + $0xb0] sm:$0xff] %v197
                %v199 = vld [vmem:[%s151 + $0xb8] sm:$0xff]
                %200 = vst [vmem:[%s152 + $0xb8] sm:$0xff] %v199
                %v201 = vld [vmem:[%s151 + $0xc0] sm:$0xff]
                %202 = vst [vmem:[%s152 + $0xc0] sm:$0xff] %v201
                %v203 = vld [vmem:[%s151 + $0xc8] sm:$0xff]
                %204 = vst [vmem:[%s152 + $0xc8] sm:$0xff] %v203
                %v205 = vld [vmem:[%s151 + $0xd0] sm:$0xff]
                %206 = vst [vmem:[%s152 + $0xd0] sm:$0xff] %v205
                %v207 = vld [vmem:[%s151 + $0xd8] sm:$0xff]
                %208 = vst [vmem:[%s152 + $0xd8] sm:$0xff] %v207
                %v209 = vld [vmem:[%s151 + $0xe0] sm:$0xff]
                %210 = vst [vmem:[%s152 + $0xe0] sm:$0xff] %v209
                %v211 = vld [vmem:[%s151 + $0xe8] sm:$0xff]
                %212 = vst [vmem:[%s152 + $0xe8] sm:$0xff] %v211
                %v213 = vld [vmem:[%s151 + $0xf0] sm:$0xff]
                %214 = vst [vmem:[%s152 + $0xf0] sm:$0xff] %v213
                %v215 = vld [vmem:[%s151 + $0xf8] sm:$0xff]
                %216 = vst [vmem:[%s152 + $0xf8] sm:$0xff] %v215
                %v217 = vld [vmem:[%s151 + $0x100] sm:$0xff]
                %218 = vst [vmem:[%s152 + $0x100] sm:$0xff] %v217
                %v219 = vld [vmem:[%s151 + $0x108] sm:$0xff]
                %220 = vst [vmem:[%s152 + $0x108] sm:$0xff] %v219
                %v221 = vld [vmem:[%s151 + $0x110] sm:$0xff]
                %222 = vst [vmem:[%s152 + $0x110] sm:$0xff] %v221
                %v223 = vld [vmem:[%s151 + $0x118] sm:$0xff]
                %224 = vst [vmem:[%s152 + $0x118] sm:$0xff] %v223
                %v225 = vld [vmem:[%s151 + $0x120] sm:$0xff]
                %226 = vst [vmem:[%s152 + $0x120] sm:$0xff] %v225
                %v227 = vld [vmem:[%s151 + $0x128] sm:$0xff]
                %228 = vst [vmem:[%s152 + $0x128] sm:$0xff] %v227
                %v229 = vld [vmem:[%s151 + $0x130] sm:$0xff]
                %230 = vst [vmem:[%s152 + $0x130] sm:$0xff] %v229
                %v231 = vld [vmem:[%s151 + $0x138] sm:$0xff]
                %232 = vst [vmem:[%s152 + $0x138] sm:$0xff] %v231
                %v233 = vld [vmem:[%s151 + $0x140] sm:$0xff]
                %234 = vst [vmem:[%s152 + $0x140] sm:$0xff] %v233
                %v235 = vld [vmem:[%s151 + $0x148] sm:$0xff]
                %236 = vst [vmem:[%s152 + $0x148] sm:$0xff] %v235
                %v237 = vld [vmem:[%s151 + $0x150] sm:$0xff]
                %238 = vst [vmem:[%s152 + $0x150] sm:$0xff] %v237
                %v239 = vld [vmem:[%s151 + $0x158] sm:$0xff]
                %240 = vst [vmem:[%s152 + $0x158] sm:$0xff] %v239
                %v241 = vld [vmem:[%s151 + $0x160] sm:$0xff]
                %242 = vst [vmem:[%s152 + $0x160] sm:$0xff] %v241
                %v243 = vld [vmem:[%s151 + $0x168] sm:$0xff]
                %244 = vst [vmem:[%s152 + $0x168] sm:$0xff] %v243
                %v245 = vld [vmem:[%s151 + $0x170] sm:$0xff]
                %246 = vst [vmem:[%s152 + $0x170] sm:$0xff] %v245
                %v247 = vld [vmem:[%s151 + $0x178] sm:$0xff]
                %248 = vst [vmem:[%s152 + $0x178] sm:$0xff] %v247
                %v249 = vld [vmem:[%s151 + $0x180] sm:$0xff]
                %250 = vst [vmem:[%s152 + $0x180] sm:$0xff] %v249
                %v251 = vld [vmem:[%s151 + $0x310] sm:$0xff]
                %252 = vst [vmem:[%s152 + $0x188] sm:$0xff] %v251
                %v253 = vld [vmem:[%s151 + $0x318] sm:$0xff]
                %254 = vst [vmem:[%s152 + $0x190] sm:$0xff] %v253
                %v255 = vld [vmem:[%s151 + $0x320] sm:$0xff]
                %256 = vst [vmem:[%s152 + $0x198] sm:$0xff] %v255
                %v257 = vld [vmem:[%s151 + $0x328] sm:$0xff]
                %258 = vst [vmem:[%s152 + $0x1a0] sm:$0xff] %v257
                %v259 = vld [vmem:[%s151 + $0x330] sm:$0xff]
                %260 = vst [vmem:[%s152 + $0x1a8] sm:$0xff] %v259
                %v261 = vld [vmem:[%s151 + $0x338] sm:$0xff]
                %262 = vst [vmem:[%s152 + $0x1b0] sm:$0xff] %v261
                %v263 = vld [vmem:[%s151 + $0x340] sm:$0xff]
                %264 = vst [vmem:[%s152 + $0x1b8] sm:$0xff] %v263
                %v265 = vld [vmem:[%s151 + $0x348] sm:$0xff]
                %266 = vst [vmem:[%s152 + $0x1c0] sm:$0xff] %v265
                %v267 = vld [vmem:[%s151 + $0x350] sm:$0xff]
                %268 = vst [vmem:[%s152 + $0x1c8] sm:$0xff] %v267
                %v269 = vld [vmem:[%s151 + $0x358] sm:$0xff]
                %270 = vst [vmem:[%s152 + $0x1d0] sm:$0xff] %v269
                %v271 = vld [vmem:[%s151 + $0x360] sm:$0xff]
                %272 = vst [vmem:[%s152 + $0x1d8] sm:$0xff] %v271
                %v273 = vld [vmem:[%s151 + $0x368] sm:$0xff]
                %274 = vst [vmem:[%s152 + $0x1e0] sm:$0xff] %v273
                %v275 = vld [vmem:[%s151 + $0x370] sm:$0xff]
                %276 = vst [vmem:[%s152 + $0x1e8] sm:$0xff] %v275
                %v277 = vld [vmem:[%s151 + $0x378] sm:$0xff]
                %278 = vst [vmem:[%s152 + $0x1f0] sm:$0xff] %v277
                %v279 = vld [vmem:[%s151 + $0x380] sm:$0xff]
                %280 = vst [vmem:[%s152 + $0x1f8] sm:$0xff] %v279
                %v281 = vld [vmem:[%s151 + $0x388] sm:$0xff]
                %282 = vst [vmem:[%s152 + $0x200] sm:$0xff] %v281
                %v283 = vld [vmem:[%s151 + $0x390] sm:$0xff]
                %284 = vst [vmem:[%s152 + $0x208] sm:$0xff] %v283
                %v285 = vld [vmem:[%s151 + $0x398] sm:$0xff]
                %286 = vst [vmem:[%s152 + $0x210] sm:$0xff] %v285
                %v287 = vld [vmem:[%s151 + $0x3a0] sm:$0xff]
                %288 = vst [vmem:[%s152 + $0x218] sm:$0xff] %v287
                %v289 = vld [vmem:[%s151 + $0x3a8] sm:$0xff]
                %290 = vst [vmem:[%s152 + $0x220] sm:$0xff] %v289
                %v291 = vld [vmem:[%s151 + $0x3b0] sm:$0xff]
                %292 = vst [vmem:[%s152 + $0x228] sm:$0xff] %v291
                %v293 = vld [vmem:[%s151 + $0x3b8] sm:$0xff]
                %294 = vst [vmem:[%s152 + $0x230] sm:$0xff] %v293
                %v295 = vld [vmem:[%s151 + $0x3c0] sm:$0xff]
                %296 = vst [vmem:[%s152 + $0x238] sm:$0xff] %v295
                %v297 = vld [vmem:[%s151 + $0x3c8] sm:$0xff]
                %298 = vst [vmem:[%s152 + $0x240] sm:$0xff] %v297
                %v299 = vld [vmem:[%s151 + $0x3d0] sm:$0xff]
                %300 = vst [vmem:[%s152 + $0x248] sm:$0xff] %v299
                %v301 = vld [vmem:[%s151 + $0x3d8] sm:$0xff]
                %302 = vst [vmem:[%s152 + $0x250] sm:$0xff] %v301
                %v303 = vld [vmem:[%s151 + $0x3e0] sm:$0xff]
                %304 = vst [vmem:[%s152 + $0x258] sm:$0xff] %v303
                %v305 = vld [vmem:[%s151 + $0x3e8] sm:$0xff]
                %306 = vst [vmem:[%s152 + $0x260] sm:$0xff] %v305
                %v307 = vld [vmem:[%s151 + $0x3f0] sm:$0xff]
                %308 = vst [vmem:[%s152 + $0x268] sm:$0xff] %v307
                %v309 = vld [vmem:[%s151 + $0x3f8] sm:$0xff]
                %310 = vst [vmem:[%s152 + $0x270] sm:$0xff] %v309
                %v311 = vld [vmem:[%s151 + $0x400] sm:$0xff]
                %312 = vst [vmem:[%s152 + $0x278] sm:$0xff] %v311
                %v313 = vld [vmem:[%s151 + $0x408] sm:$0xff]
                %314 = vst [vmem:[%s152 + $0x280] sm:$0xff] %v313
                %v315 = vld [vmem:[%s151 + $0x410] sm:$0xff]
                %316 = vst [vmem:[%s152 + $0x288] sm:$0xff] %v315
                %v317 = vld [vmem:[%s151 + $0x418] sm:$0xff]
                %318 = vst [vmem:[%s152 + $0x290] sm:$0xff] %v317
                %v319 = vld [vmem:[%s151 + $0x420] sm:$0xff]
                %320 = vst [vmem:[%s152 + $0x298] sm:$0xff] %v319
                %v321 = vld [vmem:[%s151 + $0x428] sm:$0xff]
                %322 = vst [vmem:[%s152 + $0x2a0] sm:$0xff] %v321
                %v323 = vld [vmem:[%s151 + $0x430] sm:$0xff]
                %324 = vst [vmem:[%s152 + $0x2a8] sm:$0xff] %v323
                %v325 = vld [vmem:[%s151 + $0x438] sm:$0xff]
                %326 = vst [vmem:[%s152 + $0x2b0] sm:$0xff] %v325
                %v327 = vld [vmem:[%s151 + $0x440] sm:$0xff]
                %328 = vst [vmem:[%s152 + $0x2b8] sm:$0xff] %v327
                %v329 = vld [vmem:[%s151 + $0x448] sm:$0xff]
                %330 = vst [vmem:[%s152 + $0x2c0] sm:$0xff] %v329
                %v331 = vld [vmem:[%s151 + $0x450] sm:$0xff]
                %332 = vst [vmem:[%s152 + $0x2c8] sm:$0xff] %v331
                %v333 = vld [vmem:[%s151 + $0x458] sm:$0xff]
                %334 = vst [vmem:[%s152 + $0x2d0] sm:$0xff] %v333
                %v335 = vld [vmem:[%s151 + $0x460] sm:$0xff]
                %336 = vst [vmem:[%s152 + $0x2d8] sm:$0xff] %v335
                %v337 = vld [vmem:[%s151 + $0x468] sm:$0xff]
                %338 = vst [vmem:[%s152 + $0x2e0] sm:$0xff] %v337
                %v339 = vld [vmem:[%s151 + $0x470] sm:$0xff]
                %340 = vst [vmem:[%s152 + $0x2e8] sm:$0xff] %v339
                %v341 = vld [vmem:[%s151 + $0x478] sm:$0xff]
                %342 = vst [vmem:[%s152 + $0x2f0] sm:$0xff] %v341
                %v343 = vld [vmem:[%s151 + $0x480] sm:$0xff]
                %344 = vst [vmem:[%s152 + $0x2f8] sm:$0xff] %v343
                %v345 = vld [vmem:[%s151 + $0x488] sm:$0xff]
                %346 = vst [vmem:[%s152 + $0x300] sm:$0xff] %v345
                %v347 = vld [vmem:[%s151 + $0x490] sm:$0xff]
                %348 = vst [vmem:[%s152 + $0x308] sm:$0xff] %v347
                %v349 = vld [vmem:[%s151 + $0x620] sm:$0xff]
                %350 = vst [vmem:[%s152 + $0x310] sm:$0xff] %v349
                %v351 = vld [vmem:[%s151 + $0x628] sm:$0xff]
                %352 = vst [vmem:[%s152 + $0x318] sm:$0xff] %v351
                %v353 = vld [vmem:[%s151 + $0x630] sm:$0xff]
                %354 = vst [vmem:[%s152 + $0x320] sm:$0xff] %v353
                %v355 = vld [vmem:[%s151 + $0x638] sm:$0xff]
                %356 = vst [vmem:[%s152 + $0x328] sm:$0xff] %v355
                %v357 = vld [vmem:[%s151 + $0x640] sm:$0xff]
                %358 = vst [vmem:[%s152 + $0x330] sm:$0xff] %v357
                %v359 = vld [vmem:[%s151 + $0x648] sm:$0xff]
                %360 = vst [vmem:[%s152 + $0x338] sm:$0xff] %v359
                %v361 = vld [vmem:[%s151 + $0x650] sm:$0xff]
                %362 = vst [vmem:[%s152 + $0x340] sm:$0xff] %v361
                %v363 = vld [vmem:[%s151 + $0x658] sm:$0xff]
                %364 = vst [vmem:[%s152 + $0x348] sm:$0xff] %v363
                %v365 = vld [vmem:[%s151 + $0x660] sm:$0xff]
                %366 = vst [vmem:[%s152 + $0x350] sm:$0xff] %v365
                %v367 = vld [vmem:[%s151 + $0x668] sm:$0xff]
                %368 = vst [vmem:[%s152 + $0x358] sm:$0xff] %v367
                %v369 = vld [vmem:[%s151 + $0x670] sm:$0xff]
                %370 = vst [vmem:[%s152 + $0x360] sm:$0xff] %v369
                %v371 = vld [vmem:[%s151 + $0x678] sm:$0xff]
                %372 = vst [vmem:[%s152 + $0x368] sm:$0xff] %v371
                %v373 = vld [vmem:[%s151 + $0x680] sm:$0xff]
                %374 = vst [vmem:[%s152 + $0x370] sm:$0xff] %v373
                %v375 = vld [vmem:[%s151 + $0x688] sm:$0xff]
                %376 = vst [vmem:[%s152 + $0x378] sm:$0xff] %v375
                %v377 = vld [vmem:[%s151 + $0x690] sm:$0xff]
                %378 = vst [vmem:[%s152 + $0x380] sm:$0xff] %v377
                %v379 = vld [vmem:[%s151 + $0x698] sm:$0xff]
                %380 = vst [vmem:[%s152 + $0x388] sm:$0xff] %v379
                %v381 = vld [vmem:[%s151 + $0x6a0] sm:$0xff]
                %382 = vst [vmem:[%s152 + $0x390] sm:$0xff] %v381
                %v383 = vld [vmem:[%s151 + $0x6a8] sm:$0xff]
                %384 = vst [vmem:[%s152 + $0x398] sm:$0xff] %v383
                %v385 = vld [vmem:[%s151 + $0x6b0] sm:$0xff]
                %386 = vst [vmem:[%s152 + $0x3a0] sm:$0xff] %v385
                %v387 = vld [vmem:[%s151 + $0x6b8] sm:$0xff]
                %388 = vst [vmem:[%s152 + $0x3a8] sm:$0xff] %v387
                %v389 = vld [vmem:[%s151 + $0x6c0] sm:$0xff]
                %390 = vst [vmem:[%s152 + $0x3b0] sm:$0xff] %v389
                %v391 = vld [vmem:[%s151 + $0x6c8] sm:$0xff]
                %392 = vst [vmem:[%s152 + $0x3b8] sm:$0xff] %v391
                %v393 = vld [vmem:[%s151 + $0x6d0] sm:$0xff]
                %394 = vst [vmem:[%s152 + $0x3c0] sm:$0xff] %v393
                %v395 = vld [vmem:[%s151 + $0x6d8] sm:$0xff]
                %396 = vst [vmem:[%s152 + $0x3c8] sm:$0xff] %v395
                %v397 = vld [vmem:[%s151 + $0x6e0] sm:$0xff]
                %398 = vst [vmem:[%s152 + $0x3d0] sm:$0xff] %v397
                %v399 = vld [vmem:[%s151 + $0x6e8] sm:$0xff]
                %400 = vst [vmem:[%s152 + $0x3d8] sm:$0xff] %v399
                %v401 = vld [vmem:[%s151 + $0x6f0] sm:$0xff]
                %402 = vst [vmem:[%s152 + $0x3e0] sm:$0xff] %v401
                %v403 = vld [vmem:[%s151 + $0x6f8] sm:$0xff]
                %404 = vst [vmem:[%s152 + $0x3e8] sm:$0xff] %v403
                %v405 = vld [vmem:[%s151 + $0x700] sm:$0xff]
                %406 = vst [vmem:[%s152 + $0x3f0] sm:$0xff] %v405
                %v407 = vld [vmem:[%s151 + $0x708] sm:$0xff]
                %408 = vst [vmem:[%s152 + $0x3f8] sm:$0xff] %v407
                %v409 = vld [vmem:[%s151 + $0x710] sm:$0xff]
                %410 = vst [vmem:[%s152 + $0x400] sm:$0xff] %v409
                %v411 = vld [vmem:[%s151 + $0x718] sm:$0xff]
                %412 = vst [vmem:[%s152 + $0x408] sm:$0xff] %v411
                %v413 = vld [vmem:[%s151 + $0x720] sm:$0xff]
                %414 = vst [vmem:[%s152 + $0x410] sm:$0xff] %v413
                %v415 = vld [vmem:[%s151 + $0x728] sm:$0xff]
                %416 = vst [vmem:[%s152 + $0x418] sm:$0xff] %v415
                %v417 = vld [vmem:[%s151 + $0x730] sm:$0xff]
                %418 = vst [vmem:[%s152 + $0x420] sm:$0xff] %v417
                %v419 = vld [vmem:[%s151 + $0x738] sm:$0xff]
                %420 = vst [vmem:[%s152 + $0x428] sm:$0xff] %v419
                %v421 = vld [vmem:[%s151 + $0x740] sm:$0xff]
                %422 = vst [vmem:[%s152 + $0x430] sm:$0xff] %v421
                %v423 = vld [vmem:[%s151 + $0x748] sm:$0xff]
                %424 = vst [vmem:[%s152 + $0x438] sm:$0xff] %v423
                %v425 = vld [vmem:[%s151 + $0x750] sm:$0xff]
                %426 = vst [vmem:[%s152 + $0x440] sm:$0xff] %v425
                %v427 = vld [vmem:[%s151 + $0x758] sm:$0xff]
                %428 = vst [vmem:[%s152 + $0x448] sm:$0xff] %v427
                %v429 = vld [vmem:[%s151 + $0x760] sm:$0xff]
                %430 = vst [vmem:[%s152 + $0x450] sm:$0xff] %v429
                %v431 = vld [vmem:[%s151 + $0x768] sm:$0xff]
                %432 = vst [vmem:[%s152 + $0x458] sm:$0xff] %v431
                %v433 = vld [vmem:[%s151 + $0x770] sm:$0xff]
                %434 = vst [vmem:[%s152 + $0x460] sm:$0xff] %v433
                %v435 = vld [vmem:[%s151 + $0x778] sm:$0xff]
                %436 = vst [vmem:[%s152 + $0x468] sm:$0xff] %v435
                %v437 = vld [vmem:[%s151 + $0x780] sm:$0xff]
                %438 = vst [vmem:[%s152 + $0x470] sm:$0xff] %v437
                %v439 = vld [vmem:[%s151 + $0x788] sm:$0xff]
                %440 = vst [vmem:[%s152 + $0x478] sm:$0xff] %v439
                %v441 = vld [vmem:[%s151 + $0x790] sm:$0xff]
                %442 = vst [vmem:[%s152 + $0x480] sm:$0xff] %v441
                %v443 = vld [vmem:[%s151 + $0x798] sm:$0xff]
                %444 = vst [vmem:[%s152 + $0x488] sm:$0xff] %v443
                %v445 = vld [vmem:[%s151 + $0x7a0] sm:$0xff]
                %446 = vst [vmem:[%s152 + $0x490] sm:$0xff] %v445
                %v447 = vld [vmem:[%s151 + $0x930] sm:$0xff]
                %448 = vst [vmem:[%s152 + $0x498] sm:$0xff] %v447
                %v449 = vld [vmem:[%s151 + $0x938] sm:$0xff]
                %450 = vst [vmem:[%s152 + $0x4a0] sm:$0xff] %v449
                %v451 = vld [vmem:[%s151 + $0x940] sm:$0xff]
                %452 = vst [vmem:[%s152 + $0x4a8] sm:$0xff] %v451
                %v453 = vld [vmem:[%s151 + $0x948] sm:$0xff]
                %454 = vst [vmem:[%s152 + $0x4b0] sm:$0xff] %v453
                %v455 = vld [vmem:[%s151 + $0x950] sm:$0xff]
                %456 = vst [vmem:[%s152 + $0x4b8] sm:$0xff] %v455
                %v457 = vld [vmem:[%s151 + $0x958] sm:$0xff]
                %458 = vst [vmem:[%s152 + $0x4c0] sm:$0xff] %v457
                %v459 = vld [vmem:[%s151 + $0x960] sm:$0xff]
                %460 = vst [vmem:[%s152 + $0x4c8] sm:$0xff] %v459
                %v461 = vld [vmem:[%s151 + $0x968] sm:$0xff]
                %462 = vst [vmem:[%s152 + $0x4d0] sm:$0xff] %v461
                %v463 = vld [vmem:[%s151 + $0x970] sm:$0xff]
                %464 = vst [vmem:[%s152 + $0x4d8] sm:$0xff] %v463
                %v465 = vld [vmem:[%s151 + $0x978] sm:$0xff]
                %466 = vst [vmem:[%s152 + $0x4e0] sm:$0xff] %v465
                %v467 = vld [vmem:[%s151 + $0x980] sm:$0xff]
                %468 = vst [vmem:[%s152 + $0x4e8] sm:$0xff] %v467
                %v469 = vld [vmem:[%s151 + $0x988] sm:$0xff]
                %470 = vst [vmem:[%s152 + $0x4f0] sm:$0xff] %v469
                %v471 = vld [vmem:[%s151 + $0x990] sm:$0xff]
                %472 = vst [vmem:[%s152 + $0x4f8] sm:$0xff] %v471
                %v473 = vld [vmem:[%s151 + $0x998] sm:$0xff]
                %474 = vst [vmem:[%s152 + $0x500] sm:$0xff] %v473
                %v475 = vld [vmem:[%s151 + $0x9a0] sm:$0xff]
                %476 = vst [vmem:[%s152 + $0x508] sm:$0xff] %v475
                %v477 = vld [vmem:[%s151 + $0x9a8] sm:$0xff]
                %478 = vst [vmem:[%s152 + $0x510] sm:$0xff] %v477
                %v479 = vld [vmem:[%s151 + $0x9b0] sm:$0xff]
                %480 = vst [vmem:[%s152 + $0x518] sm:$0xff] %v479
                %v481 = vld [vmem:[%s151 + $0x9b8] sm:$0xff]
                %482 = vst [vmem:[%s152 + $0x520] sm:$0xff] %v481
                %v483 = vld [vmem:[%s151 + $0x9c0] sm:$0xff]
                %484 = vst [vmem:[%s152 + $0x528] sm:$0xff] %v483
                %v485 = vld [vmem:[%s151 + $0x9c8] sm:$0xff]
                %486 = vst [vmem:[%s152 + $0x530] sm:$0xff] %v485
                %v487 = vld [vmem:[%s151 + $0x9d0] sm:$0xff]
                %488 = vst [vmem:[%s152 + $0x538] sm:$0xff] %v487
                %v489 = vld [vmem:[%s151 + $0x9d8] sm:$0xff]
                %490 = vst [vmem:[%s152 + $0x540] sm:$0xff] %v489
                %v491 = vld [vmem:[%s151 + $0x9e0] sm:$0xff]
                %492 = vst [vmem:[%s152 + $0x548] sm:$0xff] %v491
                %v493 = vld [vmem:[%s151 + $0x9e8] sm:$0xff]
                %494 = vst [vmem:[%s152 + $0x550] sm:$0xff] %v493
                %v495 = vld [vmem:[%s151 + $0x9f0] sm:$0xff]
                %496 = vst [vmem:[%s152 + $0x558] sm:$0xff] %v495
                %v497 = vld [vmem:[%s151 + $0x9f8] sm:$0xff]
                %498 = vst [vmem:[%s152 + $0x560] sm:$0xff] %v497
                %v499 = vld [vmem:[%s151 + $0xa00] sm:$0xff]
                %500 = vst [vmem:[%s152 + $0x568] sm:$0xff] %v499
                %v501 = vld [vmem:[%s151 + $0xa08] sm:$0xff]
                %502 = vst [vmem:[%s152 + $0x570] sm:$0xff] %v501
                %v503 = vld [vmem:[%s151 + $0xa10] sm:$0xff]
                %504 = vst [vmem:[%s152 + $0x578] sm:$0xff] %v503
                %v505 = vld [vmem:[%s151 + $0xa18] sm:$0xff]
                %506 = vst [vmem:[%s152 + $0x580] sm:$0xff] %v505
                %v507 = vld [vmem:[%s151 + $0xa20] sm:$0xff]
                %508 = vst [vmem:[%s152 + $0x588] sm:$0xff] %v507
                %v509 = vld [vmem:[%s151 + $0xa28] sm:$0xff]
                %510 = vst [vmem:[%s152 + $0x590] sm:$0xff] %v509
                %v511 = vld [vmem:[%s151 + $0xa30] sm:$0xff]
                %512 = vst [vmem:[%s152 + $0x598] sm:$0xff] %v511
                %v513 = vld [vmem:[%s151 + $0xa38] sm:$0xff]
                %514 = vst [vmem:[%s152 + $0x5a0] sm:$0xff] %v513
                %v515 = vld [vmem:[%s151 + $0xa40] sm:$0xff]
                %516 = vst [vmem:[%s152 + $0x5a8] sm:$0xff] %v515
                %v517 = vld [vmem:[%s151 + $0xa48] sm:$0xff]
                %518 = vst [vmem:[%s152 + $0x5b0] sm:$0xff] %v517
                %v519 = vld [vmem:[%s151 + $0xa50] sm:$0xff]
                %520 = vst [vmem:[%s152 + $0x5b8] sm:$0xff] %v519
                %v521 = vld [vmem:[%s151 + $0xa58] sm:$0xff]
                %522 = vst [vmem:[%s152 + $0x5c0] sm:$0xff] %v521
                %v523 = vld [vmem:[%s151 + $0xa60] sm:$0xff]
                %524 = vst [vmem:[%s152 + $0x5c8] sm:$0xff] %v523
                %v525 = vld [vmem:[%s151 + $0xa68] sm:$0xff]
                %526 = vst [vmem:[%s152 + $0x5d0] sm:$0xff] %v525
                %v527 = vld [vmem:[%s151 + $0xa70] sm:$0xff]
                %528 = vst [vmem:[%s152 + $0x5d8] sm:$0xff] %v527
                %v529 = vld [vmem:[%s151 + $0xa78] sm:$0xff]
                %530 = vst [vmem:[%s152 + $0x5e0] sm:$0xff] %v529
                %v531 = vld [vmem:[%s151 + $0xa80] sm:$0xff]
                %532 = vst [vmem:[%s152 + $0x5e8] sm:$0xff] %v531
                %v533 = vld [vmem:[%s151 + $0xa88] sm:$0xff]
                %534 = vst [vmem:[%s152 + $0x5f0] sm:$0xff] %v533
                %v535 = vld [vmem:[%s151 + $0xa90] sm:$0xff]
                %536 = vst [vmem:[%s152 + $0x5f8] sm:$0xff] %v535
                %v537 = vld [vmem:[%s151 + $0xa98] sm:$0xff]
                %538 = vst [vmem:[%s152 + $0x600] sm:$0xff] %v537
                %v539 = vld [vmem:[%s151 + $0xaa0] sm:$0xff]
                %540 = vst [vmem:[%s152 + $0x608] sm:$0xff] %v539
                %v541 = vld [vmem:[%s151 + $0xaa8] sm:$0xff]
                %542 = vst [vmem:[%s152 + $0x610] sm:$0xff] %v541
                %v543 = vld [vmem:[%s151 + $0xab0] sm:$0xff]
                %544 = vst [vmem:[%s152 + $0x618] sm:$0xff] %v543
              $region45: #{bwn_net_forward.3} parent=39 // loop_footer
                %s150 = sadd.s32 1, %s146
              $region46: #{bwn_net_forward.3} parent=39 // loop_footer_branch
                %145 = sbr.rel target = $region42
              $region47: #{bwn_net_forward.3} parent=39 // loop_exit
                _
            $region40: #{bwn_net_forward.3} parent=31 // pred_fallthru
              _
          $region32: #{bwn_net_forward.3} parent=27 // pred_fallthru
            _
          %949 = vnop
        $region28: #{bwn_net_forward.3} parent=23 // pred_fallthru
          _
      $region24: #{bwn_net_forward.3} parent=5 // pred_fallthru
        _
      %p950 = scmp.le.s32.totalorder 1, %s9
      %p951 = scmp.lt.s32.totalorder %s9, 3
      %p952 = pnand %p950, %p951
      %p953 = pneg %p952
      // Predicated region
      $region63: #{bwn_net_forward.3} parent=5 // pred_check
        _
      $region64: #{bwn_net_forward.3} parent=5 // pred_check_branch
        %955 = sbr.rel (%p952) target = $region66
      $region65: #{bwn_net_forward.3} parent=5 // pred_region
        %s956 = ssub.s32 %s9, 1
        %s957 = sand.u32 %s22, 1
        %s958 = sand.u32 %s22, 1
        %s959 = smul.addr %s958, 1568
        %s960 = scalar_lea.vmem [#allocation2], %s959
        // Predicated region
        $region67: #{bwn_net_forward.3} parent=65 // pred_check
          %p961 = pneg %p35
        $region68: #{bwn_net_forward.3} parent=65 // pred_check_branch
          %963 = sbr.rel (%p961) target = $region70
        $region69: #{bwn_net_forward.3} parent=65 // pred_region
          _
        $region70: #{bwn_net_forward.3} parent=65 // pred_fallthru
          _
        %s964 = sand.u32 %s22, 1
        %s965 = sand.u32 %s22, 1
        %s966 = smul.addr %s965, 1568
        %s967 = scalar_lea.vmem [#allocation2], %s966
        %p968 = pneg %p35
        %p969 = pneg %p32
        %p970 = pneg %p56
        %p971 = pneg %p53
        %p972 = pneg %p77
        %p973 = pneg %p74
        %p974 = pneg %p103
        %p975 = pneg %p100
        %s976 = smul.u32 49, %s14
        %p977 = scmp.lt.s32.totalorder %s976, 97
        %s978 = scalar_select %p977, %s976, 97
        %s979 = smul.addr %s978, 8
        %s980 = scalar_lea.vmem %s3, %s979
        %s981 = smul.u32 49, %s14
        %s982 = smul.u32 49, %s14
        %p983 = scmp.lt.s32.totalorder %s982, 97
        %s984 = scalar_select %p983, %s982, 97
        %s985 = smul.addr %s984, 8
        %s986 = scalar_lea.vmem %s3, %s985
        %s987 = smul.u32 49, %s14
        %v988 = vld [vmem:[%s1] sm:$0xff]
        %v989 = vld [vmem:[%s1 + $0x8] sm:$0xff]
        %v990 = vld [vmem:[%s1 + $0x10] sm:$0xff]
        %v991 = vld [vmem:[%s1 + $0x18] sm:$0xff]
        %v992 = vld [vmem:[%s1 + $0x20] sm:$0xff]
        %v993 = vld [vmem:[%s1 + $0x28] sm:$0xff]
        %v994 = vld [vmem:[%s1 + $0x30] sm:$0xff]
        %v995 = vld [vmem:[%s1 + $0x38] sm:$0xff]
        %v996 = vld [vmem:[%s1 + $0x40] sm:$0xff]
        %v997 = vld [vmem:[%s1 + $0x48] sm:$0x7]
        %v998 = vld [vmem:[%s960] sm:$0xff]
        %v999 = vld [vmem:[%s960 + $0x8] sm:$0xff]
        %v1000 = vld [vmem:[%s960 + $0x10] sm:$0xff]
        %v1001 = vld [vmem:[%s960 + $0x18] sm:$0xff]
        %v1002 = vld [vmem:[%s960 + $0x20] sm:$0xff]
        %v1003 = vld [vmem:[%s960 + $0x28] sm:$0xff]
        %v1004 = vld [vmem:[%s960 + $0x30] sm:$0xff]
        %v1005 = vld [vmem:[%s960 + $0x38] sm:$0xff]
        %v1006 = vld [vmem:[%s960 + $0x40] sm:$0xff]
        %v1007 = vld [vmem:[%s960 + $0x48] sm:$0xff]
        %v1008 = vld [vmem:[%s960 + $0x50] sm:$0xff]
        %v1009 = vld [vmem:[%s960 + $0x58] sm:$0xff]
        %v1010 = vld [vmem:[%s960 + $0x60] sm:$0xff]
        %v1011 = vld [vmem:[%s960 + $0x68] sm:$0xff]
        %v1012 = vld [vmem:[%s960 + $0x70] sm:$0xff]
        %v1013 = vld [vmem:[%s960 + $0x78] sm:$0xff]
        %v1014 = vld [vmem:[%s960 + $0x80] sm:$0xff]
        %v1015 = vld [vmem:[%s960 + $0x88] sm:$0xff]
        %v1016 = vld [vmem:[%s960 + $0x90] sm:$0xff]
        %v1017 = vld [vmem:[%s960 + $0x98] sm:$0xff]
        %v1018 = vld [vmem:[%s960 + $0xa0] sm:$0xff]
        %v1019 = vld [vmem:[%s960 + $0xa8] sm:$0xff]
        %v1020 = vld [vmem:[%s960 + $0xb0] sm:$0xff]
        %v1021 = vld [vmem:[%s960 + $0xb8] sm:$0xff]
        %v1022 = vld [vmem:[%s960 + $0xc0] sm:$0xff]
        %v1023 = vld [vmem:[%s960 + $0xc8] sm:$0xff]
        %v1024 = vld [vmem:[%s960 + $0xd0] sm:$0xff]
        %v1025 = vld [vmem:[%s960 + $0xd8] sm:$0xff]
        %v1026 = vld [vmem:[%s960 + $0xe0] sm:$0xff]
        %v1027 = vld [vmem:[%s960 + $0xe8] sm:$0xff]
        %v1028 = vld [vmem:[%s960 + $0xf0] sm:$0xff]
        %v1029 = vld [vmem:[%s960 + $0xf8] sm:$0xff]
        %v1030 = vld [vmem:[%s960 + $0x100] sm:$0xff]
        %v1031 = vld [vmem:[%s960 + $0x108] sm:$0xff]
        %v1032 = vld [vmem:[%s960 + $0x110] sm:$0xff]
        %v1033 = vld [vmem:[%s960 + $0x118] sm:$0xff]
        %v1034 = vld [vmem:[%s960 + $0x120] sm:$0xff]
        %v1035 = vld [vmem:[%s960 + $0x128] sm:$0xff]
        %v1036 = vld [vmem:[%s960 + $0x130] sm:$0xff]
        %v1037 = vld [vmem:[%s960 + $0x138] sm:$0xff]
        %v1038 = vld [vmem:[%s960 + $0x140] sm:$0xff]
        %v1039 = vld [vmem:[%s960 + $0x148] sm:$0xff]
        %v1040 = vld [vmem:[%s960 + $0x150] sm:$0xff]
        %v1041 = vld [vmem:[%s960 + $0x158] sm:$0xff]
        %v1042 = vld [vmem:[%s960 + $0x160] sm:$0xff]
        %v1043 = vld [vmem:[%s960 + $0x168] sm:$0xff]
        %v1044 = vld [vmem:[%s960 + $0x170] sm:$0xff]
        %v1045 = vld [vmem:[%s960 + $0x178] sm:$0xff]
        %v1046 = vld [vmem:[%s960 + $0x180] sm:$0xff]
        %vm1047 = vcmask 613376
        %v1049 = vsel %vm1047, %v998, 0
        %v1052 = vsel %vm1047, %v999, 0
        %v1055 = vsel %vm1047, %v1000, 0
        %v1058 = vsel %vm1047, %v1001, 0
        %v1061 = vsel %vm1047, %v1002, 0
        %v1064 = vsel %vm1047, %v1003, 0
        %v1067 = vsel %vm1047, %v1004, 0
        %v1070 = vsel %vm1047, %v1005, 0
        %v1073 = vsel %vm1047, %v1006, 0
        %v1076 = vsel %vm1047, %v1007, 0
        %v1079 = vsel %vm1047, %v1008, 0
        %v1082 = vsel %vm1047, %v1009, 0
        %v1085 = vsel %vm1047, %v1010, 0
        %v1088 = vsel %vm1047, %v1011, 0
        %v1091 = vsel %vm1047, %v1012, 0
        %v1094 = vsel %vm1047, %v1013, 0
        %v1097 = vsel %vm1047, %v1014, 0
        %v1100 = vsel %vm1047, %v1015, 0
        %v1103 = vsel %vm1047, %v1016, 0
        %v1106 = vsel %vm1047, %v1017, 0
        %v1109 = vsel %vm1047, %v1018, 0
        %v1112 = vsel %vm1047, %v1019, 0
        %v1115 = vsel %vm1047, %v1020, 0
        %v1118 = vsel %vm1047, %v1021, 0
        %v1121 = vsel %vm1047, %v1022, 0
        %v1124 = vsel %vm1047, %v1023, 0
        %v1127 = vsel %vm1047, %v1024, 0
        %v1130 = vsel %vm1047, %v1025, 0
        %v1133 = vsel %vm1047, %v1026, 0
        %v1136 = vsel %vm1047, %v1027, 0
        %v1139 = vsel %vm1047, %v1028, 0
        %v1142 = vsel %vm1047, %v1029, 0
        %v1145 = vsel %vm1047, %v1030, 0
        %v1148 = vsel %vm1047, %v1031, 0
        %v1151 = vsel %vm1047, %v1032, 0
        %v1154 = vsel %vm1047, %v1033, 0
        %v1157 = vsel %vm1047, %v1034, 0
        %v1160 = vsel %vm1047, %v1035, 0
        %v1163 = vsel %vm1047, %v1036, 0
        %v1166 = vsel %vm1047, %v1037, 0
        %v1169 = vsel %vm1047, %v1038, 0
        %v1172 = vsel %vm1047, %v1039, 0
        %v1175 = vsel %vm1047, %v1040, 0
        %v1178 = vsel %vm1047, %v1041, 0
        %v1181 = vsel %vm1047, %v1042, 0
        %v1184 = vsel %vm1047, %v1043, 0
        %v1187 = vsel %vm1047, %v1044, 0
        %v1190 = vsel %vm1047, %v1045, 0
        %v1193 = vsel %vm1047, %v1046, 0
        %vm1195 = vcmask 1042432
        %v1197 = vsel %vm1195, %v997, 0
        %1199 = vmatprep.subr.mxu0 0.0
        %1200 = vmatpush1.msra.mxu0 %v988
        %1201 = vmatprep.subr.mxu0 0.0
        %1202 = vmatpush1.msra.mxu0 %v989
        %1203 = vmatprep.subr.mxu0 0.0
        %1204 = vmatpush1.msra.mxu0 %v990
        %1205 = vmatprep.subr.mxu0 0.0
        %1206 = vmatpush1.msra.mxu0 %v991
        %1207 = vmatprep.subr.mxu0 0.0
        %1208 = vmatpush1.msra.mxu0 %v992
        %1209 = vmatprep.subr.mxu0 0.0
        %1210 = vmatpush1.msra.mxu0 %v993
        %1211 = vmatprep.subr.mxu0 0.0
        %1212 = vmatpush1.msra.mxu0 %v994
        %1213 = vmatprep.subr.mxu0 0.0
        %1214 = vmatpush1.msra.mxu0 %v995
        %1215 = vmatprep.subr.mxu0 0.0
        %1216 = vmatpush1.msra.mxu0 %v996
        %1217 = vmatprep.subr.mxu0 0.0
        %1218 = vmatpush1.msra.mxu0 %v1197
        %1219 = vmatprep.subr.mxu0 0.0
        %1220 = vmatpush1.msra.mxu0 0.0
        %1221 = vmatprep.subr.mxu0 0.0
        %1222 = vmatpush1.msra.mxu0 0.0
        %1223 = vmatprep.subr.mxu0 0.0
        %1224 = vmatpush1.msra.mxu0 0.0
        %1225 = vmatprep.subr.mxu0 0.0
        %1226 = vmatpush1.msra.mxu0 0.0
        %1227 = vmatprep.subr.mxu0 0.0
        %1228 = vmatpush1.msra.mxu0 0.0
        %1229 = vmatprep.subr.mxu0 0.0
        %1230 = vmatpush1.msra.mxu0 0.0
        %1231 = vmatprep.subr.mxu0 0.0
        %1232 = vmatpush1.msra.mxu0 0.0
        %1233 = vmatprep.subr.mxu0 0.0
        %1234 = vmatpush1.msra.mxu0 0.0
        %1235 = vmatprep.subr.mxu0 0.0
        %1236 = vmatpush1.msra.mxu0 0.0
        %1237 = vmatprep.subr.mxu0 0.0
        %1238 = vmatpush1.msra.mxu0 0.0
        %1239 = vmatprep.subr.mxu0 0.0
        %1240 = vmatpush1.msra.mxu0 0.0
        %1241 = vmatprep.subr.mxu0 0.0
        %1242 = vmatpush1.msra.mxu0 0.0
        %1243 = vmatprep.subr.mxu0 0.0
        %1244 = vmatpush1.msra.mxu0 0.0
        %1245 = vmatprep.subr.mxu0 0.0
        %1246 = vmatpush1.msra.mxu0 0.0
        %1247 = vmatprep.subr.mxu0 0.0
        %1248 = vmatpush1.msra.mxu0 0.0
        %1249 = vmatprep.subr.mxu0 0.0
        %1250 = vmatpush1.msra.mxu0 0.0
        %1251 = vmatprep.subr.mxu0 0.0
        %1252 = vmatpush1.msra.mxu0 0.0
        %1253 = vmatprep.subr.mxu0 0.0
        %1254 = vmatpush1.msra.mxu0 0.0
        %1255 = vmatprep.subr.mxu0 0.0
        %1256 = vmatpush1.msra.mxu0 0.0
        %1257 = vmatprep.subr.mxu0 0.0
        %1258 = vmatpush1.msra.mxu0 0.0
        %1259 = vmatprep.subr.mxu0 0.0
        %1260 = vmatpush1.msra.mxu0 0.0
        %1261 = vmatprep.subr.mxu0 0.0
        %1262 = vmatpush1.msra.mxu0 0.0
        %1263 = vmatprep.mubr.f32.mxu0 0.0
        %1264 = vmatmul.mubr.f32.gmra.mrb[0].mxu0 %v1049
        %v1265 = vpop.f32.mrb[0].mxu0
        %v1266 = vadd.f32 0.0, %v1265
        %v1267 = vpop.f32.mrb[0].mxu0
        %1268 = vmatprep.mubr.f32.mxu0 0.0
        %1269 = vmatmul.mubr.f32.gmra.mrb[0].mxu0 %v1052
        %v1270 = vpop.f32.mrb[0].mxu0
        %v1271 = vadd.f32 0.0, %v1270
        %v1272 = vpop.f32.mrb[0].mxu0
        %1273 = vmatprep.mubr.f32.mxu0 0.0
        %1274 = vmatmul.mubr.f32.gmra.mrb[0].mxu0 %v1055
        %v1275 = vpop.f32.mrb[0].mxu0
        %v1276 = vadd.f32 0.0, %v1275
        %v1277 = vpop.f32.mrb[0].mxu0
        %1278 = vmatprep.mubr.f32.mxu0 0.0
        %1279 = vmatmul.mubr.f32.gmra.mrb[0].mxu0 %v1058
        %v1280 = vpop.f32.mrb[0].mxu0
        %v1281 = vadd.f32 0.0, %v1280
        %v1282 = vpop.f32.mrb[0].mxu0
        %1283 = vmatprep.mubr.f32.mxu0 0.0
        %1284 = vmatmul.mubr.f32.gmra.mrb[0].mxu0 %v1061
        %v1285 = vpop.f32.mrb[0].mxu0
        %v1286 = vadd.f32 0.0, %v1285
        %v1287 = vpop.f32.mrb[0].mxu0
        %1288 = vmatprep.mubr.f32.mxu0 0.0
        %1289 = vmatmul.mubr.f32.gmra.mrb[0].mxu0 %v1064
        %v1290 = vpop.f32.mrb[0].mxu0
        %v1291 = vadd.f32 0.0, %v1290
        %v1292 = vpop.f32.mrb[0].mxu0
        %1293 = vmatprep.mubr.f32.mxu0 0.0
        %1294 = vmatmul.mubr.f32.gmra.mrb[0].mxu0 %v1067
        %v1295 = vpop.f32.mrb[0].mxu0
        %v1296 = vadd.f32 0.0, %v1295
        %v1297 = vpop.f32.mrb[0].mxu0
        %1298 = vmatprep.mubr.f32.mxu0 0.0
        %1299 = vmatmul.mubr.f32.gmra.mrb[0].mxu0 %v1070
        %v1300 = vpop.f32.mrb[0].mxu0
        %v1301 = vadd.f32 0.0, %v1300
        %v1302 = vpop.f32.mrb[0].mxu0
        %1303 = vmatprep.mubr.f32.mxu0 0.0
        %1304 = vmatmul.mubr.f32.gmra.mrb[0].mxu0 %v1073
        %v1305 = vpop.f32.mrb[0].mxu0
        %v1306 = vadd.f32 0.0, %v1305
        %v1307 = vpop.f32.mrb[0].mxu0
        %1308 = vmatprep.mubr.f32.mxu0 0.0
        %1309 = vmatmul.mubr.f32.gmra.mrb[0].mxu0 %v1076
        %v1310 = vpop.f32.mrb[0].mxu0
        %v1311 = vadd.f32 0.0, %v1310
        %v1312 = vpop.f32.mrb[0].mxu0
        %1313 = vmatprep.mubr.f32.mxu0 0.0
        %1314 = vmatmul.mubr.f32.gmra.mrb[0].mxu0 %v1079
        %v1315 = vpop.f32.mrb[0].mxu0
        %v1316 = vadd.f32 0.0, %v1315
        %v1317 = vpop.f32.mrb[0].mxu0
        %1318 = vmatprep.mubr.f32.mxu0 0.0
        %1319 = vmatmul.mubr.f32.gmra.mrb[0].mxu0 %v1082
        %v1320 = vpop.f32.mrb[0].mxu0
        %v1321 = vadd.f32 0.0, %v1320
        %v1322 = vpop.f32.mrb[0].mxu0
        %1323 = vmatprep.mubr.f32.mxu0 0.0
        %1324 = vmatmul.mubr.f32.gmra.mrb[0].mxu0 %v1085
        %v1325 = vpop.f32.mrb[0].mxu0
        %v1326 = vadd.f32 0.0, %v1325
        %v1327 = vpop.f32.mrb[0].mxu0
        %1328 = vmatprep.mubr.f32.mxu0 0.0
        %1329 = vmatmul.mubr.f32.gmra.mrb[0].mxu0 %v1088
        %v1330 = vpop.f32.mrb[0].mxu0
        %v1331 = vadd.f32 0.0, %v1330
        %v1332 = vpop.f32.mrb[0].mxu0
        %1333 = vmatprep.mubr.f32.mxu0 0.0
        %1334 = vmatmul.mubr.f32.gmra.mrb[0].mxu0 %v1091
        %v1335 = vpop.f32.mrb[0].mxu0
        %v1336 = vadd.f32 0.0, %v1335
        %v1337 = vpop.f32.mrb[0].mxu0
        %1338 = vmatprep.mubr.f32.mxu0 0.0
        %1339 = vmatmul.mubr.f32.gmra.mrb[0].mxu0 %v1094
        %v1340 = vpop.f32.mrb[0].mxu0
        %v1341 = vadd.f32 0.0, %v1340
        %v1342 = vpop.f32.mrb[0].mxu0
        %1343 = vmatprep.mubr.f32.mxu0 0.0
        %1344 = vmatmul.mubr.f32.gmra.mrb[0].mxu0 %v1097
        %v1345 = vpop.f32.mrb[0].mxu0
        %v1346 = vadd.f32 0.0, %v1345
        %v1347 = vpop.f32.mrb[0].mxu0
        %1348 = vmatprep.mubr.f32.mxu0 0.0
        %1349 = vmatmul.mubr.f32.gmra.mrb[0].mxu0 %v1100
        %v1350 = vpop.f32.mrb[0].mxu0
        %v1351 = vadd.f32 0.0, %v1350
        %v1352 = vpop.f32.mrb[0].mxu0
        %1353 = vmatprep.mubr.f32.mxu0 0.0
        %1354 = vmatmul.mubr.f32.gmra.mrb[0].mxu0 %v1103
        %v1355 = vpop.f32.mrb[0].mxu0
        %v1356 = vadd.f32 0.0, %v1355
        %v1357 = vpop.f32.mrb[0].mxu0
        %1358 = vmatprep.mubr.f32.mxu0 0.0
        %1359 = vmatmul.mubr.f32.gmra.mrb[0].mxu0 %v1106
        %v1360 = vpop.f32.mrb[0].mxu0
        %v1361 = vadd.f32 0.0, %v1360
        %v1362 = vpop.f32.mrb[0].mxu0
        %1363 = vmatprep.mubr.f32.mxu0 0.0
        %1364 = vmatmul.mubr.f32.gmra.mrb[0].mxu0 %v1109
        %v1365 = vpop.f32.mrb[0].mxu0
        %v1366 = vadd.f32 0.0, %v1365
        %v1367 = vpop.f32.mrb[0].mxu0
        %1368 = vmatprep.mubr.f32.mxu0 0.0
        %1369 = vmatmul.mubr.f32.gmra.mrb[0].mxu0 %v1112
        %v1370 = vpop.f32.mrb[0].mxu0
        %v1371 = vadd.f32 0.0, %v1370
        %v1372 = vpop.f32.mrb[0].mxu0
        %1373 = vmatprep.mubr.f32.mxu0 0.0
        %1374 = vmatmul.mubr.f32.gmra.mrb[0].mxu0 %v1115
        %v1375 = vpop.f32.mrb[0].mxu0
        %v1376 = vadd.f32 0.0, %v1375
        %v1377 = vpop.f32.mrb[0].mxu0
        %1378 = vmatprep.mubr.f32.mxu0 0.0
        %1379 = vmatmul.mubr.f32.gmra.mrb[0].mxu0 %v1118
        %v1380 = vpop.f32.mrb[0].mxu0
        %v1381 = vadd.f32 0.0, %v1380
        %v1382 = vpop.f32.mrb[0].mxu0
        %1383 = vmatprep.mubr.f32.mxu0 0.0
        %1384 = vmatmul.mubr.f32.gmra.mrb[0].mxu0 %v1121
        %v1385 = vpop.f32.mrb[0].mxu0
        %v1386 = vadd.f32 0.0, %v1385
        %v1387 = vpop.f32.mrb[0].mxu0
        %1388 = vmatprep.mubr.f32.mxu0 0.0
        %1389 = vmatmul.mubr.f32.gmra.mrb[0].mxu0 %v1124
        %v1390 = vpop.f32.mrb[0].mxu0
        %v1391 = vadd.f32 0.0, %v1390
        %v1392 = vpop.f32.mrb[0].mxu0
        %1393 = vmatprep.mubr.f32.mxu0 0.0
        %1394 = vmatmul.mubr.f32.gmra.mrb[0].mxu0 %v1127
        %v1395 = vpop.f32.mrb[0].mxu0
        %v1396 = vadd.f32 0.0, %v1395
        %v1397 = vpop.f32.mrb[0].mxu0
        %1398 = vmatprep.mubr.f32.mxu0 0.0
        %1399 = vmatmul.mubr.f32.gmra.mrb[0].mxu0 %v1130
        %v1400 = vpop.f32.mrb[0].mxu0
        %v1401 = vadd.f32 0.0, %v1400
        %v1402 = vpop.f32.mrb[0].mxu0
        %1403 = vmatprep.mubr.f32.mxu0 0.0
        %1404 = vmatmul.mubr.f32.gmra.mrb[0].mxu0 %v1133
        %v1405 = vpop.f32.mrb[0].mxu0
        %v1406 = vadd.f32 0.0, %v1405
        %v1407 = vpop.f32.mrb[0].mxu0
        %1408 = vmatprep.mubr.f32.mxu0 0.0
        %1409 = vmatmul.mubr.f32.gmra.mrb[0].mxu0 %v1136
        %v1410 = vpop.f32.mrb[0].mxu0
        %v1411 = vadd.f32 0.0, %v1410
        %v1412 = vpop.f32.mrb[0].mxu0
        %1413 = vmatprep.mubr.f32.mxu0 0.0
        %1414 = vmatmul.mubr.f32.gmra.mrb[0].mxu0 %v1139
        %v1415 = vpop.f32.mrb[0].mxu0
        %v1416 = vadd.f32 0.0, %v1415
        %v1417 = vpop.f32.mrb[0].mxu0
        %1418 = vmatprep.mubr.f32.mxu0 0.0
        %1419 = vmatmul.mubr.f32.gmra.mrb[0].mxu0 %v1142
        %v1420 = vpop.f32.mrb[0].mxu0
        %v1421 = vadd.f32 0.0, %v1420
        %v1422 = vpop.f32.mrb[0].mxu0
        %1423 = vmatprep.mubr.f32.mxu0 0.0
        %1424 = vmatmul.mubr.f32.gmra.mrb[0].mxu0 %v1145
        %v1425 = vpop.f32.mrb[0].mxu0
        %v1426 = vadd.f32 0.0, %v1425
        %v1427 = vpop.f32.mrb[0].mxu0
        %1428 = vmatprep.mubr.f32.mxu0 0.0
        %1429 = vmatmul.mubr.f32.gmra.mrb[0].mxu0 %v1148
        %v1430 = vpop.f32.mrb[0].mxu0
        %v1431 = vadd.f32 0.0, %v1430
        %v1432 = vpop.f32.mrb[0].mxu0
        %1433 = vmatprep.mubr.f32.mxu0 0.0
        %1434 = vmatmul.mubr.f32.gmra.mrb[0].mxu0 %v1151
        %v1435 = vpop.f32.mrb[0].mxu0
        %v1436 = vadd.f32 0.0, %v1435
        %v1437 = vpop.f32.mrb[0].mxu0
        %1438 = vmatprep.mubr.f32.mxu0 0.0
        %1439 = vmatmul.mubr.f32.gmra.mrb[0].mxu0 %v1154
        %v1440 = vpop.f32.mrb[0].mxu0
        %v1441 = vadd.f32 0.0, %v1440
        %v1442 = vpop.f32.mrb[0].mxu0
        %1443 = vmatprep.mubr.f32.mxu0 0.0
        %1444 = vmatmul.mubr.f32.gmra.mrb[0].mxu0 %v1157
        %v1445 = vpop.f32.mrb[0].mxu0
        %v1446 = vadd.f32 0.0, %v1445
        %v1447 = vpop.f32.mrb[0].mxu0
        %1448 = vmatprep.mubr.f32.mxu0 0.0
        %1449 = vmatmul.mubr.f32.gmra.mrb[0].mxu0 %v1160
        %v1450 = vpop.f32.mrb[0].mxu0
        %v1451 = vadd.f32 0.0, %v1450
        %v1452 = vpop.f32.mrb[0].mxu0
        %1453 = vmatprep.mubr.f32.mxu0 0.0
        %1454 = vmatmul.mubr.f32.gmra.mrb[0].mxu0 %v1163
        %v1455 = vpop.f32.mrb[0].mxu0
        %v1456 = vadd.f32 0.0, %v1455
        %v1457 = vpop.f32.mrb[0].mxu0
        %1458 = vmatprep.mubr.f32.mxu0 0.0
        %1459 = vmatmul.mubr.f32.gmra.mrb[0].mxu0 %v1166
        %v1460 = vpop.f32.mrb[0].mxu0
        %v1461 = vadd.f32 0.0, %v1460
        %v1462 = vpop.f32.mrb[0].mxu0
        %1463 = vmatprep.mubr.f32.mxu0 0.0
        %1464 = vmatmul.mubr.f32.gmra.mrb[0].mxu0 %v1169
        %v1465 = vpop.f32.mrb[0].mxu0
        %v1466 = vadd.f32 0.0, %v1465
        %v1467 = vpop.f32.mrb[0].mxu0
        %1468 = vmatprep.mubr.f32.mxu0 0.0
        %1469 = vmatmul.mubr.f32.gmra.mrb[0].mxu0 %v1172
        %v1470 = vpop.f32.mrb[0].mxu0
        %v1471 = vadd.f32 0.0, %v1470
        %v1472 = vpop.f32.mrb[0].mxu0
        %1473 = vmatprep.mubr.f32.mxu0 0.0
        %1474 = vmatmul.mubr.f32.gmra.mrb[0].mxu0 %v1175
        %v1475 = vpop.f32.mrb[0].mxu0
        %v1476 = vadd.f32 0.0, %v1475
        %v1477 = vpop.f32.mrb[0].mxu0
        %1478 = vmatprep.mubr.f32.mxu0 0.0
        %1479 = vmatmul.mubr.f32.gmra.mrb[0].mxu0 %v1178
        %v1480 = vpop.f32.mrb[0].mxu0
        %v1481 = vadd.f32 0.0, %v1480
        %v1482 = vpop.f32.mrb[0].mxu0
        %1483 = vmatprep.mubr.f32.mxu0 0.0
        %1484 = vmatmul.mubr.f32.gmra.mrb[0].mxu0 %v1181
        %v1485 = vpop.f32.mrb[0].mxu0
        %v1486 = vadd.f32 0.0, %v1485
        %v1487 = vpop.f32.mrb[0].mxu0
        %1488 = vmatprep.mubr.f32.mxu0 0.0
        %1489 = vmatmul.mubr.f32.gmra.mrb[0].mxu0 %v1184
        %v1490 = vpop.f32.mrb[0].mxu0
        %v1491 = vadd.f32 0.0, %v1490
        %v1492 = vpop.f32.mrb[0].mxu0
        %1493 = vmatprep.mubr.f32.mxu0 0.0
        %1494 = vmatmul.mubr.f32.gmra.mrb[0].mxu0 %v1187
        %v1495 = vpop.f32.mrb[0].mxu0
        %v1496 = vadd.f32 0.0, %v1495
        %v1497 = vpop.f32.mrb[0].mxu0
        %1498 = vmatprep.mubr.f32.mxu0 0.0
        %1499 = vmatmul.mubr.f32.gmra.mrb[0].mxu0 %v1190
        %v1500 = vpop.f32.mrb[0].mxu0
        %v1501 = vadd.f32 0.0, %v1500
        %v1502 = vpop.f32.mrb[0].mxu0
        %1503 = vmatprep.mubr.f32.mxu0 0.0
        %1504 = vmatmul.mubr.f32.gmra.mrb[0].mxu0 %v1193
        %v1505 = vpop.f32.mrb[0].mxu0
        %v1506 = vadd.f32 0.0, %v1505
        %v1507 = vpop.f32.mrb[0].mxu0
        %1508 = vdwg.mxu0
        %s1509 = scalar_lea.vmem %s960, 392 [#allocation2]
        %v1510 = vld [vmem:[%s1509] sm:$0xff]
        %v1511 = vld [vmem:[%s1509 + $0x8] sm:$0xff]
        %v1512 = vld [vmem:[%s1509 + $0x10] sm:$0xff]
        %v1513 = vld [vmem:[%s1509 + $0x18] sm:$0xff]
        %v1514 = vld [vmem:[%s1509 + $0x20] sm:$0xff]
        %v1515 = vld [vmem:[%s1509 + $0x28] sm:$0xff]
        %v1516 = vld [vmem:[%s1509 + $0x30] sm:$0xff]
        %v1517 = vld [vmem:[%s1509 + $0x38] sm:$0xff]
        %v1518 = vld [vmem:[%s1509 + $0x40] sm:$0xff]
        %v1519 = vld [vmem:[%s1509 + $0x48] sm:$0xff]
        %v1520 = vld [vmem:[%s1509 + $0x50] sm:$0xff]
        %v1521 = vld [vmem:[%s1509 + $0x58] sm:$0xff]
        %v1522 = vld [vmem:[%s1509 + $0x60] sm:$0xff]
        %v1523 = vld [vmem:[%s1509 + $0x68] sm:$0xff]
        %v1524 = vld [vmem:[%s1509 + $0x70] sm:$0xff]
        %v1525 = vld [vmem:[%s1509 + $0x78] sm:$0xff]
        %v1526 = vld [vmem:[%s1509 + $0x80] sm:$0xff]
        %v1527 = vld [vmem:[%s1509 + $0x88] sm:$0xff]
        %v1528 = vld [vmem:[%s1509 + $0x90] sm:$0xff]
        %v1529 = vld [vmem:[%s1509 + $0x98] sm:$0xff]
        %v1530 = vld [vmem:[%s1509 + $0xa0] sm:$0xff]
        %v1531 = vld [vmem:[%s1509 + $0xa8] sm:$0xff]
        %v1532 = vld [vmem:[%s1509 + $0xb0] sm:$0xff]
        %v1533 = vld [vmem:[%s1509 + $0xb8] sm:$0xff]
        %v1534 = vld [vmem:[%s1509 + $0xc0] sm:$0xff]
        %v1535 = vld [vmem:[%s1509 + $0xc8] sm:$0xff]
        %v1536 = vld [vmem:[%s1509 + $0xd0] sm:$0xff]
        %v1537 = vld [vmem:[%s1509 + $0xd8] sm:$0xff]
        %v1538 = vld [vmem:[%s1509 + $0xe0] sm:$0xff]
        %v1539 = vld [vmem:[%s1509 + $0xe8] sm:$0xff]
        %v1540 = vld [vmem:[%s1509 + $0xf0] sm:$0xff]
        %v1541 = vld [vmem:[%s1509 + $0xf8] sm:$0xff]
        %v1542 = vld [vmem:[%s1509 + $0x100] sm:$0xff]
        %v1543 = vld [vmem:[%s1509 + $0x108] sm:$0xff]
        %v1544 = vld [vmem:[%s1509 + $0x110] sm:$0xff]
        %v1545 = vld [vmem:[%s1509 + $0x118] sm:$0xff]
        %v1546 = vld [vmem:[%s1509 + $0x120] sm:$0xff]
        %v1547 = vld [vmem:[%s1509 + $0x128] sm:$0xff]
        %v1548 = vld [vmem:[%s1509 + $0x130] sm:$0xff]
        %v1549 = vld [vmem:[%s1509 + $0x138] sm:$0xff]
        %v1550 = vld [vmem:[%s1509 + $0x140] sm:$0xff]
        %v1551 = vld [vmem:[%s1509 + $0x148] sm:$0xff]
        %v1552 = vld [vmem:[%s1509 + $0x150] sm:$0xff]
        %v1553 = vld [vmem:[%s1509 + $0x158] sm:$0xff]
        %v1554 = vld [vmem:[%s1509 + $0x160] sm:$0xff]
        %v1555 = vld [vmem:[%s1509 + $0x168] sm:$0xff]
        %v1556 = vld [vmem:[%s1509 + $0x170] sm:$0xff]
        %v1557 = vld [vmem:[%s1509 + $0x178] sm:$0xff]
        %v1558 = vld [vmem:[%s1509 + $0x180] sm:$0xff]
        %v1560 = vsel %vm1047, %v1510, 0
        %v1563 = vsel %vm1047, %v1511, 0
        %v1566 = vsel %vm1047, %v1512, 0
        %v1569 = vsel %vm1047, %v1513, 0
        %v1572 = vsel %vm1047, %v1514, 0
        %v1575 = vsel %vm1047, %v1515, 0
        %v1578 = vsel %vm1047, %v1516, 0
        %v1581 = vsel %vm1047, %v1517, 0
        %v1584 = vsel %vm1047, %v1518, 0
        %v1587 = vsel %vm1047, %v1519, 0
        %v1590 = vsel %vm1047, %v1520, 0
        %v1593 = vsel %vm1047, %v1521, 0
        %v1596 = vsel %vm1047, %v1522, 0
        %v1599 = vsel %vm1047, %v1523, 0
        %v1602 = vsel %vm1047, %v1524, 0
        %v1605 = vsel %vm1047, %v1525, 0
        %v1608 = vsel %vm1047, %v1526, 0
        %v1611 = vsel %vm1047, %v1527, 0
        %v1614 = vsel %vm1047, %v1528, 0
        %v1617 = vsel %vm1047, %v1529, 0
        %v1620 = vsel %vm1047, %v1530, 0
        %v1623 = vsel %vm1047, %v1531, 0
        %v1626 = vsel %vm1047, %v1532, 0
        %v1629 = vsel %vm1047, %v1533, 0
        %v1632 = vsel %vm1047, %v1534, 0
        %v1635 = vsel %vm1047, %v1535, 0
        %v1638 = vsel %vm1047, %v1536, 0
        %v1641 = vsel %vm1047, %v1537, 0
        %v1644 = vsel %vm1047, %v1538, 0
        %v1647 = vsel %vm1047, %v1539, 0
        %v1650 = vsel %vm1047, %v1540, 0
        %v1653 = vsel %vm1047, %v1541, 0
        %v1656 = vsel %vm1047, %v1542, 0
        %v1659 = vsel %vm1047, %v1543, 0
        %v1662 = vsel %vm1047, %v1544, 0
        %v1665 = vsel %vm1047, %v1545, 0
        %v1668 = vsel %vm1047, %v1546, 0
        %v1671 = vsel %vm1047, %v1547, 0
        %v1674 = vsel %vm1047, %v1548, 0
        %v1677 = vsel %vm1047, %v1549, 0
        %v1680 = vsel %vm1047, %v1550, 0
        %v1683 = vsel %vm1047, %v1551, 0
        %v1686 = vsel %vm1047, %v1552, 0
        %v1689 = vsel %vm1047, %v1553, 0
        %v1692 = vsel %vm1047, %v1554, 0
        %v1695 = vsel %vm1047, %v1555, 0
        %v1698 = vsel %vm1047, %v1556, 0
        %v1701 = vsel %vm1047, %v1557, 0
        %v1704 = vsel %vm1047, %v1558, 0
        %1706 = vmatprep.subr.mxu0 0.0
        %1707 = vmatpush1.msra.mxu0 %v988
        %1708 = vmatprep.subr.mxu0 0.0
        %1709 = vmatpush1.msra.mxu0 %v989
        %1710 = vmatprep.subr.mxu0 0.0
        %1711 = vmatpush1.msra.mxu0 %v990
        %1712 = vmatprep.subr.mxu0 0.0
        %1713 = vmatpush1.msra.mxu0 %v991
        %1714 = vmatprep.subr.mxu0 0.0
        %1715 = vmatpush1.msra.mxu0 %v992
        %1716 = vmatprep.subr.mxu0 0.0
        %1717 = vmatpush1.msra.mxu0 %v993
        %1718 = vmatprep.subr.mxu0 0.0
        %1719 = vmatpush1.msra.mxu0 %v994
        %1720 = vmatprep.subr.mxu0 0.0
        %1721 = vmatpush1.msra.mxu0 %v995
        %1722 = vmatprep.subr.mxu0 0.0
        %1723 = vmatpush1.msra.mxu0 %v996
        %1724 = vmatprep.subr.mxu0 0.0
        %1725 = vmatpush1.msra.mxu0 %v1197
        %1726 = vmatprep.subr.mxu0 0.0
        %1727 = vmatpush1.msra.mxu0 0.0
        %1728 = vmatprep.subr.mxu0 0.0
        %1729 = vmatpush1.msra.mxu0 0.0
        %1730 = vmatprep.subr.mxu0 0.0
        %1731 = vmatpush1.msra.mxu0 0.0
        %1732 = vmatprep.subr.mxu0 0.0
        %1733 = vmatpush1.msra.mxu0 0.0
        %1734 = vmatprep.subr.mxu0 0.0
        %1735 = vmatpush1.msra.mxu0 0.0
        %1736 = vmatprep.subr.mxu0 0.0
        %1737 = vmatpush1.msra.mxu0 0.0
        %1738 = vmatprep.subr.mxu0 0.0
        %1739 = vmatpush1.msra.mxu0 0.0
        %1740 = vmatprep.subr.mxu0 0.0
        %1741 = vmatpush1.msra.mxu0 0.0
        %1742 = vmatprep.subr.mxu0 0.0
        %1743 = vmatpush1.msra.mxu0 0.0
        %1744 = vmatprep.subr.mxu0 0.0
        %1745 = vmatpush1.msra.mxu0 0.0
        %1746 = vmatprep.subr.mxu0 0.0
        %1747 = vmatpush1.msra.mxu0 0.0
        %1748 = vmatprep.subr.mxu0 0.0
        %1749 = vmatpush1.msra.mxu0 0.0
        %1750 = vmatprep.subr.mxu0 0.0
        %1751 = vmatpush1.msra.mxu0 0.0
        %1752 = vmatprep.subr.mxu0 0.0
        %1753 = vmatpush1.msra.mxu0 0.0
        %1754 = vmatprep.subr.mxu0 0.0
        %1755 = vmatpush1.msra.mxu0 0.0
        %1756 = vmatprep.subr.mxu0 0.0
        %1757 = vmatpush1.msra.mxu0 0.0
        %1758 = vmatprep.subr.mxu0 0.0
        %1759 = vmatpush1.msra.mxu0 0.0
        %1760 = vmatprep.subr.mxu0 0.0
        %1761 = vmatpush1.msra.mxu0 0.0
        %1762 = vmatprep.subr.mxu0 0.0
        %1763 = vmatpush1.msra.mxu0 0.0
        %1764 = vmatprep.subr.mxu0 0.0
        %1765 = vmatpush1.msra.mxu0 0.0
        %1766 = vmatprep.subr.mxu0 0.0
        %1767 = vmatpush1.msra.mxu0 0.0
        %1768 = vmatprep.subr.mxu0 0.0
        %1769 = vmatpush1.msra.mxu0 0.0
        %1770 = vmatprep.mubr.f32.mxu0 0.0
        %1771 = vmatmul.mubr.f32.gmra.mrb[0].mxu0 %v1560
        %v1772 = vpop.f32.mrb[0].mxu0
        %v1773 = vadd.f32 0.0, %v1772
        %v1774 = vpop.f32.mrb[0].mxu0
        %1775 = vmatprep.mubr.f32.mxu0 0.0
        %1776 = vmatmul.mubr.f32.gmra.mrb[0].mxu0 %v1563
        %v1777 = vpop.f32.mrb[0].mxu0
        %v1778 = vadd.f32 0.0, %v1777
        %v1779 = vpop.f32.mrb[0].mxu0
        %1780 = vmatprep.mubr.f32.mxu0 0.0
        %1781 = vmatmul.mubr.f32.gmra.mrb[0].mxu0 %v1566
        %v1782 = vpop.f32.mrb[0].mxu0
        %v1783 = vadd.f32 0.0, %v1782
        %v1784 = vpop.f32.mrb[0].mxu0
        %1785 = vmatprep.mubr.f32.mxu0 0.0
        %1786 = vmatmul.mubr.f32.gmra.mrb[0].mxu0 %v1569
        %v1787 = vpop.f32.mrb[0].mxu0
        %v1788 = vadd.f32 0.0, %v1787
        %v1789 = vpop.f32.mrb[0].mxu0
        %1790 = vmatprep.mubr.f32.mxu0 0.0
        %1791 = vmatmul.mubr.f32.gmra.mrb[0].mxu0 %v1572
        %v1792 = vpop.f32.mrb[0].mxu0
        %v1793 = vadd.f32 0.0, %v1792
        %v1794 = vpop.f32.mrb[0].mxu0
        %1795 = vmatprep.mubr.f32.mxu0 0.0
        %1796 = vmatmul.mubr.f32.gmra.mrb[0].mxu0 %v1575
        %v1797 = vpop.f32.mrb[0].mxu0
        %v1798 = vadd.f32 0.0, %v1797
        %v1799 = vpop.f32.mrb[0].mxu0
        %1800 = vmatprep.mubr.f32.mxu0 0.0
        %1801 = vmatmul.mubr.f32.gmra.mrb[0].mxu0 %v1578
        %v1802 = vpop.f32.mrb[0].mxu0
        %v1803 = vadd.f32 0.0, %v1802
        %v1804 = vpop.f32.mrb[0].mxu0
        %1805 = vmatprep.mubr.f32.mxu0 0.0
        %1806 = vmatmul.mubr.f32.gmra.mrb[0].mxu0 %v1581
        %v1807 = vpop.f32.mrb[0].mxu0
        %v1808 = vadd.f32 0.0, %v1807
        %v1809 = vpop.f32.mrb[0].mxu0
        %1810 = vmatprep.mubr.f32.mxu0 0.0
        %1811 = vmatmul.mubr.f32.gmra.mrb[0].mxu0 %v1584
        %v1812 = vpop.f32.mrb[0].mxu0
        %v1813 = vadd.f32 0.0, %v1812
        %v1814 = vpop.f32.mrb[0].mxu0
        %1815 = vmatprep.mubr.f32.mxu0 0.0
        %1816 = vmatmul.mubr.f32.gmra.mrb[0].mxu0 %v1587
        %v1817 = vpop.f32.mrb[0].mxu0
        %v1818 = vadd.f32 0.0, %v1817
        %v1819 = vpop.f32.mrb[0].mxu0
        %1820 = vmatprep.mubr.f32.mxu0 0.0
        %1821 = vmatmul.mubr.f32.gmra.mrb[0].mxu0 %v1590
        %v1822 = vpop.f32.mrb[0].mxu0
        %v1823 = vadd.f32 0.0, %v1822
        %v1824 = vpop.f32.mrb[0].mxu0
        %1825 = vmatprep.mubr.f32.mxu0 0.0
        %1826 = vmatmul.mubr.f32.gmra.mrb[0].mxu0 %v1593
        %v1827 = vpop.f32.mrb[0].mxu0
        %v1828 = vadd.f32 0.0, %v1827
        %v1829 = vpop.f32.mrb[0].mxu0
        %1830 = vmatprep.mubr.f32.mxu0 0.0
        %1831 = vmatmul.mubr.f32.gmra.mrb[0].mxu0 %v1596
        %v1832 = vpop.f32.mrb[0].mxu0
        %v1833 = vadd.f32 0.0, %v1832
        %v1834 = vpop.f32.mrb[0].mxu0
        %1835 = vmatprep.mubr.f32.mxu0 0.0
        %1836 = vmatmul.mubr.f32.gmra.mrb[0].mxu0 %v1599
        %v1837 = vpop.f32.mrb[0].mxu0
        %v1838 = vadd.f32 0.0, %v1837
        %v1839 = vpop.f32.mrb[0].mxu0
        %1840 = vmatprep.mubr.f32.mxu0 0.0
        %1841 = vmatmul.mubr.f32.gmra.mrb[0].mxu0 %v1602
        %v1842 = vpop.f32.mrb[0].mxu0
        %v1843 = vadd.f32 0.0, %v1842
        %v1844 = vpop.f32.mrb[0].mxu0
        %1845 = vmatprep.mubr.f32.mxu0 0.0
        %1846 = vmatmul.mubr.f32.gmra.mrb[0].mxu0 %v1605
        %v1847 = vpop.f32.mrb[0].mxu0
        %v1848 = vadd.f32 0.0, %v1847
        %v1849 = vpop.f32.mrb[0].mxu0
        %1850 = vmatprep.mubr.f32.mxu0 0.0
        %1851 = vmatmul.mubr.f32.gmra.mrb[0].mxu0 %v1608
        %v1852 = vpop.f32.mrb[0].mxu0
        %v1853 = vadd.f32 0.0, %v1852
        %v1854 = vpop.f32.mrb[0].mxu0
        %1855 = vmatprep.mubr.f32.mxu0 0.0
        %1856 = vmatmul.mubr.f32.gmra.mrb[0].mxu0 %v1611
        %v1857 = vpop.f32.mrb[0].mxu0
        %v1858 = vadd.f32 0.0, %v1857
        %v1859 = vpop.f32.mrb[0].mxu0
        %1860 = vmatprep.mubr.f32.mxu0 0.0
        %1861 = vmatmul.mubr.f32.gmra.mrb[0].mxu0 %v1614
        %v1862 = vpop.f32.mrb[0].mxu0
        %v1863 = vadd.f32 0.0, %v1862
        %v1864 = vpop.f32.mrb[0].mxu0
        %1865 = vmatprep.mubr.f32.mxu0 0.0
        %1866 = vmatmul.mubr.f32.gmra.mrb[0].mxu0 %v1617
        %v1867 = vpop.f32.mrb[0].mxu0
        %v1868 = vadd.f32 0.0, %v1867
        %v1869 = vpop.f32.mrb[0].mxu0
        %1870 = vmatprep.mubr.f32.mxu0 0.0
        %1871 = vmatmul.mubr.f32.gmra.mrb[0].mxu0 %v1620
        %v1872 = vpop.f32.mrb[0].mxu0
        %v1873 = vadd.f32 0.0, %v1872
        %v1874 = vpop.f32.mrb[0].mxu0
        %1875 = vmatprep.mubr.f32.mxu0 0.0
        %1876 = vmatmul.mubr.f32.gmra.mrb[0].mxu0 %v1623
        %v1877 = vpop.f32.mrb[0].mxu0
        %v1878 = vadd.f32 0.0, %v1877
        %v1879 = vpop.f32.mrb[0].mxu0
        %1880 = vmatprep.mubr.f32.mxu0 0.0
        %1881 = vmatmul.mubr.f32.gmra.mrb[0].mxu0 %v1626
        %v1882 = vpop.f32.mrb[0].mxu0
        %v1883 = vadd.f32 0.0, %v1882
        %v1884 = vpop.f32.mrb[0].mxu0
        %1885 = vmatprep.mubr.f32.mxu0 0.0
        %1886 = vmatmul.mubr.f32.gmra.mrb[0].mxu0 %v1629
        %v1887 = vpop.f32.mrb[0].mxu0
        %v1888 = vadd.f32 0.0, %v1887
        %v1889 = vpop.f32.mrb[0].mxu0
        %1890 = vmatprep.mubr.f32.mxu0 0.0
        %1891 = vmatmul.mubr.f32.gmra.mrb[0].mxu0 %v1632
        %v1892 = vpop.f32.mrb[0].mxu0
        %v1893 = vadd.f32 0.0, %v1892
        %v1894 = vpop.f32.mrb[0].mxu0
        %1895 = vmatprep.mubr.f32.mxu0 0.0
        %1896 = vmatmul.mubr.f32.gmra.mrb[0].mxu0 %v1635
        %v1897 = vpop.f32.mrb[0].mxu0
        %v1898 = vadd.f32 0.0, %v1897
        %v1899 = vpop.f32.mrb[0].mxu0
        %1900 = vmatprep.mubr.f32.mxu0 0.0
        %1901 = vmatmul.mubr.f32.gmra.mrb[0].mxu0 %v1638
        %v1902 = vpop.f32.mrb[0].mxu0
        %v1903 = vadd.f32 0.0, %v1902
        %v1904 = vpop.f32.mrb[0].mxu0
        %1905 = vmatprep.mubr.f32.mxu0 0.0
        %1906 = vmatmul.mubr.f32.gmra.mrb[0].mxu0 %v1641
        %v1907 = vpop.f32.mrb[0].mxu0
        %v1908 = vadd.f32 0.0, %v1907
        %v1909 = vpop.f32.mrb[0].mxu0
        %1910 = vmatprep.mubr.f32.mxu0 0.0
        %1911 = vmatmul.mubr.f32.gmra.mrb[0].mxu0 %v1644
        %v1912 = vpop.f32.mrb[0].mxu0
        %v1913 = vadd.f32 0.0, %v1912
        %v1914 = vpop.f32.mrb[0].mxu0
        %1915 = vmatprep.mubr.f32.mxu0 0.0
        %1916 = vmatmul.mubr.f32.gmra.mrb[0].mxu0 %v1647
        %v1917 = vpop.f32.mrb[0].mxu0
        %v1918 = vadd.f32 0.0, %v1917
        %v1919 = vpop.f32.mrb[0].mxu0
        %1920 = vmatprep.mubr.f32.mxu0 0.0
        %1921 = vmatmul.mubr.f32.gmra.mrb[0].mxu0 %v1650
        %v1922 = vpop.f32.mrb[0].mxu0
        %v1923 = vadd.f32 0.0, %v1922
        %v1924 = vpop.f32.mrb[0].mxu0
        %1925 = vmatprep.mubr.f32.mxu0 0.0
        %1926 = vmatmul.mubr.f32.gmra.mrb[0].mxu0 %v1653
        %v1927 = vpop.f32.mrb[0].mxu0
        %v1928 = vadd.f32 0.0, %v1927
        %v1929 = vpop.f32.mrb[0].mxu0
        %1930 = vmatprep.mubr.f32.mxu0 0.0
        %1931 = vmatmul.mubr.f32.gmra.mrb[0].mxu0 %v1656
        %v1932 = vpop.f32.mrb[0].mxu0
        %v1933 = vadd.f32 0.0, %v1932
        %v1934 = vpop.f32.mrb[0].mxu0
        %1935 = vmatprep.mubr.f32.mxu0 0.0
        %1936 = vmatmul.mubr.f32.gmra.mrb[0].mxu0 %v1659
        %v1937 = vpop.f32.mrb[0].mxu0
        %v1938 = vadd.f32 0.0, %v1937
        %v1939 = vpop.f32.mrb[0].mxu0
        %1940 = vmatprep.mubr.f32.mxu0 0.0
        %1941 = vmatmul.mubr.f32.gmra.mrb[0].mxu0 %v1662
        %v1942 = vpop.f32.mrb[0].mxu0
        %v1943 = vadd.f32 0.0, %v1942
        %v1944 = vpop.f32.mrb[0].mxu0
        %1945 = vmatprep.mubr.f32.mxu0 0.0
        %1946 = vmatmul.mubr.f32.gmra.mrb[0].mxu0 %v1665
        %v1947 = vpop.f32.mrb[0].mxu0
        %v1948 = vadd.f32 0.0, %v1947
        %v1949 = vpop.f32.mrb[0].mxu0
        %1950 = vmatprep.mubr.f32.mxu0 0.0
        %1951 = vmatmul.mubr.f32.gmra.mrb[0].mxu0 %v1668
        %v1952 = vpop.f32.mrb[0].mxu0
        %v1953 = vadd.f32 0.0, %v1952
        %v1954 = vpop.f32.mrb[0].mxu0
        %1955 = vmatprep.mubr.f32.mxu0 0.0
        %1956 = vmatmul.mubr.f32.gmra.mrb[0].mxu0 %v1671
        %v1957 = vpop.f32.mrb[0].mxu0
        %v1958 = vadd.f32 0.0, %v1957
        %v1959 = vpop.f32.mrb[0].mxu0
        %1960 = vmatprep.mubr.f32.mxu0 0.0
        %1961 = vmatmul.mubr.f32.gmra.mrb[0].mxu0 %v1674
        %v1962 = vpop.f32.mrb[0].mxu0
        %v1963 = vadd.f32 0.0, %v1962
        %v1964 = vpop.f32.mrb[0].mxu0
        %1965 = vmatprep.mubr.f32.mxu0 0.0
        %1966 = vmatmul.mubr.f32.gmra.mrb[0].mxu0 %v1677
        %v1967 = vpop.f32.mrb[0].mxu0
        %v1968 = vadd.f32 0.0, %v1967
        %v1969 = vpop.f32.mrb[0].mxu0
        %1970 = vmatprep.mubr.f32.mxu0 0.0
        %1971 = vmatmul.mubr.f32.gmra.mrb[0].mxu0 %v1680
        %v1972 = vpop.f32.mrb[0].mxu0
        %v1973 = vadd.f32 0.0, %v1972
        %v1974 = vpop.f32.mrb[0].mxu0
        %1975 = vmatprep.mubr.f32.mxu0 0.0
        %1976 = vmatmul.mubr.f32.gmra.mrb[0].mxu0 %v1683
        %v1977 = vpop.f32.mrb[0].mxu0
        %v1978 = vadd.f32 0.0, %v1977
        %v1979 = vpop.f32.mrb[0].mxu0
        %1980 = vmatprep.mubr.f32.mxu0 0.0
        %1981 = vmatmul.mubr.f32.gmra.mrb[0].mxu0 %v1686
        %v1982 = vpop.f32.mrb[0].mxu0
        %v1983 = vadd.f32 0.0, %v1982
        %v1984 = vpop.f32.mrb[0].mxu0
        %1985 = vmatprep.mubr.f32.mxu0 0.0
        %1986 = vmatmul.mubr.f32.gmra.mrb[0].mxu0 %v1689
        %v1987 = vpop.f32.mrb[0].mxu0
        %v1988 = vadd.f32 0.0, %v1987
        %v1989 = vpop.f32.mrb[0].mxu0
        %1990 = vmatprep.mubr.f32.mxu0 0.0
        %1991 = vmatmul.mubr.f32.gmra.mrb[0].mxu0 %v1692
        %v1992 = vpop.f32.mrb[0].mxu0
        %v1993 = vadd.f32 0.0, %v1992
        %v1994 = vpop.f32.mrb[0].mxu0
        %1995 = vmatprep.mubr.f32.mxu0 0.0
        %1996 = vmatmul.mubr.f32.gmra.mrb[0].mxu0 %v1695
        %v1997 = vpop.f32.mrb[0].mxu0
        %v1998 = vadd.f32 0.0, %v1997
        %v1999 = vpop.f32.mrb[0].mxu0
        %2000 = vmatprep.mubr.f32.mxu0 0.0
        %2001 = vmatmul.mubr.f32.gmra.mrb[0].mxu0 %v1698
        %v2002 = vpop.f32.mrb[0].mxu0
        %v2003 = vadd.f32 0.0, %v2002
        %v2004 = vpop.f32.mrb[0].mxu0
        %2005 = vmatprep.mubr.f32.mxu0 0.0
        %2006 = vmatmul.mubr.f32.gmra.mrb[0].mxu0 %v1701
        %v2007 = vpop.f32.mrb[0].mxu0
        %v2008 = vadd.f32 0.0, %v2007
        %v2009 = vpop.f32.mrb[0].mxu0
        %2010 = vmatprep.mubr.f32.mxu0 0.0
        %2011 = vmatmul.mubr.f32.gmra.mrb[0].mxu0 %v1704
        %v2012 = vpop.f32.mrb[0].mxu0
        %v2013 = vadd.f32 0.0, %v2012
        %v2014 = vpop.f32.mrb[0].mxu0
        %2015 = vdwg.mxu0
        %v2016 = vmax.f32 %v1266, %v1773
        %v2017 = vmax.f32 %v1271, %v1778
        %v2018 = vmax.f32 %v1276, %v1783
        %v2019 = vmax.f32 %v1281, %v1788
        %v2020 = vmax.f32 %v1286, %v1793
        %v2021 = vmax.f32 %v1291, %v1798
        %v2022 = vmax.f32 %v1296, %v1803
        %v2023 = vmax.f32 %v1301, %v1808
        %v2024 = vmax.f32 %v1306, %v1813
        %v2025 = vmax.f32 %v1311, %v1818
        %v2026 = vmax.f32 %v1316, %v1823
        %v2027 = vmax.f32 %v1321, %v1828
        %v2028 = vmax.f32 %v1326, %v1833
        %v2029 = vmax.f32 %v1331, %v1838
        %v2030 = vmax.f32 %v1336, %v1843
        %v2031 = vmax.f32 %v1341, %v1848
        %v2032 = vmax.f32 %v1346, %v1853
        %v2033 = vmax.f32 %v1351, %v1858
        %v2034 = vmax.f32 %v1356, %v1863
        %v2035 = vmax.f32 %v1361, %v1868
        %v2036 = vmax.f32 %v1366, %v1873
        %v2037 = vmax.f32 %v1371, %v1878
        %v2038 = vmax.f32 %v1376, %v1883
        %v2039 = vmax.f32 %v1381, %v1888
        %v2040 = vmax.f32 %v1386, %v1893
        %v2041 = vmax.f32 %v1391, %v1898
        %v2042 = vmax.f32 %v1396, %v1903
        %v2043 = vmax.f32 %v1401, %v1908
        %v2044 = vmax.f32 %v1406, %v1913
        %v2045 = vmax.f32 %v1411, %v1918
        %v2046 = vmax.f32 %v1416, %v1923
        %v2047 = vmax.f32 %v1421, %v1928
        %v2048 = vmax.f32 %v1426, %v1933
        %v2049 = vmax.f32 %v1431, %v1938
        %v2050 = vmax.f32 %v1436, %v1943
        %v2051 = vmax.f32 %v1441, %v1948
        %v2052 = vmax.f32 %v1446, %v1953
        %v2053 = vmax.f32 %v1451, %v1958
        %v2054 = vmax.f32 %v1456, %v1963
        %v2055 = vmax.f32 %v1461, %v1968
        %v2056 = vmax.f32 %v1466, %v1973
        %v2057 = vmax.f32 %v1471, %v1978
        %v2058 = vmax.f32 %v1476, %v1983
        %v2059 = vmax.f32 %v1481, %v1988
        %v2060 = vmax.f32 %v1486, %v1993
        %v2061 = vmax.f32 %v1491, %v1998
        %v2062 = vmax.f32 %v1496, %v2003
        %v2063 = vmax.f32 %v1501, %v2008
        %v2064 = vmax.f32 %v1506, %v2013
        %s2065 = scalar_lea.vmem %s960, 784 [#allocation2]
        %v2066 = vld [vmem:[%s2065] sm:$0xff]
        %v2067 = vld [vmem:[%s2065 + $0x8] sm:$0xff]
        %v2068 = vld [vmem:[%s2065 + $0x10] sm:$0xff]
        %v2069 = vld [vmem:[%s2065 + $0x18] sm:$0xff]
        %v2070 = vld [vmem:[%s2065 + $0x20] sm:$0xff]
        %v2071 = vld [vmem:[%s2065 + $0x28] sm:$0xff]
        %v2072 = vld [vmem:[%s2065 + $0x30] sm:$0xff]
        %v2073 = vld [vmem:[%s2065 + $0x38] sm:$0xff]
        %v2074 = vld [vmem:[%s2065 + $0x40] sm:$0xff]
        %v2075 = vld [vmem:[%s2065 + $0x48] sm:$0xff]
        %v2076 = vld [vmem:[%s2065 + $0x50] sm:$0xff]
        %v2077 = vld [vmem:[%s2065 + $0x58] sm:$0xff]
        %v2078 = vld [vmem:[%s2065 + $0x60] sm:$0xff]
        %v2079 = vld [vmem:[%s2065 + $0x68] sm:$0xff]
        %v2080 = vld [vmem:[%s2065 + $0x70] sm:$0xff]
        %v2081 = vld [vmem:[%s2065 + $0x78] sm:$0xff]
        %v2082 = vld [vmem:[%s2065 + $0x80] sm:$0xff]
        %v2083 = vld [vmem:[%s2065 + $0x88] sm:$0xff]
        %v2084 = vld [vmem:[%s2065 + $0x90] sm:$0xff]
        %v2085 = vld [vmem:[%s2065 + $0x98] sm:$0xff]
        %v2086 = vld [vmem:[%s2065 + $0xa0] sm:$0xff]
        %v2087 = vld [vmem:[%s2065 + $0xa8] sm:$0xff]
        %v2088 = vld [vmem:[%s2065 + $0xb0] sm:$0xff]
        %v2089 = vld [vmem:[%s2065 + $0xb8] sm:$0xff]
        %v2090 = vld [vmem:[%s2065 + $0xc0] sm:$0xff]
        %v2091 = vld [vmem:[%s2065 + $0xc8] sm:$0xff]
        %v2092 = vld [vmem:[%s2065 + $0xd0] sm:$0xff]
        %v2093 = vld [vmem:[%s2065 + $0xd8] sm:$0xff]
        %v2094 = vld [vmem:[%s2065 + $0xe0] sm:$0xff]
        %v2095 = vld [vmem:[%s2065 + $0xe8] sm:$0xff]
        %v2096 = vld [vmem:[%s2065 + $0xf0] sm:$0xff]
        %v2097 = vld [vmem:[%s2065 + $0xf8] sm:$0xff]
        %v2098 = vld [vmem:[%s2065 + $0x100] sm:$0xff]
        %v2099 = vld [vmem:[%s2065 + $0x108] sm:$0xff]
        %v2100 = vld [vmem:[%s2065 + $0x110] sm:$0xff]
        %v2101 = vld [vmem:[%s2065 + $0x118] sm:$0xff]
        %v2102 = vld [vmem:[%s2065 + $0x120] sm:$0xff]
        %v2103 = vld [vmem:[%s2065 + $0x128] sm:$0xff]
        %v2104 = vld [vmem:[%s2065 + $0x130] sm:$0xff]
        %v2105 = vld [vmem:[%s2065 + $0x138] sm:$0xff]
        %v2106 = vld [vmem:[%s2065 + $0x140] sm:$0xff]
        %v2107 = vld [vmem:[%s2065 + $0x148] sm:$0xff]
        %v2108 = vld [vmem:[%s2065 + $0x150] sm:$0xff]
        %v2109 = vld [vmem:[%s2065 + $0x158] sm:$0xff]
        %v2110 = vld [vmem:[%s2065 + $0x160] sm:$0xff]
        %v2111 = vld [vmem:[%s2065 + $0x168] sm:$0xff]
        %v2112 = vld [vmem:[%s2065 + $0x170] sm:$0xff]
        %v2113 = vld [vmem:[%s2065 + $0x178] sm:$0xff]
        %v2114 = vld [vmem:[%s2065 + $0x180] sm:$0xff]
        %v2116 = vsel %vm1047, %v2066, 0
        %v2119 = vsel %vm1047, %v2067, 0
        %v2122 = vsel %vm1047, %v2068, 0
        %v2125 = vsel %vm1047, %v2069, 0
        %v2128 = vsel %vm1047, %v2070, 0
        %v2131 = vsel %vm1047, %v2071, 0
        %v2134 = vsel %vm1047, %v2072, 0
        %v2137 = vsel %vm1047, %v2073, 0
        %v2140 = vsel %vm1047, %v2074, 0
        %v2143 = vsel %vm1047, %v2075, 0
        %v2146 = vsel %vm1047, %v2076, 0
        %v2149 = vsel %vm1047, %v2077, 0
        %v2152 = vsel %vm1047, %v2078, 0
        %v2155 = vsel %vm1047, %v2079, 0
        %v2158 = vsel %vm1047, %v2080, 0
        %v2161 = vsel %vm1047, %v2081, 0
        %v2164 = vsel %vm1047, %v2082, 0
        %v2167 = vsel %vm1047, %v2083, 0
        %v2170 = vsel %vm1047, %v2084, 0
        %v2173 = vsel %vm1047, %v2085, 0
        %v2176 = vsel %vm1047, %v2086, 0
        %v2179 = vsel %vm1047, %v2087, 0
        %v2182 = vsel %vm1047, %v2088, 0
        %v2185 = vsel %vm1047, %v2089, 0
        %v2188 = vsel %vm1047, %v2090, 0
        %v2191 = vsel %vm1047, %v2091, 0
        %v2194 = vsel %vm1047, %v2092, 0
        %v2197 = vsel %vm1047, %v2093, 0
        %v2200 = vsel %vm1047, %v2094, 0
        %v2203 = vsel %vm1047, %v2095, 0
        %v2206 = vsel %vm1047, %v2096, 0
        %v2209 = vsel %vm1047, %v2097, 0
        %v2212 = vsel %vm1047, %v2098, 0
        %v2215 = vsel %vm1047, %v2099, 0
        %v2218 = vsel %vm1047, %v2100, 0
        %v2221 = vsel %vm1047, %v2101, 0
        %v2224 = vsel %vm1047, %v2102, 0
        %v2227 = vsel %vm1047, %v2103, 0
        %v2230 = vsel %vm1047, %v2104, 0
        %v2233 = vsel %vm1047, %v2105, 0
        %v2236 = vsel %vm1047, %v2106, 0
        %v2239 = vsel %vm1047, %v2107, 0
        %v2242 = vsel %vm1047, %v2108, 0
        %v2245 = vsel %vm1047, %v2109, 0
        %v2248 = vsel %vm1047, %v2110, 0
        %v2251 = vsel %vm1047, %v2111, 0
        %v2254 = vsel %vm1047, %v2112, 0
        %v2257 = vsel %vm1047, %v2113, 0
        %v2260 = vsel %vm1047, %v2114, 0
        %2262 = vmatprep.subr.mxu0 0.0
        %2263 = vmatpush1.msra.mxu0 %v988
        %2264 = vmatprep.subr.mxu0 0.0
        %2265 = vmatpush1.msra.mxu0 %v989
        %2266 = vmatprep.subr.mxu0 0.0
        %2267 = vmatpush1.msra.mxu0 %v990
        %2268 = vmatprep.subr.mxu0 0.0
        %2269 = vmatpush1.msra.mxu0 %v991
        %2270 = vmatprep.subr.mxu0 0.0
        %2271 = vmatpush1.msra.mxu0 %v992
        %2272 = vmatprep.subr.mxu0 0.0
        %2273 = vmatpush1.msra.mxu0 %v993
        %2274 = vmatprep.subr.mxu0 0.0
        %2275 = vmatpush1.msra.mxu0 %v994
        %2276 = vmatprep.subr.mxu0 0.0
        %2277 = vmatpush1.msra.mxu0 %v995
        %2278 = vmatprep.subr.mxu0 0.0
        %2279 = vmatpush1.msra.mxu0 %v996
        %2280 = vmatprep.subr.mxu0 0.0
        %2281 = vmatpush1.msra.mxu0 %v1197
        %2282 = vmatprep.subr.mxu0 0.0
        %2283 = vmatpush1.msra.mxu0 0.0
        %2284 = vmatprep.subr.mxu0 0.0
        %2285 = vmatpush1.msra.mxu0 0.0
        %2286 = vmatprep.subr.mxu0 0.0
        %2287 = vmatpush1.msra.mxu0 0.0
        %2288 = vmatprep.subr.mxu0 0.0
        %2289 = vmatpush1.msra.mxu0 0.0
        %2290 = vmatprep.subr.mxu0 0.0
        %2291 = vmatpush1.msra.mxu0 0.0
        %2292 = vmatprep.subr.mxu0 0.0
        %2293 = vmatpush1.msra.mxu0 0.0
        %2294 = vmatprep.subr.mxu0 0.0
        %2295 = vmatpush1.msra.mxu0 0.0
        %2296 = vmatprep.subr.mxu0 0.0
        %2297 = vmatpush1.msra.mxu0 0.0
        %2298 = vmatprep.subr.mxu0 0.0
        %2299 = vmatpush1.msra.mxu0 0.0
        %2300 = vmatprep.subr.mxu0 0.0
        %2301 = vmatpush1.msra.mxu0 0.0
        %2302 = vmatprep.subr.mxu0 0.0
        %2303 = vmatpush1.msra.mxu0 0.0
        %2304 = vmatprep.subr.mxu0 0.0
        %2305 = vmatpush1.msra.mxu0 0.0
        %2306 = vmatprep.subr.mxu0 0.0
        %2307 = vmatpush1.msra.mxu0 0.0
        %2308 = vmatprep.subr.mxu0 0.0
        %2309 = vmatpush1.msra.mxu0 0.0
        %2310 = vmatprep.subr.mxu0 0.0
        %2311 = vmatpush1.msra.mxu0 0.0
        %2312 = vmatprep.subr.mxu0 0.0
        %2313 = vmatpush1.msra.mxu0 0.0
        %2314 = vmatprep.subr.mxu0 0.0
        %2315 = vmatpush1.msra.mxu0 0.0
        %2316 = vmatprep.subr.mxu0 0.0
        %2317 = vmatpush1.msra.mxu0 0.0
        %2318 = vmatprep.subr.mxu0 0.0
        %2319 = vmatpush1.msra.mxu0 0.0
        %2320 = vmatprep.subr.mxu0 0.0
        %2321 = vmatpush1.msra.mxu0 0.0
        %2322 = vmatprep.subr.mxu0 0.0
        %2323 = vmatpush1.msra.mxu0 0.0
        %2324 = vmatprep.subr.mxu0 0.0
        %2325 = vmatpush1.msra.mxu0 0.0
        %2326 = vmatprep.mubr.f32.mxu0 0.0
        %2327 = vmatmul.mubr.f32.gmra.mrb[0].mxu0 %v2116
        %v2328 = vpop.f32.mrb[0].mxu0
        %v2329 = vadd.f32 0.0, %v2328
        %v2330 = vpop.f32.mrb[0].mxu0
        %2331 = vmatprep.mubr.f32.mxu0 0.0
        %2332 = vmatmul.mubr.f32.gmra.mrb[0].mxu0 %v2119
        %v2333 = vpop.f32.mrb[0].mxu0
        %v2334 = vadd.f32 0.0, %v2333
        %v2335 = vpop.f32.mrb[0].mxu0
        %2336 = vmatprep.mubr.f32.mxu0 0.0
        %2337 = vmatmul.mubr.f32.gmra.mrb[0].mxu0 %v2122
        %v2338 = vpop.f32.mrb[0].mxu0
        %v2339 = vadd.f32 0.0, %v2338
        %v2340 = vpop.f32.mrb[0].mxu0
        %2341 = vmatprep.mubr.f32.mxu0 0.0
        %2342 = vmatmul.mubr.f32.gmra.mrb[0].mxu0 %v2125
        %v2343 = vpop.f32.mrb[0].mxu0
        %v2344 = vadd.f32 0.0, %v2343
        %v2345 = vpop.f32.mrb[0].mxu0
        %2346 = vmatprep.mubr.f32.mxu0 0.0
        %2347 = vmatmul.mubr.f32.gmra.mrb[0].mxu0 %v2128
        %v2348 = vpop.f32.mrb[0].mxu0
        %v2349 = vadd.f32 0.0, %v2348
        %v2350 = vpop.f32.mrb[0].mxu0
        %2351 = vmatprep.mubr.f32.mxu0 0.0
        %2352 = vmatmul.mubr.f32.gmra.mrb[0].mxu0 %v2131
        %v2353 = vpop.f32.mrb[0].mxu0
        %v2354 = vadd.f32 0.0, %v2353
        %v2355 = vpop.f32.mrb[0].mxu0
        %2356 = vmatprep.mubr.f32.mxu0 0.0
        %2357 = vmatmul.mubr.f32.gmra.mrb[0].mxu0 %v2134
        %v2358 = vpop.f32.mrb[0].mxu0
        %v2359 = vadd.f32 0.0, %v2358
        %v2360 = vpop.f32.mrb[0].mxu0
        %2361 = vmatprep.mubr.f32.mxu0 0.0
        %2362 = vmatmul.mubr.f32.gmra.mrb[0].mxu0 %v2137
        %v2363 = vpop.f32.mrb[0].mxu0
        %v2364 = vadd.f32 0.0, %v2363
        %v2365 = vpop.f32.mrb[0].mxu0
        %2366 = vmatprep.mubr.f32.mxu0 0.0
        %2367 = vmatmul.mubr.f32.gmra.mrb[0].mxu0 %v2140
        %v2368 = vpop.f32.mrb[0].mxu0
        %v2369 = vadd.f32 0.0, %v2368
        %v2370 = vpop.f32.mrb[0].mxu0
        %2371 = vmatprep.mubr.f32.mxu0 0.0
        %2372 = vmatmul.mubr.f32.gmra.mrb[0].mxu0 %v2143
        %v2373 = vpop.f32.mrb[0].mxu0
        %v2374 = vadd.f32 0.0, %v2373
        %v2375 = vpop.f32.mrb[0].mxu0
        %2376 = vmatprep.mubr.f32.mxu0 0.0
        %2377 = vmatmul.mubr.f32.gmra.mrb[0].mxu0 %v2146
        %v2378 = vpop.f32.mrb[0].mxu0
        %v2379 = vadd.f32 0.0, %v2378
        %v2380 = vpop.f32.mrb[0].mxu0
        %2381 = vmatprep.mubr.f32.mxu0 0.0
        %2382 = vmatmul.mubr.f32.gmra.mrb[0].mxu0 %v2149
        %v2383 = vpop.f32.mrb[0].mxu0
        %v2384 = vadd.f32 0.0, %v2383
        %v2385 = vpop.f32.mrb[0].mxu0
        %2386 = vmatprep.mubr.f32.mxu0 0.0
        %2387 = vmatmul.mubr.f32.gmra.mrb[0].mxu0 %v2152
        %v2388 = vpop.f32.mrb[0].mxu0
        %v2389 = vadd.f32 0.0, %v2388
        %v2390 = vpop.f32.mrb[0].mxu0
        %2391 = vmatprep.mubr.f32.mxu0 0.0
        %2392 = vmatmul.mubr.f32.gmra.mrb[0].mxu0 %v2155
        %v2393 = vpop.f32.mrb[0].mxu0
        %v2394 = vadd.f32 0.0, %v2393
        %v2395 = vpop.f32.mrb[0].mxu0
        %2396 = vmatprep.mubr.f32.mxu0 0.0
        %2397 = vmatmul.mubr.f32.gmra.mrb[0].mxu0 %v2158
        %v2398 = vpop.f32.mrb[0].mxu0
        %v2399 = vadd.f32 0.0, %v2398
        %v2400 = vpop.f32.mrb[0].mxu0
        %2401 = vmatprep.mubr.f32.mxu0 0.0
        %2402 = vmatmul.mubr.f32.gmra.mrb[0].mxu0 %v2161
        %v2403 = vpop.f32.mrb[0].mxu0
        %v2404 = vadd.f32 0.0, %v2403
        %v2405 = vpop.f32.mrb[0].mxu0
        %2406 = vmatprep.mubr.f32.mxu0 0.0
        %2407 = vmatmul.mubr.f32.gmra.mrb[0].mxu0 %v2164
        %v2408 = vpop.f32.mrb[0].mxu0
        %v2409 = vadd.f32 0.0, %v2408
        %v2410 = vpop.f32.mrb[0].mxu0
        %2411 = vmatprep.mubr.f32.mxu0 0.0
        %2412 = vmatmul.mubr.f32.gmra.mrb[0].mxu0 %v2167
        %v2413 = vpop.f32.mrb[0].mxu0
        %v2414 = vadd.f32 0.0, %v2413
        %v2415 = vpop.f32.mrb[0].mxu0
        %2416 = vmatprep.mubr.f32.mxu0 0.0
        %2417 = vmatmul.mubr.f32.gmra.mrb[0].mxu0 %v2170
        %v2418 = vpop.f32.mrb[0].mxu0
        %v2419 = vadd.f32 0.0, %v2418
        %v2420 = vpop.f32.mrb[0].mxu0
        %2421 = vmatprep.mubr.f32.mxu0 0.0
        %2422 = vmatmul.mubr.f32.gmra.mrb[0].mxu0 %v2173
        %v2423 = vpop.f32.mrb[0].mxu0
        %v2424 = vadd.f32 0.0, %v2423
        %v2425 = vpop.f32.mrb[0].mxu0
        %2426 = vmatprep.mubr.f32.mxu0 0.0
        %2427 = vmatmul.mubr.f32.gmra.mrb[0].mxu0 %v2176
        %v2428 = vpop.f32.mrb[0].mxu0
        %v2429 = vadd.f32 0.0, %v2428
        %v2430 = vpop.f32.mrb[0].mxu0
        %2431 = vmatprep.mubr.f32.mxu0 0.0
        %2432 = vmatmul.mubr.f32.gmra.mrb[0].mxu0 %v2179
        %v2433 = vpop.f32.mrb[0].mxu0
        %v2434 = vadd.f32 0.0, %v2433
        %v2435 = vpop.f32.mrb[0].mxu0
        %2436 = vmatprep.mubr.f32.mxu0 0.0
        %2437 = vmatmul.mubr.f32.gmra.mrb[0].mxu0 %v2182
        %v2438 = vpop.f32.mrb[0].mxu0
        %v2439 = vadd.f32 0.0, %v2438
        %v2440 = vpop.f32.mrb[0].mxu0
        %2441 = vmatprep.mubr.f32.mxu0 0.0
        %2442 = vmatmul.mubr.f32.gmra.mrb[0].mxu0 %v2185
        %v2443 = vpop.f32.mrb[0].mxu0
        %v2444 = vadd.f32 0.0, %v2443
        %v2445 = vpop.f32.mrb[0].mxu0
        %2446 = vmatprep.mubr.f32.mxu0 0.0
        %2447 = vmatmul.mubr.f32.gmra.mrb[0].mxu0 %v2188
        %v2448 = vpop.f32.mrb[0].mxu0
        %v2449 = vadd.f32 0.0, %v2448
        %v2450 = vpop.f32.mrb[0].mxu0
        %2451 = vmatprep.mubr.f32.mxu0 0.0
        %2452 = vmatmul.mubr.f32.gmra.mrb[0].mxu0 %v2191
        %v2453 = vpop.f32.mrb[0].mxu0
        %v2454 = vadd.f32 0.0, %v2453
        %v2455 = vpop.f32.mrb[0].mxu0
        %2456 = vmatprep.mubr.f32.mxu0 0.0
        %2457 = vmatmul.mubr.f32.gmra.mrb[0].mxu0 %v2194
        %v2458 = vpop.f32.mrb[0].mxu0
        %v2459 = vadd.f32 0.0, %v2458
        %v2460 = vpop.f32.mrb[0].mxu0
        %2461 = vmatprep.mubr.f32.mxu0 0.0
        %2462 = vmatmul.mubr.f32.gmra.mrb[0].mxu0 %v2197
        %v2463 = vpop.f32.mrb[0].mxu0
        %v2464 = vadd.f32 0.0, %v2463
        %v2465 = vpop.f32.mrb[0].mxu0
        %2466 = vmatprep.mubr.f32.mxu0 0.0
        %2467 = vmatmul.mubr.f32.gmra.mrb[0].mxu0 %v2200
        %v2468 = vpop.f32.mrb[0].mxu0
        %v2469 = vadd.f32 0.0, %v2468
        %v2470 = vpop.f32.mrb[0].mxu0
        %2471 = vmatprep.mubr.f32.mxu0 0.0
        %2472 = vmatmul.mubr.f32.gmra.mrb[0].mxu0 %v2203
        %v2473 = vpop.f32.mrb[0].mxu0
        %v2474 = vadd.f32 0.0, %v2473
        %v2475 = vpop.f32.mrb[0].mxu0
        %2476 = vmatprep.mubr.f32.mxu0 0.0
        %2477 = vmatmul.mubr.f32.gmra.mrb[0].mxu0 %v2206
        %v2478 = vpop.f32.mrb[0].mxu0
        %v2479 = vadd.f32 0.0, %v2478
        %v2480 = vpop.f32.mrb[0].mxu0
        %2481 = vmatprep.mubr.f32.mxu0 0.0
        %2482 = vmatmul.mubr.f32.gmra.mrb[0].mxu0 %v2209
        %v2483 = vpop.f32.mrb[0].mxu0
        %v2484 = vadd.f32 0.0, %v2483
        %v2485 = vpop.f32.mrb[0].mxu0
        %2486 = vmatprep.mubr.f32.mxu0 0.0
        %2487 = vmatmul.mubr.f32.gmra.mrb[0].mxu0 %v2212
        %v2488 = vpop.f32.mrb[0].mxu0
        %v2489 = vadd.f32 0.0, %v2488
        %v2490 = vpop.f32.mrb[0].mxu0
        %2491 = vmatprep.mubr.f32.mxu0 0.0
        %2492 = vmatmul.mubr.f32.gmra.mrb[0].mxu0 %v2215
        %v2493 = vpop.f32.mrb[0].mxu0
        %v2494 = vadd.f32 0.0, %v2493
        %v2495 = vpop.f32.mrb[0].mxu0
        %2496 = vmatprep.mubr.f32.mxu0 0.0
        %2497 = vmatmul.mubr.f32.gmra.mrb[0].mxu0 %v2218
        %v2498 = vpop.f32.mrb[0].mxu0
        %v2499 = vadd.f32 0.0, %v2498
        %v2500 = vpop.f32.mrb[0].mxu0
        %2501 = vmatprep.mubr.f32.mxu0 0.0
        %2502 = vmatmul.mubr.f32.gmra.mrb[0].mxu0 %v2221
        %v2503 = vpop.f32.mrb[0].mxu0
        %v2504 = vadd.f32 0.0, %v2503
        %v2505 = vpop.f32.mrb[0].mxu0
        %2506 = vmatprep.mubr.f32.mxu0 0.0
        %2507 = vmatmul.mubr.f32.gmra.mrb[0].mxu0 %v2224
        %v2508 = vpop.f32.mrb[0].mxu0
        %v2509 = vadd.f32 0.0, %v2508
        %v2510 = vpop.f32.mrb[0].mxu0
        %2511 = vmatprep.mubr.f32.mxu0 0.0
        %2512 = vmatmul.mubr.f32.gmra.mrb[0].mxu0 %v2227
        %v2513 = vpop.f32.mrb[0].mxu0
        %v2514 = vadd.f32 0.0, %v2513
        %v2515 = vpop.f32.mrb[0].mxu0
        %2516 = vmatprep.mubr.f32.mxu0 0.0
        %2517 = vmatmul.mubr.f32.gmra.mrb[0].mxu0 %v2230
        %v2518 = vpop.f32.mrb[0].mxu0
        %v2519 = vadd.f32 0.0, %v2518
        %v2520 = vpop.f32.mrb[0].mxu0
        %2521 = vmatprep.mubr.f32.mxu0 0.0
        %2522 = vmatmul.mubr.f32.gmra.mrb[0].mxu0 %v2233
        %v2523 = vpop.f32.mrb[0].mxu0
        %v2524 = vadd.f32 0.0, %v2523
        %v2525 = vpop.f32.mrb[0].mxu0
        %2526 = vmatprep.mubr.f32.mxu0 0.0
        %2527 = vmatmul.mubr.f32.gmra.mrb[0].mxu0 %v2236
        %v2528 = vpop.f32.mrb[0].mxu0
        %v2529 = vadd.f32 0.0, %v2528
        %v2530 = vpop.f32.mrb[0].mxu0
        %2531 = vmatprep.mubr.f32.mxu0 0.0
        %2532 = vmatmul.mubr.f32.gmra.mrb[0].mxu0 %v2239
        %v2533 = vpop.f32.mrb[0].mxu0
        %v2534 = vadd.f32 0.0, %v2533
        %v2535 = vpop.f32.mrb[0].mxu0
        %2536 = vmatprep.mubr.f32.mxu0 0.0
        %2537 = vmatmul.mubr.f32.gmra.mrb[0].mxu0 %v2242
        %v2538 = vpop.f32.mrb[0].mxu0
        %v2539 = vadd.f32 0.0, %v2538
        %v2540 = vpop.f32.mrb[0].mxu0
        %2541 = vmatprep.mubr.f32.mxu0 0.0
        %2542 = vmatmul.mubr.f32.gmra.mrb[0].mxu0 %v2245
        %v2543 = vpop.f32.mrb[0].mxu0
        %v2544 = vadd.f32 0.0, %v2543
        %v2545 = vpop.f32.mrb[0].mxu0
        %2546 = vmatprep.mubr.f32.mxu0 0.0
        %2547 = vmatmul.mubr.f32.gmra.mrb[0].mxu0 %v2248
        %v2548 = vpop.f32.mrb[0].mxu0
        %v2549 = vadd.f32 0.0, %v2548
        %v2550 = vpop.f32.mrb[0].mxu0
        %2551 = vmatprep.mubr.f32.mxu0 0.0
        %2552 = vmatmul.mubr.f32.gmra.mrb[0].mxu0 %v2251
        %v2553 = vpop.f32.mrb[0].mxu0
        %v2554 = vadd.f32 0.0, %v2553
        %v2555 = vpop.f32.mrb[0].mxu0
        %2556 = vmatprep.mubr.f32.mxu0 0.0
        %2557 = vmatmul.mubr.f32.gmra.mrb[0].mxu0 %v2254
        %v2558 = vpop.f32.mrb[0].mxu0
        %v2559 = vadd.f32 0.0, %v2558
        %v2560 = vpop.f32.mrb[0].mxu0
        %2561 = vmatprep.mubr.f32.mxu0 0.0
        %2562 = vmatmul.mubr.f32.gmra.mrb[0].mxu0 %v2257
        %v2563 = vpop.f32.mrb[0].mxu0
        %v2564 = vadd.f32 0.0, %v2563
        %v2565 = vpop.f32.mrb[0].mxu0
        %2566 = vmatprep.mubr.f32.mxu0 0.0
        %2567 = vmatmul.mubr.f32.gmra.mrb[0].mxu0 %v2260
        %v2568 = vpop.f32.mrb[0].mxu0
        %v2569 = vadd.f32 0.0, %v2568
        %v2570 = vpop.f32.mrb[0].mxu0
        %2571 = vdwg.mxu0
        %v2572 = vmax.f32 %v2016, %v2329
        %v2573 = vmax.f32 %v2017, %v2334
        %v2574 = vmax.f32 %v2018, %v2339
        %v2575 = vmax.f32 %v2019, %v2344
        %v2576 = vmax.f32 %v2020, %v2349
        %v2577 = vmax.f32 %v2021, %v2354
        %v2578 = vmax.f32 %v2022, %v2359
        %v2579 = vmax.f32 %v2023, %v2364
        %v2580 = vmax.f32 %v2024, %v2369
        %v2581 = vmax.f32 %v2025, %v2374
        %v2582 = vmax.f32 %v2026, %v2379
        %v2583 = vmax.f32 %v2027, %v2384
        %v2584 = vmax.f32 %v2028, %v2389
        %v2585 = vmax.f32 %v2029, %v2394
        %v2586 = vmax.f32 %v2030, %v2399
        %v2587 = vmax.f32 %v2031, %v2404
        %v2588 = vmax.f32 %v2032, %v2409
        %v2589 = vmax.f32 %v2033, %v2414
        %v2590 = vmax.f32 %v2034, %v2419
        %v2591 = vmax.f32 %v2035, %v2424
        %v2592 = vmax.f32 %v2036, %v2429
        %v2593 = vmax.f32 %v2037, %v2434
        %v2594 = vmax.f32 %v2038, %v2439
        %v2595 = vmax.f32 %v2039, %v2444
        %v2596 = vmax.f32 %v2040, %v2449
        %v2597 = vmax.f32 %v2041, %v2454
        %v2598 = vmax.f32 %v2042, %v2459
        %v2599 = vmax.f32 %v2043, %v2464
        %v2600 = vmax.f32 %v2044, %v2469
        %v2601 = vmax.f32 %v2045, %v2474
        %v2602 = vmax.f32 %v2046, %v2479
        %v2603 = vmax.f32 %v2047, %v2484
        %v2604 = vmax.f32 %v2048, %v2489
        %v2605 = vmax.f32 %v2049, %v2494
        %v2606 = vmax.f32 %v2050, %v2499
        %v2607 = vmax.f32 %v2051, %v2504
        %v2608 = vmax.f32 %v2052, %v2509
        %v2609 = vmax.f32 %v2053, %v2514
        %v2610 = vmax.f32 %v2054, %v2519
        %v2611 = vmax.f32 %v2055, %v2524
        %v2612 = vmax.f32 %v2056, %v2529
        %v2613 = vmax.f32 %v2057, %v2534
        %v2614 = vmax.f32 %v2058, %v2539
        %v2615 = vmax.f32 %v2059, %v2544
        %v2616 = vmax.f32 %v2060, %v2549
        %v2617 = vmax.f32 %v2061, %v2554
        %v2618 = vmax.f32 %v2062, %v2559
        %v2619 = vmax.f32 %v2063, %v2564
        %v2620 = vmax.f32 %v2064, %v2569
        %s2621 = scalar_lea.vmem %s960, 1176 [#allocation2]
        %v2622 = vld [vmem:[%s2621] sm:$0xff]
        %v2623 = vld [vmem:[%s2621 + $0x8] sm:$0xff]
        %v2624 = vld [vmem:[%s2621 + $0x10] sm:$0xff]
        %v2625 = vld [vmem:[%s2621 + $0x18] sm:$0xff]
        %v2626 = vld [vmem:[%s2621 + $0x20] sm:$0xff]
        %v2627 = vld [vmem:[%s2621 + $0x28] sm:$0xff]
        %v2628 = vld [vmem:[%s2621 + $0x30] sm:$0xff]
        %v2629 = vld [vmem:[%s2621 + $0x38] sm:$0xff]
        %v2630 = vld [vmem:[%s2621 + $0x40] sm:$0xff]
        %v2631 = vld [vmem:[%s2621 + $0x48] sm:$0xff]
        %v2632 = vld [vmem:[%s2621 + $0x50] sm:$0xff]
        %v2633 = vld [vmem:[%s2621 + $0x58] sm:$0xff]
        %v2634 = vld [vmem:[%s2621 + $0x60] sm:$0xff]
        %v2635 = vld [vmem:[%s2621 + $0x68] sm:$0xff]
        %v2636 = vld [vmem:[%s2621 + $0x70] sm:$0xff]
        %v2637 = vld [vmem:[%s2621 + $0x78] sm:$0xff]
        %v2638 = vld [vmem:[%s2621 + $0x80] sm:$0xff]
        %v2639 = vld [vmem:[%s2621 + $0x88] sm:$0xff]
        %v2640 = vld [vmem:[%s2621 + $0x90] sm:$0xff]
        %v2641 = vld [vmem:[%s2621 + $0x98] sm:$0xff]
        %v2642 = vld [vmem:[%s2621 + $0xa0] sm:$0xff]
        %v2643 = vld [vmem:[%s2621 + $0xa8] sm:$0xff]
        %v2644 = vld [vmem:[%s2621 + $0xb0] sm:$0xff]
        %v2645 = vld [vmem:[%s2621 + $0xb8] sm:$0xff]
        %v2646 = vld [vmem:[%s2621 + $0xc0] sm:$0xff]
        %v2647 = vld [vmem:[%s2621 + $0xc8] sm:$0xff]
        %v2648 = vld [vmem:[%s2621 + $0xd0] sm:$0xff]
        %v2649 = vld [vmem:[%s2621 + $0xd8] sm:$0xff]
        %v2650 = vld [vmem:[%s2621 + $0xe0] sm:$0xff]
        %v2651 = vld [vmem:[%s2621 + $0xe8] sm:$0xff]
        %v2652 = vld [vmem:[%s2621 + $0xf0] sm:$0xff]
        %v2653 = vld [vmem:[%s2621 + $0xf8] sm:$0xff]
        %v2654 = vld [vmem:[%s2621 + $0x100] sm:$0xff]
        %v2655 = vld [vmem:[%s2621 + $0x108] sm:$0xff]
        %v2656 = vld [vmem:[%s2621 + $0x110] sm:$0xff]
        %v2657 = vld [vmem:[%s2621 + $0x118] sm:$0xff]
        %v2658 = vld [vmem:[%s2621 + $0x120] sm:$0xff]
        %v2659 = vld [vmem:[%s2621 + $0x128] sm:$0xff]
        %v2660 = vld [vmem:[%s2621 + $0x130] sm:$0xff]
        %v2661 = vld [vmem:[%s2621 + $0x138] sm:$0xff]
        %v2662 = vld [vmem:[%s2621 + $0x140] sm:$0xff]
        %v2663 = vld [vmem:[%s2621 + $0x148] sm:$0xff]
        %v2664 = vld [vmem:[%s2621 + $0x150] sm:$0xff]
        %v2665 = vld [vmem:[%s2621 + $0x158] sm:$0xff]
        %v2666 = vld [vmem:[%s2621 + $0x160] sm:$0xff]
        %v2667 = vld [vmem:[%s2621 + $0x168] sm:$0xff]
        %v2668 = vld [vmem:[%s2621 + $0x170] sm:$0xff]
        %v2669 = vld [vmem:[%s2621 + $0x178] sm:$0xff]
        %v2670 = vld [vmem:[%s2621 + $0x180] sm:$0xff]
        %v2672 = vsel %vm1047, %v2622, 0
        %v2675 = vsel %vm1047, %v2623, 0
        %v2678 = vsel %vm1047, %v2624, 0
        %v2681 = vsel %vm1047, %v2625, 0
        %v2684 = vsel %vm1047, %v2626, 0
        %v2687 = vsel %vm1047, %v2627, 0
        %v2690 = vsel %vm1047, %v2628, 0
        %v2693 = vsel %vm1047, %v2629, 0
        %v2696 = vsel %vm1047, %v2630, 0
        %v2699 = vsel %vm1047, %v2631, 0
        %v2702 = vsel %vm1047, %v2632, 0
        %v2705 = vsel %vm1047, %v2633, 0
        %v2708 = vsel %vm1047, %v2634, 0
        %v2711 = vsel %vm1047, %v2635, 0
        %v2714 = vsel %vm1047, %v2636, 0
        %v2717 = vsel %vm1047, %v2637, 0
        %v2720 = vsel %vm1047, %v2638, 0
        %v2723 = vsel %vm1047, %v2639, 0
        %v2726 = vsel %vm1047, %v2640, 0
        %v2729 = vsel %vm1047, %v2641, 0
        %v2732 = vsel %vm1047, %v2642, 0
        %v2735 = vsel %vm1047, %v2643, 0
        %v2738 = vsel %vm1047, %v2644, 0
        %v2741 = vsel %vm1047, %v2645, 0
        %v2744 = vsel %vm1047, %v2646, 0
        %v2747 = vsel %vm1047, %v2647, 0
        %v2750 = vsel %vm1047, %v2648, 0
        %v2753 = vsel %vm1047, %v2649, 0
        %v2756 = vsel %vm1047, %v2650, 0
        %v2759 = vsel %vm1047, %v2651, 0
        %v2762 = vsel %vm1047, %v2652, 0
        %v2765 = vsel %vm1047, %v2653, 0
        %v2768 = vsel %vm1047, %v2654, 0
        %v2771 = vsel %vm1047, %v2655, 0
        %v2774 = vsel %vm1047, %v2656, 0
        %v2777 = vsel %vm1047, %v2657, 0
        %v2780 = vsel %vm1047, %v2658, 0
        %v2783 = vsel %vm1047, %v2659, 0
        %v2786 = vsel %vm1047, %v2660, 0
        %v2789 = vsel %vm1047, %v2661, 0
        %v2792 = vsel %vm1047, %v2662, 0
        %v2795 = vsel %vm1047, %v2663, 0
        %v2798 = vsel %vm1047, %v2664, 0
        %v2801 = vsel %vm1047, %v2665, 0
        %v2804 = vsel %vm1047, %v2666, 0
        %v2807 = vsel %vm1047, %v2667, 0
        %v2810 = vsel %vm1047, %v2668, 0
        %v2813 = vsel %vm1047, %v2669, 0
        %v2816 = vsel %vm1047, %v2670, 0
        %2818 = vmatprep.subr.mxu0 0.0
        %2819 = vmatpush1.msra.mxu0 %v988
        %2820 = vmatprep.subr.mxu0 0.0
        %2821 = vmatpush1.msra.mxu0 %v989
        %2822 = vmatprep.subr.mxu0 0.0
        %2823 = vmatpush1.msra.mxu0 %v990
        %2824 = vmatprep.subr.mxu0 0.0
        %2825 = vmatpush1.msra.mxu0 %v991
        %2826 = vmatprep.subr.mxu0 0.0
        %2827 = vmatpush1.msra.mxu0 %v992
        %2828 = vmatprep.subr.mxu0 0.0
        %2829 = vmatpush1.msra.mxu0 %v993
        %2830 = vmatprep.subr.mxu0 0.0
        %2831 = vmatpush1.msra.mxu0 %v994
        %2832 = vmatprep.subr.mxu0 0.0
        %2833 = vmatpush1.msra.mxu0 %v995
        %2834 = vmatprep.subr.mxu0 0.0
        %2835 = vmatpush1.msra.mxu0 %v996
        %2836 = vmatprep.subr.mxu0 0.0
        %2837 = vmatpush1.msra.mxu0 %v1197
        %2838 = vmatprep.subr.mxu0 0.0
        %2839 = vmatpush1.msra.mxu0 0.0
        %2840 = vmatprep.subr.mxu0 0.0
        %2841 = vmatpush1.msra.mxu0 0.0
        %2842 = vmatprep.subr.mxu0 0.0
        %2843 = vmatpush1.msra.mxu0 0.0
        %2844 = vmatprep.subr.mxu0 0.0
        %2845 = vmatpush1.msra.mxu0 0.0
        %2846 = vmatprep.subr.mxu0 0.0
        %2847 = vmatpush1.msra.mxu0 0.0
        %2848 = vmatprep.subr.mxu0 0.0
        %2849 = vmatpush1.msra.mxu0 0.0
        %2850 = vmatprep.subr.mxu0 0.0
        %2851 = vmatpush1.msra.mxu0 0.0
        %2852 = vmatprep.subr.mxu0 0.0
        %2853 = vmatpush1.msra.mxu0 0.0
        %2854 = vmatprep.subr.mxu0 0.0
        %2855 = vmatpush1.msra.mxu0 0.0
        %2856 = vmatprep.subr.mxu0 0.0
        %2857 = vmatpush1.msra.mxu0 0.0
        %2858 = vmatprep.subr.mxu0 0.0
        %2859 = vmatpush1.msra.mxu0 0.0
        %2860 = vmatprep.subr.mxu0 0.0
        %2861 = vmatpush1.msra.mxu0 0.0
        %2862 = vmatprep.subr.mxu0 0.0
        %2863 = vmatpush1.msra.mxu0 0.0
        %2864 = vmatprep.subr.mxu0 0.0
        %2865 = vmatpush1.msra.mxu0 0.0
        %2866 = vmatprep.subr.mxu0 0.0
        %2867 = vmatpush1.msra.mxu0 0.0
        %2868 = vmatprep.subr.mxu0 0.0
        %2869 = vmatpush1.msra.mxu0 0.0
        %2870 = vmatprep.subr.mxu0 0.0
        %2871 = vmatpush1.msra.mxu0 0.0
        %2872 = vmatprep.subr.mxu0 0.0
        %2873 = vmatpush1.msra.mxu0 0.0
        %2874 = vmatprep.subr.mxu0 0.0
        %2875 = vmatpush1.msra.mxu0 0.0
        %2876 = vmatprep.subr.mxu0 0.0
        %2877 = vmatpush1.msra.mxu0 0.0
        %2878 = vmatprep.subr.mxu0 0.0
        %2879 = vmatpush1.msra.mxu0 0.0
        %2880 = vmatprep.subr.mxu0 0.0
        %2881 = vmatpush1.msra.mxu0 0.0
        %2882 = vmatprep.mubr.f32.mxu0 0.0
        %2883 = vmatmul.mubr.f32.gmra.mrb[0].mxu0 %v2672
        %v2884 = vpop.f32.mrb[0].mxu0
        %v2885 = vadd.f32 0.0, %v2884
        %v2886 = vpop.f32.mrb[0].mxu0
        %2887 = vmatprep.mubr.f32.mxu0 0.0
        %2888 = vmatmul.mubr.f32.gmra.mrb[0].mxu0 %v2675
        %v2889 = vpop.f32.mrb[0].mxu0
        %v2890 = vadd.f32 0.0, %v2889
        %v2891 = vpop.f32.mrb[0].mxu0
        %2892 = vmatprep.mubr.f32.mxu0 0.0
        %2893 = vmatmul.mubr.f32.gmra.mrb[0].mxu0 %v2678
        %v2894 = vpop.f32.mrb[0].mxu0
        %v2895 = vadd.f32 0.0, %v2894
        %v2896 = vpop.f32.mrb[0].mxu0
        %2897 = vmatprep.mubr.f32.mxu0 0.0
        %2898 = vmatmul.mubr.f32.gmra.mrb[0].mxu0 %v2681
        %v2899 = vpop.f32.mrb[0].mxu0
        %v2900 = vadd.f32 0.0, %v2899
        %v2901 = vpop.f32.mrb[0].mxu0
        %2902 = vmatprep.mubr.f32.mxu0 0.0
        %2903 = vmatmul.mubr.f32.gmra.mrb[0].mxu0 %v2684
        %v2904 = vpop.f32.mrb[0].mxu0
        %v2905 = vadd.f32 0.0, %v2904
        %v2906 = vpop.f32.mrb[0].mxu0
        %2907 = vmatprep.mubr.f32.mxu0 0.0
        %2908 = vmatmul.mubr.f32.gmra.mrb[0].mxu0 %v2687
        %v2909 = vpop.f32.mrb[0].mxu0
        %v2910 = vadd.f32 0.0, %v2909
        %v2911 = vpop.f32.mrb[0].mxu0
        %2912 = vmatprep.mubr.f32.mxu0 0.0
        %2913 = vmatmul.mubr.f32.gmra.mrb[0].mxu0 %v2690
        %v2914 = vpop.f32.mrb[0].mxu0
        %v2915 = vadd.f32 0.0, %v2914
        %v2916 = vpop.f32.mrb[0].mxu0
        %2917 = vmatprep.mubr.f32.mxu0 0.0
        %2918 = vmatmul.mubr.f32.gmra.mrb[0].mxu0 %v2693
        %v2919 = vpop.f32.mrb[0].mxu0
        %v2920 = vadd.f32 0.0, %v2919
        %v2921 = vpop.f32.mrb[0].mxu0
        %2922 = vmatprep.mubr.f32.mxu0 0.0
        %2923 = vmatmul.mubr.f32.gmra.mrb[0].mxu0 %v2696
        %v2924 = vpop.f32.mrb[0].mxu0
        %v2925 = vadd.f32 0.0, %v2924
        %v2926 = vpop.f32.mrb[0].mxu0
        %2927 = vmatprep.mubr.f32.mxu0 0.0
        %2928 = vmatmul.mubr.f32.gmra.mrb[0].mxu0 %v2699
        %v2929 = vpop.f32.mrb[0].mxu0
        %v2930 = vadd.f32 0.0, %v2929
        %v2931 = vpop.f32.mrb[0].mxu0
        %2932 = vmatprep.mubr.f32.mxu0 0.0
        %2933 = vmatmul.mubr.f32.gmra.mrb[0].mxu0 %v2702
        %v2934 = vpop.f32.mrb[0].mxu0
        %v2935 = vadd.f32 0.0, %v2934
        %v2936 = vpop.f32.mrb[0].mxu0
        %2937 = vmatprep.mubr.f32.mxu0 0.0
        %2938 = vmatmul.mubr.f32.gmra.mrb[0].mxu0 %v2705
        %v2939 = vpop.f32.mrb[0].mxu0
        %v2940 = vadd.f32 0.0, %v2939
        %v2941 = vpop.f32.mrb[0].mxu0
        %2942 = vmatprep.mubr.f32.mxu0 0.0
        %2943 = vmatmul.mubr.f32.gmra.mrb[0].mxu0 %v2708
        %v2944 = vpop.f32.mrb[0].mxu0
        %v2945 = vadd.f32 0.0, %v2944
        %v2946 = vpop.f32.mrb[0].mxu0
        %2947 = vmatprep.mubr.f32.mxu0 0.0
        %2948 = vmatmul.mubr.f32.gmra.mrb[0].mxu0 %v2711
        %v2949 = vpop.f32.mrb[0].mxu0
        %v2950 = vadd.f32 0.0, %v2949
        %v2951 = vpop.f32.mrb[0].mxu0
        %2952 = vmatprep.mubr.f32.mxu0 0.0
        %2953 = vmatmul.mubr.f32.gmra.mrb[0].mxu0 %v2714
        %v2954 = vpop.f32.mrb[0].mxu0
        %v2955 = vadd.f32 0.0, %v2954
        %v2956 = vpop.f32.mrb[0].mxu0
        %2957 = vmatprep.mubr.f32.mxu0 0.0
        %2958 = vmatmul.mubr.f32.gmra.mrb[0].mxu0 %v2717
        %v2959 = vpop.f32.mrb[0].mxu0
        %v2960 = vadd.f32 0.0, %v2959
        %v2961 = vpop.f32.mrb[0].mxu0
        %2962 = vmatprep.mubr.f32.mxu0 0.0
        %2963 = vmatmul.mubr.f32.gmra.mrb[0].mxu0 %v2720
        %v2964 = vpop.f32.mrb[0].mxu0
        %v2965 = vadd.f32 0.0, %v2964
        %v2966 = vpop.f32.mrb[0].mxu0
        %2967 = vmatprep.mubr.f32.mxu0 0.0
        %2968 = vmatmul.mubr.f32.gmra.mrb[0].mxu0 %v2723
        %v2969 = vpop.f32.mrb[0].mxu0
        %v2970 = vadd.f32 0.0, %v2969
        %v2971 = vpop.f32.mrb[0].mxu0
        %2972 = vmatprep.mubr.f32.mxu0 0.0
        %2973 = vmatmul.mubr.f32.gmra.mrb[0].mxu0 %v2726
        %v2974 = vpop.f32.mrb[0].mxu0
        %v2975 = vadd.f32 0.0, %v2974
        %v2976 = vpop.f32.mrb[0].mxu0
        %2977 = vmatprep.mubr.f32.mxu0 0.0
        %2978 = vmatmul.mubr.f32.gmra.mrb[0].mxu0 %v2729
        %v2979 = vpop.f32.mrb[0].mxu0
        %v2980 = vadd.f32 0.0, %v2979
        %v2981 = vpop.f32.mrb[0].mxu0
        %2982 = vmatprep.mubr.f32.mxu0 0.0
        %2983 = vmatmul.mubr.f32.gmra.mrb[0].mxu0 %v2732
        %v2984 = vpop.f32.mrb[0].mxu0
        %v2985 = vadd.f32 0.0, %v2984
        %v2986 = vpop.f32.mrb[0].mxu0
        %2987 = vmatprep.mubr.f32.mxu0 0.0
        %2988 = vmatmul.mubr.f32.gmra.mrb[0].mxu0 %v2735
        %v2989 = vpop.f32.mrb[0].mxu0
        %v2990 = vadd.f32 0.0, %v2989
        %v2991 = vpop.f32.mrb[0].mxu0
        %2992 = vmatprep.mubr.f32.mxu0 0.0
        %2993 = vmatmul.mubr.f32.gmra.mrb[0].mxu0 %v2738
        %v2994 = vpop.f32.mrb[0].mxu0
        %v2995 = vadd.f32 0.0, %v2994
        %v2996 = vpop.f32.mrb[0].mxu0
        %2997 = vmatprep.mubr.f32.mxu0 0.0
        %2998 = vmatmul.mubr.f32.gmra.mrb[0].mxu0 %v2741
        %v2999 = vpop.f32.mrb[0].mxu0
        %v3000 = vadd.f32 0.0, %v2999
        %v3001 = vpop.f32.mrb[0].mxu0
        %3002 = vmatprep.mubr.f32.mxu0 0.0
        %3003 = vmatmul.mubr.f32.gmra.mrb[0].mxu0 %v2744
        %v3004 = vpop.f32.mrb[0].mxu0
        %v3005 = vadd.f32 0.0, %v3004
        %v3006 = vpop.f32.mrb[0].mxu0
        %3007 = vmatprep.mubr.f32.mxu0 0.0
        %3008 = vmatmul.mubr.f32.gmra.mrb[0].mxu0 %v2747
        %v3009 = vpop.f32.mrb[0].mxu0
        %v3010 = vadd.f32 0.0, %v3009
        %v3011 = vpop.f32.mrb[0].mxu0
        %3012 = vmatprep.mubr.f32.mxu0 0.0
        %3013 = vmatmul.mubr.f32.gmra.mrb[0].mxu0 %v2750
        %v3014 = vpop.f32.mrb[0].mxu0
        %v3015 = vadd.f32 0.0, %v3014
        %v3016 = vpop.f32.mrb[0].mxu0
        %3017 = vmatprep.mubr.f32.mxu0 0.0
        %3018 = vmatmul.mubr.f32.gmra.mrb[0].mxu0 %v2753
        %v3019 = vpop.f32.mrb[0].mxu0
        %v3020 = vadd.f32 0.0, %v3019
        %v3021 = vpop.f32.mrb[0].mxu0
        %3022 = vmatprep.mubr.f32.mxu0 0.0
        %3023 = vmatmul.mubr.f32.gmra.mrb[0].mxu0 %v2756
        %v3024 = vpop.f32.mrb[0].mxu0
        %v3025 = vadd.f32 0.0, %v3024
        %v3026 = vpop.f32.mrb[0].mxu0
        %3027 = vmatprep.mubr.f32.mxu0 0.0
        %3028 = vmatmul.mubr.f32.gmra.mrb[0].mxu0 %v2759
        %v3029 = vpop.f32.mrb[0].mxu0
        %v3030 = vadd.f32 0.0, %v3029
        %v3031 = vpop.f32.mrb[0].mxu0
        %3032 = vmatprep.mubr.f32.mxu0 0.0
        %3033 = vmatmul.mubr.f32.gmra.mrb[0].mxu0 %v2762
        %v3034 = vpop.f32.mrb[0].mxu0
        %v3035 = vadd.f32 0.0, %v3034
        %v3036 = vpop.f32.mrb[0].mxu0
        %3037 = vmatprep.mubr.f32.mxu0 0.0
        %3038 = vmatmul.mubr.f32.gmra.mrb[0].mxu0 %v2765
        %v3039 = vpop.f32.mrb[0].mxu0
        %v3040 = vadd.f32 0.0, %v3039
        %v3041 = vpop.f32.mrb[0].mxu0
        %3042 = vmatprep.mubr.f32.mxu0 0.0
        %3043 = vmatmul.mubr.f32.gmra.mrb[0].mxu0 %v2768
        %v3044 = vpop.f32.mrb[0].mxu0
        %v3045 = vadd.f32 0.0, %v3044
        %v3046 = vpop.f32.mrb[0].mxu0
        %3047 = vmatprep.mubr.f32.mxu0 0.0
        %3048 = vmatmul.mubr.f32.gmra.mrb[0].mxu0 %v2771
        %v3049 = vpop.f32.mrb[0].mxu0
        %v3050 = vadd.f32 0.0, %v3049
        %v3051 = vpop.f32.mrb[0].mxu0
        %3052 = vmatprep.mubr.f32.mxu0 0.0
        %3053 = vmatmul.mubr.f32.gmra.mrb[0].mxu0 %v2774
        %v3054 = vpop.f32.mrb[0].mxu0
        %v3055 = vadd.f32 0.0, %v3054
        %v3056 = vpop.f32.mrb[0].mxu0
        %3057 = vmatprep.mubr.f32.mxu0 0.0
        %3058 = vmatmul.mubr.f32.gmra.mrb[0].mxu0 %v2777
        %v3059 = vpop.f32.mrb[0].mxu0
        %v3060 = vadd.f32 0.0, %v3059
        %v3061 = vpop.f32.mrb[0].mxu0
        %3062 = vmatprep.mubr.f32.mxu0 0.0
        %3063 = vmatmul.mubr.f32.gmra.mrb[0].mxu0 %v2780
        %v3064 = vpop.f32.mrb[0].mxu0
        %v3065 = vadd.f32 0.0, %v3064
        %v3066 = vpop.f32.mrb[0].mxu0
        %3067 = vmatprep.mubr.f32.mxu0 0.0
        %3068 = vmatmul.mubr.f32.gmra.mrb[0].mxu0 %v2783
        %v3069 = vpop.f32.mrb[0].mxu0
        %v3070 = vadd.f32 0.0, %v3069
        %v3071 = vpop.f32.mrb[0].mxu0
        %3072 = vmatprep.mubr.f32.mxu0 0.0
        %3073 = vmatmul.mubr.f32.gmra.mrb[0].mxu0 %v2786
        %v3074 = vpop.f32.mrb[0].mxu0
        %v3075 = vadd.f32 0.0, %v3074
        %v3076 = vpop.f32.mrb[0].mxu0
        %3077 = vmatprep.mubr.f32.mxu0 0.0
        %3078 = vmatmul.mubr.f32.gmra.mrb[0].mxu0 %v2789
        %v3079 = vpop.f32.mrb[0].mxu0
        %v3080 = vadd.f32 0.0, %v3079
        %v3081 = vpop.f32.mrb[0].mxu0
        %3082 = vmatprep.mubr.f32.mxu0 0.0
        %3083 = vmatmul.mubr.f32.gmra.mrb[0].mxu0 %v2792
        %v3084 = vpop.f32.mrb[0].mxu0
        %v3085 = vadd.f32 0.0, %v3084
        %v3086 = vpop.f32.mrb[0].mxu0
        %3087 = vmatprep.mubr.f32.mxu0 0.0
        %3088 = vmatmul.mubr.f32.gmra.mrb[0].mxu0 %v2795
        %v3089 = vpop.f32.mrb[0].mxu0
        %v3090 = vadd.f32 0.0, %v3089
        %v3091 = vpop.f32.mrb[0].mxu0
        %3092 = vmatprep.mubr.f32.mxu0 0.0
        %3093 = vmatmul.mubr.f32.gmra.mrb[0].mxu0 %v2798
        %v3094 = vpop.f32.mrb[0].mxu0
        %v3095 = vadd.f32 0.0, %v3094
        %v3096 = vpop.f32.mrb[0].mxu0
        %3097 = vmatprep.mubr.f32.mxu0 0.0
        %3098 = vmatmul.mubr.f32.gmra.mrb[0].mxu0 %v2801
        %v3099 = vpop.f32.mrb[0].mxu0
        %v3100 = vadd.f32 0.0, %v3099
        %v3101 = vpop.f32.mrb[0].mxu0
        %3102 = vmatprep.mubr.f32.mxu0 0.0
        %3103 = vmatmul.mubr.f32.gmra.mrb[0].mxu0 %v2804
        %v3104 = vpop.f32.mrb[0].mxu0
        %v3105 = vadd.f32 0.0, %v3104
        %v3106 = vpop.f32.mrb[0].mxu0
        %3107 = vmatprep.mubr.f32.mxu0 0.0
        %3108 = vmatmul.mubr.f32.gmra.mrb[0].mxu0 %v2807
        %v3109 = vpop.f32.mrb[0].mxu0
        %v3110 = vadd.f32 0.0, %v3109
        %v3111 = vpop.f32.mrb[0].mxu0
        %3112 = vmatprep.mubr.f32.mxu0 0.0
        %3113 = vmatmul.mubr.f32.gmra.mrb[0].mxu0 %v2810
        %v3114 = vpop.f32.mrb[0].mxu0
        %v3115 = vadd.f32 0.0, %v3114
        %v3116 = vpop.f32.mrb[0].mxu0
        %3117 = vmatprep.mubr.f32.mxu0 0.0
        %3118 = vmatmul.mubr.f32.gmra.mrb[0].mxu0 %v2813
        %v3119 = vpop.f32.mrb[0].mxu0
        %v3120 = vadd.f32 0.0, %v3119
        %v3121 = vpop.f32.mrb[0].mxu0
        %3122 = vmatprep.mubr.f32.mxu0 0.0
        %3123 = vmatmul.mubr.f32.gmra.mrb[0].mxu0 %v2816
        %v3124 = vpop.f32.mrb[0].mxu0
        %v3125 = vadd.f32 0.0, %v3124
        %v3126 = vpop.f32.mrb[0].mxu0
        %3127 = vdwg.mxu0
        %v3128 = vmax.f32 %v2572, %v2885
        %v3129 = vmax.f32 %v2573, %v2890
        %v3130 = vmax.f32 %v2574, %v2895
        %v3131 = vmax.f32 %v2575, %v2900
        %v3132 = vmax.f32 %v2576, %v2905
        %v3133 = vmax.f32 %v2577, %v2910
        %v3134 = vmax.f32 %v2578, %v2915
        %v3135 = vmax.f32 %v2579, %v2920
        %v3136 = vmax.f32 %v2580, %v2925
        %v3137 = vmax.f32 %v2581, %v2930
        %v3138 = vmax.f32 %v2582, %v2935
        %v3139 = vmax.f32 %v2583, %v2940
        %v3140 = vmax.f32 %v2584, %v2945
        %v3141 = vmax.f32 %v2585, %v2950
        %v3142 = vmax.f32 %v2586, %v2955
        %v3143 = vmax.f32 %v2587, %v2960
        %v3144 = vmax.f32 %v2588, %v2965
        %v3145 = vmax.f32 %v2589, %v2970
        %v3146 = vmax.f32 %v2590, %v2975
        %v3147 = vmax.f32 %v2591, %v2980
        %v3148 = vmax.f32 %v2592, %v2985
        %v3149 = vmax.f32 %v2593, %v2990
        %v3150 = vmax.f32 %v2594, %v2995
        %v3151 = vmax.f32 %v2595, %v3000
        %v3152 = vmax.f32 %v2596, %v3005
        %v3153 = vmax.f32 %v2597, %v3010
        %v3154 = vmax.f32 %v2598, %v3015
        %v3155 = vmax.f32 %v2599, %v3020
        %v3156 = vmax.f32 %v2600, %v3025
        %v3157 = vmax.f32 %v2601, %v3030
        %v3158 = vmax.f32 %v2602, %v3035
        %v3159 = vmax.f32 %v2603, %v3040
        %v3160 = vmax.f32 %v2604, %v3045
        %v3161 = vmax.f32 %v2605, %v3050
        %v3162 = vmax.f32 %v2606, %v3055
        %v3163 = vmax.f32 %v2607, %v3060
        %v3164 = vmax.f32 %v2608, %v3065
        %v3165 = vmax.f32 %v2609, %v3070
        %v3166 = vmax.f32 %v2610, %v3075
        %v3167 = vmax.f32 %v2611, %v3080
        %v3168 = vmax.f32 %v2612, %v3085
        %v3169 = vmax.f32 %v2613, %v3090
        %v3170 = vmax.f32 %v2614, %v3095
        %v3171 = vmax.f32 %v2615, %v3100
        %v3172 = vmax.f32 %v2616, %v3105
        %v3173 = vmax.f32 %v2617, %v3110
        %v3174 = vmax.f32 %v2618, %v3115
        %v3175 = vmax.f32 %v2619, %v3120
        %v3176 = vmax.f32 %v2620, %v3125
        %v3177 = vld [vmem:[%s2] sm:$0x1]
        %v3179 = vlaneseq
        %v3180 = vshrl.u32 %v3179, 7
        %v3181 = vsub.s32 0, %v3180
        %v3182 = vrot.slane %v3177, %v3181
        %v3184 = vadd.f32 %v3128, %v3182
        %v3185 = vadd.f32 %v3129, %v3182
        %v3186 = vadd.f32 %v3130, %v3182
        %v3187 = vadd.f32 %v3131, %v3182
        %v3188 = vadd.f32 %v3132, %v3182
        %v3189 = vadd.f32 %v3133, %v3182
        %v3190 = vadd.f32 %v3134, %v3182
        %v3191 = vadd.f32 %v3135, %v3182
        %v3192 = vadd.f32 %v3136, %v3182
        %v3193 = vadd.f32 %v3137, %v3182
        %v3194 = vadd.f32 %v3138, %v3182
        %v3195 = vadd.f32 %v3139, %v3182
        %v3196 = vadd.f32 %v3140, %v3182
        %v3197 = vadd.f32 %v3141, %v3182
        %v3198 = vadd.f32 %v3142, %v3182
        %v3199 = vadd.f32 %v3143, %v3182
        %v3200 = vadd.f32 %v3144, %v3182
        %v3201 = vadd.f32 %v3145, %v3182
        %v3202 = vadd.f32 %v3146, %v3182
        %v3203 = vadd.f32 %v3147, %v3182
        %v3204 = vadd.f32 %v3148, %v3182
        %v3205 = vadd.f32 %v3149, %v3182
        %v3206 = vadd.f32 %v3150, %v3182
        %v3207 = vadd.f32 %v3151, %v3182
        %v3208 = vadd.f32 %v3152, %v3182
        %v3209 = vadd.f32 %v3153, %v3182
        %v3210 = vadd.f32 %v3154, %v3182
        %v3211 = vadd.f32 %v3155, %v3182
        %v3212 = vadd.f32 %v3156, %v3182
        %v3213 = vadd.f32 %v3157, %v3182
        %v3214 = vadd.f32 %v3158, %v3182
        %v3215 = vadd.f32 %v3159, %v3182
        %v3216 = vadd.f32 %v3160, %v3182
        %v3217 = vadd.f32 %v3161, %v3182
        %v3218 = vadd.f32 %v3162, %v3182
        %v3219 = vadd.f32 %v3163, %v3182
        %v3220 = vadd.f32 %v3164, %v3182
        %v3221 = vadd.f32 %v3165, %v3182
        %v3222 = vadd.f32 %v3166, %v3182
        %v3223 = vadd.f32 %v3167, %v3182
        %v3224 = vadd.f32 %v3168, %v3182
        %v3225 = vadd.f32 %v3169, %v3182
        %v3226 = vadd.f32 %v3170, %v3182
        %v3227 = vadd.f32 %v3171, %v3182
        %v3228 = vadd.f32 %v3172, %v3182
        %v3229 = vadd.f32 %v3173, %v3182
        %v3230 = vadd.f32 %v3174, %v3182
        %v3231 = vadd.f32 %v3175, %v3182
        %v3232 = vadd.f32 %v3176, %v3182
        %v3233 = vmax.f32 %v3184, 0.0
        %v3234 = vmax.f32 %v3185, 0.0
        %v3235 = vmax.f32 %v3186, 0.0
        %v3236 = vmax.f32 %v3187, 0.0
        %v3237 = vmax.f32 %v3188, 0.0
        %v3238 = vmax.f32 %v3189, 0.0
        %v3239 = vmax.f32 %v3190, 0.0
        %v3240 = vmax.f32 %v3191, 0.0
        %v3241 = vmax.f32 %v3192, 0.0
        %v3242 = vmax.f32 %v3193, 0.0
        %v3243 = vmax.f32 %v3194, 0.0
        %v3244 = vmax.f32 %v3195, 0.0
        %v3245 = vmax.f32 %v3196, 0.0
        %v3246 = vmax.f32 %v3197, 0.0
        %v3247 = vmax.f32 %v3198, 0.0
        %v3248 = vmax.f32 %v3199, 0.0
        %v3249 = vmax.f32 %v3200, 0.0
        %v3250 = vmax.f32 %v3201, 0.0
        %v3251 = vmax.f32 %v3202, 0.0
        %v3252 = vmax.f32 %v3203, 0.0
        %v3253 = vmax.f32 %v3204, 0.0
        %v3254 = vmax.f32 %v3205, 0.0
        %v3255 = vmax.f32 %v3206, 0.0
        %v3256 = vmax.f32 %v3207, 0.0
        %v3257 = vmax.f32 %v3208, 0.0
        %v3258 = vmax.f32 %v3209, 0.0
        %v3259 = vmax.f32 %v3210, 0.0
        %v3260 = vmax.f32 %v3211, 0.0
        %v3261 = vmax.f32 %v3212, 0.0
        %v3262 = vmax.f32 %v3213, 0.0
        %v3263 = vmax.f32 %v3214, 0.0
        %v3264 = vmax.f32 %v3215, 0.0
        %v3265 = vmax.f32 %v3216, 0.0
        %v3266 = vmax.f32 %v3217, 0.0
        %v3267 = vmax.f32 %v3218, 0.0
        %v3268 = vmax.f32 %v3219, 0.0
        %v3269 = vmax.f32 %v3220, 0.0
        %v3270 = vmax.f32 %v3221, 0.0
        %v3271 = vmax.f32 %v3222, 0.0
        %v3272 = vmax.f32 %v3223, 0.0
        %v3273 = vmax.f32 %v3224, 0.0
        %v3274 = vmax.f32 %v3225, 0.0
        %v3275 = vmax.f32 %v3226, 0.0
        %v3276 = vmax.f32 %v3227, 0.0
        %v3277 = vmax.f32 %v3228, 0.0
        %v3278 = vmax.f32 %v3229, 0.0
        %v3279 = vmax.f32 %v3230, 0.0
        %v3280 = vmax.f32 %v3231, 0.0
        %v3281 = vmax.f32 %v3232, 0.0
        %vm3282 = vcmask 162816
        %3283 = vst.msk [vmem:[%s986] sm:$0xff] %vm3282, %v3233
        %3284 = vst.msk [vmem:[%s986 + $0x8] sm:$0xff] %vm3282, %v3234
        %3285 = vst.msk [vmem:[%s986 + $0x10] sm:$0xff] %vm3282, %v3235
        %3286 = vst.msk [vmem:[%s986 + $0x18] sm:$0xff] %vm3282, %v3236
        %3287 = vst.msk [vmem:[%s986 + $0x20] sm:$0xff] %vm3282, %v3237
        %3288 = vst.msk [vmem:[%s986 + $0x28] sm:$0xff] %vm3282, %v3238
        %3289 = vst.msk [vmem:[%s986 + $0x30] sm:$0xff] %vm3282, %v3239
        %3290 = vst.msk [vmem:[%s986 + $0x38] sm:$0xff] %vm3282, %v3240
        %3291 = vst.msk [vmem:[%s986 + $0x40] sm:$0xff] %vm3282, %v3241
        %3292 = vst.msk [vmem:[%s986 + $0x48] sm:$0xff] %vm3282, %v3242
        %3293 = vst.msk [vmem:[%s986 + $0x50] sm:$0xff] %vm3282, %v3243
        %3294 = vst.msk [vmem:[%s986 + $0x58] sm:$0xff] %vm3282, %v3244
        %3295 = vst.msk [vmem:[%s986 + $0x60] sm:$0xff] %vm3282, %v3245
        %3296 = vst.msk [vmem:[%s986 + $0x68] sm:$0xff] %vm3282, %v3246
        %3297 = vst.msk [vmem:[%s986 + $0x70] sm:$0xff] %vm3282, %v3247
        %3298 = vst.msk [vmem:[%s986 + $0x78] sm:$0xff] %vm3282, %v3248
        %3299 = vst.msk [vmem:[%s986 + $0x80] sm:$0xff] %vm3282, %v3249
        %3300 = vst.msk [vmem:[%s986 + $0x88] sm:$0xff] %vm3282, %v3250
        %3301 = vst.msk [vmem:[%s986 + $0x90] sm:$0xff] %vm3282, %v3251
        %3302 = vst.msk [vmem:[%s986 + $0x98] sm:$0xff] %vm3282, %v3252
        %3303 = vst.msk [vmem:[%s986 + $0xa0] sm:$0xff] %vm3282, %v3253
        %3304 = vst.msk [vmem:[%s986 + $0xa8] sm:$0xff] %vm3282, %v3254
        %3305 = vst.msk [vmem:[%s986 + $0xb0] sm:$0xff] %vm3282, %v3255
        %3306 = vst.msk [vmem:[%s986 + $0xb8] sm:$0xff] %vm3282, %v3256
        %3307 = vst.msk [vmem:[%s986 + $0xc0] sm:$0xff] %vm3282, %v3257
        %3308 = vst.msk [vmem:[%s986 + $0xc8] sm:$0xff] %vm3282, %v3258
        %3309 = vst.msk [vmem:[%s986 + $0xd0] sm:$0xff] %vm3282, %v3259
        %3310 = vst.msk [vmem:[%s986 + $0xd8] sm:$0xff] %vm3282, %v3260
        %3311 = vst.msk [vmem:[%s986 + $0xe0] sm:$0xff] %vm3282, %v3261
        %3312 = vst.msk [vmem:[%s986 + $0xe8] sm:$0xff] %vm3282, %v3262
        %3313 = vst.msk [vmem:[%s986 + $0xf0] sm:$0xff] %vm3282, %v3263
        %3314 = vst.msk [vmem:[%s986 + $0xf8] sm:$0xff] %vm3282, %v3264
        %3315 = vst.msk [vmem:[%s986 + $0x100] sm:$0xff] %vm3282, %v3265
        %3316 = vst.msk [vmem:[%s986 + $0x108] sm:$0xff] %vm3282, %v3266
        %3317 = vst.msk [vmem:[%s986 + $0x110] sm:$0xff] %vm3282, %v3267
        %3318 = vst.msk [vmem:[%s986 + $0x118] sm:$0xff] %vm3282, %v3268
        %3319 = vst.msk [vmem:[%s986 + $0x120] sm:$0xff] %vm3282, %v3269
        %3320 = vst.msk [vmem:[%s986 + $0x128] sm:$0xff] %vm3282, %v3270
        %3321 = vst.msk [vmem:[%s986 + $0x130] sm:$0xff] %vm3282, %v3271
        %3322 = vst.msk [vmem:[%s986 + $0x138] sm:$0xff] %vm3282, %v3272
        %3323 = vst.msk [vmem:[%s986 + $0x140] sm:$0xff] %vm3282, %v3273
        %3324 = vst.msk [vmem:[%s986 + $0x148] sm:$0xff] %vm3282, %v3274
        %3325 = vst.msk [vmem:[%s986 + $0x150] sm:$0xff] %vm3282, %v3275
        %3326 = vst.msk [vmem:[%s986 + $0x158] sm:$0xff] %vm3282, %v3276
        %3327 = vst.msk [vmem:[%s986 + $0x160] sm:$0xff] %vm3282, %v3277
        %3328 = vst.msk [vmem:[%s986 + $0x168] sm:$0xff] %vm3282, %v3278
        %3329 = vst.msk [vmem:[%s986 + $0x170] sm:$0xff] %vm3282, %v3279
        %3330 = vst.msk [vmem:[%s986 + $0x178] sm:$0xff] %vm3282, %v3280
        %3331 = vst.msk [vmem:[%s986 + $0x180] sm:$0xff] %vm3282, %v3281
        %s3332 = smul.u32 49, %s14
        %p3333 = scmp.lt.s32.totalorder %s3332, 97
        %s3334 = scalar_select %p3333, %s3332, 97
        %s3335 = smul.addr %s3334, 8
        %s3336 = scalar_lea.vmem %s3, %s3335
        // Predicated region
        $region71: #{bwn_net_forward.3} parent=65 // pred_check
          %p3337 = pneg %p100
        $region72: #{bwn_net_forward.3} parent=65 // pred_check_branch
          %3339 = sbr.rel (%p3337) target = $region74
        $region73: #{bwn_net_forward.3} parent=65 // pred_region
          %s3340 = smul.u32 49, %s14
        $region74: #{bwn_net_forward.3} parent=65 // pred_fallthru
          _
      $region66: #{bwn_net_forward.3} parent=5 // pred_fallthru
        _
      %p3341 = scmp.le.s32.totalorder 2, %s9
      // Predicated region
      $region75: #{bwn_net_forward.3} parent=5 // pred_check
        %p3342 = pneg %p3341
      $region76: #{bwn_net_forward.3} parent=5 // pred_check_branch
        %3344 = sbr.rel (%p3342) target = $region78
      $region77: #{bwn_net_forward.3} parent=5 // pred_region
        %s3345 = ssub.s32 %s9, 2
        // Predicated region
        $region79: #{bwn_net_forward.3} parent=77 // pred_check
          %p3346 = pneg %p106
        $region80: #{bwn_net_forward.3} parent=77 // pred_check_branch
          %3348 = sbr.rel (%p3346) target = $region82
        $region81: #{bwn_net_forward.3} parent=77 // pred_region
          %s3349 = smul.u32 49, %s15
          %p3350 = scmp.lt.s32.totalorder %s3349, 97
          %s3351 = scalar_select %p3350, %s3349, 97
          %s3352 = smul.addr %s3351, 8
          %s3353 = scalar_lea.vmem %s3, %s3352
        $region82: #{bwn_net_forward.3} parent=77 // pred_fallthru
          _
      $region78: #{bwn_net_forward.3} parent=5 // pred_fallthru
        _
    $region6: #{bwn_net_forward.3} parent=1 // loop_footer
      %s13 = sadd.s32 1, %s9
    $region7: #{bwn_net_forward.3} parent=1 // loop_footer_branch
      %8 = sbr.rel target = $region3
    $region8: #{bwn_net_forward.3} parent=1 // loop_exit
      _

// kernel: bwn_net_forward.4
$region0: #{bwn_net_forward.4}
  #allocation0 [shape = 'u32[]', space=smem, size = 0x4, offset = 0x4, fixed_abs, tag = 'smem constant byte address 0x4 - core index']
  #allocation1 [shape = 'u32[144,128]{1,0:T(1,128)}', space=vmem, size = 0x12000, scoped, tag = 'internal scratch']
  %s0 = inlined_call_operand.vmem [shape: f32[4,100,500], index: 0, kind: input, shape index: {}]
  %s1 = inlined_call_operand.vmem [shape: f32[500,128], index: 1, kind: input, shape index: {}]
  %s2 = inlined_call_operand.vmem [shape: f32[1,128], index: 2, kind: input, shape index: {}]
  %s3 = inlined_call_operand.vmem [shape: f32[100,50], index: 3, kind: output, shape index: {}]
  %s4 = sld [smem:[#allocation0]]
  $region22: #{bwn_net_forward.4} parent=0
    _
  %s6 = ssub.s32 1, %s4
  %s7 = scalar_select 0, %s6, %s4
  // Predicated region
  $region2: #{bwn_net_forward.4} parent=0 // pred_check
    _
  $region3: #{bwn_net_forward.4} parent=0 // pred_check_branch
    %9 = sbr.rel (0) target = $region5
  $region4: #{bwn_net_forward.4} parent=0 // pred_region
    _
  $region5: #{bwn_net_forward.4} parent=0 // pred_fallthru
    _
  // Predicated region
  $region6: #{bwn_net_forward.4} parent=0 // pred_check
    _
  $region7: #{bwn_net_forward.4} parent=0 // pred_check_branch
    %11 = sbr.rel (0) target = $region9
  $region8: #{bwn_net_forward.4} parent=0 // pred_region
    _
  $region9: #{bwn_net_forward.4} parent=0 // pred_fallthru
    _
  // Predicated region
  $region10: #{bwn_net_forward.4} parent=0 // pred_check
    _
  $region11: #{bwn_net_forward.4} parent=0 // pred_check_branch
    %13 = sbr.rel (0) target = $region13
  $region12: #{bwn_net_forward.4} parent=0 // pred_region
    _
  $region13: #{bwn_net_forward.4} parent=0 // pred_fallthru
    _
  %v14 = vld [vmem:[%s1] sm:$0xff]
  %v15 = vld [vmem:[%s1 + $0x8] sm:$0xff]
  %v16 = vld [vmem:[%s1 + $0x10] sm:$0xff]
  %v17 = vld [vmem:[%s1 + $0x18] sm:$0xff]
  %v18 = vld [vmem:[%s1 + $0x20] sm:$0xff]
  %v19 = vld [vmem:[%s1 + $0x28] sm:$0xff]
  %v20 = vld [vmem:[%s1 + $0x30] sm:$0xff]
  %v21 = vld [vmem:[%s1 + $0x38] sm:$0xff]
  %v22 = vld [vmem:[%s1 + $0x40] sm:$0xff]
  %v23 = vld [vmem:[%s1 + $0x48] sm:$0xff]
  %v24 = vld [vmem:[%s1 + $0x50] sm:$0xff]
  %v25 = vld [vmem:[%s1 + $0x58] sm:$0xff]
  %v26 = vld [vmem:[%s1 + $0x60] sm:$0xff]
  %v27 = vld [vmem:[%s1 + $0x68] sm:$0xff]
  %v28 = vld [vmem:[%s1 + $0x70] sm:$0xff]
  %v29 = vld [vmem:[%s1 + $0x78] sm:$0xff]
  %v30 = vld [vmem:[%s1 + $0x80] sm:$0xff]
  %v31 = vld [vmem:[%s1 + $0x88] sm:$0xff]
  %v32 = vld [vmem:[%s1 + $0x90] sm:$0xff]
  %v33 = vld [vmem:[%s1 + $0x98] sm:$0xff]
  %v34 = vld [vmem:[%s1 + $0xa0] sm:$0xff]
  %v35 = vld [vmem:[%s1 + $0xa8] sm:$0xff]
  %v36 = vld [vmem:[%s1 + $0xb0] sm:$0xff]
  %v37 = vld [vmem:[%s1 + $0xb8] sm:$0xff]
  %v38 = vld [vmem:[%s1 + $0xc0] sm:$0xff]
  %v39 = vld [vmem:[%s1 + $0xc8] sm:$0xff]
  %v40 = vld [vmem:[%s1 + $0xd0] sm:$0xff]
  %v41 = vld [vmem:[%s1 + $0xd8] sm:$0xff]
  %v42 = vld [vmem:[%s1 + $0xe0] sm:$0xff]
  %v43 = vld [vmem:[%s1 + $0xe8] sm:$0xff]
  %v44 = vld [vmem:[%s1 + $0xf0] sm:$0xff]
  %v45 = vld [vmem:[%s1 + $0xf8] sm:$0xff]
  %v46 = vld [vmem:[%s1 + $0x100] sm:$0xff]
  %v47 = vld [vmem:[%s1 + $0x108] sm:$0xff]
  %v48 = vld [vmem:[%s1 + $0x110] sm:$0xff]
  %v49 = vld [vmem:[%s1 + $0x118] sm:$0xff]
  %v50 = vld [vmem:[%s1 + $0x120] sm:$0xff]
  %v51 = vld [vmem:[%s1 + $0x128] sm:$0xff]
  %v52 = vld [vmem:[%s1 + $0x130] sm:$0xff]
  %v53 = vld [vmem:[%s1 + $0x138] sm:$0xff]
  %v54 = vld [vmem:[%s1 + $0x140] sm:$0xff]
  %v55 = vld [vmem:[%s1 + $0x148] sm:$0xff]
  %v56 = vld [vmem:[%s1 + $0x150] sm:$0xff]
  %v57 = vld [vmem:[%s1 + $0x158] sm:$0xff]
  %v58 = vld [vmem:[%s1 + $0x160] sm:$0xff]
  %v59 = vld [vmem:[%s1 + $0x168] sm:$0xff]
  %v60 = vld [vmem:[%s1 + $0x170] sm:$0xff]
  %v61 = vld [vmem:[%s1 + $0x178] sm:$0xff]
  %v62 = vld [vmem:[%s1 + $0x180] sm:$0xff]
  %v63 = vld [vmem:[%s1 + $0x188] sm:$0xff]
  %v64 = vld [vmem:[%s1 + $0x190] sm:$0xff]
  %v65 = vld [vmem:[%s1 + $0x198] sm:$0xff]
  %v66 = vld [vmem:[%s1 + $0x1a0] sm:$0xff]
  %v67 = vld [vmem:[%s1 + $0x1a8] sm:$0xff]
  %v68 = vld [vmem:[%s1 + $0x1b0] sm:$0xff]
  %v69 = vld [vmem:[%s1 + $0x1b8] sm:$0xff]
  %v70 = vld [vmem:[%s1 + $0x1c0] sm:$0xff]
  %v71 = vld [vmem:[%s1 + $0x1c8] sm:$0xff]
  %v72 = vld [vmem:[%s1 + $0x1d0] sm:$0xff]
  %v73 = vld [vmem:[%s1 + $0x1d8] sm:$0xff]
  %v74 = vld [vmem:[%s1 + $0x1e0] sm:$0xff]
  %v75 = vld [vmem:[%s1 + $0x1e8] sm:$0xff]
  %v76 = vld [vmem:[%s1 + $0x1f0] sm:$0xf]
  %v77 = vld [vmem:[%s0] sm:$0xff]
  %v78 = vld [vmem:[%s0 + $0x8] sm:$0xff]
  %v79 = vld [vmem:[%s0 + $0x10] sm:$0xff]
  %v80 = vld [vmem:[%s0 + $0x18] sm:$0xff]
  %v81 = vld [vmem:[%s0 + $0x20] sm:$0xff]
  %v82 = vld [vmem:[%s0 + $0x28] sm:$0xff]
  %v83 = vld [vmem:[%s0 + $0x30] sm:$0xff]
  %v84 = vld [vmem:[%s0 + $0x38] sm:$0xff]
  %v85 = vld [vmem:[%s0 + $0x40] sm:$0xff]
  %v86 = vld [vmem:[%s0 + $0x48] sm:$0xff]
  %v87 = vld [vmem:[%s0 + $0x50] sm:$0xff]
  %v88 = vld [vmem:[%s0 + $0x58] sm:$0xff]
  %v89 = vld [vmem:[%s0 + $0x60] sm:$0xff]
  %v90 = vld [vmem:[%s0 + $0x68] sm:$0xff]
  %v91 = vld [vmem:[%s0 + $0x70] sm:$0xff]
  %v92 = vld [vmem:[%s0 + $0x78] sm:$0xff]
  %v93 = vld [vmem:[%s0 + $0x80] sm:$0xff]
  %v94 = vld [vmem:[%s0 + $0x88] sm:$0xff]
  %v95 = vld [vmem:[%s0 + $0x90] sm:$0xff]
  %v96 = vld [vmem:[%s0 + $0x98] sm:$0xff]
  %v97 = vld [vmem:[%s0 + $0xa0] sm:$0xff]
  %v98 = vld [vmem:[%s0 + $0xa8] sm:$0xff]
  %v99 = vld [vmem:[%s0 + $0xb0] sm:$0xff]
  %v100 = vld [vmem:[%s0 + $0xb8] sm:$0xff]
  %v101 = vld [vmem:[%s0 + $0xc0] sm:$0xff]
  %v102 = vld [vmem:[%s0 + $0xc8] sm:$0xff]
  %v103 = vld [vmem:[%s0 + $0xd0] sm:$0xff]
  %v104 = vld [vmem:[%s0 + $0xd8] sm:$0xff]
  %v105 = vld [vmem:[%s0 + $0xe0] sm:$0xff]
  %v106 = vld [vmem:[%s0 + $0xe8] sm:$0xff]
  %v107 = vld [vmem:[%s0 + $0xf0] sm:$0xff]
  %v108 = vld [vmem:[%s0 + $0xf8] sm:$0xff]
  %v109 = vld [vmem:[%s0 + $0x100] sm:$0xff]
  %v110 = vld [vmem:[%s0 + $0x108] sm:$0xff]
  %v111 = vld [vmem:[%s0 + $0x110] sm:$0xff]
  %v112 = vld [vmem:[%s0 + $0x118] sm:$0xff]
  %v113 = vld [vmem:[%s0 + $0x120] sm:$0xff]
  %v114 = vld [vmem:[%s0 + $0x128] sm:$0xff]
  %v115 = vld [vmem:[%s0 + $0x130] sm:$0xff]
  %v116 = vld [vmem:[%s0 + $0x138] sm:$0xff]
  %v117 = vld [vmem:[%s0 + $0x140] sm:$0xff]
  %v118 = vld [vmem:[%s0 + $0x148] sm:$0xff]
  %v119 = vld [vmem:[%s0 + $0x150] sm:$0xff]
  %v120 = vld [vmem:[%s0 + $0x158] sm:$0xff]
  %v121 = vld [vmem:[%s0 + $0x160] sm:$0xff]
  %v122 = vld [vmem:[%s0 + $0x168] sm:$0xff]
  %v123 = vld [vmem:[%s0 + $0x170] sm:$0xff]
  %v124 = vld [vmem:[%s0 + $0x178] sm:$0xff]
  %v125 = vld [vmem:[%s0 + $0x180] sm:$0xf]
  %v126 = vld [vmem:[%s0 + $0x188] sm:$0xf]
  %v127 = vld [vmem:[%s0 + $0x190] sm:$0xf]
  %v128 = vld [vmem:[%s0 + $0x198] sm:$0xf]
  %vm129 = vcmask 949248
  %v131 = vsel %vm129, %v80, 0
  %v134 = vsel %vm129, %v84, 0
  %v137 = vsel %vm129, %v88, 0
  %v140 = vsel %vm129, %v92, 0
  %v143 = vsel %vm129, %v96, 0
  %v146 = vsel %vm129, %v100, 0
  %v149 = vsel %vm129, %v104, 0
  %v152 = vsel %vm129, %v108, 0
  %v155 = vsel %vm129, %v112, 0
  %v158 = vsel %vm129, %v116, 0
  %v161 = vsel %vm129, %v120, 0
  %v164 = vsel %vm129, %v124, 0
  %v167 = vsel %vm129, %v128, 0
  %vm169 = vcmask 1043456
  %v171 = vsel %vm169, %v76, 0
  %173 = vmatprep.subr.mxu0 0.0
  %174 = vmatpush1.msra.mxu0 %v14
  %175 = vmatprep.subr.mxu0 0.0
  %176 = vmatpush1.msra.mxu0 %v15
  %177 = vmatprep.subr.mxu0 0.0
  %178 = vmatpush1.msra.mxu0 %v16
  %179 = vmatprep.subr.mxu0 0.0
  %180 = vmatpush1.msra.mxu0 %v17
  %181 = vmatprep.subr.mxu0 0.0
  %182 = vmatpush1.msra.mxu0 %v18
  %183 = vmatprep.subr.mxu0 0.0
  %184 = vmatpush1.msra.mxu0 %v19
  %185 = vmatprep.subr.mxu0 0.0
  %186 = vmatpush1.msra.mxu0 %v20
  %187 = vmatprep.subr.mxu0 0.0
  %188 = vmatpush1.msra.mxu0 %v21
  %189 = vmatprep.subr.mxu0 0.0
  %190 = vmatpush1.msra.mxu0 %v22
  %191 = vmatprep.subr.mxu0 0.0
  %192 = vmatpush1.msra.mxu0 %v23
  %193 = vmatprep.subr.mxu0 0.0
  %194 = vmatpush1.msra.mxu0 %v24
  %195 = vmatprep.subr.mxu0 0.0
  %196 = vmatpush1.msra.mxu0 %v25
  %197 = vmatprep.subr.mxu0 0.0
  %198 = vmatpush1.msra.mxu0 %v26
  %199 = vmatprep.subr.mxu0 0.0
  %200 = vmatpush1.msra.mxu0 %v27
  %201 = vmatprep.subr.mxu0 0.0
  %202 = vmatpush1.msra.mxu0 %v28
  %203 = vmatprep.subr.mxu0 0.0
  %204 = vmatpush1.msra.mxu0 %v29
  %205 = vmatprep.subr.mxu0 0.0
  %206 = vmatpush1.msra.mxu0 %v30
  %207 = vmatprep.subr.mxu0 0.0
  %208 = vmatpush1.msra.mxu0 %v31
  %209 = vmatprep.subr.mxu0 0.0
  %210 = vmatpush1.msra.mxu0 %v32
  %211 = vmatprep.subr.mxu0 0.0
  %212 = vmatpush1.msra.mxu0 %v33
  %213 = vmatprep.subr.mxu0 0.0
  %214 = vmatpush1.msra.mxu0 %v34
  %215 = vmatprep.subr.mxu0 0.0
  %216 = vmatpush1.msra.mxu0 %v35
  %217 = vmatprep.subr.mxu0 0.0
  %218 = vmatpush1.msra.mxu0 %v36
  %219 = vmatprep.subr.mxu0 0.0
  %220 = vmatpush1.msra.mxu0 %v37
  %221 = vmatprep.subr.mxu0 0.0
  %222 = vmatpush1.msra.mxu0 %v38
  %223 = vmatprep.subr.mxu0 0.0
  %224 = vmatpush1.msra.mxu0 %v39
  %225 = vmatprep.subr.mxu0 0.0
  %226 = vmatpush1.msra.mxu0 %v40
  %227 = vmatprep.subr.mxu0 0.0
  %228 = vmatpush1.msra.mxu0 %v41
  %229 = vmatprep.subr.mxu0 0.0
  %230 = vmatpush1.msra.mxu0 %v42
  %231 = vmatprep.subr.mxu0 0.0
  %232 = vmatpush1.msra.mxu0 %v43
  %233 = vmatprep.subr.mxu0 0.0
  %234 = vmatpush1.msra.mxu0 %v44
  %235 = vmatprep.subr.mxu0 0.0
  %236 = vmatpush1.msra.mxu0 %v45
  %237 = vmatprep.mubr.f32.mxu0 %v78
  %238 = vmatmul.mubr.f32.gmra.mrb[0].mxu0 %v77
  %v239 = vpop.f32.mrb[0].mxu0
  %v240 = vadd.f32 0.0, %v239
  %v241 = vpop.f32.mrb[0].mxu0
  %242 = vmatprep.mubr.f32.mxu0 %v82
  %243 = vmatmul.mubr.f32.gmra.mrb[0].mxu0 %v81
  %v244 = vpop.f32.mrb[0].mxu0
  %v245 = vadd.f32 0.0, %v244
  %v246 = vpop.f32.mrb[0].mxu0
  %247 = vmatprep.mubr.f32.mxu0 %v86
  %248 = vmatmul.mubr.f32.gmra.mrb[0].mxu0 %v85
  %v249 = vpop.f32.mrb[0].mxu0
  %v250 = vadd.f32 0.0, %v249
  %v251 = vpop.f32.mrb[0].mxu0
  %252 = vmatprep.mubr.f32.mxu0 %v90
  %253 = vmatmul.mubr.f32.gmra.mrb[0].mxu0 %v89
  %v254 = vpop.f32.mrb[0].mxu0
  %v255 = vadd.f32 0.0, %v254
  %v256 = vpop.f32.mrb[0].mxu0
  %257 = vmatprep.mubr.f32.mxu0 %v94
  %258 = vmatmul.mubr.f32.gmra.mrb[0].mxu0 %v93
  %v259 = vpop.f32.mrb[0].mxu0
  %v260 = vadd.f32 0.0, %v259
  %v261 = vpop.f32.mrb[0].mxu0
  %262 = vmatprep.mubr.f32.mxu0 %v98
  %263 = vmatmul.mubr.f32.gmra.mrb[0].mxu0 %v97
  %v264 = vpop.f32.mrb[0].mxu0
  %v265 = vadd.f32 0.0, %v264
  %v266 = vpop.f32.mrb[0].mxu0
  %267 = vmatprep.mubr.f32.mxu0 %v102
  %268 = vmatmul.mubr.f32.gmra.mrb[0].mxu0 %v101
  %v269 = vpop.f32.mrb[0].mxu0
  %v270 = vadd.f32 0.0, %v269
  %v271 = vpop.f32.mrb[0].mxu0
  %272 = vmatprep.mubr.f32.mxu0 %v106
  %273 = vmatmul.mubr.f32.gmra.mrb[0].mxu0 %v105
  %v274 = vpop.f32.mrb[0].mxu0
  %v275 = vadd.f32 0.0, %v274
  %v276 = vpop.f32.mrb[0].mxu0
  %277 = vmatprep.mubr.f32.mxu0 %v110
  %278 = vmatmul.mubr.f32.gmra.mrb[0].mxu0 %v109
  %v279 = vpop.f32.mrb[0].mxu0
  %v280 = vadd.f32 0.0, %v279
  %v281 = vpop.f32.mrb[0].mxu0
  %282 = vmatprep.mubr.f32.mxu0 %v114
  %283 = vmatmul.mubr.f32.gmra.mrb[0].mxu0 %v113
  %v284 = vpop.f32.mrb[0].mxu0
  %v285 = vadd.f32 0.0, %v284
  %v286 = vpop.f32.mrb[0].mxu0
  %287 = vmatprep.mubr.f32.mxu0 %v118
  %288 = vmatmul.mubr.f32.gmra.mrb[0].mxu0 %v117
  %v289 = vpop.f32.mrb[0].mxu0
  %v290 = vadd.f32 0.0, %v289
  %v291 = vpop.f32.mrb[0].mxu0
  %292 = vmatprep.mubr.f32.mxu0 %v122
  %293 = vmatmul.mubr.f32.gmra.mrb[0].mxu0 %v121
  %v294 = vpop.f32.mrb[0].mxu0
  %v295 = vadd.f32 0.0, %v294
  %v296 = vpop.f32.mrb[0].mxu0
  %297 = vmatprep.mubr.f32.mxu0 %v126
  %298 = vmatmul.mubr.f32.gmra.mrb[0].mxu0 %v125
  %v299 = vpop.f32.mrb[0].mxu0
  %v300 = vadd.f32 0.0, %v299
  %v301 = vpop.f32.mrb[0].mxu0
  %302 = vdwg.mxu0
  %303 = vmatprep.subr.mxu0 0.0
  %304 = vmatpush1.msra.mxu0 %v46
  %305 = vmatprep.subr.mxu0 0.0
  %306 = vmatpush1.msra.mxu0 %v47
  %307 = vmatprep.subr.mxu0 0.0
  %308 = vmatpush1.msra.mxu0 %v48
  %309 = vmatprep.subr.mxu0 0.0
  %310 = vmatpush1.msra.mxu0 %v49
  %311 = vmatprep.subr.mxu0 0.0
  %312 = vmatpush1.msra.mxu0 %v50
  %313 = vmatprep.subr.mxu0 0.0
  %314 = vmatpush1.msra.mxu0 %v51
  %315 = vmatprep.subr.mxu0 0.0
  %316 = vmatpush1.msra.mxu0 %v52
  %317 = vmatprep.subr.mxu0 0.0
  %318 = vmatpush1.msra.mxu0 %v53
  %319 = vmatprep.subr.mxu0 0.0
  %320 = vmatpush1.msra.mxu0 %v54
  %321 = vmatprep.subr.mxu0 0.0
  %322 = vmatpush1.msra.mxu0 %v55
  %323 = vmatprep.subr.mxu0 0.0
  %324 = vmatpush1.msra.mxu0 %v56
  %325 = vmatprep.subr.mxu0 0.0
  %326 = vmatpush1.msra.mxu0 %v57
  %327 = vmatprep.subr.mxu0 0.0
  %328 = vmatpush1.msra.mxu0 %v58
  %329 = vmatprep.subr.mxu0 0.0
  %330 = vmatpush1.msra.mxu0 %v59
  %331 = vmatprep.subr.mxu0 0.0
  %332 = vmatpush1.msra.mxu0 %v60
  %333 = vmatprep.subr.mxu0 0.0
  %334 = vmatpush1.msra.mxu0 %v61
  %335 = vmatprep.subr.mxu0 0.0
  %336 = vmatpush1.msra.mxu0 %v62
  %337 = vmatprep.subr.mxu0 0.0
  %338 = vmatpush1.msra.mxu0 %v63
  %339 = vmatprep.subr.mxu0 0.0
  %340 = vmatpush1.msra.mxu0 %v64
  %341 = vmatprep.subr.mxu0 0.0
  %342 = vmatpush1.msra.mxu0 %v65
  %343 = vmatprep.subr.mxu0 0.0
  %344 = vmatpush1.msra.mxu0 %v66
  %345 = vmatprep.subr.mxu0 0.0
  %346 = vmatpush1.msra.mxu0 %v67
  %347 = vmatprep.subr.mxu0 0.0
  %348 = vmatpush1.msra.mxu0 %v68
  %349 = vmatprep.subr.mxu0 0.0
  %350 = vmatpush1.msra.mxu0 %v69
  %351 = vmatprep.subr.mxu0 0.0
  %352 = vmatpush1.msra.mxu0 %v70
  %353 = vmatprep.subr.mxu0 0.0
  %354 = vmatpush1.msra.mxu0 %v71
  %355 = vmatprep.subr.mxu0 0.0
  %356 = vmatpush1.msra.mxu0 %v72
  %357 = vmatprep.subr.mxu0 0.0
  %358 = vmatpush1.msra.mxu0 %v73
  %359 = vmatprep.subr.mxu0 0.0
  %360 = vmatpush1.msra.mxu0 %v74
  %361 = vmatprep.subr.mxu0 0.0
  %362 = vmatpush1.msra.mxu0 %v75
  %363 = vmatprep.subr.mxu0 0.0
  %364 = vmatpush1.msra.mxu0 %v171
  %365 = vmatprep.subr.mxu0 0.0
  %366 = vmatpush1.msra.mxu0 0.0
  %367 = vmatprep.mubr.f32.mxu0 %v131
  %368 = vmatmul.mubr.f32.gmra.mrb[0].mxu0 %v79
  %v369 = vpop.f32.mrb[0].mxu0
  %v370 = vadd.f32 %v240, %v369
  %v371 = vpop.f32.mrb[0].mxu0
  %372 = vmatprep.mubr.f32.mxu0 %v134
  %373 = vmatmul.mubr.f32.gmra.mrb[0].mxu0 %v83
  %v374 = vpop.f32.mrb[0].mxu0
  %v375 = vadd.f32 %v245, %v374
  %v376 = vpop.f32.mrb[0].mxu0
  %377 = vmatprep.mubr.f32.mxu0 %v137
  %378 = vmatmul.mubr.f32.gmra.mrb[0].mxu0 %v87
  %v379 = vpop.f32.mrb[0].mxu0
  %v380 = vadd.f32 %v250, %v379
  %v381 = vpop.f32.mrb[0].mxu0
  %382 = vmatprep.mubr.f32.mxu0 %v140
  %383 = vmatmul.mubr.f32.gmra.mrb[0].mxu0 %v91
  %v384 = vpop.f32.mrb[0].mxu0
  %v385 = vadd.f32 %v255, %v384
  %v386 = vpop.f32.mrb[0].mxu0
  %387 = vmatprep.mubr.f32.mxu0 %v143
  %388 = vmatmul.mubr.f32.gmra.mrb[0].mxu0 %v95
  %v389 = vpop.f32.mrb[0].mxu0
  %v390 = vadd.f32 %v260, %v389
  %v391 = vpop.f32.mrb[0].mxu0
  %392 = vmatprep.mubr.f32.mxu0 %v146
  %393 = vmatmul.mubr.f32.gmra.mrb[0].mxu0 %v99
  %v394 = vpop.f32.mrb[0].mxu0
  %v395 = vadd.f32 %v265, %v394
  %v396 = vpop.f32.mrb[0].mxu0
  %397 = vmatprep.mubr.f32.mxu0 %v149
  %398 = vmatmul.mubr.f32.gmra.mrb[0].mxu0 %v103
  %v399 = vpop.f32.mrb[0].mxu0
  %v400 = vadd.f32 %v270, %v399
  %v401 = vpop.f32.mrb[0].mxu0
  %402 = vmatprep.mubr.f32.mxu0 %v152
  %403 = vmatmul.mubr.f32.gmra.mrb[0].mxu0 %v107
  %v404 = vpop.f32.mrb[0].mxu0
  %v405 = vadd.f32 %v275, %v404
  %v406 = vpop.f32.mrb[0].mxu0
  %407 = vmatprep.mubr.f32.mxu0 %v155
  %408 = vmatmul.mubr.f32.gmra.mrb[0].mxu0 %v111
  %v409 = vpop.f32.mrb[0].mxu0
  %v410 = vadd.f32 %v280, %v409
  %v411 = vpop.f32.mrb[0].mxu0
  %412 = vmatprep.mubr.f32.mxu0 %v158
  %413 = vmatmul.mubr.f32.gmra.mrb[0].mxu0 %v115
  %v414 = vpop.f32.mrb[0].mxu0
  %v415 = vadd.f32 %v285, %v414
  %v416 = vpop.f32.mrb[0].mxu0
  %417 = vmatprep.mubr.f32.mxu0 %v161
  %418 = vmatmul.mubr.f32.gmra.mrb[0].mxu0 %v119
  %v419 = vpop.f32.mrb[0].mxu0
  %v420 = vadd.f32 %v290, %v419
  %v421 = vpop.f32.mrb[0].mxu0
  %422 = vmatprep.mubr.f32.mxu0 %v164
  %423 = vmatmul.mubr.f32.gmra.mrb[0].mxu0 %v123
  %v424 = vpop.f32.mrb[0].mxu0
  %v425 = vadd.f32 %v295, %v424
  %v426 = vpop.f32.mrb[0].mxu0
  %427 = vmatprep.mubr.f32.mxu0 %v167
  %428 = vmatmul.mubr.f32.gmra.mrb[0].mxu0 %v127
  %v429 = vpop.f32.mrb[0].mxu0
  %v430 = vadd.f32 %v300, %v429
  %v431 = vpop.f32.mrb[0].mxu0
  %432 = vdwg.mxu0
  %s433 = scalar_lea.vmem %s0, 416
  %v434 = vld [vmem:[%s433] sm:$0xff]
  %v435 = vld [vmem:[%s433 + $0x8] sm:$0xff]
  %v436 = vld [vmem:[%s433 + $0x10] sm:$0xff]
  %v437 = vld [vmem:[%s433 + $0x18] sm:$0xff]
  %v438 = vld [vmem:[%s433 + $0x20] sm:$0xff]
  %v439 = vld [vmem:[%s433 + $0x28] sm:$0xff]
  %v440 = vld [vmem:[%s433 + $0x30] sm:$0xff]
  %v441 = vld [vmem:[%s433 + $0x38] sm:$0xff]
  %v442 = vld [vmem:[%s433 + $0x40] sm:$0xff]
  %v443 = vld [vmem:[%s433 + $0x48] sm:$0xff]
  %v444 = vld [vmem:[%s433 + $0x50] sm:$0xff]
  %v445 = vld [vmem:[%s433 + $0x58] sm:$0xff]
  %v446 = vld [vmem:[%s433 + $0x60] sm:$0xff]
  %v447 = vld [vmem:[%s433 + $0x68] sm:$0xff]
  %v448 = vld [vmem:[%s433 + $0x70] sm:$0xff]
  %v449 = vld [vmem:[%s433 + $0x78] sm:$0xff]
  %v450 = vld [vmem:[%s433 + $0x80] sm:$0xff]
  %v451 = vld [vmem:[%s433 + $0x88] sm:$0xff]
  %v452 = vld [vmem:[%s433 + $0x90] sm:$0xff]
  %v453 = vld [vmem:[%s433 + $0x98] sm:$0xff]
  %v454 = vld [vmem:[%s433 + $0xa0] sm:$0xff]
  %v455 = vld [vmem:[%s433 + $0xa8] sm:$0xff]
  %v456 = vld [vmem:[%s433 + $0xb0] sm:$0xff]
  %v457 = vld [vmem:[%s433 + $0xb8] sm:$0xff]
  %v458 = vld [vmem:[%s433 + $0xc0] sm:$0xff]
  %v459 = vld [vmem:[%s433 + $0xc8] sm:$0xff]
  %v460 = vld [vmem:[%s433 + $0xd0] sm:$0xff]
  %v461 = vld [vmem:[%s433 + $0xd8] sm:$0xff]
  %v462 = vld [vmem:[%s433 + $0xe0] sm:$0xff]
  %v463 = vld [vmem:[%s433 + $0xe8] sm:$0xff]
  %v464 = vld [vmem:[%s433 + $0xf0] sm:$0xff]
  %v465 = vld [vmem:[%s433 + $0xf8] sm:$0xff]
  %v466 = vld [vmem:[%s433 + $0x100] sm:$0xff]
  %v467 = vld [vmem:[%s433 + $0x108] sm:$0xff]
  %v468 = vld [vmem:[%s433 + $0x110] sm:$0xff]
  %v469 = vld [vmem:[%s433 + $0x118] sm:$0xff]
  %v470 = vld [vmem:[%s433 + $0x120] sm:$0xff]
  %v471 = vld [vmem:[%s433 + $0x128] sm:$0xff]
  %v472 = vld [vmem:[%s433 + $0x130] sm:$0xff]
  %v473 = vld [vmem:[%s433 + $0x138] sm:$0xff]
  %v474 = vld [vmem:[%s433 + $0x140] sm:$0xff]
  %v475 = vld [vmem:[%s433 + $0x148] sm:$0xff]
  %v476 = vld [vmem:[%s433 + $0x150] sm:$0xff]
  %v477 = vld [vmem:[%s433 + $0x158] sm:$0xff]
  %v478 = vld [vmem:[%s433 + $0x160] sm:$0xff]
  %v479 = vld [vmem:[%s433 + $0x168] sm:$0xff]
  %v480 = vld [vmem:[%s433 + $0x170] sm:$0xff]
  %v481 = vld [vmem:[%s433 + $0x178] sm:$0xff]
  %v482 = vld [vmem:[%s433 + $0x180] sm:$0xf]
  %v483 = vld [vmem:[%s433 + $0x188] sm:$0xf]
  %v484 = vld [vmem:[%s433 + $0x190] sm:$0xf]
  %v485 = vld [vmem:[%s433 + $0x198] sm:$0xf]
  %v487 = vsel %vm129, %v437, 0
  %v490 = vsel %vm129, %v441, 0
  %v493 = vsel %vm129, %v445, 0
  %v496 = vsel %vm129, %v449, 0
  %v499 = vsel %vm129, %v453, 0
  %v502 = vsel %vm129, %v457, 0
  %v505 = vsel %vm129, %v461, 0
  %v508 = vsel %vm129, %v465, 0
  %v511 = vsel %vm129, %v469, 0
  %v514 = vsel %vm129, %v473, 0
  %v517 = vsel %vm129, %v477, 0
  %v520 = vsel %vm129, %v481, 0
  %v523 = vsel %vm129, %v485, 0
  %525 = vmatprep.subr.mxu0 0.0
  %526 = vmatpush1.msra.mxu0 %v14
  %527 = vmatprep.subr.mxu0 0.0
  %528 = vmatpush1.msra.mxu0 %v15
  %529 = vmatprep.subr.mxu0 0.0
  %530 = vmatpush1.msra.mxu0 %v16
  %531 = vmatprep.subr.mxu0 0.0
  %532 = vmatpush1.msra.mxu0 %v17
  %533 = vmatprep.subr.mxu0 0.0
  %534 = vmatpush1.msra.mxu0 %v18
  %535 = vmatprep.subr.mxu0 0.0
  %536 = vmatpush1.msra.mxu0 %v19
  %537 = vmatprep.subr.mxu0 0.0
  %538 = vmatpush1.msra.mxu0 %v20
  %539 = vmatprep.subr.mxu0 0.0
  %540 = vmatpush1.msra.mxu0 %v21
  %541 = vmatprep.subr.mxu0 0.0
  %542 = vmatpush1.msra.mxu0 %v22
  %543 = vmatprep.subr.mxu0 0.0
  %544 = vmatpush1.msra.mxu0 %v23
  %545 = vmatprep.subr.mxu0 0.0
  %546 = vmatpush1.msra.mxu0 %v24
  %547 = vmatprep.subr.mxu0 0.0
  %548 = vmatpush1.msra.mxu0 %v25
  %549 = vmatprep.subr.mxu0 0.0
  %550 = vmatpush1.msra.mxu0 %v26
  %551 = vmatprep.subr.mxu0 0.0
  %552 = vmatpush1.msra.mxu0 %v27
  %553 = vmatprep.subr.mxu0 0.0
  %554 = vmatpush1.msra.mxu0 %v28
  %555 = vmatprep.subr.mxu0 0.0
  %556 = vmatpush1.msra.mxu0 %v29
  %557 = vmatprep.subr.mxu0 0.0
  %558 = vmatpush1.msra.mxu0 %v30
  %559 = vmatprep.subr.mxu0 0.0
  %560 = vmatpush1.msra.mxu0 %v31
  %561 = vmatprep.subr.mxu0 0.0
  %562 = vmatpush1.msra.mxu0 %v32
  %563 = vmatprep.subr.mxu0 0.0
  %564 = vmatpush1.msra.mxu0 %v33
  %565 = vmatprep.subr.mxu0 0.0
  %566 = vmatpush1.msra.mxu0 %v34
  %567 = vmatprep.subr.mxu0 0.0
  %568 = vmatpush1.msra.mxu0 %v35
  %569 = vmatprep.subr.mxu0 0.0
  %570 = vmatpush1.msra.mxu0 %v36
  %571 = vmatprep.subr.mxu0 0.0
  %572 = vmatpush1.msra.mxu0 %v37
  %573 = vmatprep.subr.mxu0 0.0
  %574 = vmatpush1.msra.mxu0 %v38
  %575 = vmatprep.subr.mxu0 0.0
  %576 = vmatpush1.msra.mxu0 %v39
  %577 = vmatprep.subr.mxu0 0.0
  %578 = vmatpush1.msra.mxu0 %v40
  %579 = vmatprep.subr.mxu0 0.0
  %580 = vmatpush1.msra.mxu0 %v41
  %581 = vmatprep.subr.mxu0 0.0
  %582 = vmatpush1.msra.mxu0 %v42
  %583 = vmatprep.subr.mxu0 0.0
  %584 = vmatpush1.msra.mxu0 %v43
  %585 = vmatprep.subr.mxu0 0.0
  %586 = vmatpush1.msra.mxu0 %v44
  %587 = vmatprep.subr.mxu0 0.0
  %588 = vmatpush1.msra.mxu0 %v45
  %589 = vmatprep.mubr.f32.mxu0 %v435
  %590 = vmatmul.mubr.f32.gmra.mrb[0].mxu0 %v434
  %v591 = vpop.f32.mrb[0].mxu0
  %v592 = vadd.f32 0.0, %v591
  %v593 = vpop.f32.mrb[0].mxu0
  %594 = vmatprep.mubr.f32.mxu0 %v439
  %595 = vmatmul.mubr.f32.gmra.mrb[0].mxu0 %v438
  %v596 = vpop.f32.mrb[0].mxu0
  %v597 = vadd.f32 0.0, %v596
  %v598 = vpop.f32.mrb[0].mxu0
  %599 = vmatprep.mubr.f32.mxu0 %v443
  %600 = vmatmul.mubr.f32.gmra.mrb[0].mxu0 %v442
  %v601 = vpop.f32.mrb[0].mxu0
  %v602 = vadd.f32 0.0, %v601
  %v603 = vpop.f32.mrb[0].mxu0
  %604 = vmatprep.mubr.f32.mxu0 %v447
  %605 = vmatmul.mubr.f32.gmra.mrb[0].mxu0 %v446
  %v606 = vpop.f32.mrb[0].mxu0
  %v607 = vadd.f32 0.0, %v606
  %v608 = vpop.f32.mrb[0].mxu0
  %609 = vmatprep.mubr.f32.mxu0 %v451
  %610 = vmatmul.mubr.f32.gmra.mrb[0].mxu0 %v450
  %v611 = vpop.f32.mrb[0].mxu0
  %v612 = vadd.f32 0.0, %v611
  %v613 = vpop.f32.mrb[0].mxu0
  %614 = vmatprep.mubr.f32.mxu0 %v455
  %615 = vmatmul.mubr.f32.gmra.mrb[0].mxu0 %v454
  %v616 = vpop.f32.mrb[0].mxu0
  %v617 = vadd.f32 0.0, %v616
  %v618 = vpop.f32.mrb[0].mxu0
  %619 = vmatprep.mubr.f32.mxu0 %v459
  %620 = vmatmul.mubr.f32.gmra.mrb[0].mxu0 %v458
  %v621 = vpop.f32.mrb[0].mxu0
  %v622 = vadd.f32 0.0, %v621
  %v623 = vpop.f32.mrb[0].mxu0
  %624 = vmatprep.mubr.f32.mxu0 %v463
  %625 = vmatmul.mubr.f32.gmra.mrb[0].mxu0 %v462
  %v626 = vpop.f32.mrb[0].mxu0
  %v627 = vadd.f32 0.0, %v626
  %v628 = vpop.f32.mrb[0].mxu0
  %629 = vmatprep.mubr.f32.mxu0 %v467
  %630 = vmatmul.mubr.f32.gmra.mrb[0].mxu0 %v466
  %v631 = vpop.f32.mrb[0].mxu0
  %v632 = vadd.f32 0.0, %v631
  %v633 = vpop.f32.mrb[0].mxu0
  %634 = vmatprep.mubr.f32.mxu0 %v471
  %635 = vmatmul.mubr.f32.gmra.mrb[0].mxu0 %v470
  %v636 = vpop.f32.mrb[0].mxu0
  %v637 = vadd.f32 0.0, %v636
  %v638 = vpop.f32.mrb[0].mxu0
  %639 = vmatprep.mubr.f32.mxu0 %v475
  %640 = vmatmul.mubr.f32.gmra.mrb[0].mxu0 %v474
  %v641 = vpop.f32.mrb[0].mxu0
  %v642 = vadd.f32 0.0, %v641
  %v643 = vpop.f32.mrb[0].mxu0
  %644 = vmatprep.mubr.f32.mxu0 %v479
  %645 = vmatmul.mubr.f32.gmra.mrb[0].mxu0 %v478
  %v646 = vpop.f32.mrb[0].mxu0
  %v647 = vadd.f32 0.0, %v646
  %v648 = vpop.f32.mrb[0].mxu0
  %649 = vmatprep.mubr.f32.mxu0 %v483
  %650 = vmatmul.mubr.f32.gmra.mrb[0].mxu0 %v482
  %v651 = vpop.f32.mrb[0].mxu0
  %v652 = vadd.f32 0.0, %v651
  %v653 = vpop.f32.mrb[0].mxu0
  %654 = vdwg.mxu0
  %655 = vmatprep.subr.mxu0 0.0
  %656 = vmatpush1.msra.mxu0 %v46
  %657 = vmatprep.subr.mxu0 0.0
  %658 = vmatpush1.msra.mxu0 %v47
  %659 = vmatprep.subr.mxu0 0.0
  %660 = vmatpush1.msra.mxu0 %v48
  %661 = vmatprep.subr.mxu0 0.0
  %662 = vmatpush1.msra.mxu0 %v49
  %663 = vmatprep.subr.mxu0 0.0
  %664 = vmatpush1.msra.mxu0 %v50
  %665 = vmatprep.subr.mxu0 0.0
  %666 = vmatpush1.msra.mxu0 %v51
  %667 = vmatprep.subr.mxu0 0.0
  %668 = vmatpush1.msra.mxu0 %v52
  %669 = vmatprep.subr.mxu0 0.0
  %670 = vmatpush1.msra.mxu0 %v53
  %671 = vmatprep.subr.mxu0 0.0
  %672 = vmatpush1.msra.mxu0 %v54
  %673 = vmatprep.subr.mxu0 0.0
  %674 = vmatpush1.msra.mxu0 %v55
  %675 = vmatprep.subr.mxu0 0.0
  %676 = vmatpush1.msra.mxu0 %v56
  %677 = vmatprep.subr.mxu0 0.0
  %678 = vmatpush1.msra.mxu0 %v57
  %679 = vmatprep.subr.mxu0 0.0
  %680 = vmatpush1.msra.mxu0 %v58
  %681 = vmatprep.subr.mxu0 0.0
  %682 = vmatpush1.msra.mxu0 %v59
  %683 = vmatprep.subr.mxu0 0.0
  %684 = vmatpush1.msra.mxu0 %v60
  %685 = vmatprep.subr.mxu0 0.0
  %686 = vmatpush1.msra.mxu0 %v61
  %687 = vmatprep.subr.mxu0 0.0
  %688 = vmatpush1.msra.mxu0 %v62
  %689 = vmatprep.subr.mxu0 0.0
  %690 = vmatpush1.msra.mxu0 %v63
  %691 = vmatprep.subr.mxu0 0.0
  %692 = vmatpush1.msra.mxu0 %v64
  %693 = vmatprep.subr.mxu0 0.0
  %694 = vmatpush1.msra.mxu0 %v65
  %695 = vmatprep.subr.mxu0 0.0
  %696 = vmatpush1.msra.mxu0 %v66
  %697 = vmatprep.subr.mxu0 0.0
  %698 = vmatpush1.msra.mxu0 %v67
  %699 = vmatprep.subr.mxu0 0.0
  %700 = vmatpush1.msra.mxu0 %v68
  %701 = vmatprep.subr.mxu0 0.0
  %702 = vmatpush1.msra.mxu0 %v69
  %703 = vmatprep.subr.mxu0 0.0
  %704 = vmatpush1.msra.mxu0 %v70
  %705 = vmatprep.subr.mxu0 0.0
  %706 = vmatpush1.msra.mxu0 %v71
  %707 = vmatprep.subr.mxu0 0.0
  %708 = vmatpush1.msra.mxu0 %v72
  %709 = vmatprep.subr.mxu0 0.0
  %710 = vmatpush1.msra.mxu0 %v73
  %711 = vmatprep.subr.mxu0 0.0
  %712 = vmatpush1.msra.mxu0 %v74
  %713 = vmatprep.subr.mxu0 0.0
  %714 = vmatpush1.msra.mxu0 %v75
  %715 = vmatprep.subr.mxu0 0.0
  %716 = vmatpush1.msra.mxu0 %v171
  %717 = vmatprep.subr.mxu0 0.0
  %718 = vmatpush1.msra.mxu0 0.0
  %719 = vmatprep.mubr.f32.mxu0 %v487
  %720 = vmatmul.mubr.f32.gmra.mrb[0].mxu0 %v436
  %v721 = vpop.f32.mrb[0].mxu0
  %v722 = vadd.f32 %v592, %v721
  %v723 = vpop.f32.mrb[0].mxu0
  %724 = vmatprep.mubr.f32.mxu0 %v490
  %725 = vmatmul.mubr.f32.gmra.mrb[0].mxu0 %v440
  %v726 = vpop.f32.mrb[0].mxu0
  %v727 = vadd.f32 %v597, %v726
  %v728 = vpop.f32.mrb[0].mxu0
  %729 = vmatprep.mubr.f32.mxu0 %v493
  %730 = vmatmul.mubr.f32.gmra.mrb[0].mxu0 %v444
  %v731 = vpop.f32.mrb[0].mxu0
  %v732 = vadd.f32 %v602, %v731
  %v733 = vpop.f32.mrb[0].mxu0
  %734 = vmatprep.mubr.f32.mxu0 %v496
  %735 = vmatmul.mubr.f32.gmra.mrb[0].mxu0 %v448
  %v736 = vpop.f32.mrb[0].mxu0
  %v737 = vadd.f32 %v607, %v736
  %v738 = vpop.f32.mrb[0].mxu0
  %739 = vmatprep.mubr.f32.mxu0 %v499
  %740 = vmatmul.mubr.f32.gmra.mrb[0].mxu0 %v452
  %v741 = vpop.f32.mrb[0].mxu0
  %v742 = vadd.f32 %v612, %v741
  %v743 = vpop.f32.mrb[0].mxu0
  %744 = vmatprep.mubr.f32.mxu0 %v502
  %745 = vmatmul.mubr.f32.gmra.mrb[0].mxu0 %v456
  %v746 = vpop.f32.mrb[0].mxu0
  %v747 = vadd.f32 %v617, %v746
  %v748 = vpop.f32.mrb[0].mxu0
  %749 = vmatprep.mubr.f32.mxu0 %v505
  %750 = vmatmul.mubr.f32.gmra.mrb[0].mxu0 %v460
  %v751 = vpop.f32.mrb[0].mxu0
  %v752 = vadd.f32 %v622, %v751
  %v753 = vpop.f32.mrb[0].mxu0
  %754 = vmatprep.mubr.f32.mxu0 %v508
  %755 = vmatmul.mubr.f32.gmra.mrb[0].mxu0 %v464
  %v756 = vpop.f32.mrb[0].mxu0
  %v757 = vadd.f32 %v627, %v756
  %v758 = vpop.f32.mrb[0].mxu0
  %759 = vmatprep.mubr.f32.mxu0 %v511
  %760 = vmatmul.mubr.f32.gmra.mrb[0].mxu0 %v468
  %v761 = vpop.f32.mrb[0].mxu0
  %v762 = vadd.f32 %v632, %v761
  %v763 = vpop.f32.mrb[0].mxu0
  %764 = vmatprep.mubr.f32.mxu0 %v514
  %765 = vmatmul.mubr.f32.gmra.mrb[0].mxu0 %v472
  %v766 = vpop.f32.mrb[0].mxu0
  %v767 = vadd.f32 %v637, %v766
  %v768 = vpop.f32.mrb[0].mxu0
  %769 = vmatprep.mubr.f32.mxu0 %v517
  %770 = vmatmul.mubr.f32.gmra.mrb[0].mxu0 %v476
  %v771 = vpop.f32.mrb[0].mxu0
  %v772 = vadd.f32 %v642, %v771
  %v773 = vpop.f32.mrb[0].mxu0
  %774 = vmatprep.mubr.f32.mxu0 %v520
  %775 = vmatmul.mubr.f32.gmra.mrb[0].mxu0 %v480
  %v776 = vpop.f32.mrb[0].mxu0
  %v777 = vadd.f32 %v647, %v776
  %v778 = vpop.f32.mrb[0].mxu0
  %779 = vmatprep.mubr.f32.mxu0 %v523
  %780 = vmatmul.mubr.f32.gmra.mrb[0].mxu0 %v484
  %v781 = vpop.f32.mrb[0].mxu0
  %v782 = vadd.f32 %v652, %v781
  %v783 = vpop.f32.mrb[0].mxu0
  %784 = vdwg.mxu0
  %v785 = vmax.f32 %v370, %v722
  %v786 = vmax.f32 %v375, %v727
  %v787 = vmax.f32 %v380, %v732
  %v788 = vmax.f32 %v385, %v737
  %v789 = vmax.f32 %v390, %v742
  %v790 = vmax.f32 %v395, %v747
  %v791 = vmax.f32 %v400, %v752
  %v792 = vmax.f32 %v405, %v757
  %v793 = vmax.f32 %v410, %v762
  %v794 = vmax.f32 %v415, %v767
  %v795 = vmax.f32 %v420, %v772
  %v796 = vmax.f32 %v425, %v777
  %v797 = vmax.f32 %v430, %v782
  %s798 = scalar_lea.vmem %s0, 832
  %v799 = vld [vmem:[%s798] sm:$0xff]
  %v800 = vld [vmem:[%s798 + $0x8] sm:$0xff]
  %v801 = vld [vmem:[%s798 + $0x10] sm:$0xff]
  %v802 = vld [vmem:[%s798 + $0x18] sm:$0xff]
  %v803 = vld [vmem:[%s798 + $0x20] sm:$0xff]
  %v804 = vld [vmem:[%s798 + $0x28] sm:$0xff]
  %v805 = vld [vmem:[%s798 + $0x30] sm:$0xff]
  %v806 = vld [vmem:[%s798 + $0x38] sm:$0xff]
  %v807 = vld [vmem:[%s798 + $0x40] sm:$0xff]
  %v808 = vld [vmem:[%s798 + $0x48] sm:$0xff]
  %v809 = vld [vmem:[%s798 + $0x50] sm:$0xff]
  %v810 = vld [vmem:[%s798 + $0x58] sm:$0xff]
  %v811 = vld [vmem:[%s798 + $0x60] sm:$0xff]
  %v812 = vld [vmem:[%s798 + $0x68] sm:$0xff]
  %v813 = vld [vmem:[%s798 + $0x70] sm:$0xff]
  %v814 = vld [vmem:[%s798 + $0x78] sm:$0xff]
  %v815 = vld [vmem:[%s798 + $0x80] sm:$0xff]
  %v816 = vld [vmem:[%s798 + $0x88] sm:$0xff]
  %v817 = vld [vmem:[%s798 + $0x90] sm:$0xff]
  %v818 = vld [vmem:[%s798 + $0x98] sm:$0xff]
  %v819 = vld [vmem:[%s798 + $0xa0] sm:$0xff]
  %v820 = vld [vmem:[%s798 + $0xa8] sm:$0xff]
  %v821 = vld [vmem:[%s798 + $0xb0] sm:$0xff]
  %v822 = vld [vmem:[%s798 + $0xb8] sm:$0xff]
  %v823 = vld [vmem:[%s798 + $0xc0] sm:$0xff]
  %v824 = vld [vmem:[%s798 + $0xc8] sm:$0xff]
  %v825 = vld [vmem:[%s798 + $0xd0] sm:$0xff]
  %v826 = vld [vmem:[%s798 + $0xd8] sm:$0xff]
  %v827 = vld [vmem:[%s798 + $0xe0] sm:$0xff]
  %v828 = vld [vmem:[%s798 + $0xe8] sm:$0xff]
  %v829 = vld [vmem:[%s798 + $0xf0] sm:$0xff]
  %v830 = vld [vmem:[%s798 + $0xf8] sm:$0xff]
  %v831 = vld [vmem:[%s798 + $0x100] sm:$0xff]
  %v832 = vld [vmem:[%s798 + $0x108] sm:$0xff]
  %v833 = vld [vmem:[%s798 + $0x110] sm:$0xff]
  %v834 = vld [vmem:[%s798 + $0x118] sm:$0xff]
  %v835 = vld [vmem:[%s798 + $0x120] sm:$0xff]
  %v836 = vld [vmem:[%s798 + $0x128] sm:$0xff]
  %v837 = vld [vmem:[%s798 + $0x130] sm:$0xff]
  %v838 = vld [vmem:[%s798 + $0x138] sm:$0xff]
  %v839 = vld [vmem:[%s798 + $0x140] sm:$0xff]
  %v840 = vld [vmem:[%s798 + $0x148] sm:$0xff]
  %v841 = vld [vmem:[%s798 + $0x150] sm:$0xff]
  %v842 = vld [vmem:[%s798 + $0x158] sm:$0xff]
  %v843 = vld [vmem:[%s798 + $0x160] sm:$0xff]
  %v844 = vld [vmem:[%s798 + $0x168] sm:$0xff]
  %v845 = vld [vmem:[%s798 + $0x170] sm:$0xff]
  %v846 = vld [vmem:[%s798 + $0x178] sm:$0xff]
  %v847 = vld [vmem:[%s798 + $0x180] sm:$0xf]
  %v848 = vld [vmem:[%s798 + $0x188] sm:$0xf]
  %v849 = vld [vmem:[%s798 + $0x190] sm:$0xf]
  %v850 = vld [vmem:[%s798 + $0x198] sm:$0xf]
  %v852 = vsel %vm129, %v802, 0
  %v855 = vsel %vm129, %v806, 0
  %v858 = vsel %vm129, %v810, 0
  %v861 = vsel %vm129, %v814, 0
  %v864 = vsel %vm129, %v818, 0
  %v867 = vsel %vm129, %v822, 0
  %v870 = vsel %vm129, %v826, 0
  %v873 = vsel %vm129, %v830, 0
  %v876 = vsel %vm129, %v834, 0
  %v879 = vsel %vm129, %v838, 0
  %v882 = vsel %vm129, %v842, 0
  %v885 = vsel %vm129, %v846, 0
  %v888 = vsel %vm129, %v850, 0
  %890 = vmatprep.subr.mxu0 0.0
  %891 = vmatpush1.msra.mxu0 %v14
  %892 = vmatprep.subr.mxu0 0.0
  %893 = vmatpush1.msra.mxu0 %v15
  %894 = vmatprep.subr.mxu0 0.0
  %895 = vmatpush1.msra.mxu0 %v16
  %896 = vmatprep.subr.mxu0 0.0
  %897 = vmatpush1.msra.mxu0 %v17
  %898 = vmatprep.subr.mxu0 0.0
  %899 = vmatpush1.msra.mxu0 %v18
  %900 = vmatprep.subr.mxu0 0.0
  %901 = vmatpush1.msra.mxu0 %v19
  %902 = vmatprep.subr.mxu0 0.0
  %903 = vmatpush1.msra.mxu0 %v20
  %904 = vmatprep.subr.mxu0 0.0
  %905 = vmatpush1.msra.mxu0 %v21
  %906 = vmatprep.subr.mxu0 0.0
  %907 = vmatpush1.msra.mxu0 %v22
  %908 = vmatprep.subr.mxu0 0.0
  %909 = vmatpush1.msra.mxu0 %v23
  %910 = vmatprep.subr.mxu0 0.0
  %911 = vmatpush1.msra.mxu0 %v24
  %912 = vmatprep.subr.mxu0 0.0
  %913 = vmatpush1.msra.mxu0 %v25
  %914 = vmatprep.subr.mxu0 0.0
  %915 = vmatpush1.msra.mxu0 %v26
  %916 = vmatprep.subr.mxu0 0.0
  %917 = vmatpush1.msra.mxu0 %v27
  %918 = vmatprep.subr.mxu0 0.0
  %919 = vmatpush1.msra.mxu0 %v28
  %920 = vmatprep.subr.mxu0 0.0
  %921 = vmatpush1.msra.mxu0 %v29
  %922 = vmatprep.subr.mxu0 0.0
  %923 = vmatpush1.msra.mxu0 %v30
  %924 = vmatprep.subr.mxu0 0.0
  %925 = vmatpush1.msra.mxu0 %v31
  %926 = vmatprep.subr.mxu0 0.0
  %927 = vmatpush1.msra.mxu0 %v32
  %928 = vmatprep.subr.mxu0 0.0
  %929 = vmatpush1.msra.mxu0 %v33
  %930 = vmatprep.subr.mxu0 0.0
  %931 = vmatpush1.msra.mxu0 %v34
  %932 = vmatprep.subr.mxu0 0.0
  %933 = vmatpush1.msra.mxu0 %v35
  %934 = vmatprep.subr.mxu0 0.0
  %935 = vmatpush1.msra.mxu0 %v36
  %936 = vmatprep.subr.mxu0 0.0
  %937 = vmatpush1.msra.mxu0 %v37
  %938 = vmatprep.subr.mxu0 0.0
  %939 = vmatpush1.msra.mxu0 %v38
  %940 = vmatprep.subr.mxu0 0.0
  %941 = vmatpush1.msra.mxu0 %v39
  %942 = vmatprep.subr.mxu0 0.0
  %943 = vmatpush1.msra.mxu0 %v40
  %944 = vmatprep.subr.mxu0 0.0
  %945 = vmatpush1.msra.mxu0 %v41
  %946 = vmatprep.subr.mxu0 0.0
  %947 = vmatpush1.msra.mxu0 %v42
  %948 = vmatprep.subr.mxu0 0.0
  %949 = vmatpush1.msra.mxu0 %v43
  %950 = vmatprep.subr.mxu0 0.0
  %951 = vmatpush1.msra.mxu0 %v44
  %952 = vmatprep.subr.mxu0 0.0
  %953 = vmatpush1.msra.mxu0 %v45
  %954 = vmatprep.mubr.f32.mxu0 %v800
  %955 = vmatmul.mubr.f32.gmra.mrb[0].mxu0 %v799
  %v956 = vpop.f32.mrb[0].mxu0
  %v957 = vadd.f32 0.0, %v956
  %v958 = vpop.f32.mrb[0].mxu0
  %959 = vmatprep.mubr.f32.mxu0 %v804
  %960 = vmatmul.mubr.f32.gmra.mrb[0].mxu0 %v803
  %v961 = vpop.f32.mrb[0].mxu0
  %v962 = vadd.f32 0.0, %v961
  %v963 = vpop.f32.mrb[0].mxu0
  %964 = vmatprep.mubr.f32.mxu0 %v808
  %965 = vmatmul.mubr.f32.gmra.mrb[0].mxu0 %v807
  %v966 = vpop.f32.mrb[0].mxu0
  %v967 = vadd.f32 0.0, %v966
  %v968 = vpop.f32.mrb[0].mxu0
  %969 = vmatprep.mubr.f32.mxu0 %v812
  %970 = vmatmul.mubr.f32.gmra.mrb[0].mxu0 %v811
  %v971 = vpop.f32.mrb[0].mxu0
  %v972 = vadd.f32 0.0, %v971
  %v973 = vpop.f32.mrb[0].mxu0
  %974 = vmatprep.mubr.f32.mxu0 %v816
  %975 = vmatmul.mubr.f32.gmra.mrb[0].mxu0 %v815
  %v976 = vpop.f32.mrb[0].mxu0
  %v977 = vadd.f32 0.0, %v976
  %v978 = vpop.f32.mrb[0].mxu0
  %979 = vmatprep.mubr.f32.mxu0 %v820
  %980 = vmatmul.mubr.f32.gmra.mrb[0].mxu0 %v819
  %v981 = vpop.f32.mrb[0].mxu0
  %v982 = vadd.f32 0.0, %v981
  %v983 = vpop.f32.mrb[0].mxu0
  %984 = vmatprep.mubr.f32.mxu0 %v824
  %985 = vmatmul.mubr.f32.gmra.mrb[0].mxu0 %v823
  %v986 = vpop.f32.mrb[0].mxu0
  %v987 = vadd.f32 0.0, %v986
  %v988 = vpop.f32.mrb[0].mxu0
  %989 = vmatprep.mubr.f32.mxu0 %v828
  %990 = vmatmul.mubr.f32.gmra.mrb[0].mxu0 %v827
  %v991 = vpop.f32.mrb[0].mxu0
  %v992 = vadd.f32 0.0, %v991
  %v993 = vpop.f32.mrb[0].mxu0
  %994 = vmatprep.mubr.f32.mxu0 %v832
  %995 = vmatmul.mubr.f32.gmra.mrb[0].mxu0 %v831
  %v996 = vpop.f32.mrb[0].mxu0
  %v997 = vadd.f32 0.0, %v996
  %v998 = vpop.f32.mrb[0].mxu0
  %999 = vmatprep.mubr.f32.mxu0 %v836
  %1000 = vmatmul.mubr.f32.gmra.mrb[0].mxu0 %v835
  %v1001 = vpop.f32.mrb[0].mxu0
  %v1002 = vadd.f32 0.0, %v1001
  %v1003 = vpop.f32.mrb[0].mxu0
  %1004 = vmatprep.mubr.f32.mxu0 %v840
  %1005 = vmatmul.mubr.f32.gmra.mrb[0].mxu0 %v839
  %v1006 = vpop.f32.mrb[0].mxu0
  %v1007 = vadd.f32 0.0, %v1006
  %v1008 = vpop.f32.mrb[0].mxu0
  %1009 = vmatprep.mubr.f32.mxu0 %v844
  %1010 = vmatmul.mubr.f32.gmra.mrb[0].mxu0 %v843
  %v1011 = vpop.f32.mrb[0].mxu0
  %v1012 = vadd.f32 0.0, %v1011
  %v1013 = vpop.f32.mrb[0].mxu0
  %1014 = vmatprep.mubr.f32.mxu0 %v848
  %1015 = vmatmul.mubr.f32.gmra.mrb[0].mxu0 %v847
  %v1016 = vpop.f32.mrb[0].mxu0
  %v1017 = vadd.f32 0.0, %v1016
  %v1018 = vpop.f32.mrb[0].mxu0
  %1019 = vdwg.mxu0
  %1020 = vmatprep.subr.mxu0 0.0
  %1021 = vmatpush1.msra.mxu0 %v46
  %1022 = vmatprep.subr.mxu0 0.0
  %1023 = vmatpush1.msra.mxu0 %v47
  %1024 = vmatprep.subr.mxu0 0.0
  %1025 = vmatpush1.msra.mxu0 %v48
  %1026 = vmatprep.subr.mxu0 0.0
  %1027 = vmatpush1.msra.mxu0 %v49
  %1028 = vmatprep.subr.mxu0 0.0
  %1029 = vmatpush1.msra.mxu0 %v50
  %1030 = vmatprep.subr.mxu0 0.0
  %1031 = vmatpush1.msra.mxu0 %v51
  %1032 = vmatprep.subr.mxu0 0.0
  %1033 = vmatpush1.msra.mxu0 %v52
  %1034 = vmatprep.subr.mxu0 0.0
  %1035 = vmatpush1.msra.mxu0 %v53
  %1036 = vmatprep.subr.mxu0 0.0
  %1037 = vmatpush1.msra.mxu0 %v54
  %1038 = vmatprep.subr.mxu0 0.0
  %1039 = vmatpush1.msra.mxu0 %v55
  %1040 = vmatprep.subr.mxu0 0.0
  %1041 = vmatpush1.msra.mxu0 %v56
  %1042 = vmatprep.subr.mxu0 0.0
  %1043 = vmatpush1.msra.mxu0 %v57
  %1044 = vmatprep.subr.mxu0 0.0
  %1045 = vmatpush1.msra.mxu0 %v58
  %1046 = vmatprep.subr.mxu0 0.0
  %1047 = vmatpush1.msra.mxu0 %v59
  %1048 = vmatprep.subr.mxu0 0.0
  %1049 = vmatpush1.msra.mxu0 %v60
  %1050 = vmatprep.subr.mxu0 0.0
  %1051 = vmatpush1.msra.mxu0 %v61
  %1052 = vmatprep.subr.mxu0 0.0
  %1053 = vmatpush1.msra.mxu0 %v62
  %1054 = vmatprep.subr.mxu0 0.0
  %1055 = vmatpush1.msra.mxu0 %v63
  %1056 = vmatprep.subr.mxu0 0.0
  %1057 = vmatpush1.msra.mxu0 %v64
  %1058 = vmatprep.subr.mxu0 0.0
  %1059 = vmatpush1.msra.mxu0 %v65
  %1060 = vmatprep.subr.mxu0 0.0
  %1061 = vmatpush1.msra.mxu0 %v66
  %1062 = vmatprep.subr.mxu0 0.0
  %1063 = vmatpush1.msra.mxu0 %v67
  %1064 = vmatprep.subr.mxu0 0.0
  %1065 = vmatpush1.msra.mxu0 %v68
  %1066 = vmatprep.subr.mxu0 0.0
  %1067 = vmatpush1.msra.mxu0 %v69
  %1068 = vmatprep.subr.mxu0 0.0
  %1069 = vmatpush1.msra.mxu0 %v70
  %1070 = vmatprep.subr.mxu0 0.0
  %1071 = vmatpush1.msra.mxu0 %v71
  %1072 = vmatprep.subr.mxu0 0.0
  %1073 = vmatpush1.msra.mxu0 %v72
  %1074 = vmatprep.subr.mxu0 0.0
  %1075 = vmatpush1.msra.mxu0 %v73
  %1076 = vmatprep.subr.mxu0 0.0
  %1077 = vmatpush1.msra.mxu0 %v74
  %1078 = vmatprep.subr.mxu0 0.0
  %1079 = vmatpush1.msra.mxu0 %v75
  %1080 = vmatprep.subr.mxu0 0.0
  %1081 = vmatpush1.msra.mxu0 %v171
  %1082 = vmatprep.subr.mxu0 0.0
  %1083 = vmatpush1.msra.mxu0 0.0
  %1084 = vmatprep.mubr.f32.mxu0 %v852
  %1085 = vmatmul.mubr.f32.gmra.mrb[0].mxu0 %v801
  %v1086 = vpop.f32.mrb[0].mxu0
  %v1087 = vadd.f32 %v957, %v1086
  %v1088 = vpop.f32.mrb[0].mxu0
  %1089 = vmatprep.mubr.f32.mxu0 %v855
  %1090 = vmatmul.mubr.f32.gmra.mrb[0].mxu0 %v805
  %v1091 = vpop.f32.mrb[0].mxu0
  %v1092 = vadd.f32 %v962, %v1091
  %v1093 = vpop.f32.mrb[0].mxu0
  %1094 = vmatprep.mubr.f32.mxu0 %v858
  %1095 = vmatmul.mubr.f32.gmra.mrb[0].mxu0 %v809
  %v1096 = vpop.f32.mrb[0].mxu0
  %v1097 = vadd.f32 %v967, %v1096
  %v1098 = vpop.f32.mrb[0].mxu0
  %1099 = vmatprep.mubr.f32.mxu0 %v861
  %1100 = vmatmul.mubr.f32.gmra.mrb[0].mxu0 %v813
  %v1101 = vpop.f32.mrb[0].mxu0
  %v1102 = vadd.f32 %v972, %v1101
  %v1103 = vpop.f32.mrb[0].mxu0
  %1104 = vmatprep.mubr.f32.mxu0 %v864
  %1105 = vmatmul.mubr.f32.gmra.mrb[0].mxu0 %v817
  %v1106 = vpop.f32.mrb[0].mxu0
  %v1107 = vadd.f32 %v977, %v1106
  %v1108 = vpop.f32.mrb[0].mxu0
  %1109 = vmatprep.mubr.f32.mxu0 %v867
  %1110 = vmatmul.mubr.f32.gmra.mrb[0].mxu0 %v821
  %v1111 = vpop.f32.mrb[0].mxu0
  %v1112 = vadd.f32 %v982, %v1111
  %v1113 = vpop.f32.mrb[0].mxu0
  %1114 = vmatprep.mubr.f32.mxu0 %v870
  %1115 = vmatmul.mubr.f32.gmra.mrb[0].mxu0 %v825
  %v1116 = vpop.f32.mrb[0].mxu0
  %v1117 = vadd.f32 %v987, %v1116
  %v1118 = vpop.f32.mrb[0].mxu0
  %1119 = vmatprep.mubr.f32.mxu0 %v873
  %1120 = vmatmul.mubr.f32.gmra.mrb[0].mxu0 %v829
  %v1121 = vpop.f32.mrb[0].mxu0
  %v1122 = vadd.f32 %v992, %v1121
  %v1123 = vpop.f32.mrb[0].mxu0
  %1124 = vmatprep.mubr.f32.mxu0 %v876
  %1125 = vmatmul.mubr.f32.gmra.mrb[0].mxu0 %v833
  %v1126 = vpop.f32.mrb[0].mxu0
  %v1127 = vadd.f32 %v997, %v1126
  %v1128 = vpop.f32.mrb[0].mxu0
  %1129 = vmatprep.mubr.f32.mxu0 %v879
  %1130 = vmatmul.mubr.f32.gmra.mrb[0].mxu0 %v837
  %v1131 = vpop.f32.mrb[0].mxu0
  %v1132 = vadd.f32 %v1002, %v1131
  %v1133 = vpop.f32.mrb[0].mxu0
  %1134 = vmatprep.mubr.f32.mxu0 %v882
  %1135 = vmatmul.mubr.f32.gmra.mrb[0].mxu0 %v841
  %v1136 = vpop.f32.mrb[0].mxu0
  %v1137 = vadd.f32 %v1007, %v1136
  %v1138 = vpop.f32.mrb[0].mxu0
  %1139 = vmatprep.mubr.f32.mxu0 %v885
  %1140 = vmatmul.mubr.f32.gmra.mrb[0].mxu0 %v845
  %v1141 = vpop.f32.mrb[0].mxu0
  %v1142 = vadd.f32 %v1012, %v1141
  %v1143 = vpop.f32.mrb[0].mxu0
  %1144 = vmatprep.mubr.f32.mxu0 %v888
  %1145 = vmatmul.mubr.f32.gmra.mrb[0].mxu0 %v849
  %v1146 = vpop.f32.mrb[0].mxu0
  %v1147 = vadd.f32 %v1017, %v1146
  %v1148 = vpop.f32.mrb[0].mxu0
  %1149 = vdwg.mxu0
  %v1150 = vmax.f32 %v785, %v1087
  %v1151 = vmax.f32 %v786, %v1092
  %v1152 = vmax.f32 %v787, %v1097
  %v1153 = vmax.f32 %v788, %v1102
  %v1154 = vmax.f32 %v789, %v1107
  %v1155 = vmax.f32 %v790, %v1112
  %v1156 = vmax.f32 %v791, %v1117
  %v1157 = vmax.f32 %v792, %v1122
  %v1158 = vmax.f32 %v793, %v1127
  %v1159 = vmax.f32 %v794, %v1132
  %v1160 = vmax.f32 %v795, %v1137
  %v1161 = vmax.f32 %v796, %v1142
  %v1162 = vmax.f32 %v797, %v1147
  %s1163 = scalar_lea.vmem %s0, 1248
  %v1164 = vld [vmem:[%s1163] sm:$0xff]
  %v1165 = vld [vmem:[%s1163 + $0x8] sm:$0xff]
  %v1166 = vld [vmem:[%s1163 + $0x10] sm:$0xff]
  %v1167 = vld [vmem:[%s1163 + $0x18] sm:$0xff]
  %v1168 = vld [vmem:[%s1163 + $0x20] sm:$0xff]
  %v1169 = vld [vmem:[%s1163 + $0x28] sm:$0xff]
  %v1170 = vld [vmem:[%s1163 + $0x30] sm:$0xff]
  %v1171 = vld [vmem:[%s1163 + $0x38] sm:$0xff]
  %v1172 = vld [vmem:[%s1163 + $0x40] sm:$0xff]
  %v1173 = vld [vmem:[%s1163 + $0x48] sm:$0xff]
  %v1174 = vld [vmem:[%s1163 + $0x50] sm:$0xff]
  %v1175 = vld [vmem:[%s1163 + $0x58] sm:$0xff]
  %v1176 = vld [vmem:[%s1163 + $0x60] sm:$0xff]
  %v1177 = vld [vmem:[%s1163 + $0x68] sm:$0xff]
  %v1178 = vld [vmem:[%s1163 + $0x70] sm:$0xff]
  %v1179 = vld [vmem:[%s1163 + $0x78] sm:$0xff]
  %v1180 = vld [vmem:[%s1163 + $0x80] sm:$0xff]
  %v1181 = vld [vmem:[%s1163 + $0x88] sm:$0xff]
  %v1182 = vld [vmem:[%s1163 + $0x90] sm:$0xff]
  %v1183 = vld [vmem:[%s1163 + $0x98] sm:$0xff]
  %v1184 = vld [vmem:[%s1163 + $0xa0] sm:$0xff]
  %v1185 = vld [vmem:[%s1163 + $0xa8] sm:$0xff]
  %v1186 = vld [vmem:[%s1163 + $0xb0] sm:$0xff]
  %v1187 = vld [vmem:[%s1163 + $0xb8] sm:$0xff]
  %v1188 = vld [vmem:[%s1163 + $0xc0] sm:$0xff]
  %v1189 = vld [vmem:[%s1163 + $0xc8] sm:$0xff]
  %v1190 = vld [vmem:[%s1163 + $0xd0] sm:$0xff]
  %v1191 = vld [vmem:[%s1163 + $0xd8] sm:$0xff]
  %v1192 = vld [vmem:[%s1163 + $0xe0] sm:$0xff]
  %v1193 = vld [vmem:[%s1163 + $0xe8] sm:$0xff]
  %v1194 = vld [vmem:[%s1163 + $0xf0] sm:$0xff]
  %v1195 = vld [vmem:[%s1163 + $0xf8] sm:$0xff]
  %v1196 = vld [vmem:[%s1163 + $0x100] sm:$0xff]
  %v1197 = vld [vmem:[%s1163 + $0x108] sm:$0xff]
  %v1198 = vld [vmem:[%s1163 + $0x110] sm:$0xff]
  %v1199 = vld [vmem:[%s1163 + $0x118] sm:$0xff]
  %v1200 = vld [vmem:[%s1163 + $0x120] sm:$0xff]
  %v1201 = vld [vmem:[%s1163 + $0x128] sm:$0xff]
  %v1202 = vld [vmem:[%s1163 + $0x130] sm:$0xff]
  %v1203 = vld [vmem:[%s1163 + $0x138] sm:$0xff]
  %v1204 = vld [vmem:[%s1163 + $0x140] sm:$0xff]
  %v1205 = vld [vmem:[%s1163 + $0x148] sm:$0xff]
  %v1206 = vld [vmem:[%s1163 + $0x150] sm:$0xff]
  %v1207 = vld [vmem:[%s1163 + $0x158] sm:$0xff]
  %v1208 = vld [vmem:[%s1163 + $0x160] sm:$0xff]
  %v1209 = vld [vmem:[%s1163 + $0x168] sm:$0xff]
  %v1210 = vld [vmem:[%s1163 + $0x170] sm:$0xff]
  %v1211 = vld [vmem:[%s1163 + $0x178] sm:$0xff]
  %v1212 = vld [vmem:[%s1163 + $0x180] sm:$0xf]
  %v1213 = vld [vmem:[%s1163 + $0x188] sm:$0xf]
  %v1214 = vld [vmem:[%s1163 + $0x190] sm:$0xf]
  %v1215 = vld [vmem:[%s1163 + $0x198] sm:$0xf]
  %v1217 = vsel %vm129, %v1167, 0
  %v1220 = vsel %vm129, %v1171, 0
  %v1223 = vsel %vm129, %v1175, 0
  %v1226 = vsel %vm129, %v1179, 0
  %v1229 = vsel %vm129, %v1183, 0
  %v1232 = vsel %vm129, %v1187, 0
  %v1235 = vsel %vm129, %v1191, 0
  %v1238 = vsel %vm129, %v1195, 0
  %v1241 = vsel %vm129, %v1199, 0
  %v1244 = vsel %vm129, %v1203, 0
  %v1247 = vsel %vm129, %v1207, 0
  %v1250 = vsel %vm129, %v1211, 0
  %v1253 = vsel %vm129, %v1215, 0
  %1255 = vmatprep.subr.mxu0 0.0
  %1256 = vmatpush1.msra.mxu0 %v14
  %1257 = vmatprep.subr.mxu0 0.0
  %1258 = vmatpush1.msra.mxu0 %v15
  %1259 = vmatprep.subr.mxu0 0.0
  %1260 = vmatpush1.msra.mxu0 %v16
  %1261 = vmatprep.subr.mxu0 0.0
  %1262 = vmatpush1.msra.mxu0 %v17
  %1263 = vmatprep.subr.mxu0 0.0
  %1264 = vmatpush1.msra.mxu0 %v18
  %1265 = vmatprep.subr.mxu0 0.0
  %1266 = vmatpush1.msra.mxu0 %v19
  %1267 = vmatprep.subr.mxu0 0.0
  %1268 = vmatpush1.msra.mxu0 %v20
  %1269 = vmatprep.subr.mxu0 0.0
  %1270 = vmatpush1.msra.mxu0 %v21
  %1271 = vmatprep.subr.mxu0 0.0
  %1272 = vmatpush1.msra.mxu0 %v22
  %1273 = vmatprep.subr.mxu0 0.0
  %1274 = vmatpush1.msra.mxu0 %v23
  %1275 = vmatprep.subr.mxu0 0.0
  %1276 = vmatpush1.msra.mxu0 %v24
  %1277 = vmatprep.subr.mxu0 0.0
  %1278 = vmatpush1.msra.mxu0 %v25
  %1279 = vmatprep.subr.mxu0 0.0
  %1280 = vmatpush1.msra.mxu0 %v26
  %1281 = vmatprep.subr.mxu0 0.0
  %1282 = vmatpush1.msra.mxu0 %v27
  %1283 = vmatprep.subr.mxu0 0.0
  %1284 = vmatpush1.msra.mxu0 %v28
  %1285 = vmatprep.subr.mxu0 0.0
  %1286 = vmatpush1.msra.mxu0 %v29
  %1287 = vmatprep.subr.mxu0 0.0
  %1288 = vmatpush1.msra.mxu0 %v30
  %1289 = vmatprep.subr.mxu0 0.0
  %1290 = vmatpush1.msra.mxu0 %v31
  %1291 = vmatprep.subr.mxu0 0.0
  %1292 = vmatpush1.msra.mxu0 %v32
  %1293 = vmatprep.subr.mxu0 0.0
  %1294 = vmatpush1.msra.mxu0 %v33
  %1295 = vmatprep.subr.mxu0 0.0
  %1296 = vmatpush1.msra.mxu0 %v34
  %1297 = vmatprep.subr.mxu0 0.0
  %1298 = vmatpush1.msra.mxu0 %v35
  %1299 = vmatprep.subr.mxu0 0.0
  %1300 = vmatpush1.msra.mxu0 %v36
  %1301 = vmatprep.subr.mxu0 0.0
  %1302 = vmatpush1.msra.mxu0 %v37
  %1303 = vmatprep.subr.mxu0 0.0
  %1304 = vmatpush1.msra.mxu0 %v38
  %1305 = vmatprep.subr.mxu0 0.0
  %1306 = vmatpush1.msra.mxu0 %v39
  %1307 = vmatprep.subr.mxu0 0.0
  %1308 = vmatpush1.msra.mxu0 %v40
  %1309 = vmatprep.subr.mxu0 0.0
  %1310 = vmatpush1.msra.mxu0 %v41
  %1311 = vmatprep.subr.mxu0 0.0
  %1312 = vmatpush1.msra.mxu0 %v42
  %1313 = vmatprep.subr.mxu0 0.0
  %1314 = vmatpush1.msra.mxu0 %v43
  %1315 = vmatprep.subr.mxu0 0.0
  %1316 = vmatpush1.msra.mxu0 %v44
  %1317 = vmatprep.subr.mxu0 0.0
  %1318 = vmatpush1.msra.mxu0 %v45
  %1319 = vmatprep.mubr.f32.mxu0 %v1165
  %1320 = vmatmul.mubr.f32.gmra.mrb[0].mxu0 %v1164
  %v1321 = vpop.f32.mrb[0].mxu0
  %v1322 = vadd.f32 0.0, %v1321
  %v1323 = vpop.f32.mrb[0].mxu0
  %1324 = vmatprep.mubr.f32.mxu0 %v1169
  %1325 = vmatmul.mubr.f32.gmra.mrb[0].mxu0 %v1168
  %v1326 = vpop.f32.mrb[0].mxu0
  %v1327 = vadd.f32 0.0, %v1326
  %v1328 = vpop.f32.mrb[0].mxu0
  %1329 = vmatprep.mubr.f32.mxu0 %v1173
  %1330 = vmatmul.mubr.f32.gmra.mrb[0].mxu0 %v1172
  %v1331 = vpop.f32.mrb[0].mxu0
  %v1332 = vadd.f32 0.0, %v1331
  %v1333 = vpop.f32.mrb[0].mxu0
  %1334 = vmatprep.mubr.f32.mxu0 %v1177
  %1335 = vmatmul.mubr.f32.gmra.mrb[0].mxu0 %v1176
  %v1336 = vpop.f32.mrb[0].mxu0
  %v1337 = vadd.f32 0.0, %v1336
  %v1338 = vpop.f32.mrb[0].mxu0
  %1339 = vmatprep.mubr.f32.mxu0 %v1181
  %1340 = vmatmul.mubr.f32.gmra.mrb[0].mxu0 %v1180
  %v1341 = vpop.f32.mrb[0].mxu0
  %v1342 = vadd.f32 0.0, %v1341
  %v1343 = vpop.f32.mrb[0].mxu0
  %1344 = vmatprep.mubr.f32.mxu0 %v1185
  %1345 = vmatmul.mubr.f32.gmra.mrb[0].mxu0 %v1184
  %v1346 = vpop.f32.mrb[0].mxu0
  %v1347 = vadd.f32 0.0, %v1346
  %v1348 = vpop.f32.mrb[0].mxu0
  %1349 = vmatprep.mubr.f32.mxu0 %v1189
  %1350 = vmatmul.mubr.f32.gmra.mrb[0].mxu0 %v1188
  %v1351 = vpop.f32.mrb[0].mxu0
  %v1352 = vadd.f32 0.0, %v1351
  %v1353 = vpop.f32.mrb[0].mxu0
  %1354 = vmatprep.mubr.f32.mxu0 %v1193
  %1355 = vmatmul.mubr.f32.gmra.mrb[0].mxu0 %v1192
  %v1356 = vpop.f32.mrb[0].mxu0
  %v1357 = vadd.f32 0.0, %v1356
  %v1358 = vpop.f32.mrb[0].mxu0
  %1359 = vmatprep.mubr.f32.mxu0 %v1197
  %1360 = vmatmul.mubr.f32.gmra.mrb[0].mxu0 %v1196
  %v1361 = vpop.f32.mrb[0].mxu0
  %v1362 = vadd.f32 0.0, %v1361
  %v1363 = vpop.f32.mrb[0].mxu0
  %1364 = vmatprep.mubr.f32.mxu0 %v1201
  %1365 = vmatmul.mubr.f32.gmra.mrb[0].mxu0 %v1200
  %v1366 = vpop.f32.mrb[0].mxu0
  %v1367 = vadd.f32 0.0, %v1366
  %v1368 = vpop.f32.mrb[0].mxu0
  %1369 = vmatprep.mubr.f32.mxu0 %v1205
  %1370 = vmatmul.mubr.f32.gmra.mrb[0].mxu0 %v1204
  %v1371 = vpop.f32.mrb[0].mxu0
  %v1372 = vadd.f32 0.0, %v1371
  %v1373 = vpop.f32.mrb[0].mxu0
  %1374 = vmatprep.mubr.f32.mxu0 %v1209
  %1375 = vmatmul.mubr.f32.gmra.mrb[0].mxu0 %v1208
  %v1376 = vpop.f32.mrb[0].mxu0
  %v1377 = vadd.f32 0.0, %v1376
  %v1378 = vpop.f32.mrb[0].mxu0
  %1379 = vmatprep.mubr.f32.mxu0 %v1213
  %1380 = vmatmul.mubr.f32.gmra.mrb[0].mxu0 %v1212
  %v1381 = vpop.f32.mrb[0].mxu0
  %v1382 = vadd.f32 0.0, %v1381
  %v1383 = vpop.f32.mrb[0].mxu0
  %1384 = vdwg.mxu0
  %1385 = vmatprep.subr.mxu0 0.0
  %1386 = vmatpush1.msra.mxu0 %v46
  %1387 = vmatprep.subr.mxu0 0.0
  %1388 = vmatpush1.msra.mxu0 %v47
  %1389 = vmatprep.subr.mxu0 0.0
  %1390 = vmatpush1.msra.mxu0 %v48
  %1391 = vmatprep.subr.mxu0 0.0
  %1392 = vmatpush1.msra.mxu0 %v49
  %1393 = vmatprep.subr.mxu0 0.0
  %1394 = vmatpush1.msra.mxu0 %v50
  %1395 = vmatprep.subr.mxu0 0.0
  %1396 = vmatpush1.msra.mxu0 %v51
  %1397 = vmatprep.subr.mxu0 0.0
  %1398 = vmatpush1.msra.mxu0 %v52
  %1399 = vmatprep.subr.mxu0 0.0
  %1400 = vmatpush1.msra.mxu0 %v53
  %1401 = vmatprep.subr.mxu0 0.0
  %1402 = vmatpush1.msra.mxu0 %v54
  %1403 = vmatprep.subr.mxu0 0.0
  %1404 = vmatpush1.msra.mxu0 %v55
  %1405 = vmatprep.subr.mxu0 0.0
  %1406 = vmatpush1.msra.mxu0 %v56
  %1407 = vmatprep.subr.mxu0 0.0
  %1408 = vmatpush1.msra.mxu0 %v57
  %1409 = vmatprep.subr.mxu0 0.0
  %1410 = vmatpush1.msra.mxu0 %v58
  %1411 = vmatprep.subr.mxu0 0.0
  %1412 = vmatpush1.msra.mxu0 %v59
  %1413 = vmatprep.subr.mxu0 0.0
  %1414 = vmatpush1.msra.mxu0 %v60
  %1415 = vmatprep.subr.mxu0 0.0
  %1416 = vmatpush1.msra.mxu0 %v61
  %1417 = vmatprep.subr.mxu0 0.0
  %1418 = vmatpush1.msra.mxu0 %v62
  %1419 = vmatprep.subr.mxu0 0.0
  %1420 = vmatpush1.msra.mxu0 %v63
  %1421 = vmatprep.subr.mxu0 0.0
  %1422 = vmatpush1.msra.mxu0 %v64
  %1423 = vmatprep.subr.mxu0 0.0
  %1424 = vmatpush1.msra.mxu0 %v65
  %1425 = vmatprep.subr.mxu0 0.0
  %1426 = vmatpush1.msra.mxu0 %v66
  %1427 = vmatprep.subr.mxu0 0.0
  %1428 = vmatpush1.msra.mxu0 %v67
  %1429 = vmatprep.subr.mxu0 0.0
  %1430 = vmatpush1.msra.mxu0 %v68
  %1431 = vmatprep.subr.mxu0 0.0
  %1432 = vmatpush1.msra.mxu0 %v69
  %1433 = vmatprep.subr.mxu0 0.0
  %1434 = vmatpush1.msra.mxu0 %v70
  %1435 = vmatprep.subr.mxu0 0.0
  %1436 = vmatpush1.msra.mxu0 %v71
  %1437 = vmatprep.subr.mxu0 0.0
  %1438 = vmatpush1.msra.mxu0 %v72
  %1439 = vmatprep.subr.mxu0 0.0
  %1440 = vmatpush1.msra.mxu0 %v73
  %1441 = vmatprep.subr.mxu0 0.0
  %1442 = vmatpush1.msra.mxu0 %v74
  %1443 = vmatprep.subr.mxu0 0.0
  %1444 = vmatpush1.msra.mxu0 %v75
  %1445 = vmatprep.subr.mxu0 0.0
  %1446 = vmatpush1.msra.mxu0 %v171
  %1447 = vmatprep.subr.mxu0 0.0
  %1448 = vmatpush1.msra.mxu0 0.0
  %1449 = vmatprep.mubr.f32.mxu0 %v1217
  %1450 = vmatmul.mubr.f32.gmra.mrb[0].mxu0 %v1166
  %v1451 = vpop.f32.mrb[0].mxu0
  %v1452 = vadd.f32 %v1322, %v1451
  %v1453 = vpop.f32.mrb[0].mxu0
  %1454 = vmatprep.mubr.f32.mxu0 %v1220
  %1455 = vmatmul.mubr.f32.gmra.mrb[0].mxu0 %v1170
  %v1456 = vpop.f32.mrb[0].mxu0
  %v1457 = vadd.f32 %v1327, %v1456
  %v1458 = vpop.f32.mrb[0].mxu0
  %1459 = vmatprep.mubr.f32.mxu0 %v1223
  %1460 = vmatmul.mubr.f32.gmra.mrb[0].mxu0 %v1174
  %v1461 = vpop.f32.mrb[0].mxu0
  %v1462 = vadd.f32 %v1332, %v1461
  %v1463 = vpop.f32.mrb[0].mxu0
  %1464 = vmatprep.mubr.f32.mxu0 %v1226
  %1465 = vmatmul.mubr.f32.gmra.mrb[0].mxu0 %v1178
  %v1466 = vpop.f32.mrb[0].mxu0
  %v1467 = vadd.f32 %v1337, %v1466
  %v1468 = vpop.f32.mrb[0].mxu0
  %1469 = vmatprep.mubr.f32.mxu0 %v1229
  %1470 = vmatmul.mubr.f32.gmra.mrb[0].mxu0 %v1182
  %v1471 = vpop.f32.mrb[0].mxu0
  %v1472 = vadd.f32 %v1342, %v1471
  %v1473 = vpop.f32.mrb[0].mxu0
  %1474 = vmatprep.mubr.f32.mxu0 %v1232
  %1475 = vmatmul.mubr.f32.gmra.mrb[0].mxu0 %v1186
  %v1476 = vpop.f32.mrb[0].mxu0
  %v1477 = vadd.f32 %v1347, %v1476
  %v1478 = vpop.f32.mrb[0].mxu0
  %1479 = vmatprep.mubr.f32.mxu0 %v1235
  %1480 = vmatmul.mubr.f32.gmra.mrb[0].mxu0 %v1190
  %v1481 = vpop.f32.mrb[0].mxu0
  %v1482 = vadd.f32 %v1352, %v1481
  %v1483 = vpop.f32.mrb[0].mxu0
  %1484 = vmatprep.mubr.f32.mxu0 %v1238
  %1485 = vmatmul.mubr.f32.gmra.mrb[0].mxu0 %v1194
  %v1486 = vpop.f32.mrb[0].mxu0
  %v1487 = vadd.f32 %v1357, %v1486
  %v1488 = vpop.f32.mrb[0].mxu0
  %1489 = vmatprep.mubr.f32.mxu0 %v1241
  %1490 = vmatmul.mubr.f32.gmra.mrb[0].mxu0 %v1198
  %v1491 = vpop.f32.mrb[0].mxu0
  %v1492 = vadd.f32 %v1362, %v1491
  %v1493 = vpop.f32.mrb[0].mxu0
  %1494 = vmatprep.mubr.f32.mxu0 %v1244
  %1495 = vmatmul.mubr.f32.gmra.mrb[0].mxu0 %v1202
  %v1496 = vpop.f32.mrb[0].mxu0
  %v1497 = vadd.f32 %v1367, %v1496
  %v1498 = vpop.f32.mrb[0].mxu0
  %1499 = vmatprep.mubr.f32.mxu0 %v1247
  %1500 = vmatmul.mubr.f32.gmra.mrb[0].mxu0 %v1206
  %v1501 = vpop.f32.mrb[0].mxu0
  %v1502 = vadd.f32 %v1372, %v1501
  %v1503 = vpop.f32.mrb[0].mxu0
  %1504 = vmatprep.mubr.f32.mxu0 %v1250
  %1505 = vmatmul.mubr.f32.gmra.mrb[0].mxu0 %v1210
  %v1506 = vpop.f32.mrb[0].mxu0
  %v1507 = vadd.f32 %v1377, %v1506
  %v1508 = vpop.f32.mrb[0].mxu0
  %1509 = vmatprep.mubr.f32.mxu0 %v1253
  %1510 = vmatmul.mubr.f32.gmra.mrb[0].mxu0 %v1214
  %v1511 = vpop.f32.mrb[0].mxu0
  %v1512 = vadd.f32 %v1382, %v1511
  %v1513 = vpop.f32.mrb[0].mxu0
  %1514 = vdwg.mxu0
  %v1515 = vmax.f32 %v1150, %v1452
  %v1516 = vmax.f32 %v1151, %v1457
  %v1517 = vmax.f32 %v1152, %v1462
  %v1518 = vmax.f32 %v1153, %v1467
  %v1519 = vmax.f32 %v1154, %v1472
  %v1520 = vmax.f32 %v1155, %v1477
  %v1521 = vmax.f32 %v1156, %v1482
  %v1522 = vmax.f32 %v1157, %v1487
  %v1523 = vmax.f32 %v1158, %v1492
  %v1524 = vmax.f32 %v1159, %v1497
  %v1525 = vmax.f32 %v1160, %v1502
  %v1526 = vmax.f32 %v1161, %v1507
  %v1527 = vmax.f32 %v1162, %v1512
  %v1528 = vld [vmem:[%s2] sm:$0x1]
  %v1530 = vlaneseq
  %v1531 = vshrl.u32 %v1530, 7
  %v1532 = vsub.s32 0, %v1531
  %v1533 = vrot.slane %v1528, %v1532
  %v1535 = vadd.f32 %v1515, %v1533
  %v1536 = vadd.f32 %v1516, %v1533
  %v1537 = vadd.f32 %v1517, %v1533
  %v1538 = vadd.f32 %v1518, %v1533
  %v1539 = vadd.f32 %v1519, %v1533
  %v1540 = vadd.f32 %v1520, %v1533
  %v1541 = vadd.f32 %v1521, %v1533
  %v1542 = vadd.f32 %v1522, %v1533
  %v1543 = vadd.f32 %v1523, %v1533
  %v1544 = vadd.f32 %v1524, %v1533
  %v1545 = vadd.f32 %v1525, %v1533
  %v1546 = vadd.f32 %v1526, %v1533
  %v1547 = vadd.f32 %v1527, %v1533
  %v1548 = vmax.f32 %v1535, 0.0
  %v1549 = vmax.f32 %v1536, 0.0
  %v1550 = vmax.f32 %v1537, 0.0
  %v1551 = vmax.f32 %v1538, 0.0
  %v1552 = vmax.f32 %v1539, 0.0
  %v1553 = vmax.f32 %v1540, 0.0
  %v1554 = vmax.f32 %v1541, 0.0
  %v1555 = vmax.f32 %v1542, 0.0
  %v1556 = vmax.f32 %v1543, 0.0
  %v1557 = vmax.f32 %v1544, 0.0
  %v1558 = vmax.f32 %v1545, 0.0
  %v1559 = vmax.f32 %v1546, 0.0
  %v1560 = vmax.f32 %v1547, 0.0
  %vm1561 = vcmask 408576
  %1562 = vst.msk [vmem:[%s3] sm:$0xff] %vm1561, %v1548
  %1563 = vst.msk [vmem:[%s3 + $0x8] sm:$0xff] %vm1561, %v1549
  %1564 = vst.msk [vmem:[%s3 + $0x10] sm:$0xff] %vm1561, %v1550
  %1565 = vst.msk [vmem:[%s3 + $0x18] sm:$0xff] %vm1561, %v1551
  %1566 = vst.msk [vmem:[%s3 + $0x20] sm:$0xff] %vm1561, %v1552
  %1567 = vst.msk [vmem:[%s3 + $0x28] sm:$0xff] %vm1561, %v1553
  %1568 = vst.msk [vmem:[%s3 + $0x30] sm:$0xff] %vm1561, %v1554
  %1569 = vst.msk [vmem:[%s3 + $0x38] sm:$0xff] %vm1561, %v1555
  %1570 = vst.msk [vmem:[%s3 + $0x40] sm:$0xff] %vm1561, %v1556
  %1571 = vst.msk [vmem:[%s3 + $0x48] sm:$0xff] %vm1561, %v1557
  %1572 = vst.msk [vmem:[%s3 + $0x50] sm:$0xff] %vm1561, %v1558
  %1573 = vst.msk [vmem:[%s3 + $0x58] sm:$0xff] %vm1561, %v1559
  %vm1574 = vcmask 404480
  %1575 = vst.msk [vmem:[%s3 + $0x60] sm:$0xf] %vm1574, %v1560
  // Predicated region
  $region14: #{bwn_net_forward.4} parent=0 // pred_check
    _
  $region15: #{bwn_net_forward.4} parent=0 // pred_check_branch
    %1577 = sbr.rel (0) target = $region17
  $region16: #{bwn_net_forward.4} parent=0 // pred_region
    _
  $region17: #{bwn_net_forward.4} parent=0 // pred_fallthru
    _
  // Predicated region
  $region18: #{bwn_net_forward.4} parent=0 // pred_check
    _
  $region19: #{bwn_net_forward.4} parent=0 // pred_check_branch
    %1579 = sbr.rel (0) target = $region21
  $region20: #{bwn_net_forward.4} parent=0 // pred_region
    _
  $region21: #{bwn_net_forward.4} parent=0 // pred_fallthru
    _

// kernel: bwn_net_forward.5
$region0: #{bwn_net_forward.5}
  #allocation0 [shape = 'u32[]', space=smem, size = 0x4, offset = 0x4, fixed_abs, tag = 'smem constant byte address 0x4 - core index']
  #allocation1 [shape = 'u32[144,128]{1,0:T(1,128)}', space=vmem, size = 0x12000, scoped, tag = 'internal scratch']
  %s0 = inlined_call_operand.vmem [shape: f32[4,1250], index: 0, kind: input, shape index: {}]
  %s1 = inlined_call_operand.vmem [shape: f32[1250,512], index: 1, kind: input, shape index: {}]
  %s2 = inlined_call_operand.vmem [shape: f32[1,512], index: 2, kind: input, shape index: {}]
  %s3 = inlined_call_operand.vmem [shape: f32[512,128], index: 3, kind: input, shape index: {}]
  %s4 = inlined_call_operand.vmem [shape: f32[1,128], index: 4, kind: input, shape index: {}]
  %s5 = inlined_call_operand.hbm [shape: f32[4,10], index: 5, kind: output, shape index: {}]
  %s6 = sld [smem:[#allocation0]]
  $region30: #{bwn_net_forward.5} parent=0
    _
  %s8 = ssub.s32 1, %s6
  %s9 = scalar_select 0, %s8, %s6
  $region1: #{bwn_net_forward.5} parent=0
    #allocation2 [shape = 'u8[2048]{0}', space=vmem, size = 0x800, scoped, tag = 'output window, operand 0, single buffered']
    #allocation3 [shape = 's32[1]{0}', space=sflag, size = 0x4, scoped, tag = 'scoped memory for bwn_net_forward.5']
    %10 = vsyncpa [#allocation3], 0
    // Predicated region
    $region2: #{bwn_net_forward.5} parent=1 // pred_check
      _
    $region3: #{bwn_net_forward.5} parent=1 // pred_check_branch
      %12 = sbr.rel (0) target = $region5
    $region4: #{bwn_net_forward.5} parent=1 // pred_region
      _
    $region5: #{bwn_net_forward.5} parent=1 // pred_fallthru
      _
    // Predicated region
    $region6: #{bwn_net_forward.5} parent=1 // pred_check
      _
    $region7: #{bwn_net_forward.5} parent=1 // pred_check_branch
      %14 = sbr.rel (0) target = $region9
    $region8: #{bwn_net_forward.5} parent=1 // pred_region
      _
    $region9: #{bwn_net_forward.5} parent=1 // pred_fallthru
      _
    // Predicated region
    $region10: #{bwn_net_forward.5} parent=1 // pred_check
      _
    $region11: #{bwn_net_forward.5} parent=1 // pred_check_branch
      %16 = sbr.rel (0) target = $region13
    $region12: #{bwn_net_forward.5} parent=1 // pred_region
      _
    $region13: #{bwn_net_forward.5} parent=1 // pred_fallthru
      _
    // Predicated region
    $region14: #{bwn_net_forward.5} parent=1 // pred_check
      _
    $region15: #{bwn_net_forward.5} parent=1 // pred_check_branch
      %18 = sbr.rel (0) target = $region17
    $region16: #{bwn_net_forward.5} parent=1 // pred_region
      _
    $region17: #{bwn_net_forward.5} parent=1 // pred_fallthru
      _
    // Predicated region
    $region18: #{bwn_net_forward.5} parent=1 // pred_check
      _
    $region19: #{bwn_net_forward.5} parent=1 // pred_check_branch
      %20 = sbr.rel (0) target = $region21
    $region20: #{bwn_net_forward.5} parent=1 // pred_region
      _
    $region21: #{bwn_net_forward.5} parent=1 // pred_fallthru
      _
    %v21 = vld [vmem:[%s0] sm:$0xff]
    %v22 = vld [vmem:[%s0 + $0x8] sm:$0xff]
    %v23 = vld [vmem:[%s0 + $0x10] sm:$0xff]
    %v24 = vld [vmem:[%s0 + $0x18] sm:$0xff]
    %v25 = vld [vmem:[%s0 + $0x20] sm:$0xff]
    %v26 = vld [vmem:[%s1] sm:$0xff]
    %v27 = vld [vmem:[%s1 + $0x8] sm:$0xff]
    %v28 = vld [vmem:[%s1 + $0x10] sm:$0xff]
    %v29 = vld [vmem:[%s1 + $0x18] sm:$0xff]
    %v30 = vld [vmem:[%s1 + $0x20] sm:$0xff]
    %v31 = vld [vmem:[%s1 + $0x28] sm:$0xff]
    %v32 = vld [vmem:[%s1 + $0x30] sm:$0xff]
    %v33 = vld [vmem:[%s1 + $0x38] sm:$0xff]
    %v34 = vld [vmem:[%s1 + $0x40] sm:$0xff]
    %v35 = vld [vmem:[%s1 + $0x48] sm:$0xff]
    %v36 = vld [vmem:[%s1 + $0x50] sm:$0xff]
    %v37 = vld [vmem:[%s1 + $0x58] sm:$0xff]
    %v38 = vld [vmem:[%s1 + $0x60] sm:$0xff]
    %v39 = vld [vmem:[%s1 + $0x68] sm:$0xff]
    %v40 = vld [vmem:[%s1 + $0x70] sm:$0xff]
    %v41 = vld [vmem:[%s1 + $0x78] sm:$0xff]
    %v42 = vld [vmem:[%s1 + $0x80] sm:$0xff]
    %v43 = vld [vmem:[%s1 + $0x88] sm:$0xff]
    %v44 = vld [vmem:[%s1 + $0x90] sm:$0xff]
    %v45 = vld [vmem:[%s1 + $0x98] sm:$0xff]
    %v46 = vld [vmem:[%s1 + $0xa0] sm:$0xff]
    %v47 = vld [vmem:[%s1 + $0xa8] sm:$0xff]
    %v48 = vld [vmem:[%s1 + $0xb0] sm:$0xff]
    %v49 = vld [vmem:[%s1 + $0xb8] sm:$0xff]
    %v50 = vld [vmem:[%s1 + $0xc0] sm:$0xff]
    %v51 = vld [vmem:[%s1 + $0xc8] sm:$0xff]
    %v52 = vld [vmem:[%s1 + $0xd0] sm:$0xff]
    %v53 = vld [vmem:[%s1 + $0xd8] sm:$0xff]
    %v54 = vld [vmem:[%s1 + $0xe0] sm:$0xff]
    %v55 = vld [vmem:[%s1 + $0xe8] sm:$0xff]
    %v56 = vld [vmem:[%s1 + $0xf0] sm:$0xff]
    %v57 = vld [vmem:[%s1 + $0xf8] sm:$0xff]
    %v58 = vld [vmem:[%s1 + $0x100] sm:$0xff]
    %v59 = vld [vmem:[%s1 + $0x108] sm:$0xff]
    %v60 = vld [vmem:[%s1 + $0x110] sm:$0xff]
    %v61 = vld [vmem:[%s1 + $0x118] sm:$0xff]
    %v62 = vld [vmem:[%s1 + $0x120] sm:$0xff]
    %v63 = vld [vmem:[%s1 + $0x128] sm:$0xff]
    %v64 = vld [vmem:[%s1 + $0x130] sm:$0xff]
    %v65 = vld [vmem:[%s1 + $0x138] sm:$0xff]
    %v66 = vld [vmem:[%s1 + $0x140] sm:$0xff]
    %v67 = vld [vmem:[%s1 + $0x148] sm:$0xff]
    %v68 = vld [vmem:[%s1 + $0x150] sm:$0xff]
    %v69 = vld [vmem:[%s1 + $0x158] sm:$0xff]
    %v70 = vld [vmem:[%s1 + $0x160] sm:$0xff]
    %v71 = vld [vmem:[%s1 + $0x168] sm:$0xff]
    %v72 = vld [vmem:[%s1 + $0x170] sm:$0xff]
    %v73 = vld [vmem:[%s1 + $0x178] sm:$0xff]
    %v74 = vld [vmem:[%s1 + $0x180] sm:$0xff]
    %v75 = vld [vmem:[%s1 + $0x188] sm:$0xff]
    %v76 = vld [vmem:[%s1 + $0x190] sm:$0xff]
    %v77 = vld [vmem:[%s1 + $0x198] sm:$0xff]
    %v78 = vld [vmem:[%s1 + $0x1a0] sm:$0xff]
    %v79 = vld [vmem:[%s1 + $0x1a8] sm:$0xff]
    %v80 = vld [vmem:[%s1 + $0x1b0] sm:$0xff]
    %v81 = vld [vmem:[%s1 + $0x1b8] sm:$0xff]
    %v82 = vld [vmem:[%s1 + $0x1c0] sm:$0xff]
    %v83 = vld [vmem:[%s1 + $0x1c8] sm:$0xff]
    %v84 = vld [vmem:[%s1 + $0x1d0] sm:$0xff]
    %v85 = vld [vmem:[%s1 + $0x1d8] sm:$0xff]
    %v86 = vld [vmem:[%s1 + $0x1e0] sm:$0xff]
    %v87 = vld [vmem:[%s1 + $0x1e8] sm:$0xff]
    %v88 = vld [vmem:[%s1 + $0x1f0] sm:$0xff]
    %v89 = vld [vmem:[%s1 + $0x1f8] sm:$0xff]
    %v90 = vld [vmem:[%s1 + $0x200] sm:$0xff]
    %v91 = vld [vmem:[%s1 + $0x208] sm:$0xff]
    %v92 = vld [vmem:[%s1 + $0x210] sm:$0xff]
    %v93 = vld [vmem:[%s1 + $0x218] sm:$0xff]
    %v94 = vld [vmem:[%s1 + $0x220] sm:$0xff]
    %v95 = vld [vmem:[%s1 + $0x228] sm:$0xff]
    %v96 = vld [vmem:[%s1 + $0x230] sm:$0xff]
    %v97 = vld [vmem:[%s1 + $0x238] sm:$0xff]
    %v98 = vld [vmem:[%s1 + $0x240] sm:$0xff]
    %v99 = vld [vmem:[%s1 + $0x248] sm:$0xff]
    %v100 = vld [vmem:[%s1 + $0x250] sm:$0xff]
    %v101 = vld [vmem:[%s1 + $0x258] sm:$0xff]
    %v102 = vld [vmem:[%s1 + $0x260] sm:$0xff]
    %v103 = vld [vmem:[%s1 + $0x268] sm:$0xff]
    %v104 = vld [vmem:[%s1 + $0x270] sm:$0xff]
    %v105 = vld [vmem:[%s1 + $0x278] sm:$0xff]
    %v106 = vld [vmem:[%s1 + $0x280] sm:$0xff]
    %v107 = vld [vmem:[%s1 + $0x288] sm:$0xff]
    %v108 = vld [vmem:[%s1 + $0x290] sm:$0xff]
    %v109 = vld [vmem:[%s1 + $0x298] sm:$0xff]
    %v110 = vld [vmem:[%s1 + $0x2a0] sm:$0xff]
    %v111 = vld [vmem:[%s1 + $0x2a8] sm:$0xff]
    %v112 = vld [vmem:[%s1 + $0x2b0] sm:$0xff]
    %v113 = vld [vmem:[%s1 + $0x2b8] sm:$0xff]
    %v114 = vld [vmem:[%s1 + $0x2c0] sm:$0xff]
    %v115 = vld [vmem:[%s1 + $0x2c8] sm:$0xff]
    %v116 = vld [vmem:[%s1 + $0x2d0] sm:$0xff]
    %v117 = vld [vmem:[%s1 + $0x2d8] sm:$0xff]
    %v118 = vld [vmem:[%s1 + $0x2e0] sm:$0xff]
    %v119 = vld [vmem:[%s1 + $0x2e8] sm:$0xff]
    %v120 = vld [vmem:[%s1 + $0x2f0] sm:$0xff]
    %v121 = vld [vmem:[%s1 + $0x2f8] sm:$0xff]
    %v122 = vld [vmem:[%s1 + $0x300] sm:$0xff]
    %v123 = vld [vmem:[%s1 + $0x308] sm:$0xff]
    %v124 = vld [vmem:[%s1 + $0x310] sm:$0xff]
    %v125 = vld [vmem:[%s1 + $0x318] sm:$0xff]
    %v126 = vld [vmem:[%s1 + $0x320] sm:$0xff]
    %v127 = vld [vmem:[%s1 + $0x328] sm:$0xff]
    %v128 = vld [vmem:[%s1 + $0x330] sm:$0xff]
    %v129 = vld [vmem:[%s1 + $0x338] sm:$0xff]
    %v130 = vld [vmem:[%s1 + $0x340] sm:$0xff]
    %v131 = vld [vmem:[%s1 + $0x348] sm:$0xff]
    %v132 = vld [vmem:[%s1 + $0x350] sm:$0xff]
    %v133 = vld [vmem:[%s1 + $0x358] sm:$0xff]
    %v134 = vld [vmem:[%s1 + $0x360] sm:$0xff]
    %v135 = vld [vmem:[%s1 + $0x368] sm:$0xff]
    %v136 = vld [vmem:[%s1 + $0x370] sm:$0xff]
    %v137 = vld [vmem:[%s1 + $0x378] sm:$0xff]
    %v138 = vld [vmem:[%s1 + $0x380] sm:$0xff]
    %v139 = vld [vmem:[%s1 + $0x388] sm:$0xff]
    %v140 = vld [vmem:[%s1 + $0x390] sm:$0xff]
    %v141 = vld [vmem:[%s1 + $0x398] sm:$0xff]
    %v142 = vld [vmem:[%s1 + $0x3a0] sm:$0xff]
    %v143 = vld [vmem:[%s1 + $0x3a8] sm:$0xff]
    %v144 = vld [vmem:[%s1 + $0x3b0] sm:$0xff]
    %v145 = vld [vmem:[%s1 + $0x3b8] sm:$0xff]
    %v146 = vld [vmem:[%s1 + $0x3c0] sm:$0xff]
    %v147 = vld [vmem:[%s1 + $0x3c8] sm:$0xff]
    %v148 = vld [vmem:[%s1 + $0x3d0] sm:$0xff]
    %v149 = vld [vmem:[%s1 + $0x3d8] sm:$0xff]
    %v150 = vld [vmem:[%s1 + $0x3e0] sm:$0xff]
    %v151 = vld [vmem:[%s1 + $0x3e8] sm:$0xff]
    %v152 = vld [vmem:[%s1 + $0x3f0] sm:$0xff]
    %v153 = vld [vmem:[%s1 + $0x3f8] sm:$0xff]
    %v154 = vld [vmem:[%s1 + $0x400] sm:$0xff]
    %v155 = vld [vmem:[%s1 + $0x408] sm:$0xff]
    %v156 = vld [vmem:[%s1 + $0x410] sm:$0xff]
    %v157 = vld [vmem:[%s1 + $0x418] sm:$0xff]
    %v158 = vld [vmem:[%s1 + $0x420] sm:$0xff]
    %v159 = vld [vmem:[%s1 + $0x428] sm:$0xff]
    %v160 = vld [vmem:[%s1 + $0x430] sm:$0xff]
    %v161 = vld [vmem:[%s1 + $0x438] sm:$0xff]
    %v162 = vld [vmem:[%s1 + $0x440] sm:$0xff]
    %v163 = vld [vmem:[%s1 + $0x448] sm:$0xff]
    %v164 = vld [vmem:[%s1 + $0x450] sm:$0xff]
    %v165 = vld [vmem:[%s1 + $0x458] sm:$0xff]
    %v166 = vld [vmem:[%s1 + $0x460] sm:$0xff]
    %v167 = vld [vmem:[%s1 + $0x468] sm:$0xff]
    %v168 = vld [vmem:[%s1 + $0x470] sm:$0xff]
    %v169 = vld [vmem:[%s1 + $0x478] sm:$0xff]
    %v170 = vld [vmem:[%s1 + $0x480] sm:$0xff]
    %v171 = vld [vmem:[%s1 + $0x488] sm:$0xff]
    %v172 = vld [vmem:[%s1 + $0x490] sm:$0xff]
    %v173 = vld [vmem:[%s1 + $0x498] sm:$0xff]
    %v174 = vld [vmem:[%s1 + $0x4a0] sm:$0xff]
    %v175 = vld [vmem:[%s1 + $0x4a8] sm:$0xff]
    %v176 = vld [vmem:[%s1 + $0x4b0] sm:$0xff]
    %v177 = vld [vmem:[%s1 + $0x4b8] sm:$0xff]
    %v178 = vld [vmem:[%s1 + $0x4c0] sm:$0xff]
    %v179 = vld [vmem:[%s1 + $0x4c8] sm:$0xff]
    %v180 = vld [vmem:[%s1 + $0x4d0] sm:$0xff]
    %v181 = vld [vmem:[%s1 + $0x4d8] sm:$0xff]
    %v182 = vld [vmem:[%s1 + $0x4e0] sm:$0xff]
    %v183 = vld [vmem:[%s1 + $0x4e8] sm:$0xff]
    %v184 = vld [vmem:[%s1 + $0x4f0] sm:$0xff]
    %v185 = vld [vmem:[%s1 + $0x4f8] sm:$0xff]
    %v186 = vld [vmem:[%s1 + $0x500] sm:$0xff]
    %v187 = vld [vmem:[%s1 + $0x508] sm:$0xff]
    %v188 = vld [vmem:[%s1 + $0x510] sm:$0xff]
    %v189 = vld [vmem:[%s1 + $0x518] sm:$0xff]
    %v190 = vld [vmem:[%s1 + $0x520] sm:$0xff]
    %v191 = vld [vmem:[%s1 + $0x528] sm:$0xff]
    %v192 = vld [vmem:[%s1 + $0x530] sm:$0xff]
    %v193 = vld [vmem:[%s1 + $0x538] sm:$0xff]
    %v194 = vld [vmem:[%s1 + $0x540] sm:$0xff]
    %v195 = vld [vmem:[%s1 + $0x548] sm:$0xff]
    %v196 = vld [vmem:[%s1 + $0x550] sm:$0xff]
    %v197 = vld [vmem:[%s1 + $0x558] sm:$0xff]
    %v198 = vld [vmem:[%s1 + $0x560] sm:$0xff]
    %v199 = vld [vmem:[%s1 + $0x568] sm:$0xff]
    %v200 = vld [vmem:[%s1 + $0x570] sm:$0xff]
    %v201 = vld [vmem:[%s1 + $0x578] sm:$0xff]
    %v202 = vld [vmem:[%s1 + $0x580] sm:$0xff]
    %v203 = vld [vmem:[%s1 + $0x588] sm:$0xff]
    %v204 = vld [vmem:[%s1 + $0x590] sm:$0xff]
    %v205 = vld [vmem:[%s1 + $0x598] sm:$0xff]
    %v206 = vld [vmem:[%s1 + $0x5a0] sm:$0xff]
    %v207 = vld [vmem:[%s1 + $0x5a8] sm:$0xff]
    %v208 = vld [vmem:[%s1 + $0x5b0] sm:$0xff]
    %v209 = vld [vmem:[%s1 + $0x5b8] sm:$0xff]
    %v210 = vld [vmem:[%s1 + $0x5c0] sm:$0xff]
    %v211 = vld [vmem:[%s1 + $0x5c8] sm:$0xff]
    %v212 = vld [vmem:[%s1 + $0x5d0] sm:$0xff]
    %v213 = vld [vmem:[%s1 + $0x5d8] sm:$0xff]
    %v214 = vld [vmem:[%s1 + $0x5e0] sm:$0xff]
    %v215 = vld [vmem:[%s1 + $0x5e8] sm:$0xff]
    %v216 = vld [vmem:[%s1 + $0x5f0] sm:$0xff]
    %v217 = vld [vmem:[%s1 + $0x5f8] sm:$0xff]
    %v218 = vld [vmem:[%s1 + $0x600] sm:$0xff]
    %v219 = vld [vmem:[%s1 + $0x608] sm:$0xff]
    %v220 = vld [vmem:[%s1 + $0x610] sm:$0xff]
    %v221 = vld [vmem:[%s1 + $0x618] sm:$0xff]
    %v222 = vld [vmem:[%s1 + $0x620] sm:$0xff]
    %v223 = vld [vmem:[%s1 + $0x628] sm:$0xff]
    %v224 = vld [vmem:[%s1 + $0x630] sm:$0xff]
    %v225 = vld [vmem:[%s1 + $0x638] sm:$0xff]
    %v226 = vld [vmem:[%s1 + $0x640] sm:$0xff]
    %v227 = vld [vmem:[%s1 + $0x648] sm:$0xff]
    %v228 = vld [vmem:[%s1 + $0x650] sm:$0xff]
    %v229 = vld [vmem:[%s1 + $0x658] sm:$0xff]
    %v230 = vld [vmem:[%s1 + $0x660] sm:$0xff]
    %v231 = vld [vmem:[%s1 + $0x668] sm:$0xff]
    %v232 = vld [vmem:[%s1 + $0x670] sm:$0xff]
    %v233 = vld [vmem:[%s1 + $0x678] sm:$0xff]
    %v234 = vld [vmem:[%s1 + $0x680] sm:$0xff]
    %v235 = vld [vmem:[%s1 + $0x688] sm:$0xff]
    %v236 = vld [vmem:[%s1 + $0x690] sm:$0xff]
    %v237 = vld [vmem:[%s1 + $0x698] sm:$0xff]
    %v238 = vld [vmem:[%s1 + $0x6a0] sm:$0xff]
    %v239 = vld [vmem:[%s1 + $0x6a8] sm:$0xff]
    %v240 = vld [vmem:[%s1 + $0x6b0] sm:$0xff]
    %v241 = vld [vmem:[%s1 + $0x6b8] sm:$0xff]
    %v242 = vld [vmem:[%s1 + $0x6c0] sm:$0xff]
    %v243 = vld [vmem:[%s1 + $0x6c8] sm:$0xff]
    %v244 = vld [vmem:[%s1 + $0x6d0] sm:$0xff]
    %v245 = vld [vmem:[%s1 + $0x6d8] sm:$0xff]
    %v246 = vld [vmem:[%s1 + $0x6e0] sm:$0xff]
    %v247 = vld [vmem:[%s1 + $0x6e8] sm:$0xff]
    %v248 = vld [vmem:[%s1 + $0x6f0] sm:$0xff]
    %v249 = vld [vmem:[%s1 + $0x6f8] sm:$0xff]
    %v250 = vld [vmem:[%s1 + $0x700] sm:$0xff]
    %v251 = vld [vmem:[%s1 + $0x708] sm:$0xff]
    %v252 = vld [vmem:[%s1 + $0x710] sm:$0xff]
    %v253 = vld [vmem:[%s1 + $0x718] sm:$0xff]
    %v254 = vld [vmem:[%s1 + $0x720] sm:$0xff]
    %v255 = vld [vmem:[%s1 + $0x728] sm:$0xff]
    %v256 = vld [vmem:[%s1 + $0x730] sm:$0xff]
    %v257 = vld [vmem:[%s1 + $0x738] sm:$0xff]
    %v258 = vld [vmem:[%s1 + $0x740] sm:$0xff]
    %v259 = vld [vmem:[%s1 + $0x748] sm:$0xff]
    %v260 = vld [vmem:[%s1 + $0x750] sm:$0xff]
    %v261 = vld [vmem:[%s1 + $0x758] sm:$0xff]
    %v262 = vld [vmem:[%s1 + $0x760] sm:$0xff]
    %v263 = vld [vmem:[%s1 + $0x768] sm:$0xff]
    %v264 = vld [vmem:[%s1 + $0x770] sm:$0xff]
    %v265 = vld [vmem:[%s1 + $0x778] sm:$0xff]
    %v266 = vld [vmem:[%s1 + $0x780] sm:$0xff]
    %v267 = vld [vmem:[%s1 + $0x788] sm:$0xff]
    %v268 = vld [vmem:[%s1 + $0x790] sm:$0xff]
    %v269 = vld [vmem:[%s1 + $0x798] sm:$0xff]
    %v270 = vld [vmem:[%s1 + $0x7a0] sm:$0xff]
    %v271 = vld [vmem:[%s1 + $0x7a8] sm:$0xff]
    %v272 = vld [vmem:[%s1 + $0x7b0] sm:$0xff]
    %v273 = vld [vmem:[%s1 + $0x7b8] sm:$0xff]
    %v274 = vld [vmem:[%s1 + $0x7c0] sm:$0xff]
    %v275 = vld [vmem:[%s1 + $0x7c8] sm:$0xff]
    %v276 = vld [vmem:[%s1 + $0x7d0] sm:$0xff]
    %v277 = vld [vmem:[%s1 + $0x7d8] sm:$0xff]
    %v278 = vld [vmem:[%s1 + $0x7e0] sm:$0xff]
    %v279 = vld [vmem:[%s1 + $0x7e8] sm:$0xff]
    %v280 = vld [vmem:[%s1 + $0x7f0] sm:$0xff]
    %v281 = vld [vmem:[%s1 + $0x7f8] sm:$0xff]
    %v282 = vld [vmem:[%s1 + $0x800] sm:$0xff]
    %v283 = vld [vmem:[%s1 + $0x808] sm:$0xff]
    %v284 = vld [vmem:[%s1 + $0x810] sm:$0xff]
    %v285 = vld [vmem:[%s1 + $0x818] sm:$0xff]
    %v286 = vld [vmem:[%s1 + $0x820] sm:$0xff]
    %v287 = vld [vmem:[%s1 + $0x828] sm:$0xff]
    %v288 = vld [vmem:[%s1 + $0x830] sm:$0xff]
    %v289 = vld [vmem:[%s1 + $0x838] sm:$0xff]
    %v290 = vld [vmem:[%s1 + $0x840] sm:$0xff]
    %v291 = vld [vmem:[%s1 + $0x848] sm:$0xff]
    %v292 = vld [vmem:[%s1 + $0x850] sm:$0xff]
    %v293 = vld [vmem:[%s1 + $0x858] sm:$0xff]
    %v294 = vld [vmem:[%s1 + $0x860] sm:$0xff]
    %v295 = vld [vmem:[%s1 + $0x868] sm:$0xff]
    %v296 = vld [vmem:[%s1 + $0x870] sm:$0xff]
    %v297 = vld [vmem:[%s1 + $0x878] sm:$0xff]
    %v298 = vld [vmem:[%s1 + $0x880] sm:$0xff]
    %v299 = vld [vmem:[%s1 + $0x888] sm:$0xff]
    %v300 = vld [vmem:[%s1 + $0x890] sm:$0xff]
    %v301 = vld [vmem:[%s1 + $0x898] sm:$0xff]
    %v302 = vld [vmem:[%s1 + $0x8a0] sm:$0xff]
    %v303 = vld [vmem:[%s1 + $0x8a8] sm:$0xff]
    %v304 = vld [vmem:[%s1 + $0x8b0] sm:$0xff]
    %v305 = vld [vmem:[%s1 + $0x8b8] sm:$0xff]
    %v306 = vld [vmem:[%s1 + $0x8c0] sm:$0xff]
    %v307 = vld [vmem:[%s1 + $0x8c8] sm:$0xff]
    %v308 = vld [vmem:[%s1 + $0x8d0] sm:$0xff]
    %v309 = vld [vmem:[%s1 + $0x8d8] sm:$0xff]
    %v310 = vld [vmem:[%s1 + $0x8e0] sm:$0xff]
    %v311 = vld [vmem:[%s1 + $0x8e8] sm:$0xff]
    %v312 = vld [vmem:[%s1 + $0x8f0] sm:$0xff]
    %v313 = vld [vmem:[%s1 + $0x8f8] sm:$0xff]
    %v314 = vld [vmem:[%s1 + $0x900] sm:$0xff]
    %v315 = vld [vmem:[%s1 + $0x908] sm:$0xff]
    %v316 = vld [vmem:[%s1 + $0x910] sm:$0xff]
    %v317 = vld [vmem:[%s1 + $0x918] sm:$0xff]
    %v318 = vld [vmem:[%s1 + $0x920] sm:$0xff]
    %v319 = vld [vmem:[%s1 + $0x928] sm:$0xff]
    %v320 = vld [vmem:[%s1 + $0x930] sm:$0xff]
    %v321 = vld [vmem:[%s1 + $0x938] sm:$0xff]
    %v322 = vld [vmem:[%s1 + $0x940] sm:$0xff]
    %v323 = vld [vmem:[%s1 + $0x948] sm:$0xff]
    %v324 = vld [vmem:[%s1 + $0x950] sm:$0xff]
    %v325 = vld [vmem:[%s1 + $0x958] sm:$0xff]
    %v326 = vld [vmem:[%s1 + $0x960] sm:$0xff]
    %v327 = vld [vmem:[%s1 + $0x968] sm:$0xff]
    %v328 = vld [vmem:[%s1 + $0x970] sm:$0xff]
    %v329 = vld [vmem:[%s1 + $0x978] sm:$0xff]
    %v330 = vld [vmem:[%s1 + $0x980] sm:$0xff]
    %v331 = vld [vmem:[%s1 + $0x988] sm:$0xff]
    %v332 = vld [vmem:[%s1 + $0x990] sm:$0xff]
    %v333 = vld [vmem:[%s1 + $0x998] sm:$0xff]
    %v334 = vld [vmem:[%s1 + $0x9a0] sm:$0xff]
    %v335 = vld [vmem:[%s1 + $0x9a8] sm:$0xff]
    %v336 = vld [vmem:[%s1 + $0x9b0] sm:$0xff]
    %v337 = vld [vmem:[%s1 + $0x9b8] sm:$0xff]
    %v338 = vld [vmem:[%s1 + $0x9c0] sm:$0xff]
    %v339 = vld [vmem:[%s1 + $0x9c8] sm:$0xff]
    %v340 = vld [vmem:[%s1 + $0x9d0] sm:$0xff]
    %v341 = vld [vmem:[%s1 + $0x9d8] sm:$0xff]
    %v342 = vld [vmem:[%s1 + $0x9e0] sm:$0xff]
    %v343 = vld [vmem:[%s1 + $0x9e8] sm:$0xff]
    %v344 = vld [vmem:[%s1 + $0x9f0] sm:$0xff]
    %v345 = vld [vmem:[%s1 + $0x9f8] sm:$0xff]
    %v346 = vld [vmem:[%s1 + $0xa00] sm:$0xff]
    %v347 = vld [vmem:[%s1 + $0xa08] sm:$0xff]
    %v348 = vld [vmem:[%s1 + $0xa10] sm:$0xff]
    %v349 = vld [vmem:[%s1 + $0xa18] sm:$0xff]
    %v350 = vld [vmem:[%s1 + $0xa20] sm:$0xff]
    %v351 = vld [vmem:[%s1 + $0xa28] sm:$0xff]
    %v352 = vld [vmem:[%s1 + $0xa30] sm:$0xff]
    %v353 = vld [vmem:[%s1 + $0xa38] sm:$0xff]
    %v354 = vld [vmem:[%s1 + $0xa40] sm:$0xff]
    %v355 = vld [vmem:[%s1 + $0xa48] sm:$0xff]
    %v356 = vld [vmem:[%s1 + $0xa50] sm:$0xff]
    %v357 = vld [vmem:[%s1 + $0xa58] sm:$0xff]
    %v358 = vld [vmem:[%s1 + $0xa60] sm:$0xff]
    %v359 = vld [vmem:[%s1 + $0xa68] sm:$0xff]
    %v360 = vld [vmem:[%s1 + $0xa70] sm:$0xff]
    %v361 = vld [vmem:[%s1 + $0xa78] sm:$0xff]
    %v362 = vld [vmem:[%s1 + $0xa80] sm:$0xff]
    %v363 = vld [vmem:[%s1 + $0xa88] sm:$0xff]
    %v364 = vld [vmem:[%s1 + $0xa90] sm:$0xff]
    %v365 = vld [vmem:[%s1 + $0xa98] sm:$0xff]
    %v366 = vld [vmem:[%s1 + $0xaa0] sm:$0xff]
    %v367 = vld [vmem:[%s1 + $0xaa8] sm:$0xff]
    %v368 = vld [vmem:[%s1 + $0xab0] sm:$0xff]
    %v369 = vld [vmem:[%s1 + $0xab8] sm:$0xff]
    %v370 = vld [vmem:[%s1 + $0xac0] sm:$0xff]
    %v371 = vld [vmem:[%s1 + $0xac8] sm:$0xff]
    %v372 = vld [vmem:[%s1 + $0xad0] sm:$0xff]
    %v373 = vld [vmem:[%s1 + $0xad8] sm:$0xff]
    %v374 = vld [vmem:[%s1 + $0xae0] sm:$0xff]
    %v375 = vld [vmem:[%s1 + $0xae8] sm:$0xff]
    %v376 = vld [vmem:[%s1 + $0xaf0] sm:$0xff]
    %v377 = vld [vmem:[%s1 + $0xaf8] sm:$0xff]
    %v378 = vld [vmem:[%s1 + $0xb00] sm:$0xff]
    %v379 = vld [vmem:[%s1 + $0xb08] sm:$0xff]
    %v380 = vld [vmem:[%s1 + $0xb10] sm:$0xff]
    %v381 = vld [vmem:[%s1 + $0xb18] sm:$0xff]
    %v382 = vld [vmem:[%s1 + $0xb20] sm:$0xff]
    %v383 = vld [vmem:[%s1 + $0xb28] sm:$0xff]
    %v384 = vld [vmem:[%s1 + $0xb30] sm:$0xff]
    %v385 = vld [vmem:[%s1 + $0xb38] sm:$0xff]
    %v386 = vld [vmem:[%s1 + $0xb40] sm:$0xff]
    %v387 = vld [vmem:[%s1 + $0xb48] sm:$0xff]
    %v388 = vld [vmem:[%s1 + $0xb50] sm:$0xff]
    %v389 = vld [vmem:[%s1 + $0xb58] sm:$0xff]
    %v390 = vld [vmem:[%s1 + $0xb60] sm:$0xff]
    %v391 = vld [vmem:[%s1 + $0xb68] sm:$0xff]
    %v392 = vld [vmem:[%s1 + $0xb70] sm:$0xff]
    %v393 = vld [vmem:[%s1 + $0xb78] sm:$0xff]
    %v394 = vld [vmem:[%s1 + $0xb80] sm:$0xff]
    %v395 = vld [vmem:[%s1 + $0xb88] sm:$0xff]
    %v396 = vld [vmem:[%s1 + $0xb90] sm:$0xff]
    %v397 = vld [vmem:[%s1 + $0xb98] sm:$0xff]
    %v398 = vld [vmem:[%s1 + $0xba0] sm:$0xff]
    %v399 = vld [vmem:[%s1 + $0xba8] sm:$0xff]
    %v400 = vld [vmem:[%s1 + $0xbb0] sm:$0xff]
    %v401 = vld [vmem:[%s1 + $0xbb8] sm:$0xff]
    %v402 = vld [vmem:[%s1 + $0xbc0] sm:$0xff]
    %v403 = vld [vmem:[%s1 + $0xbc8] sm:$0xff]
    %v404 = vld [vmem:[%s1 + $0xbd0] sm:$0xff]
    %v405 = vld [vmem:[%s1 + $0xbd8] sm:$0xff]
    %v406 = vld [vmem:[%s1 + $0xbe0] sm:$0xff]
    %v407 = vld [vmem:[%s1 + $0xbe8] sm:$0xff]
    %v408 = vld [vmem:[%s1 + $0xbf0] sm:$0xff]
    %v409 = vld [vmem:[%s1 + $0xbf8] sm:$0xff]
    %v410 = vld [vmem:[%s1 + $0xc00] sm:$0xff]
    %v411 = vld [vmem:[%s1 + $0xc08] sm:$0xff]
    %v412 = vld [vmem:[%s1 + $0xc10] sm:$0xff]
    %v413 = vld [vmem:[%s1 + $0xc18] sm:$0xff]
    %v414 = vld [vmem:[%s1 + $0xc20] sm:$0xff]
    %v415 = vld [vmem:[%s1 + $0xc28] sm:$0xff]
    %v416 = vld [vmem:[%s1 + $0xc30] sm:$0xff]
    %v417 = vld [vmem:[%s1 + $0xc38] sm:$0xff]
    %v418 = vld [vmem:[%s1 + $0xc40] sm:$0xff]
    %v419 = vld [vmem:[%s1 + $0xc48] sm:$0xff]
    %v420 = vld [vmem:[%s1 + $0xc50] sm:$0xff]
    %v421 = vld [vmem:[%s1 + $0xc58] sm:$0xff]
    %v422 = vld [vmem:[%s1 + $0xc60] sm:$0xff]
    %v423 = vld [vmem:[%s1 + $0xc68] sm:$0xff]
    %v424 = vld [vmem:[%s1 + $0xc70] sm:$0xff]
    %v425 = vld [vmem:[%s1 + $0xc78] sm:$0xff]
    %v426 = vld [vmem:[%s1 + $0xc80] sm:$0xff]
    %v427 = vld [vmem:[%s1 + $0xc88] sm:$0xff]
    %v428 = vld [vmem:[%s1 + $0xc90] sm:$0xff]
    %v429 = vld [vmem:[%s1 + $0xc98] sm:$0xff]
    %v430 = vld [vmem:[%s1 + $0xca0] sm:$0xff]
    %v431 = vld [vmem:[%s1 + $0xca8] sm:$0xff]
    %v432 = vld [vmem:[%s1 + $0xcb0] sm:$0xff]
    %v433 = vld [vmem:[%s1 + $0xcb8] sm:$0xff]
    %v434 = vld [vmem:[%s1 + $0xcc0] sm:$0xff]
    %v435 = vld [vmem:[%s1 + $0xcc8] sm:$0xff]
    %v436 = vld [vmem:[%s1 + $0xcd0] sm:$0xff]
    %v437 = vld [vmem:[%s1 + $0xcd8] sm:$0xff]
    %v438 = vld [vmem:[%s1 + $0xce0] sm:$0xff]
    %v439 = vld [vmem:[%s1 + $0xce8] sm:$0xff]
    %v440 = vld [vmem:[%s1 + $0xcf0] sm:$0xff]
    %v441 = vld [vmem:[%s1 + $0xcf8] sm:$0xff]
    %v442 = vld [vmem:[%s1 + $0xd00] sm:$0xff]
    %v443 = vld [vmem:[%s1 + $0xd08] sm:$0xff]
    %v444 = vld [vmem:[%s1 + $0xd10] sm:$0xff]
    %v445 = vld [vmem:[%s1 + $0xd18] sm:$0xff]
    %v446 = vld [vmem:[%s1 + $0xd20] sm:$0xff]
    %v447 = vld [vmem:[%s1 + $0xd28] sm:$0xff]
    %v448 = vld [vmem:[%s1 + $0xd30] sm:$0xff]
    %v449 = vld [vmem:[%s1 + $0xd38] sm:$0xff]
    %v450 = vld [vmem:[%s1 + $0xd40] sm:$0xff]
    %v451 = vld [vmem:[%s1 + $0xd48] sm:$0xff]
    %v452 = vld [vmem:[%s1 + $0xd50] sm:$0xff]
    %v453 = vld [vmem:[%s1 + $0xd58] sm:$0xff]
    %v454 = vld [vmem:[%s1 + $0xd60] sm:$0xff]
    %v455 = vld [vmem:[%s1 + $0xd68] sm:$0xff]
    %v456 = vld [vmem:[%s1 + $0xd70] sm:$0xff]
    %v457 = vld [vmem:[%s1 + $0xd78] sm:$0xff]
    %v458 = vld [vmem:[%s1 + $0xd80] sm:$0xff]
    %v459 = vld [vmem:[%s1 + $0xd88] sm:$0xff]
    %v460 = vld [vmem:[%s1 + $0xd90] sm:$0xff]
    %v461 = vld [vmem:[%s1 + $0xd98] sm:$0xff]
    %v462 = vld [vmem:[%s1 + $0xda0] sm:$0xff]
    %v463 = vld [vmem:[%s1 + $0xda8] sm:$0xff]
    %v464 = vld [vmem:[%s1 + $0xdb0] sm:$0xff]
    %v465 = vld [vmem:[%s1 + $0xdb8] sm:$0xff]
    %v466 = vld [vmem:[%s1 + $0xdc0] sm:$0xff]
    %v467 = vld [vmem:[%s1 + $0xdc8] sm:$0xff]
    %v468 = vld [vmem:[%s1 + $0xdd0] sm:$0xff]
    %v469 = vld [vmem:[%s1 + $0xdd8] sm:$0xff]
    %v470 = vld [vmem:[%s1 + $0xde0] sm:$0xff]
    %v471 = vld [vmem:[%s1 + $0xde8] sm:$0xff]
    %v472 = vld [vmem:[%s1 + $0xdf0] sm:$0xff]
    %v473 = vld [vmem:[%s1 + $0xdf8] sm:$0xff]
    %v474 = vld [vmem:[%s1 + $0xe00] sm:$0xff]
    %v475 = vld [vmem:[%s1 + $0xe08] sm:$0xff]
    %v476 = vld [vmem:[%s1 + $0xe10] sm:$0xff]
    %v477 = vld [vmem:[%s1 + $0xe18] sm:$0xff]
    %v478 = vld [vmem:[%s1 + $0xe20] sm:$0xff]
    %v479 = vld [vmem:[%s1 + $0xe28] sm:$0xff]
    %v480 = vld [vmem:[%s1 + $0xe30] sm:$0xff]
    %v481 = vld [vmem:[%s1 + $0xe38] sm:$0xff]
    %v482 = vld [vmem:[%s1 + $0xe40] sm:$0xff]
    %v483 = vld [vmem:[%s1 + $0xe48] sm:$0xff]
    %v484 = vld [vmem:[%s1 + $0xe50] sm:$0xff]
    %v485 = vld [vmem:[%s1 + $0xe58] sm:$0xff]
    %v486 = vld [vmem:[%s1 + $0xe60] sm:$0xff]
    %v487 = vld [vmem:[%s1 + $0xe68] sm:$0xff]
    %v488 = vld [vmem:[%s1 + $0xe70] sm:$0xff]
    %v489 = vld [vmem:[%s1 + $0xe78] sm:$0xff]
    %v490 = vld [vmem:[%s1 + $0xe80] sm:$0xff]
    %v491 = vld [vmem:[%s1 + $0xe88] sm:$0xff]
    %v492 = vld [vmem:[%s1 + $0xe90] sm:$0xff]
    %v493 = vld [vmem:[%s1 + $0xe98] sm:$0xff]
    %v494 = vld [vmem:[%s1 + $0xea0] sm:$0xff]
    %v495 = vld [vmem:[%s1 + $0xea8] sm:$0xff]
    %v496 = vld [vmem:[%s1 + $0xeb0] sm:$0xff]
    %v497 = vld [vmem:[%s1 + $0xeb8] sm:$0xff]
    %v498 = vld [vmem:[%s1 + $0xec0] sm:$0xff]
    %v499 = vld [vmem:[%s1 + $0xec8] sm:$0xff]
    %v500 = vld [vmem:[%s1 + $0xed0] sm:$0xff]
    %v501 = vld [vmem:[%s1 + $0xed8] sm:$0xff]
    %v502 = vld [vmem:[%s1 + $0xee0] sm:$0xff]
    %v503 = vld [vmem:[%s1 + $0xee8] sm:$0xff]
    %v504 = vld [vmem:[%s1 + $0xef0] sm:$0xff]
    %v505 = vld [vmem:[%s1 + $0xef8] sm:$0xff]
    %v506 = vld [vmem:[%s1 + $0xf00] sm:$0xff]
    %v507 = vld [vmem:[%s1 + $0xf08] sm:$0xff]
    %v508 = vld [vmem:[%s1 + $0xf10] sm:$0xff]
    %v509 = vld [vmem:[%s1 + $0xf18] sm:$0xff]
    %v510 = vld [vmem:[%s1 + $0xf20] sm:$0xff]
    %v511 = vld [vmem:[%s1 + $0xf28] sm:$0xff]
    %v512 = vld [vmem:[%s1 + $0xf30] sm:$0xff]
    %v513 = vld [vmem:[%s1 + $0xf38] sm:$0xff]
    %v514 = vld [vmem:[%s1 + $0xf40] sm:$0xff]
    %v515 = vld [vmem:[%s1 + $0xf48] sm:$0xff]
    %v516 = vld [vmem:[%s1 + $0xf50] sm:$0xff]
    %v517 = vld [vmem:[%s1 + $0xf58] sm:$0xff]
    %v518 = vld [vmem:[%s1 + $0xf60] sm:$0xff]
    %v519 = vld [vmem:[%s1 + $0xf68] sm:$0xff]
    %v520 = vld [vmem:[%s1 + $0xf70] sm:$0xff]
    %v521 = vld [vmem:[%s1 + $0xf78] sm:$0xff]
    %v522 = vld [vmem:[%s1 + $0xf80] sm:$0xff]
    %v523 = vld [vmem:[%s1 + $0xf88] sm:$0xff]
    %v524 = vld [vmem:[%s1 + $0xf90] sm:$0xff]
    %v525 = vld [vmem:[%s1 + $0xf98] sm:$0xff]
    %v526 = vld [vmem:[%s1 + $0xfa0] sm:$0xff]
    %v527 = vld [vmem:[%s1 + $0xfa8] sm:$0xff]
    %v528 = vld [vmem:[%s1 + $0xfb0] sm:$0xff]
    %v529 = vld [vmem:[%s1 + $0xfb8] sm:$0xff]
    %v530 = vld [vmem:[%s1 + $0xfc0] sm:$0xff]
    %v531 = vld [vmem:[%s1 + $0xfc8] sm:$0xff]
    %v532 = vld [vmem:[%s1 + $0xfd0] sm:$0xff]
    %v533 = vld [vmem:[%s1 + $0xfd8] sm:$0xff]
    %v534 = vld [vmem:[%s1 + $0xfe0] sm:$0xff]
    %v535 = vld [vmem:[%s1 + $0xfe8] sm:$0xff]
    %v536 = vld [vmem:[%s1 + $0xff0] sm:$0xff]
    %v537 = vld [vmem:[%s1 + $0xff8] sm:$0xff]
    %v538 = vld [vmem:[%s1 + $0x1000] sm:$0xff]
    %v539 = vld [vmem:[%s1 + $0x1008] sm:$0xff]
    %v540 = vld [vmem:[%s1 + $0x1010] sm:$0xff]
    %v541 = vld [vmem:[%s1 + $0x1018] sm:$0xff]
    %v542 = vld [vmem:[%s1 + $0x1020] sm:$0xff]
    %v543 = vld [vmem:[%s1 + $0x1028] sm:$0xff]
    %v544 = vld [vmem:[%s1 + $0x1030] sm:$0xff]
    %v545 = vld [vmem:[%s1 + $0x1038] sm:$0xff]
    %v546 = vld [vmem:[%s1 + $0x1040] sm:$0xff]
    %v547 = vld [vmem:[%s1 + $0x1048] sm:$0xff]
    %v548 = vld [vmem:[%s1 + $0x1050] sm:$0xff]
    %v549 = vld [vmem:[%s1 + $0x1058] sm:$0xff]
    %v550 = vld [vmem:[%s1 + $0x1060] sm:$0xff]
    %v551 = vld [vmem:[%s1 + $0x1068] sm:$0xff]
    %v552 = vld [vmem:[%s1 + $0x1070] sm:$0xff]
    %v553 = vld [vmem:[%s1 + $0x1078] sm:$0xff]
    %v554 = vld [vmem:[%s1 + $0x1080] sm:$0xff]
    %v555 = vld [vmem:[%s1 + $0x1088] sm:$0xff]
    %v556 = vld [vmem:[%s1 + $0x1090] sm:$0xff]
    %v557 = vld [vmem:[%s1 + $0x1098] sm:$0xff]
    %v558 = vld [vmem:[%s1 + $0x10a0] sm:$0xff]
    %v559 = vld [vmem:[%s1 + $0x10a8] sm:$0xff]
    %v560 = vld [vmem:[%s1 + $0x10b0] sm:$0xff]
    %v561 = vld [vmem:[%s1 + $0x10b8] sm:$0xff]
    %v562 = vld [vmem:[%s1 + $0x10c0] sm:$0xff]
    %v563 = vld [vmem:[%s1 + $0x10c8] sm:$0xff]
    %v564 = vld [vmem:[%s1 + $0x10d0] sm:$0xff]
    %v565 = vld [vmem:[%s1 + $0x10d8] sm:$0xff]
    %v566 = vld [vmem:[%s1 + $0x10e0] sm:$0xff]
    %v567 = vld [vmem:[%s1 + $0x10e8] sm:$0xff]
    %v568 = vld [vmem:[%s1 + $0x10f0] sm:$0xff]
    %v569 = vld [vmem:[%s1 + $0x10f8] sm:$0xff]
    %v570 = vld [vmem:[%s1 + $0x1100] sm:$0xff]
    %v571 = vld [vmem:[%s1 + $0x1108] sm:$0xff]
    %v572 = vld [vmem:[%s1 + $0x1110] sm:$0xff]
    %v573 = vld [vmem:[%s1 + $0x1118] sm:$0xff]
    %v574 = vld [vmem:[%s1 + $0x1120] sm:$0xff]
    %v575 = vld [vmem:[%s1 + $0x1128] sm:$0xff]
    %v576 = vld [vmem:[%s1 + $0x1130] sm:$0xff]
    %v577 = vld [vmem:[%s1 + $0x1138] sm:$0xff]
    %v578 = vld [vmem:[%s1 + $0x1140] sm:$0xff]
    %v579 = vld [vmem:[%s1 + $0x1148] sm:$0xff]
    %v580 = vld [vmem:[%s1 + $0x1150] sm:$0xff]
    %v581 = vld [vmem:[%s1 + $0x1158] sm:$0xff]
    %v582 = vld [vmem:[%s1 + $0x1160] sm:$0xff]
    %v583 = vld [vmem:[%s1 + $0x1168] sm:$0xff]
    %v584 = vld [vmem:[%s1 + $0x1170] sm:$0xff]
    %v585 = vld [vmem:[%s1 + $0x1178] sm:$0xff]
    %v586 = vld [vmem:[%s1 + $0x1180] sm:$0xff]
    %v587 = vld [vmem:[%s1 + $0x1188] sm:$0xff]
    %v588 = vld [vmem:[%s1 + $0x1190] sm:$0xff]
    %v589 = vld [vmem:[%s1 + $0x1198] sm:$0xff]
    %v590 = vld [vmem:[%s1 + $0x11a0] sm:$0xff]
    %v591 = vld [vmem:[%s1 + $0x11a8] sm:$0xff]
    %v592 = vld [vmem:[%s1 + $0x11b0] sm:$0xff]
    %v593 = vld [vmem:[%s1 + $0x11b8] sm:$0xff]
    %v594 = vld [vmem:[%s1 + $0x11c0] sm:$0xff]
    %v595 = vld [vmem:[%s1 + $0x11c8] sm:$0xff]
    %v596 = vld [vmem:[%s1 + $0x11d0] sm:$0xff]
    %v597 = vld [vmem:[%s1 + $0x11d8] sm:$0xff]
    %v598 = vld [vmem:[%s1 + $0x11e0] sm:$0xff]
    %v599 = vld [vmem:[%s1 + $0x11e8] sm:$0xff]
    %v600 = vld [vmem:[%s1 + $0x11f0] sm:$0xff]
    %v601 = vld [vmem:[%s1 + $0x11f8] sm:$0xff]
    %v602 = vld [vmem:[%s1 + $0x1200] sm:$0xff]
    %v603 = vld [vmem:[%s1 + $0x1208] sm:$0xff]
    %v604 = vld [vmem:[%s1 + $0x1210] sm:$0xff]
    %v605 = vld [vmem:[%s1 + $0x1218] sm:$0xff]
    %v606 = vld [vmem:[%s1 + $0x1220] sm:$0xff]
    %v607 = vld [vmem:[%s1 + $0x1228] sm:$0xff]
    %v608 = vld [vmem:[%s1 + $0x1230] sm:$0xff]
    %v609 = vld [vmem:[%s1 + $0x1238] sm:$0xff]
    %v610 = vld [vmem:[%s1 + $0x1240] sm:$0xff]
    %v611 = vld [vmem:[%s1 + $0x1248] sm:$0xff]
    %v612 = vld [vmem:[%s1 + $0x1250] sm:$0xff]
    %v613 = vld [vmem:[%s1 + $0x1258] sm:$0xff]
    %v614 = vld [vmem:[%s1 + $0x1260] sm:$0xff]
    %v615 = vld [vmem:[%s1 + $0x1268] sm:$0xff]
    %v616 = vld [vmem:[%s1 + $0x1270] sm:$0xff]
    %v617 = vld [vmem:[%s1 + $0x1278] sm:$0xff]
    %v618 = vld [vmem:[%s1 + $0x1280] sm:$0xff]
    %v619 = vld [vmem:[%s1 + $0x1288] sm:$0xff]
    %v620 = vld [vmem:[%s1 + $0x1290] sm:$0xff]
    %v621 = vld [vmem:[%s1 + $0x1298] sm:$0xff]
    %v622 = vld [vmem:[%s1 + $0x12a0] sm:$0xff]
    %v623 = vld [vmem:[%s1 + $0x12a8] sm:$0xff]
    %v624 = vld [vmem:[%s1 + $0x12b0] sm:$0xff]
    %v625 = vld [vmem:[%s1 + $0x12b8] sm:$0xff]
    %v626 = vld [vmem:[%s1 + $0x12c0] sm:$0xff]
    %v627 = vld [vmem:[%s1 + $0x12c8] sm:$0xff]
    %v628 = vld [vmem:[%s1 + $0x12d0] sm:$0xff]
    %v629 = vld [vmem:[%s1 + $0x12d8] sm:$0xff]
    %v630 = vld [vmem:[%s1 + $0x12e0] sm:$0xff]
    %v631 = vld [vmem:[%s1 + $0x12e8] sm:$0xff]
    %v632 = vld [vmem:[%s1 + $0x12f0] sm:$0xff]
    %v633 = vld [vmem:[%s1 + $0x12f8] sm:$0xff]
    %v634 = vld [vmem:[%s1 + $0x1300] sm:$0xff]
    %v635 = vld [vmem:[%s1 + $0x1308] sm:$0xff]
    %v636 = vld [vmem:[%s1 + $0x1310] sm:$0xff]
    %v637 = vld [vmem:[%s1 + $0x1318] sm:$0xff]
    %v638 = vld [vmem:[%s1 + $0x1320] sm:$0xff]
    %v639 = vld [vmem:[%s1 + $0x1328] sm:$0xff]
    %v640 = vld [vmem:[%s1 + $0x1330] sm:$0xff]
    %v641 = vld [vmem:[%s1 + $0x1338] sm:$0xff]
    %v642 = vld [vmem:[%s1 + $0x1340] sm:$0xff]
    %v643 = vld [vmem:[%s1 + $0x1348] sm:$0xff]
    %v644 = vld [vmem:[%s1 + $0x1350] sm:$0xff]
    %v645 = vld [vmem:[%s1 + $0x1358] sm:$0xff]
    %v646 = vld [vmem:[%s1 + $0x1360] sm:$0xff]
    %v647 = vld [vmem:[%s1 + $0x1368] sm:$0xff]
    %v648 = vld [vmem:[%s1 + $0x1370] sm:$0xff]
    %v649 = vld [vmem:[%s1 + $0x1378] sm:$0xff]
    %v650 = vld [vmem:[%s1 + $0x1380] sm:$0x3]
    %v651 = vld [vmem:[%s1 + $0x1388] sm:$0x3]
    %v652 = vld [vmem:[%s1 + $0x1390] sm:$0x3]
    %v653 = vld [vmem:[%s1 + $0x1398] sm:$0x3]
    %v654 = vld [vmem:[%s2] sm:$0xf]
    %v656 = vlaneseq
    %v657 = vshrl.u32 %v656, 7
    %v658 = vsub.s32 0, %v657
    %v659 = vrot.slane %v654, %v658
    %v660 = vlaneseq
    %v661 = vshrl.u32 %v660, 7
    %v662 = vsub.s32 1, %v661
    %v663 = vrot.slane %v654, %v662
    %v664 = vlaneseq
    %v665 = vshrl.u32 %v664, 7
    %v666 = vsub.s32 2, %v665
    %v667 = vrot.slane %v654, %v666
    %v668 = vlaneseq
    %v669 = vshrl.u32 %v668, 7
    %v670 = vsub.s32 3, %v669
    %v671 = vrot.slane %v654, %v670
    %v681 = vcombine.high %v21, %v21
    %v682 = vcombine.high %v22, %v22
    %v683 = vcombine.high %v23, %v23
    %v684 = vcombine.high %v24, %v24
    %v685 = vcombine.high %v25, %v25
    %vm690 = vcmask 801792
    %v691 = vsel %vm690, %v685, 0
    %vm693 = vcmask 1041408
    %v695 = vsel %vm693, %v650, 0
    %v698 = vsel %vm693, %v651, 0
    %v701 = vsel %vm693, %v652, 0
    %v704 = vsel %vm693, %v653, 0
    %706 = vmatprep.subr.mxu0 %v27
    %707 = vmatpush1.msra.mxu0 %v26
    %708 = vmatprep.subr.mxu0 %v31
    %709 = vmatpush1.msra.mxu0 %v30
    %710 = vmatprep.subr.mxu0 %v35
    %711 = vmatpush1.msra.mxu0 %v34
    %712 = vmatprep.subr.mxu0 %v39
    %713 = vmatpush1.msra.mxu0 %v38
    %714 = vmatprep.subr.mxu0 %v43
    %715 = vmatpush1.msra.mxu0 %v42
    %716 = vmatprep.subr.mxu0 %v47
    %717 = vmatpush1.msra.mxu0 %v46
    %718 = vmatprep.subr.mxu0 %v51
    %719 = vmatpush1.msra.mxu0 %v50
    %720 = vmatprep.subr.mxu0 %v55
    %721 = vmatpush1.msra.mxu0 %v54
    %722 = vmatprep.subr.mxu0 %v59
    %723 = vmatpush1.msra.mxu0 %v58
    %724 = vmatprep.subr.mxu0 %v63
    %725 = vmatpush1.msra.mxu0 %v62
    %726 = vmatprep.subr.mxu0 %v67
    %727 = vmatpush1.msra.mxu0 %v66
    %728 = vmatprep.subr.mxu0 %v71
    %729 = vmatpush1.msra.mxu0 %v70
    %730 = vmatprep.subr.mxu0 %v75
    %731 = vmatpush1.msra.mxu0 %v74
    %732 = vmatprep.subr.mxu0 %v79
    %733 = vmatpush1.msra.mxu0 %v78
    %734 = vmatprep.subr.mxu0 %v83
    %735 = vmatpush1.msra.mxu0 %v82
    %736 = vmatprep.subr.mxu0 %v87
    %737 = vmatpush1.msra.mxu0 %v86
    %738 = vmatprep.subr.mxu0 %v91
    %739 = vmatpush1.msra.mxu0 %v90
    %740 = vmatprep.subr.mxu0 %v95
    %741 = vmatpush1.msra.mxu0 %v94
    %742 = vmatprep.subr.mxu0 %v99
    %743 = vmatpush1.msra.mxu0 %v98
    %744 = vmatprep.subr.mxu0 %v103
    %745 = vmatpush1.msra.mxu0 %v102
    %746 = vmatprep.subr.mxu0 %v107
    %747 = vmatpush1.msra.mxu0 %v106
    %748 = vmatprep.subr.mxu0 %v111
    %749 = vmatpush1.msra.mxu0 %v110
    %750 = vmatprep.subr.mxu0 %v115
    %751 = vmatpush1.msra.mxu0 %v114
    %752 = vmatprep.subr.mxu0 %v119
    %753 = vmatpush1.msra.mxu0 %v118
    %754 = vmatprep.subr.mxu0 %v123
    %755 = vmatpush1.msra.mxu0 %v122
    %756 = vmatprep.subr.mxu0 %v127
    %757 = vmatpush1.msra.mxu0 %v126
    %758 = vmatprep.subr.mxu0 %v131
    %759 = vmatpush1.msra.mxu0 %v130
    %760 = vmatprep.subr.mxu0 %v135
    %761 = vmatpush1.msra.mxu0 %v134
    %762 = vmatprep.subr.mxu0 %v139
    %763 = vmatpush1.msra.mxu0 %v138
    %764 = vmatprep.subr.mxu0 %v143
    %765 = vmatpush1.msra.mxu0 %v142
    %766 = vmatprep.subr.mxu0 %v147
    %767 = vmatpush1.msra.mxu0 %v146
    %768 = vmatprep.subr.mxu0 %v151
    %769 = vmatpush1.msra.mxu0 %v150
    %770 = vmatprep.mubr.f32.mxu0 %v681
    %771 = vmatmul.mubr.f32.gmra.mrb[0].mxu0 %v21
    %v772 = vpop.f32.mrb[0].mxu0
    %v773 = vadd.f32 %v659, %v772
    %v774 = vpop.f32.mrb[0].mxu0
    %v775 = vadd.f32 %v663, %v774
    %776 = vdwg.mxu0
    %777 = vmatprep.subr.mxu0 %v155
    %778 = vmatpush1.msra.mxu0 %v154
    %779 = vmatprep.subr.mxu0 %v159
    %780 = vmatpush1.msra.mxu0 %v158
    %781 = vmatprep.subr.mxu0 %v163
    %782 = vmatpush1.msra.mxu0 %v162
    %783 = vmatprep.subr.mxu0 %v167
    %784 = vmatpush1.msra.mxu0 %v166
    %785 = vmatprep.subr.mxu0 %v171
    %786 = vmatpush1.msra.mxu0 %v170
    %787 = vmatprep.subr.mxu0 %v175
    %788 = vmatpush1.msra.mxu0 %v174
    %789 = vmatprep.subr.mxu0 %v179
    %790 = vmatpush1.msra.mxu0 %v178
    %791 = vmatprep.subr.mxu0 %v183
    %792 = vmatpush1.msra.mxu0 %v182
    %793 = vmatprep.subr.mxu0 %v187
    %794 = vmatpush1.msra.mxu0 %v186
    %795 = vmatprep.subr.mxu0 %v191
    %796 = vmatpush1.msra.mxu0 %v190
    %797 = vmatprep.subr.mxu0 %v195
    %798 = vmatpush1.msra.mxu0 %v194
    %799 = vmatprep.subr.mxu0 %v199
    %800 = vmatpush1.msra.mxu0 %v198
    %801 = vmatprep.subr.mxu0 %v203
    %802 = vmatpush1.msra.mxu0 %v202
    %803 = vmatprep.subr.mxu0 %v207
    %804 = vmatpush1.msra.mxu0 %v206
    %805 = vmatprep.subr.mxu0 %v211
    %806 = vmatpush1.msra.mxu0 %v210
    %807 = vmatprep.subr.mxu0 %v215
    %808 = vmatpush1.msra.mxu0 %v214
    %809 = vmatprep.subr.mxu0 %v219
    %810 = vmatpush1.msra.mxu0 %v218
    %811 = vmatprep.subr.mxu0 %v223
    %812 = vmatpush1.msra.mxu0 %v222
    %813 = vmatprep.subr.mxu0 %v227
    %814 = vmatpush1.msra.mxu0 %v226
    %815 = vmatprep.subr.mxu0 %v231
    %816 = vmatpush1.msra.mxu0 %v230
    %817 = vmatprep.subr.mxu0 %v235
    %818 = vmatpush1.msra.mxu0 %v234
    %819 = vmatprep.subr.mxu0 %v239
    %820 = vmatpush1.msra.mxu0 %v238
    %821 = vmatprep.subr.mxu0 %v243
    %822 = vmatpush1.msra.mxu0 %v242
    %823 = vmatprep.subr.mxu0 %v247
    %824 = vmatpush1.msra.mxu0 %v246
    %825 = vmatprep.subr.mxu0 %v251
    %826 = vmatpush1.msra.mxu0 %v250
    %827 = vmatprep.subr.mxu0 %v255
    %828 = vmatpush1.msra.mxu0 %v254
    %829 = vmatprep.subr.mxu0 %v259
    %830 = vmatpush1.msra.mxu0 %v258
    %831 = vmatprep.subr.mxu0 %v263
    %832 = vmatpush1.msra.mxu0 %v262
    %833 = vmatprep.subr.mxu0 %v267
    %834 = vmatpush1.msra.mxu0 %v266
    %835 = vmatprep.subr.mxu0 %v271
    %836 = vmatpush1.msra.mxu0 %v270
    %837 = vmatprep.subr.mxu0 %v275
    %838 = vmatpush1.msra.mxu0 %v274
    %839 = vmatprep.subr.mxu0 %v279
    %840 = vmatpush1.msra.mxu0 %v278
    %841 = vmatprep.mubr.f32.mxu0 %v682
    %842 = vmatmul.mubr.f32.gmra.mrb[0].mxu0 %v22
    %v843 = vpop.f32.mrb[0].mxu0
    %v844 = vadd.f32 %v773, %v843
    %v845 = vpop.f32.mrb[0].mxu0
    %v846 = vadd.f32 %v775, %v845
    %847 = vdwg.mxu0
    %848 = vmatprep.subr.mxu0 %v283
    %849 = vmatpush1.msra.mxu0 %v282
    %850 = vmatprep.subr.mxu0 %v287
    %851 = vmatpush1.msra.mxu0 %v286
    %852 = vmatprep.subr.mxu0 %v291
    %853 = vmatpush1.msra.mxu0 %v290
    %854 = vmatprep.subr.mxu0 %v295
    %855 = vmatpush1.msra.mxu0 %v294
    %856 = vmatprep.subr.mxu0 %v299
    %857 = vmatpush1.msra.mxu0 %v298
    %858 = vmatprep.subr.mxu0 %v303
    %859 = vmatpush1.msra.mxu0 %v302
    %860 = vmatprep.subr.mxu0 %v307
    %861 = vmatpush1.msra.mxu0 %v306
    %862 = vmatprep.subr.mxu0 %v311
    %863 = vmatpush1.msra.mxu0 %v310
    %864 = vmatprep.subr.mxu0 %v315
    %865 = vmatpush1.msra.mxu0 %v314
    %866 = vmatprep.subr.mxu0 %v319
    %867 = vmatpush1.msra.mxu0 %v318
    %868 = vmatprep.subr.mxu0 %v323
    %869 = vmatpush1.msra.mxu0 %v322
    %870 = vmatprep.subr.mxu0 %v327
    %871 = vmatpush1.msra.mxu0 %v326
    %872 = vmatprep.subr.mxu0 %v331
    %873 = vmatpush1.msra.mxu0 %v330
    %874 = vmatprep.subr.mxu0 %v335
    %875 = vmatpush1.msra.mxu0 %v334
    %876 = vmatprep.subr.mxu0 %v339
    %877 = vmatpush1.msra.mxu0 %v338
    %878 = vmatprep.subr.mxu0 %v343
    %879 = vmatpush1.msra.mxu0 %v342
    %880 = vmatprep.subr.mxu0 %v347
    %881 = vmatpush1.msra.mxu0 %v346
    %882 = vmatprep.subr.mxu0 %v351
    %883 = vmatpush1.msra.mxu0 %v350
    %884 = vmatprep.subr.mxu0 %v355
    %885 = vmatpush1.msra.mxu0 %v354
    %886 = vmatprep.subr.mxu0 %v359
    %887 = vmatpush1.msra.mxu0 %v358
    %888 = vmatprep.subr.mxu0 %v363
    %889 = vmatpush1.msra.mxu0 %v362
    %890 = vmatprep.subr.mxu0 %v367
    %891 = vmatpush1.msra.mxu0 %v366
    %892 = vmatprep.subr.mxu0 %v371
    %893 = vmatpush1.msra.mxu0 %v370
    %894 = vmatprep.subr.mxu0 %v375
    %895 = vmatpush1.msra.mxu0 %v374
    %896 = vmatprep.subr.mxu0 %v379
    %897 = vmatpush1.msra.mxu0 %v378
    %898 = vmatprep.subr.mxu0 %v383
    %899 = vmatpush1.msra.mxu0 %v382
    %900 = vmatprep.subr.mxu0 %v387
    %901 = vmatpush1.msra.mxu0 %v386
    %902 = vmatprep.subr.mxu0 %v391
    %903 = vmatpush1.msra.mxu0 %v390
    %904 = vmatprep.subr.mxu0 %v395
    %905 = vmatpush1.msra.mxu0 %v394
    %906 = vmatprep.subr.mxu0 %v399
    %907 = vmatpush1.msra.mxu0 %v398
    %908 = vmatprep.subr.mxu0 %v403
    %909 = vmatpush1.msra.mxu0 %v402
    %910 = vmatprep.subr.mxu0 %v407
    %911 = vmatpush1.msra.mxu0 %v406
    %912 = vmatprep.mubr.f32.mxu0 %v683
    %913 = vmatmul.mubr.f32.gmra.mrb[0].mxu0 %v23
    %v914 = vpop.f32.mrb[0].mxu0
    %v915 = vadd.f32 %v844, %v914
    %v916 = vpop.f32.mrb[0].mxu0
    %v917 = vadd.f32 %v846, %v916
    %918 = vdwg.mxu0
    %919 = vmatprep.subr.mxu0 %v411
    %920 = vmatpush1.msra.mxu0 %v410
    %921 = vmatprep.subr.mxu0 %v415
    %922 = vmatpush1.msra.mxu0 %v414
    %923 = vmatprep.subr.mxu0 %v419
    %924 = vmatpush1.msra.mxu0 %v418
    %925 = vmatprep.subr.mxu0 %v423
    %926 = vmatpush1.msra.mxu0 %v422
    %927 = vmatprep.subr.mxu0 %v427
    %928 = vmatpush1.msra.mxu0 %v426
    %929 = vmatprep.subr.mxu0 %v431
    %930 = vmatpush1.msra.mxu0 %v430
    %931 = vmatprep.subr.mxu0 %v435
    %932 = vmatpush1.msra.mxu0 %v434
    %933 = vmatprep.subr.mxu0 %v439
    %934 = vmatpush1.msra.mxu0 %v438
    %935 = vmatprep.subr.mxu0 %v443
    %936 = vmatpush1.msra.mxu0 %v442
    %937 = vmatprep.subr.mxu0 %v447
    %938 = vmatpush1.msra.mxu0 %v446
    %939 = vmatprep.subr.mxu0 %v451
    %940 = vmatpush1.msra.mxu0 %v450
    %941 = vmatprep.subr.mxu0 %v455
    %942 = vmatpush1.msra.mxu0 %v454
    %943 = vmatprep.subr.mxu0 %v459
    %944 = vmatpush1.msra.mxu0 %v458
    %945 = vmatprep.subr.mxu0 %v463
    %946 = vmatpush1.msra.mxu0 %v462
    %947 = vmatprep.subr.mxu0 %v467
    %948 = vmatpush1.msra.mxu0 %v466
    %949 = vmatprep.subr.mxu0 %v471
    %950 = vmatpush1.msra.mxu0 %v470
    %951 = vmatprep.subr.mxu0 %v475
    %952 = vmatpush1.msra.mxu0 %v474
    %953 = vmatprep.subr.mxu0 %v479
    %954 = vmatpush1.msra.mxu0 %v478
    %955 = vmatprep.subr.mxu0 %v483
    %956 = vmatpush1.msra.mxu0 %v482
    %957 = vmatprep.subr.mxu0 %v487
    %958 = vmatpush1.msra.mxu0 %v486
    %959 = vmatprep.subr.mxu0 %v491
    %960 = vmatpush1.msra.mxu0 %v490
    %961 = vmatprep.subr.mxu0 %v495
    %962 = vmatpush1.msra.mxu0 %v494
    %963 = vmatprep.subr.mxu0 %v499
    %964 = vmatpush1.msra.mxu0 %v498
    %965 = vmatprep.subr.mxu0 %v503
    %966 = vmatpush1.msra.mxu0 %v502
    %967 = vmatprep.subr.mxu0 %v507
    %968 = vmatpush1.msra.mxu0 %v506
    %969 = vmatprep.subr.mxu0 %v511
    %970 = vmatpush1.msra.mxu0 %v510
    %971 = vmatprep.subr.mxu0 %v515
    %972 = vmatpush1.msra.mxu0 %v514
    %973 = vmatprep.subr.mxu0 %v519
    %974 = vmatpush1.msra.mxu0 %v518
    %975 = vmatprep.subr.mxu0 %v523
    %976 = vmatpush1.msra.mxu0 %v522
    %977 = vmatprep.subr.mxu0 %v527
    %978 = vmatpush1.msra.mxu0 %v526
    %979 = vmatprep.subr.mxu0 %v531
    %980 = vmatpush1.msra.mxu0 %v530
    %981 = vmatprep.subr.mxu0 %v535
    %982 = vmatpush1.msra.mxu0 %v534
    %983 = vmatprep.mubr.f32.mxu0 %v684
    %984 = vmatmul.mubr.f32.gmra.mrb[0].mxu0 %v24
    %v985 = vpop.f32.mrb[0].mxu0
    %v986 = vadd.f32 %v915, %v985
    %v987 = vpop.f32.mrb[0].mxu0
    %v988 = vadd.f32 %v917, %v987
    %989 = vdwg.mxu0
    %990 = vmatprep.subr.mxu0 %v539
    %991 = vmatpush1.msra.mxu0 %v538
    %992 = vmatprep.subr.mxu0 %v543
    %993 = vmatpush1.msra.mxu0 %v542
    %994 = vmatprep.subr.mxu0 %v547
    %995 = vmatpush1.msra.mxu0 %v546
    %996 = vmatprep.subr.mxu0 %v551
    %997 = vmatpush1.msra.mxu0 %v550
    %998 = vmatprep.subr.mxu0 %v555
    %999 = vmatpush1.msra.mxu0 %v554
    %1000 = vmatprep.subr.mxu0 %v559
    %1001 = vmatpush1.msra.mxu0 %v558
    %1002 = vmatprep.subr.mxu0 %v563
    %1003 = vmatpush1.msra.mxu0 %v562
    %1004 = vmatprep.subr.mxu0 %v567
    %1005 = vmatpush1.msra.mxu0 %v566
    %1006 = vmatprep.subr.mxu0 %v571
    %1007 = vmatpush1.msra.mxu0 %v570
    %1008 = vmatprep.subr.mxu0 %v575
    %1009 = vmatpush1.msra.mxu0 %v574
    %1010 = vmatprep.subr.mxu0 %v579
    %1011 = vmatpush1.msra.mxu0 %v578
    %1012 = vmatprep.subr.mxu0 %v583
    %1013 = vmatpush1.msra.mxu0 %v582
    %1014 = vmatprep.subr.mxu0 %v587
    %1015 = vmatpush1.msra.mxu0 %v586
    %1016 = vmatprep.subr.mxu0 %v591
    %1017 = vmatpush1.msra.mxu0 %v590
    %1018 = vmatprep.subr.mxu0 %v595
    %1019 = vmatpush1.msra.mxu0 %v594
    %1020 = vmatprep.subr.mxu0 %v599
    %1021 = vmatpush1.msra.mxu0 %v598
    %1022 = vmatprep.subr.mxu0 %v603
    %1023 = vmatpush1.msra.mxu0 %v602
    %1024 = vmatprep.subr.mxu0 %v607
    %1025 = vmatpush1.msra.mxu0 %v606
    %1026 = vmatprep.subr.mxu0 %v611
    %1027 = vmatpush1.msra.mxu0 %v610
    %1028 = vmatprep.subr.mxu0 %v615
    %1029 = vmatpush1.msra.mxu0 %v614
    %1030 = vmatprep.subr.mxu0 %v619
    %1031 = vmatpush1.msra.mxu0 %v618
    %1032 = vmatprep.subr.mxu0 %v623
    %1033 = vmatpush1.msra.mxu0 %v622
    %1034 = vmatprep.subr.mxu0 %v627
    %1035 = vmatpush1.msra.mxu0 %v626
    %1036 = vmatprep.subr.mxu0 %v631
    %1037 = vmatpush1.msra.mxu0 %v630
    %1038 = vmatprep.subr.mxu0 %v635
    %1039 = vmatpush1.msra.mxu0 %v634
    %1040 = vmatprep.subr.mxu0 %v639
    %1041 = vmatpush1.msra.mxu0 %v638
    %1042 = vmatprep.subr.mxu0 %v643
    %1043 = vmatpush1.msra.mxu0 %v642
    %1044 = vmatprep.subr.mxu0 %v647
    %1045 = vmatpush1.msra.mxu0 %v646
    %1046 = vmatprep.subr.mxu0 %v698
    %1047 = vmatpush1.msra.mxu0 %v695
    %1048 = vmatprep.subr.mxu0 0.0
    %1049 = vmatpush1.msra.mxu0 0.0
    %1050 = vmatprep.subr.mxu0 0.0
    %1051 = vmatpush1.msra.mxu0 0.0
    %1052 = vmatprep.subr.mxu0 0.0
    %1053 = vmatpush1.msra.mxu0 0.0
    %1054 = vmatprep.mubr.f32.mxu0 %v691
    %1055 = vmatmul.mubr.f32.gmra.mrb[0].mxu0 %v25
    %v1056 = vpop.f32.mrb[0].mxu0
    %v1057 = vadd.f32 %v986, %v1056
    %v1058 = vpop.f32.mrb[0].mxu0
    %v1059 = vadd.f32 %v988, %v1058
    %1060 = vdwg.mxu0
    %1061 = vmatprep.subr.mxu0 %v29
    %1062 = vmatpush1.msra.mxu0 %v28
    %1063 = vmatprep.subr.mxu0 %v33
    %1064 = vmatpush1.msra.mxu0 %v32
    %1065 = vmatprep.subr.mxu0 %v37
    %1066 = vmatpush1.msra.mxu0 %v36
    %1067 = vmatprep.subr.mxu0 %v41
    %1068 = vmatpush1.msra.mxu0 %v40
    %1069 = vmatprep.subr.mxu0 %v45
    %1070 = vmatpush1.msra.mxu0 %v44
    %1071 = vmatprep.subr.mxu0 %v49
    %1072 = vmatpush1.msra.mxu0 %v48
    %1073 = vmatprep.subr.mxu0 %v53
    %1074 = vmatpush1.msra.mxu0 %v52
    %1075 = vmatprep.subr.mxu0 %v57
    %1076 = vmatpush1.msra.mxu0 %v56
    %1077 = vmatprep.subr.mxu0 %v61
    %1078 = vmatpush1.msra.mxu0 %v60
    %1079 = vmatprep.subr.mxu0 %v65
    %1080 = vmatpush1.msra.mxu0 %v64
    %1081 = vmatprep.subr.mxu0 %v69
    %1082 = vmatpush1.msra.mxu0 %v68
    %1083 = vmatprep.subr.mxu0 %v73
    %1084 = vmatpush1.msra.mxu0 %v72
    %1085 = vmatprep.subr.mxu0 %v77
    %1086 = vmatpush1.msra.mxu0 %v76
    %1087 = vmatprep.subr.mxu0 %v81
    %1088 = vmatpush1.msra.mxu0 %v80
    %1089 = vmatprep.subr.mxu0 %v85
    %1090 = vmatpush1.msra.mxu0 %v84
    %1091 = vmatprep.subr.mxu0 %v89
    %1092 = vmatpush1.msra.mxu0 %v88
    %1093 = vmatprep.subr.mxu0 %v93
    %1094 = vmatpush1.msra.mxu0 %v92
    %1095 = vmatprep.subr.mxu0 %v97
    %1096 = vmatpush1.msra.mxu0 %v96
    %1097 = vmatprep.subr.mxu0 %v101
    %1098 = vmatpush1.msra.mxu0 %v100
    %1099 = vmatprep.subr.mxu0 %v105
    %1100 = vmatpush1.msra.mxu0 %v104
    %1101 = vmatprep.subr.mxu0 %v109
    %1102 = vmatpush1.msra.mxu0 %v108
    %1103 = vmatprep.subr.mxu0 %v113
    %1104 = vmatpush1.msra.mxu0 %v112
    %1105 = vmatprep.subr.mxu0 %v117
    %1106 = vmatpush1.msra.mxu0 %v116
    %1107 = vmatprep.subr.mxu0 %v121
    %1108 = vmatpush1.msra.mxu0 %v120
    %1109 = vmatprep.subr.mxu0 %v125
    %1110 = vmatpush1.msra.mxu0 %v124
    %1111 = vmatprep.subr.mxu0 %v129
    %1112 = vmatpush1.msra.mxu0 %v128
    %1113 = vmatprep.subr.mxu0 %v133
    %1114 = vmatpush1.msra.mxu0 %v132
    %1115 = vmatprep.subr.mxu0 %v137
    %1116 = vmatpush1.msra.mxu0 %v136
    %1117 = vmatprep.subr.mxu0 %v141
    %1118 = vmatpush1.msra.mxu0 %v140
    %1119 = vmatprep.subr.mxu0 %v145
    %1120 = vmatpush1.msra.mxu0 %v144
    %1121 = vmatprep.subr.mxu0 %v149
    %1122 = vmatpush1.msra.mxu0 %v148
    %1123 = vmatprep.subr.mxu0 %v153
    %1124 = vmatpush1.msra.mxu0 %v152
    %1125 = vmatprep.mubr.f32.mxu0 %v681
    %1126 = vmatmul.mubr.f32.gmra.mrb[0].mxu0 %v21
    %v1127 = vpop.f32.mrb[0].mxu0
    %v1128 = vadd.f32 %v667, %v1127
    %v1129 = vpop.f32.mrb[0].mxu0
    %v1130 = vadd.f32 %v671, %v1129
    %1131 = vdwg.mxu0
    %1132 = vmatprep.subr.mxu0 %v157
    %1133 = vmatpush1.msra.mxu0 %v156
    %1134 = vmatprep.subr.mxu0 %v161
    %1135 = vmatpush1.msra.mxu0 %v160
    %1136 = vmatprep.subr.mxu0 %v165
    %1137 = vmatpush1.msra.mxu0 %v164
    %1138 = vmatprep.subr.mxu0 %v169
    %1139 = vmatpush1.msra.mxu0 %v168
    %1140 = vmatprep.subr.mxu0 %v173
    %1141 = vmatpush1.msra.mxu0 %v172
    %1142 = vmatprep.subr.mxu0 %v177
    %1143 = vmatpush1.msra.mxu0 %v176
    %1144 = vmatprep.subr.mxu0 %v181
    %1145 = vmatpush1.msra.mxu0 %v180
    %1146 = vmatprep.subr.mxu0 %v185
    %1147 = vmatpush1.msra.mxu0 %v184
    %1148 = vmatprep.subr.mxu0 %v189
    %1149 = vmatpush1.msra.mxu0 %v188
    %1150 = vmatprep.subr.mxu0 %v193
    %1151 = vmatpush1.msra.mxu0 %v192
    %1152 = vmatprep.subr.mxu0 %v197
    %1153 = vmatpush1.msra.mxu0 %v196
    %1154 = vmatprep.subr.mxu0 %v201
    %1155 = vmatpush1.msra.mxu0 %v200
    %1156 = vmatprep.subr.mxu0 %v205
    %1157 = vmatpush1.msra.mxu0 %v204
    %1158 = vmatprep.subr.mxu0 %v209
    %1159 = vmatpush1.msra.mxu0 %v208
    %1160 = vmatprep.subr.mxu0 %v213
    %1161 = vmatpush1.msra.mxu0 %v212
    %1162 = vmatprep.subr.mxu0 %v217
    %1163 = vmatpush1.msra.mxu0 %v216
    %1164 = vmatprep.subr.mxu0 %v221
    %1165 = vmatpush1.msra.mxu0 %v220
    %1166 = vmatprep.subr.mxu0 %v225
    %1167 = vmatpush1.msra.mxu0 %v224
    %1168 = vmatprep.subr.mxu0 %v229
    %1169 = vmatpush1.msra.mxu0 %v228
    %1170 = vmatprep.subr.mxu0 %v233
    %1171 = vmatpush1.msra.mxu0 %v232
    %1172 = vmatprep.subr.mxu0 %v237
    %1173 = vmatpush1.msra.mxu0 %v236
    %1174 = vmatprep.subr.mxu0 %v241
    %1175 = vmatpush1.msra.mxu0 %v240
    %1176 = vmatprep.subr.mxu0 %v245
    %1177 = vmatpush1.msra.mxu0 %v244
    %1178 = vmatprep.subr.mxu0 %v249
    %1179 = vmatpush1.msra.mxu0 %v248
    %1180 = vmatprep.subr.mxu0 %v253
    %1181 = vmatpush1.msra.mxu0 %v252
    %1182 = vmatprep.subr.mxu0 %v257
    %1183 = vmatpush1.msra.mxu0 %v256
    %1184 = vmatprep.subr.mxu0 %v261
    %1185 = vmatpush1.msra.mxu0 %v260
    %1186 = vmatprep.subr.mxu0 %v265
    %1187 = vmatpush1.msra.mxu0 %v264
    %1188 = vmatprep.subr.mxu0 %v269
    %1189 = vmatpush1.msra.mxu0 %v268
    %1190 = vmatprep.subr.mxu0 %v273
    %1191 = vmatpush1.msra.mxu0 %v272
    %1192 = vmatprep.subr.mxu0 %v277
    %1193 = vmatpush1.msra.mxu0 %v276
    %1194 = vmatprep.subr.mxu0 %v281
    %1195 = vmatpush1.msra.mxu0 %v280
    %1196 = vmatprep.mubr.f32.mxu0 %v682
    %1197 = vmatmul.mubr.f32.gmra.mrb[0].mxu0 %v22
    %v1198 = vpop.f32.mrb[0].mxu0
    %v1199 = vadd.f32 %v1128, %v1198
    %v1200 = vpop.f32.mrb[0].mxu0
    %v1201 = vadd.f32 %v1130, %v1200
    %1202 = vdwg.mxu0
    %1203 = vmatprep.subr.mxu0 %v285
    %1204 = vmatpush1.msra.mxu0 %v284
    %1205 = vmatprep.subr.mxu0 %v289
    %1206 = vmatpush1.msra.mxu0 %v288
    %1207 = vmatprep.subr.mxu0 %v293
    %1208 = vmatpush1.msra.mxu0 %v292
    %1209 = vmatprep.subr.mxu0 %v297
    %1210 = vmatpush1.msra.mxu0 %v296
    %1211 = vmatprep.subr.mxu0 %v301
    %1212 = vmatpush1.msra.mxu0 %v300
    %1213 = vmatprep.subr.mxu0 %v305
    %1214 = vmatpush1.msra.mxu0 %v304
    %1215 = vmatprep.subr.mxu0 %v309
    %1216 = vmatpush1.msra.mxu0 %v308
    %1217 = vmatprep.subr.mxu0 %v313
    %1218 = vmatpush1.msra.mxu0 %v312
    %1219 = vmatprep.subr.mxu0 %v317
    %1220 = vmatpush1.msra.mxu0 %v316
    %1221 = vmatprep.subr.mxu0 %v321
    %1222 = vmatpush1.msra.mxu0 %v320
    %1223 = vmatprep.subr.mxu0 %v325
    %1224 = vmatpush1.msra.mxu0 %v324
    %1225 = vmatprep.subr.mxu0 %v329
    %1226 = vmatpush1.msra.mxu0 %v328
    %1227 = vmatprep.subr.mxu0 %v333
    %1228 = vmatpush1.msra.mxu0 %v332
    %1229 = vmatprep.subr.mxu0 %v337
    %1230 = vmatpush1.msra.mxu0 %v336
    %1231 = vmatprep.subr.mxu0 %v341
    %1232 = vmatpush1.msra.mxu0 %v340
    %1233 = vmatprep.subr.mxu0 %v345
    %1234 = vmatpush1.msra.mxu0 %v344
    %1235 = vmatprep.subr.mxu0 %v349
    %1236 = vmatpush1.msra.mxu0 %v348
    %1237 = vmatprep.subr.mxu0 %v353
    %1238 = vmatpush1.msra.mxu0 %v352
    %1239 = vmatprep.subr.mxu0 %v357
    %1240 = vmatpush1.msra.mxu0 %v356
    %1241 = vmatprep.subr.mxu0 %v361
    %1242 = vmatpush1.msra.mxu0 %v360
    %1243 = vmatprep.subr.mxu0 %v365
    %1244 = vmatpush1.msra.mxu0 %v364
    %1245 = vmatprep.subr.mxu0 %v369
    %1246 = vmatpush1.msra.mxu0 %v368
    %1247 = vmatprep.subr.mxu0 %v373
    %1248 = vmatpush1.msra.mxu0 %v372
    %1249 = vmatprep.subr.mxu0 %v377
    %1250 = vmatpush1.msra.mxu0 %v376
    %1251 = vmatprep.subr.mxu0 %v381
    %1252 = vmatpush1.msra.mxu0 %v380
    %1253 = vmatprep.subr.mxu0 %v385
    %1254 = vmatpush1.msra.mxu0 %v384
    %1255 = vmatprep.subr.mxu0 %v389
    %1256 = vmatpush1.msra.mxu0 %v388
    %1257 = vmatprep.subr.mxu0 %v393
    %1258 = vmatpush1.msra.mxu0 %v392
    %1259 = vmatprep.subr.mxu0 %v397
    %1260 = vmatpush1.msra.mxu0 %v396
    %1261 = vmatprep.subr.mxu0 %v401
    %1262 = vmatpush1.msra.mxu0 %v400
    %1263 = vmatprep.subr.mxu0 %v405
    %1264 = vmatpush1.msra.mxu0 %v404
    %1265 = vmatprep.subr.mxu0 %v409
    %1266 = vmatpush1.msra.mxu0 %v408
    %1267 = vmatprep.mubr.f32.mxu0 %v683
    %1268 = vmatmul.mubr.f32.gmra.mrb[0].mxu0 %v23
    %v1269 = vpop.f32.mrb[0].mxu0
    %v1270 = vadd.f32 %v1199, %v1269
    %v1271 = vpop.f32.mrb[0].mxu0
    %v1272 = vadd.f32 %v1201, %v1271
    %1273 = vdwg.mxu0
    %1274 = vmatprep.subr.mxu0 %v413
    %1275 = vmatpush1.msra.mxu0 %v412
    %1276 = vmatprep.subr.mxu0 %v417
    %1277 = vmatpush1.msra.mxu0 %v416
    %1278 = vmatprep.subr.mxu0 %v421
    %1279 = vmatpush1.msra.mxu0 %v420
    %1280 = vmatprep.subr.mxu0 %v425
    %1281 = vmatpush1.msra.mxu0 %v424
    %1282 = vmatprep.subr.mxu0 %v429
    %1283 = vmatpush1.msra.mxu0 %v428
    %1284 = vmatprep.subr.mxu0 %v433
    %1285 = vmatpush1.msra.mxu0 %v432
    %1286 = vmatprep.subr.mxu0 %v437
    %1287 = vmatpush1.msra.mxu0 %v436
    %1288 = vmatprep.subr.mxu0 %v441
    %1289 = vmatpush1.msra.mxu0 %v440
    %1290 = vmatprep.subr.mxu0 %v445
    %1291 = vmatpush1.msra.mxu0 %v444
    %1292 = vmatprep.subr.mxu0 %v449
    %1293 = vmatpush1.msra.mxu0 %v448
    %1294 = vmatprep.subr.mxu0 %v453
    %1295 = vmatpush1.msra.mxu0 %v452
    %1296 = vmatprep.subr.mxu0 %v457
    %1297 = vmatpush1.msra.mxu0 %v456
    %1298 = vmatprep.subr.mxu0 %v461
    %1299 = vmatpush1.msra.mxu0 %v460
    %1300 = vmatprep.subr.mxu0 %v465
    %1301 = vmatpush1.msra.mxu0 %v464
    %1302 = vmatprep.subr.mxu0 %v469
    %1303 = vmatpush1.msra.mxu0 %v468
    %1304 = vmatprep.subr.mxu0 %v473
    %1305 = vmatpush1.msra.mxu0 %v472
    %1306 = vmatprep.subr.mxu0 %v477
    %1307 = vmatpush1.msra.mxu0 %v476
    %1308 = vmatprep.subr.mxu0 %v481
    %1309 = vmatpush1.msra.mxu0 %v480
    %1310 = vmatprep.subr.mxu0 %v485
    %1311 = vmatpush1.msra.mxu0 %v484
    %1312 = vmatprep.subr.mxu0 %v489
    %1313 = vmatpush1.msra.mxu0 %v488
    %1314 = vmatprep.subr.mxu0 %v493
    %1315 = vmatpush1.msra.mxu0 %v492
    %1316 = vmatprep.subr.mxu0 %v497
    %1317 = vmatpush1.msra.mxu0 %v496
    %1318 = vmatprep.subr.mxu0 %v501
    %1319 = vmatpush1.msra.mxu0 %v500
    %1320 = vmatprep.subr.mxu0 %v505
    %1321 = vmatpush1.msra.mxu0 %v504
    %1322 = vmatprep.subr.mxu0 %v509
    %1323 = vmatpush1.msra.mxu0 %v508
    %1324 = vmatprep.subr.mxu0 %v513
    %1325 = vmatpush1.msra.mxu0 %v512
    %1326 = vmatprep.subr.mxu0 %v517
    %1327 = vmatpush1.msra.mxu0 %v516
    %1328 = vmatprep.subr.mxu0 %v521
    %1329 = vmatpush1.msra.mxu0 %v520
    %1330 = vmatprep.subr.mxu0 %v525
    %1331 = vmatpush1.msra.mxu0 %v524
    %1332 = vmatprep.subr.mxu0 %v529
    %1333 = vmatpush1.msra.mxu0 %v528
    %1334 = vmatprep.subr.mxu0 %v533
    %1335 = vmatpush1.msra.mxu0 %v532
    %1336 = vmatprep.subr.mxu0 %v537
    %1337 = vmatpush1.msra.mxu0 %v536
    %1338 = vmatprep.mubr.f32.mxu0 %v684
    %1339 = vmatmul.mubr.f32.gmra.mrb[0].mxu0 %v24
    %v1340 = vpop.f32.mrb[0].mxu0
    %v1341 = vadd.f32 %v1270, %v1340
    %v1342 = vpop.f32.mrb[0].mxu0
    %v1343 = vadd.f32 %v1272, %v1342
    %1344 = vdwg.mxu0
    %1345 = vmatprep.subr.mxu0 %v541
    %1346 = vmatpush1.msra.mxu0 %v540
    %1347 = vmatprep.subr.mxu0 %v545
    %1348 = vmatpush1.msra.mxu0 %v544
    %1349 = vmatprep.subr.mxu0 %v549
    %1350 = vmatpush1.msra.mxu0 %v548
    %1351 = vmatprep.subr.mxu0 %v553
    %1352 = vmatpush1.msra.mxu0 %v552
    %1353 = vmatprep.subr.mxu0 %v557
    %1354 = vmatpush1.msra.mxu0 %v556
    %1355 = vmatprep.subr.mxu0 %v561
    %1356 = vmatpush1.msra.mxu0 %v560
    %1357 = vmatprep.subr.mxu0 %v565
    %1358 = vmatpush1.msra.mxu0 %v564
    %1359 = vmatprep.subr.mxu0 %v569
    %1360 = vmatpush1.msra.mxu0 %v568
    %1361 = vmatprep.subr.mxu0 %v573
    %1362 = vmatpush1.msra.mxu0 %v572
    %1363 = vmatprep.subr.mxu0 %v577
    %1364 = vmatpush1.msra.mxu0 %v576
    %1365 = vmatprep.subr.mxu0 %v581
    %1366 = vmatpush1.msra.mxu0 %v580
    %1367 = vmatprep.subr.mxu0 %v585
    %1368 = vmatpush1.msra.mxu0 %v584
    %1369 = vmatprep.subr.mxu0 %v589
    %1370 = vmatpush1.msra.mxu0 %v588
    %1371 = vmatprep.subr.mxu0 %v593
    %1372 = vmatpush1.msra.mxu0 %v592
    %1373 = vmatprep.subr.mxu0 %v597
    %1374 = vmatpush1.msra.mxu0 %v596
    %1375 = vmatprep.subr.mxu0 %v601
    %1376 = vmatpush1.msra.mxu0 %v600
    %1377 = vmatprep.subr.mxu0 %v605
    %1378 = vmatpush1.msra.mxu0 %v604
    %1379 = vmatprep.subr.mxu0 %v609
    %1380 = vmatpush1.msra.mxu0 %v608
    %1381 = vmatprep.subr.mxu0 %v613
    %1382 = vmatpush1.msra.mxu0 %v612
    %1383 = vmatprep.subr.mxu0 %v617
    %1384 = vmatpush1.msra.mxu0 %v616
    %1385 = vmatprep.subr.mxu0 %v621
    %1386 = vmatpush1.msra.mxu0 %v620
    %1387 = vmatprep.subr.mxu0 %v625
    %1388 = vmatpush1.msra.mxu0 %v624
    %1389 = vmatprep.subr.mxu0 %v629
    %1390 = vmatpush1.msra.mxu0 %v628
    %1391 = vmatprep.subr.mxu0 %v633
    %1392 = vmatpush1.msra.mxu0 %v632
    %1393 = vmatprep.subr.mxu0 %v637
    %1394 = vmatpush1.msra.mxu0 %v636
    %1395 = vmatprep.subr.mxu0 %v641
    %1396 = vmatpush1.msra.mxu0 %v640
    %1397 = vmatprep.subr.mxu0 %v645
    %1398 = vmatpush1.msra.mxu0 %v644
    %1399 = vmatprep.subr.mxu0 %v649
    %1400 = vmatpush1.msra.mxu0 %v648
    %1401 = vmatprep.subr.mxu0 %v704
    %1402 = vmatpush1.msra.mxu0 %v701
    %1403 = vmatprep.subr.mxu0 0.0
    %1404 = vmatpush1.msra.mxu0 0.0
    %1405 = vmatprep.subr.mxu0 0.0
    %1406 = vmatpush1.msra.mxu0 0.0
    %1407 = vmatprep.subr.mxu0 0.0
    %1408 = vmatpush1.msra.mxu0 0.0
    %1409 = vmatprep.mubr.f32.mxu0 %v691
    %1410 = vmatmul.mubr.f32.gmra.mrb[0].mxu0 %v25
    %v1411 = vpop.f32.mrb[0].mxu0
    %v1412 = vadd.f32 %v1341, %v1411
    %v1413 = vpop.f32.mrb[0].mxu0
    %v1414 = vadd.f32 %v1343, %v1413
    %1415 = vdwg.mxu0
    %v1416 = vmax.f32 %v1057, 0.0
    %v1417 = vmax.f32 %v1059, 0.0
    %v1418 = vmax.f32 %v1412, 0.0
    %v1419 = vmax.f32 %v1414, 0.0
    %v1420 = vld [vmem:[%s3] sm:$0xff]
    %v1421 = vld [vmem:[%s3 + $0x8] sm:$0xff]
    %v1422 = vld [vmem:[%s3 + $0x10] sm:$0xff]
    %v1423 = vld [vmem:[%s3 + $0x18] sm:$0xff]
    %v1424 = vld [vmem:[%s3 + $0x20] sm:$0xff]
    %v1425 = vld [vmem:[%s3 + $0x28] sm:$0xff]
    %v1426 = vld [vmem:[%s3 + $0x30] sm:$0xff]
    %v1427 = vld [vmem:[%s3 + $0x38] sm:$0xff]
    %v1428 = vld [vmem:[%s3 + $0x40] sm:$0xff]
    %v1429 = vld [vmem:[%s3 + $0x48] sm:$0xff]
    %v1430 = vld [vmem:[%s3 + $0x50] sm:$0xff]
    %v1431 = vld [vmem:[%s3 + $0x58] sm:$0xff]
    %v1432 = vld [vmem:[%s3 + $0x60] sm:$0xff]
    %v1433 = vld [vmem:[%s3 + $0x68] sm:$0xff]
    %v1434 = vld [vmem:[%s3 + $0x70] sm:$0xff]
    %v1435 = vld [vmem:[%s3 + $0x78] sm:$0xff]
    %v1436 = vld [vmem:[%s3 + $0x80] sm:$0xff]
    %v1437 = vld [vmem:[%s3 + $0x88] sm:$0xff]
    %v1438 = vld [vmem:[%s3 + $0x90] sm:$0xff]
    %v1439 = vld [vmem:[%s3 + $0x98] sm:$0xff]
    %v1440 = vld [vmem:[%s3 + $0xa0] sm:$0xff]
    %v1441 = vld [vmem:[%s3 + $0xa8] sm:$0xff]
    %v1442 = vld [vmem:[%s3 + $0xb0] sm:$0xff]
    %v1443 = vld [vmem:[%s3 + $0xb8] sm:$0xff]
    %v1444 = vld [vmem:[%s3 + $0xc0] sm:$0xff]
    %v1445 = vld [vmem:[%s3 + $0xc8] sm:$0xff]
    %v1446 = vld [vmem:[%s3 + $0xd0] sm:$0xff]
    %v1447 = vld [vmem:[%s3 + $0xd8] sm:$0xff]
    %v1448 = vld [vmem:[%s3 + $0xe0] sm:$0xff]
    %v1449 = vld [vmem:[%s3 + $0xe8] sm:$0xff]
    %v1450 = vld [vmem:[%s3 + $0xf0] sm:$0xff]
    %v1451 = vld [vmem:[%s3 + $0xf8] sm:$0xff]
    %v1452 = vld [vmem:[%s3 + $0x100] sm:$0xff]
    %v1453 = vld [vmem:[%s3 + $0x108] sm:$0xff]
    %v1454 = vld [vmem:[%s3 + $0x110] sm:$0xff]
    %v1455 = vld [vmem:[%s3 + $0x118] sm:$0xff]
    %v1456 = vld [vmem:[%s3 + $0x120] sm:$0xff]
    %v1457 = vld [vmem:[%s3 + $0x128] sm:$0xff]
    %v1458 = vld [vmem:[%s3 + $0x130] sm:$0xff]
    %v1459 = vld [vmem:[%s3 + $0x138] sm:$0xff]
    %v1460 = vld [vmem:[%s3 + $0x140] sm:$0xff]
    %v1461 = vld [vmem:[%s3 + $0x148] sm:$0xff]
    %v1462 = vld [vmem:[%s3 + $0x150] sm:$0xff]
    %v1463 = vld [vmem:[%s3 + $0x158] sm:$0xff]
    %v1464 = vld [vmem:[%s3 + $0x160] sm:$0xff]
    %v1465 = vld [vmem:[%s3 + $0x168] sm:$0xff]
    %v1466 = vld [vmem:[%s3 + $0x170] sm:$0xff]
    %v1467 = vld [vmem:[%s3 + $0x178] sm:$0xff]
    %v1468 = vld [vmem:[%s3 + $0x180] sm:$0xff]
    %v1469 = vld [vmem:[%s3 + $0x188] sm:$0xff]
    %v1470 = vld [vmem:[%s3 + $0x190] sm:$0xff]
    %v1471 = vld [vmem:[%s3 + $0x198] sm:$0xff]
    %v1472 = vld [vmem:[%s3 + $0x1a0] sm:$0xff]
    %v1473 = vld [vmem:[%s3 + $0x1a8] sm:$0xff]
    %v1474 = vld [vmem:[%s3 + $0x1b0] sm:$0xff]
    %v1475 = vld [vmem:[%s3 + $0x1b8] sm:$0xff]
    %v1476 = vld [vmem:[%s3 + $0x1c0] sm:$0xff]
    %v1477 = vld [vmem:[%s3 + $0x1c8] sm:$0xff]
    %v1478 = vld [vmem:[%s3 + $0x1d0] sm:$0xff]
    %v1479 = vld [vmem:[%s3 + $0x1d8] sm:$0xff]
    %v1480 = vld [vmem:[%s3 + $0x1e0] sm:$0xff]
    %v1481 = vld [vmem:[%s3 + $0x1e8] sm:$0xff]
    %v1482 = vld [vmem:[%s3 + $0x1f0] sm:$0xff]
    %v1483 = vld [vmem:[%s3 + $0x1f8] sm:$0xff]
    %v1484 = vld [vmem:[%s4] sm:$0x1]
    %v1486 = vlaneseq
    %v1487 = vshrl.u32 %v1486, 7
    %v1488 = vsub.s32 0, %v1487
    %v1489 = vrot.slane %v1484, %v1488
    %1491 = vmatprep.subr.mxu0 0.0
    %1492 = vmatpush1.msra.mxu0 %v1420
    %1493 = vmatprep.subr.mxu0 0.0
    %1494 = vmatpush1.msra.mxu0 %v1421
    %1495 = vmatprep.subr.mxu0 0.0
    %1496 = vmatpush1.msra.mxu0 %v1422
    %1497 = vmatprep.subr.mxu0 0.0
    %1498 = vmatpush1.msra.mxu0 %v1423
    %1499 = vmatprep.subr.mxu0 0.0
    %1500 = vmatpush1.msra.mxu0 %v1424
    %1501 = vmatprep.subr.mxu0 0.0
    %1502 = vmatpush1.msra.mxu0 %v1425
    %1503 = vmatprep.subr.mxu0 0.0
    %1504 = vmatpush1.msra.mxu0 %v1426
    %1505 = vmatprep.subr.mxu0 0.0
    %1506 = vmatpush1.msra.mxu0 %v1427
    %1507 = vmatprep.subr.mxu0 0.0
    %1508 = vmatpush1.msra.mxu0 %v1428
    %1509 = vmatprep.subr.mxu0 0.0
    %1510 = vmatpush1.msra.mxu0 %v1429
    %1511 = vmatprep.subr.mxu0 0.0
    %1512 = vmatpush1.msra.mxu0 %v1430
    %1513 = vmatprep.subr.mxu0 0.0
    %1514 = vmatpush1.msra.mxu0 %v1431
    %1515 = vmatprep.subr.mxu0 0.0
    %1516 = vmatpush1.msra.mxu0 %v1432
    %1517 = vmatprep.subr.mxu0 0.0
    %1518 = vmatpush1.msra.mxu0 %v1433
    %1519 = vmatprep.subr.mxu0 0.0
    %1520 = vmatpush1.msra.mxu0 %v1434
    %1521 = vmatprep.subr.mxu0 0.0
    %1522 = vmatpush1.msra.mxu0 %v1435
    %1523 = vmatprep.subr.mxu0 0.0
    %1524 = vmatpush1.msra.mxu0 %v1436
    %1525 = vmatprep.subr.mxu0 0.0
    %1526 = vmatpush1.msra.mxu0 %v1437
    %1527 = vmatprep.subr.mxu0 0.0
    %1528 = vmatpush1.msra.mxu0 %v1438
    %1529 = vmatprep.subr.mxu0 0.0
    %1530 = vmatpush1.msra.mxu0 %v1439
    %1531 = vmatprep.subr.mxu0 0.0
    %1532 = vmatpush1.msra.mxu0 %v1440
    %1533 = vmatprep.subr.mxu0 0.0
    %1534 = vmatpush1.msra.mxu0 %v1441
    %1535 = vmatprep.subr.mxu0 0.0
    %1536 = vmatpush1.msra.mxu0 %v1442
    %1537 = vmatprep.subr.mxu0 0.0
    %1538 = vmatpush1.msra.mxu0 %v1443
    %1539 = vmatprep.subr.mxu0 0.0
    %1540 = vmatpush1.msra.mxu0 %v1444
    %1541 = vmatprep.subr.mxu0 0.0
    %1542 = vmatpush1.msra.mxu0 %v1445
    %1543 = vmatprep.subr.mxu0 0.0
    %1544 = vmatpush1.msra.mxu0 %v1446
    %1545 = vmatprep.subr.mxu0 0.0
    %1546 = vmatpush1.msra.mxu0 %v1447
    %1547 = vmatprep.subr.mxu0 0.0
    %1548 = vmatpush1.msra.mxu0 %v1448
    %1549 = vmatprep.subr.mxu0 0.0
    %1550 = vmatpush1.msra.mxu0 %v1449
    %1551 = vmatprep.subr.mxu0 0.0
    %1552 = vmatpush1.msra.mxu0 %v1450
    %1553 = vmatprep.subr.mxu0 0.0
    %1554 = vmatpush1.msra.mxu0 %v1451
    %1555 = vmatprep.mubr.f32.mxu0 %v1417
    %1556 = vmatmul.mubr.f32.gmra.mrb[0].mxu0 %v1416
    %v1557 = vpop.f32.mrb[0].mxu0
    %v1558 = vadd.f32 %v1489, %v1557
    %v1559 = vpop.f32.mrb[0].mxu0
    %1560 = vdwg.mxu0
    %1561 = vmatprep.subr.mxu0 0.0
    %1562 = vmatpush1.msra.mxu0 %v1452
    %1563 = vmatprep.subr.mxu0 0.0
    %1564 = vmatpush1.msra.mxu0 %v1453
    %1565 = vmatprep.subr.mxu0 0.0
    %1566 = vmatpush1.msra.mxu0 %v1454
    %1567 = vmatprep.subr.mxu0 0.0
    %1568 = vmatpush1.msra.mxu0 %v1455
    %1569 = vmatprep.subr.mxu0 0.0
    %1570 = vmatpush1.msra.mxu0 %v1456
    %1571 = vmatprep.subr.mxu0 0.0
    %1572 = vmatpush1.msra.mxu0 %v1457
    %1573 = vmatprep.subr.mxu0 0.0
    %1574 = vmatpush1.msra.mxu0 %v1458
    %1575 = vmatprep.subr.mxu0 0.0
    %1576 = vmatpush1.msra.mxu0 %v1459
    %1577 = vmatprep.subr.mxu0 0.0
    %1578 = vmatpush1.msra.mxu0 %v1460
    %1579 = vmatprep.subr.mxu0 0.0
    %1580 = vmatpush1.msra.mxu0 %v1461
    %1581 = vmatprep.subr.mxu0 0.0
    %1582 = vmatpush1.msra.mxu0 %v1462
    %1583 = vmatprep.subr.mxu0 0.0
    %1584 = vmatpush1.msra.mxu0 %v1463
    %1585 = vmatprep.subr.mxu0 0.0
    %1586 = vmatpush1.msra.mxu0 %v1464
    %1587 = vmatprep.subr.mxu0 0.0
    %1588 = vmatpush1.msra.mxu0 %v1465
    %1589 = vmatprep.subr.mxu0 0.0
    %1590 = vmatpush1.msra.mxu0 %v1466
    %1591 = vmatprep.subr.mxu0 0.0
    %1592 = vmatpush1.msra.mxu0 %v1467
    %1593 = vmatprep.subr.mxu0 0.0
    %1594 = vmatpush1.msra.mxu0 %v1468
    %1595 = vmatprep.subr.mxu0 0.0
    %1596 = vmatpush1.msra.mxu0 %v1469
    %1597 = vmatprep.subr.mxu0 0.0
    %1598 = vmatpush1.msra.mxu0 %v1470
    %1599 = vmatprep.subr.mxu0 0.0
    %1600 = vmatpush1.msra.mxu0 %v1471
    %1601 = vmatprep.subr.mxu0 0.0
    %1602 = vmatpush1.msra.mxu0 %v1472
    %1603 = vmatprep.subr.mxu0 0.0
    %1604 = vmatpush1.msra.mxu0 %v1473
    %1605 = vmatprep.subr.mxu0 0.0
    %1606 = vmatpush1.msra.mxu0 %v1474
    %1607 = vmatprep.subr.mxu0 0.0
    %1608 = vmatpush1.msra.mxu0 %v1475
    %1609 = vmatprep.subr.mxu0 0.0
    %1610 = vmatpush1.msra.mxu0 %v1476
    %1611 = vmatprep.subr.mxu0 0.0
    %1612 = vmatpush1.msra.mxu0 %v1477
    %1613 = vmatprep.subr.mxu0 0.0
    %1614 = vmatpush1.msra.mxu0 %v1478
    %1615 = vmatprep.subr.mxu0 0.0
    %1616 = vmatpush1.msra.mxu0 %v1479
    %1617 = vmatprep.subr.mxu0 0.0
    %1618 = vmatpush1.msra.mxu0 %v1480
    %1619 = vmatprep.subr.mxu0 0.0
    %1620 = vmatpush1.msra.mxu0 %v1481
    %1621 = vmatprep.subr.mxu0 0.0
    %1622 = vmatpush1.msra.mxu0 %v1482
    %1623 = vmatprep.subr.mxu0 0.0
    %1624 = vmatpush1.msra.mxu0 %v1483
    %1625 = vmatprep.mubr.f32.mxu0 %v1419
    %1626 = vmatmul.mubr.f32.gmra.mrb[0].mxu0 %v1418
    %v1627 = vpop.f32.mrb[0].mxu0
    %v1628 = vadd.f32 %v1558, %v1627
    %v1629 = vpop.f32.mrb[0].mxu0
    %1630 = vdwg.mxu0
    %vm1631 = vcmask 76800
    %1632 = vst.msk [vmem:[#allocation2] sm:$0xf] %vm1631, %v1628
    // Predicated region
    $region22: #{bwn_net_forward.5} parent=1 // pred_check
      _
    $region23: #{bwn_net_forward.5} parent=1 // pred_check_branch
      %1634 = sbr.rel (0) target = $region25
    $region24: #{bwn_net_forward.5} parent=1 // pred_region
      %s1636 = ssub.s32 64, 64
      %1637 = vsyncadd [#allocation3], %s1636
      %s1639 = sshll.u32 [#allocation2], 4
      %s1640 = int_to_ptr.vmem [resolvable:$true] %s1639
      %1642 = dma.vmem_to_hbm [thread:$0]  %s1640, 64, %s5, [#allocation3]
    $region25: #{bwn_net_forward.5} parent=1 // pred_fallthru
      _
    // Predicated region
    $region26: #{bwn_net_forward.5} parent=1 // pred_check
      _
    $region27: #{bwn_net_forward.5} parent=1 // pred_check_branch
      %1644 = sbr.rel (0) target = $region29
    $region28: #{bwn_net_forward.5} parent=1 // pred_region
      %1645 = dma.done [#allocation3], 64
    $region29: #{bwn_net_forward.5} parent=1 // pred_fallthru
      _
    %1646 = vsyncpa [#allocation3], 1

</llo_original>
